<compile_context>
chip_gen: v6e
topology: v6e:2x2x1
jax: 0.10.0
libtpu: 0.0.40
codegen_flags: <defaults>
</compile_context>

<pallas_src>
import functools

import jax
import jax.numpy as jnp
from jax.experimental import pallas as pl
from jax.experimental.pallas import tpu as pltpu

_VMEM_LIMIT = 32 * 1024 * 1024  # explicit scoped-VMEM limit (well above usage)


# ----------------------------- Pallas kernels ------------------------------ #

def _conv_relu_pool_kernel(x_ref, w_ref, b_ref, o_ref, *, KH, KW):
    """Fused conv(stride 1) + bias + ReLU + 2x2 max-pool for one pooled row.

    x_ref: (Hp, Wp, Cin)      padded input image (bf16), resident per image
    w_ref: (KH*KW, Cin, Cout) per-tap weights (bf16)
    b_ref: (1, Cout)          bias (f32)
    o_ref: (Wo, Cout)         one pooled output row (bf16)
    """
    Hp, Wp, Cin = x_ref.shape
    Wo, Cout = o_ref.shape
    W = Wp - KW + 1            # conv output width (= 2 * Wo)
    ho = pl.program_id(1)      # pooled output row index

    # Two conv output rows (2*ho, 2*ho+1) accumulated over the KHxKW taps.
    acc = jnp.zeros((2 * W, Cout), jnp.float32)
    for kh in range(KH):
        for kw in range(KW):
            win = x_ref[pl.ds(2 * ho + kh, 2), pl.ds(kw, W), :]   # (2, W, Cin)
            acc = acc + jnp.dot(win.reshape(2 * W, Cin),
                                w_ref[kh * KW + kw],
                                preferred_element_type=jnp.float32)

    acc = jnp.maximum(acc + b_ref[...], 0.0)                      # bias + ReLU

    # Vertical 2-max: row 2*ho vs row 2*ho+1.
    vmax = jnp.maximum(acc[:W, :], acc[W:, :])                    # (W, Cout)

    # Horizontal 2-max via 0/1 selection matmuls (lane-dense, MXU-friendly).
    r = jax.lax.broadcasted_iota(jnp.int32, (Wo, W), 0)
    c = jax.lax.broadcasted_iota(jnp.int32, (Wo, W), 1)
    sel_e = (c == 2 * r).astype(jnp.float32)
    sel_o = (c == 2 * r + 1).astype(jnp.float32)
    pooled = jnp.maximum(
        jnp.dot(sel_e, vmax, preferred_element_type=jnp.float32),
        jnp.dot(sel_o, vmax, preferred_element_type=jnp.float32))  # (Wo, Cout)

    o_ref[...] = pooled.astype(o_ref.dtype)


def _fc_kernel(x_ref, w1_ref, b1_ref, w2_ref, b2_ref, w3_ref, b3_ref, o_ref):
    """Fused fc1 -> ReLU -> fc2 -> ReLU -> fc3 (all weights resident in VMEM)."""
    h = jnp.dot(x_ref[...], w1_ref[...], preferred_element_type=jnp.float32)
    h = jnp.maximum(h + b1_ref[...], 0.0)
    h = jnp.dot(h.astype(jnp.bfloat16), w2_ref[...],
                preferred_element_type=jnp.float32)
    h = jnp.maximum(h + b2_ref[...], 0.0)
    y = jnp.dot(h.astype(jnp.bfloat16), w3_ref[...],
                preferred_element_type=jnp.float32)
    o_ref[...] = (y + b3_ref[...]).astype(o_ref.dtype)


# ------------------------------ Pallas wrappers ----------------------------- #

def conv_relu_pool(x_padded, w, b, *, KH, KW):
    """x_padded: (B, Hp, Wp, Cin) bf16 spatially padded activation.
    Returns pooled activation (B, H//2, W//2, Cout) bf16."""
    B, Hp, Wp, Cin = x_padded.shape
    H, W = Hp - KH + 1, Wp - KW + 1
    Ho, Wo = H // 2, W // 2
    Cout = w.shape[-1]
    kernel = functools.partial(_conv_relu_pool_kernel, KH=KH, KW=KW)
    return pl.pallas_call(
        kernel,
        out_shape=jax.ShapeDtypeStruct((B, Ho, Wo, Cout), jnp.bfloat16),
        grid=(B, Ho),
        in_specs=[
            # Whole padded image; block index ignores ho -> DMA'd once per image.
            pl.BlockSpec((None, Hp, Wp, Cin), lambda bb, ho: (bb, 0, 0, 0)),
            pl.BlockSpec((KH * KW, Cin, Cout), lambda bb, ho: (0, 0, 0)),
            pl.BlockSpec((1, Cout), lambda bb, ho: (0, 0)),
        ],
        out_specs=pl.BlockSpec((None, None, Wo, Cout),
                               lambda bb, ho: (bb, ho, 0, 0)),
        compiler_params=pltpu.CompilerParams(
            dimension_semantics=("parallel", "parallel"),
            vmem_limit_bytes=_VMEM_LIMIT),
    )(x_padded, w, b)


def fc_fused(x, w1, b1, w2, b2, w3, b3):
    B, K = x.shape
    n1, n2, n3 = w1.shape[1], w2.shape[1], w3.shape[1]
    return pl.pallas_call(
        _fc_kernel,
        out_shape=jax.ShapeDtypeStruct((B, n3), jnp.float32),
        grid=(1,),
        in_specs=[
            pl.BlockSpec((B, K), lambda i: (0, 0)),
            pl.BlockSpec((K, n1), lambda i: (0, 0)),
            pl.BlockSpec((1, n1), lambda i: (0, 0)),
            pl.BlockSpec((n1, n2), lambda i: (0, 0)),
            pl.BlockSpec((1, n2), lambda i: (0, 0)),
            pl.BlockSpec((n2, n3), lambda i: (0, 0)),
            pl.BlockSpec((1, n3), lambda i: (0, 0)),
        ],
        out_specs=pl.BlockSpec((B, n3), lambda i: (0, 0)),
        compiler_params=pltpu.CompilerParams(
            dimension_semantics=("arbitrary",),
            vmem_limit_bytes=_VMEM_LIMIT),
    )(x, w1, b1, w2, b2, w3, b3)


# ------------------------------- parameters -------------------------------- #

def _round_up(x, m):
    return (x + m - 1) // m * m


def init_params(key, in_channel, out_channel):
    fc1_in = 4 * 4 * 256 // 4      # 1024 (= 2*2*256 after four 2x2 pools)
    fc1_out = 2560 // 4            # 640
    fc2_out = 768 // 4             # 192

    def kaiming_conv(k, ksz, cin, cout):
        # kaiming_normal_, mode='fan_out', relu: std = sqrt(2 / (cout*k*k))
        std = (2.0 / (cout * ksz * ksz)) ** 0.5
        return std * jax.random.normal(k, (ksz, ksz, cin, cout), jnp.float32)

    def uni(k, shape, fan_in):
        bound = 1.0 / (fan_in ** 0.5)
        return jax.random.uniform(k, shape, jnp.float32, -bound, bound)

    def pad_tap_weight(w4d, cin_pad, cout_pad):
        ksz, _, cin, cout = w4d.shape
        w4d = jnp.pad(w4d, ((0, 0), (0, 0), (0, cin_pad - cin),
                            (0, cout_pad - cout)))
        return w4d.reshape(ksz * ksz, cin_pad, cout_pad).astype(jnp.bfloat16)

    def pad_bias(b, cpad):
        return jnp.pad(b, (0, cpad - b.shape[0])).reshape(1, cpad)

    ks = jax.random.split(key, 14)

    # conv1: 5x5, cin -> 32.  im2col layout: rows = (kh, kw, cin), K padded to 128,
    # output channels padded to 128 (lane-dense).
    k1 = 25 * in_channel
    k1p = _round_up(max(k1, 128), 128)
    w1 = kaiming_conv(ks[0], 5, in_channel, 32).reshape(k1, 32)
    w1 = jnp.pad(w1, ((0, k1p - k1), (0, 128 - 32)))
    w1 = w1.reshape(1, k1p, 128).astype(jnp.bfloat16)
    b1 = pad_bias(uni(ks[1], (32,), k1), 128)

    # conv2-4: 3x3; input channels padded to 128 (padded lanes carry exact zeros),
    # conv2 output channels padded to 128, conv3/conv4 already 128/256.
    w2 = pad_tap_weight(kaiming_conv(ks[2], 3, 32, 64), 128, 128)
    b2 = pad_bias(uni(ks[3], (64,), 32 * 9), 128)
    w3 = pad_tap_weight(kaiming_conv(ks[4], 3, 64, 128), 128, 128)
    b3 = pad_bias(uni(ks[5], (128,), 64 * 9), 128)
    w4 = pad_tap_weight(kaiming_conv(ks[6], 3, 128, 256), 128, 256)
    b4 = pad_bias(uni(ks[7], (256,), 128 * 9), 256)

    # FC weights stored as (in, out); wf1 rows are in NHWC-flatten order of the
    # (2,2,256) feature map (== PyTorch NCHW-layout weight with rows permuted
    # once at init), so no runtime transpose is needed before fc1.
    p = {
        "w1": w1, "b1": b1, "w2": w2, "b2": b2,
        "w3": w3, "b3": b3, "w4": w4, "b4": b4,
        "wf1": uni(ks[8], (fc1_in, fc1_out), fc1_in).astype(jnp.bfloat16),
        "bf1": uni(ks[9], (fc1_out,), fc1_in).reshape(1, fc1_out),
        "wf2": uni(ks[10], (fc1_out, fc2_out), fc1_out).astype(jnp.bfloat16),
        "bf2": uni(ks[11], (fc2_out,), fc1_out).reshape(1, fc2_out),
        "wf3": uni(ks[12], (fc2_out, out_channel), fc2_out).astype(jnp.bfloat16),
        "bf3": uni(ks[13], (out_channel,), fc2_out).reshape(1, out_channel),
    }
    return p


# -------------------------------- forward ---------------------------------- #

def _pad_hw(x, p):
    return jnp.pad(x, ((0, 0), (p, p), (p, p), (0, 0)))


def modified_lenet_forward(params, x_nchw):
    # NCHW (PyTorch) -> NHWC (kernel layout), bf16 for the MXU.
    x = jnp.transpose(x_nchw, (0, 2, 3, 1)).astype(jnp.bfloat16)
    B, H, W, cin = x.shape

    # conv1: Cin=3 is too narrow for lane-dense tap GEMMs, so pack the 5x5
    # patches once in JAX (feature order (kh,kw,cin), K zero-padded to 128) and
    # run the fused kernel as a 1x1 conv over the 128-wide patch image.
    xp = _pad_hw(x, 2)                                           # (B, H+4, W+4, cin)
    cols = [xp[:, i:i + H, j:j + W, :] for i in range(5) for j in range(5)]
    patches = jnp.concatenate(cols, axis=-1)                     # (B, H, W, 25*cin)
    k1p = params["w1"].shape[1]
    patches = jnp.pad(patches, ((0, 0), (0, 0), (0, 0),
                                (0, k1p - patches.shape[-1])))
    out = conv_relu_pool(patches, params["w1"], params["b1"], KH=1, KW=1)   # (B,16,16,128)

    out = conv_relu_pool(_pad_hw(out, 1), params["w2"], params["b2"], KH=3, KW=3)  # (B,8,8,128)
    out = conv_relu_pool(_pad_hw(out, 1), params["w3"], params["b3"], KH=3, KW=3)  # (B,4,4,128)
    out = conv_relu_pool(_pad_hw(out, 1), params["w4"], params["b4"], KH=3, KW=3)  # (B,2,2,256)

    # NHWC flatten; wf1's row order matches this layout (no transpose needed).
    flat = out.reshape(B, -1)                                    # (B, 1024) bf16

    return fc_fused(flat, params["wf1"], params["bf1"],
                    params["wf2"], params["bf2"],
                    params["wf3"], params["bf3"])                # (B, out_channel)


if __name__ == "__main__":
    key = jax.random.PRNGKey(0)
    k_param, k_x = jax.random.split(key)

    in_channel, out_channel = 3, 10
    batch = 2
    params = init_params(k_param, in_channel, out_channel)
    # 32x32 spatial is required by fc1 (1024 == 256*2*2 after four 2x2 pools).
    x = jax.random.normal(k_x, (batch, in_channel, 32, 32), jnp.float32)

    fwd = jax.jit(modified_lenet_forward)
    y = fwd(params, x)
    jax.block_until_ready(y)
    assert y.shape == (batch, out_channel)
    assert bool(jnp.all(jnp.isfinite(y)))
    print("KERNEL_OK")
</pallas_src>

<mosaic_0001>
module attributes {stable_mosaic.version = 11 : i64} {
  func.func @_conv_relu_pool_kernel(%arg0: i32, %arg1: i32, %arg2: memref<1x32x32x128xbf16, #tpu.memory_space<vmem>>, %arg3: memref<1x128x128xbf16, #tpu.memory_space<vmem>>, %arg4: memref<1x128xf32, #tpu.memory_space<vmem>>, %arg5: memref<1x1x16x128xbf16, #tpu.memory_space<vmem>>) attributes {dimension_semantics = [#tpu.dimension_semantics<parallel>, #tpu.dimension_semantics<parallel>], iteration_bounds = array<i64: 2, 16>, scalar_prefetch = 0 : i64, scratch_operands = 0 : i64, tpu.core_type = #tpu.core_type<tc>, window_params = [{transform_indices = @transform_0, window_bounds = array<i64: 1, 32, 32, 128>}, {pipeline_mode = #tpu.pipeline_mode<synchronous>, transform_indices = @transform_1, window_bounds = array<i64: 1, 128, 128>}, {pipeline_mode = #tpu.pipeline_mode<synchronous>, transform_indices = @transform_2, window_bounds = array<i64: 1, 128>}, {transform_indices = @transform_3, window_bounds = array<i64: 1, 1, 16, 128>}]} {
    %cst = arith.constant 0.000000e+00 : f32
    %0 = vector.broadcast %cst : f32 to vector<64x128xf32>
    %c2_i32 = arith.constant 2 : i32
    %1 = arith.muli %c2_i32, %arg1 : i32
    %c0_i32 = arith.constant 0 : i32
    %2 = arith.addi %1, %c0_i32 : i32
    %c0 = arith.constant 0 : index
    %3 = arith.index_cast %2 : i32 to index
    %c0_0 = arith.constant 0 : index
    %c0_1 = arith.constant 0 : index
    %4 = vector.load %arg2[%c0, %3, %c0_0, %c0_1] : memref<1x32x32x128xbf16, #tpu.memory_space<vmem>>, vector<1x2x32x128xbf16>
    %5 = vector.shape_cast %4 : vector<1x2x32x128xbf16> to vector<2x32x128xbf16>
    %6 = vector.shape_cast %5 : vector<2x32x128xbf16> to vector<64x128xbf16>
    %c0_2 = arith.constant 0 : index
    %c0_3 = arith.constant 0 : index
    %c0_4 = arith.constant 0 : index
    %7 = vector.load %arg3[%c0_2, %c0_3, %c0_4] : memref<1x128x128xbf16, #tpu.memory_space<vmem>>, vector<1x128x128xbf16>
    %8 = vector.shape_cast %7 : vector<1x128x128xbf16> to vector<128x128xbf16>
    %cst_5 = arith.constant dense<0.000000e+00> : vector<64x128xf32>
    %9 = tpu.matmul %6, %8, %cst_5 {dimension_numbers = #tpu.dot_dimension_numbers<[1], [0], [0], [1], [0, 0, 1, 1], [], []>} : vector<64x128xbf16>, vector<128x128xbf16>, vector<64x128xf32> -> vector<64x128xf32>
    %10 = arith.addf %0, %9 : vector<64x128xf32>
    %c0_6 = arith.constant 0 : index
    %c0_7 = arith.constant 0 : index
    %11 = vector.load %arg4[%c0_6, %c0_7] : memref<1x128xf32, #tpu.memory_space<vmem>>, vector<1x128xf32>
    %12 = vector.broadcast %11 : vector<1x128xf32> to vector<64x128xf32>
    %13 = arith.addf %10, %12 : vector<64x128xf32>
    %cst_8 = arith.constant 0.000000e+00 : f32
    %14 = vector.broadcast %cst_8 : f32 to vector<64x128xf32>
    %15 = arith.maximumf %13, %14 : vector<64x128xf32>
    %16 = vector.extract_strided_slice %15 {offsets = [0, 0], sizes = [32, 128], strides = [1, 1]} : vector<64x128xf32> to vector<32x128xf32>
    %17 = vector.extract_strided_slice %15 {offsets = [32, 0], sizes = [32, 128], strides = [1, 1]} : vector<64x128xf32> to vector<32x128xf32>
    %18 = arith.maximumf %16, %17 : vector<32x128xf32>
    %19 = tpu.iota {dimensions = array<i32: 0>} : vector<16x32xi32>
    %20 = tpu.iota {dimensions = array<i32: 1>} : vector<16x32xi32>
    %c2_i32_9 = arith.constant 2 : i32
    %21 = vector.broadcast %c2_i32_9 : i32 to vector<16x32xi32>
    %22 = arith.muli %21, %19 : vector<16x32xi32>
    %23 = arith.cmpi eq, %20, %22 : vector<16x32xi32>
    %24 = arith.extui %23 : vector<16x32xi1> to vector<16x32xi32>
    %25 = arith.sitofp %24 : vector<16x32xi32> to vector<16x32xf32>
    %c2_i32_10 = arith.constant 2 : i32
    %26 = vector.broadcast %c2_i32_10 : i32 to vector<16x32xi32>
    %27 = arith.muli %26, %19 : vector<16x32xi32>
    %c1_i32 = arith.constant 1 : i32
    %28 = vector.broadcast %c1_i32 : i32 to vector<16x32xi32>
    %29 = arith.addi %27, %28 : vector<16x32xi32>
    %30 = arith.cmpi eq, %20, %29 : vector<16x32xi32>
    %31 = arith.extui %30 : vector<16x32xi1> to vector<16x32xi32>
    %32 = arith.sitofp %31 : vector<16x32xi32> to vector<16x32xf32>
    %cst_11 = arith.constant dense<0.000000e+00> : vector<16x128xf32>
    %33 = tpu.matmul %25, %18, %cst_11 {dimension_numbers = #tpu.dot_dimension_numbers<[1], [0], [0], [1], [0, 0, 1, 1], [], []>} : vector<16x32xf32>, vector<32x128xf32>, vector<16x128xf32> -> vector<16x128xf32>
    %cst_12 = arith.constant dense<0.000000e+00> : vector<16x128xf32>
    %34 = tpu.matmul %32, %18, %cst_12 {dimension_numbers = #tpu.dot_dimension_numbers<[1], [0], [0], [1], [0, 0, 1, 1], [], []>} : vector<16x32xf32>, vector<32x128xf32>, vector<16x128xf32> -> vector<16x128xf32>
    %35 = arith.maximumf %33, %34 : vector<16x128xf32>
    %36 = arith.truncf %35 : vector<16x128xf32> to vector<16x128xbf16>
    %c0_13 = arith.constant 0 : index
    %c0_14 = arith.constant 0 : index
    %c0_15 = arith.constant 0 : index
    %c0_16 = arith.constant 0 : index
    %37 = vector.load %arg5[%c0_13, %c0_14, %c0_15, %c0_16] : memref<1x1x16x128xbf16, #tpu.memory_space<vmem>>, vector<1x1x16x128xbf16>
    %38 = vector.shape_cast %37 : vector<1x1x16x128xbf16> to vector<16x128xbf16>
    %39 = vector.shape_cast %36 : vector<16x128xbf16> to vector<1x1x16x128xbf16>
    tpu.vector_store %arg5[%c0_13, %c0_14, %c0_15, %c0_16], %39 {strides = array<i32>} : memref<1x1x16x128xbf16, #tpu.memory_space<vmem>>, vector<1x1x16x128xbf16>,
    return
  }
  func.func @transform_0(%arg0: i32, %arg1: i32) -> (i32, i32, i32, i32) {
    %c0_i32 = arith.constant 0 : i32
    %c0_i32_0 = arith.constant 0 : i32
    %c0_i32_1 = arith.constant 0 : i32
    %c0_i32_2 = arith.constant 0 : i32
    return %arg0, %c0_i32, %c0_i32_0, %c0_i32_1 : i32, i32, i32, i32
  }
  func.func @transform_1(%arg0: i32, %arg1: i32) -> (i32, i32, i32) {
    %c0_i32 = arith.constant 0 : i32
    %c0_i32_0 = arith.constant 0 : i32
    %c0_i32_1 = arith.constant 0 : i32
    %c0_i32_2 = arith.constant 0 : i32
    return %c0_i32, %c0_i32_0, %c0_i32_1 : i32, i32, i32
  }
  func.func @transform_2(%arg0: i32, %arg1: i32) -> (i32, i32) {
    %c0_i32 = arith.constant 0 : i32
    %c0_i32_0 = arith.constant 0 : i32
    %c0_i32_1 = arith.constant 0 : i32
    return %c0_i32, %c0_i32_0 : i32, i32
  }
  func.func @transform_3(%arg0: i32, %arg1: i32) -> (i32, i32, i32, i32) {
    %c0_i32 = arith.constant 0 : i32
    %c0_i32_0 = arith.constant 0 : i32
    %c0_i32_1 = arith.constant 0 : i32
    return %arg0, %arg1, %c0_i32, %c0_i32_0 : i32, i32, i32, i32
  }
}

module attributes {stable_mosaic.version = 11 : i64} {
  func.func @_conv_relu_pool_kernel(%arg0: i32, %arg1: i32, %arg2: memref<1x18x18x128xbf16, #tpu.memory_space<vmem>>, %arg3: memref<9x128x128xbf16, #tpu.memory_space<vmem>>, %arg4: memref<1x128xf32, #tpu.memory_space<vmem>>, %arg5: memref<1x1x8x128xbf16, #tpu.memory_space<vmem>>) attributes {dimension_semantics = [#tpu.dimension_semantics<parallel>, #tpu.dimension_semantics<parallel>], iteration_bounds = array<i64: 2, 8>, scalar_prefetch = 0 : i64, scratch_operands = 0 : i64, tpu.core_type = #tpu.core_type<tc>, window_params = [{transform_indices = @transform_0, window_bounds = array<i64: 1, 18, 18, 128>}, {pipeline_mode = #tpu.pipeline_mode<synchronous>, transform_indices = @transform_1, window_bounds = array<i64: 9, 128, 128>}, {pipeline_mode = #tpu.pipeline_mode<synchronous>, transform_indices = @transform_2, window_bounds = array<i64: 1, 128>}, {transform_indices = @transform_3, window_bounds = array<i64: 1, 1, 8, 128>}]} {
    %cst = arith.constant 0.000000e+00 : f32
    %0 = vector.broadcast %cst : f32 to vector<32x128xf32>
    %c2_i32 = arith.constant 2 : i32
    %1 = arith.muli %c2_i32, %arg1 : i32
    %c0_i32 = arith.constant 0 : i32
    %2 = arith.addi %1, %c0_i32 : i32
    %c0 = arith.constant 0 : index
    %3 = arith.index_cast %2 : i32 to index
    %c0_0 = arith.constant 0 : index
    %c0_1 = arith.constant 0 : index
    %4 = vector.load %arg2[%c0, %3, %c0_0, %c0_1] : memref<1x18x18x128xbf16, #tpu.memory_space<vmem>>, vector<1x2x16x128xbf16>
    %5 = vector.shape_cast %4 : vector<1x2x16x128xbf16> to vector<2x16x128xbf16>
    %6 = vector.shape_cast %5 : vector<2x16x128xbf16> to vector<32x128xbf16>
    %c0_2 = arith.constant 0 : index
    %c0_3 = arith.constant 0 : index
    %c0_4 = arith.constant 0 : index
    %7 = vector.load %arg3[%c0_2, %c0_3, %c0_4] : memref<9x128x128xbf16, #tpu.memory_space<vmem>>, vector<1x128x128xbf16>
    %8 = vector.shape_cast %7 : vector<1x128x128xbf16> to vector<128x128xbf16>
    %cst_5 = arith.constant dense<0.000000e+00> : vector<32x128xf32>
    %9 = tpu.matmul %6, %8, %cst_5 {dimension_numbers = #tpu.dot_dimension_numbers<[1], [0], [0], [1], [0, 0, 1, 1], [], []>} : vector<32x128xbf16>, vector<128x128xbf16>, vector<32x128xf32> -> vector<32x128xf32>
    %10 = arith.addf %0, %9 : vector<32x128xf32>
    %c2_i32_6 = arith.constant 2 : i32
    %11 = arith.muli %c2_i32_6, %arg1 : i32
    %c0_i32_7 = arith.constant 0 : i32
    %12 = arith.addi %11, %c0_i32_7 : i32
    %c0_8 = arith.constant 0 : index
    %13 = arith.index_cast %12 : i32 to index
    %c1 = arith.constant 1 : index
    %c0_9 = arith.constant 0 : index
    %14 = vector.load %arg2[%c0_8, %13, %c1, %c0_9] : memref<1x18x18x128xbf16, #tpu.memory_space<vmem>>, vector<1x2x16x128xbf16>
    %15 = vector.shape_cast %14 : vector<1x2x16x128xbf16> to vector<2x16x128xbf16>
    %16 = vector.shape_cast %15 : vector<2x16x128xbf16> to vector<32x128xbf16>
    %c1_10 = arith.constant 1 : index
    %c0_11 = arith.constant 0 : index
    %c0_12 = arith.constant 0 : index
    %17 = vector.load %arg3[%c1_10, %c0_11, %c0_12] : memref<9x128x128xbf16, #tpu.memory_space<vmem>>, vector<1x128x128xbf16>
    %18 = vector.shape_cast %17 : vector<1x128x128xbf16> to vector<128x128xbf16>
    %cst_13 = arith.constant dense<0.000000e+00> : vector<32x128xf32>
    %19 = tpu.matmul %16, %18, %cst_13 {dimension_numbers = #tpu.dot_dimension_numbers<[1], [0], [0], [1], [0, 0, 1, 1], [], []>} : vector<32x128xbf16>, vector<128x128xbf16>, vector<32x128xf32> -> vector<32x128xf32>
    %20 = arith.addf %10, %19 : vector<32x128xf32>
    %c2_i32_14 = arith.constant 2 : i32
    %21 = arith.muli %c2_i32_14, %arg1 : i32
    %c0_i32_15 = arith.constant 0 : i32
    %22 = arith.addi %21, %c0_i32_15 : i32
    %c0_16 = arith.constant 0 : index
    %23 = arith.index_cast %22 : i32 to index
    %c2 = arith.constant 2 : index
    %c0_17 = arith.constant 0 : index
    %24 = vector.load %arg2[%c0_16, %23, %c2, %c0_17] : memref<1x18x18x128xbf16, #tpu.memory_space<vmem>>, vector<1x2x16x128xbf16>
    %25 = vector.shape_cast %24 : vector<1x2x16x128xbf16> to vector<2x16x128xbf16>
    %26 = vector.shape_cast %25 : vector<2x16x128xbf16> to vector<32x128xbf16>
    %c2_18 = arith.constant 2 : index
    %c0_19 = arith.constant 0 : index
    %c0_20 = arith.constant 0 : index
    %27 = vector.load %arg3[%c2_18, %c0_19, %c0_20] : memref<9x128x128xbf16, #tpu.memory_space<vmem>>, vector<1x128x128xbf16>
    %28 = vector.shape_cast %27 : vector<1x128x128xbf16> to vector<128x128xbf16>
    %cst_21 = arith.constant dense<0.000000e+00> : vector<32x128xf32>
    %29 = tpu.matmul %26, %28, %cst_21 {dimension_numbers = #tpu.dot_dimension_numbers<[1], [0], [0], [1], [0, 0, 1, 1], [], []>} : vector<32x128xbf16>, vector<128x128xbf16>, vector<32x128xf32> -> vector<32x128xf32>
    %30 = arith.addf %20, %29 : vector<32x128xf32>
    %c2_i32_22 = arith.constant 2 : i32
    %31 = arith.muli %c2_i32_22, %arg1 : i32
    %c1_i32 = arith.constant 1 : i32
    %32 = arith.addi %31, %c1_i32 : i32
    %c0_23 = arith.constant 0 : index
    %33 = arith.index_cast %32 : i32 to index
    %c0_24 = arith.constant 0 : index
    %c0_25 = arith.constant 0 : index
    %34 = vector.load %arg2[%c0_23, %33, %c0_24, %c0_25] : memref<1x18x18x128xbf16, #tpu.memory_space<vmem>>, vector<1x2x16x128xbf16>
    %35 = vector.shape_cast %34 : vector<1x2x16x128xbf16> to vector<2x16x128xbf16>
    %36 = vector.shape_cast %35 : vector<2x16x128xbf16> to vector<32x128xbf16>
    %c3 = arith.constant 3 : index
    %c0_26 = arith.constant 0 : index
    %c0_27 = arith.constant 0 : index
    %37 = vector.load %arg3[%c3, %c0_26, %c0_27] : memref<9x128x128xbf16, #tpu.memory_space<vmem>>, vector<1x128x128xbf16>
    %38 = vector.shape_cast %37 : vector<1x128x128xbf16> to vector<128x128xbf16>
    %cst_28 = arith.constant dense<0.000000e+00> : vector<32x128xf32>
    %39 = tpu.matmul %36, %38, %cst_28 {dimension_numbers = #tpu.dot_dimension_numbers<[1], [0], [0], [1], [0, 0, 1, 1], [], []>} : vector<32x128xbf16>, vector<128x128xbf16>, vector<32x128xf32> -> vector<32x128xf32>
    %40 = arith.addf %30, %39 : vector<32x128xf32>
    %c2_i32_29 = arith.constant 2 : i32
    %41 = arith.muli %c2_i32_29, %arg1 : i32
    %c1_i32_30 = arith.constant 1 : i32
    %42 = arith.addi %41, %c1_i32_30 : i32
    %c0_31 = arith.constant 0 : index
    %43 = arith.index_cast %42 : i32 to index
    %c1_32 = arith.constant 1 : index
    %c0_33 = arith.constant 0 : index
    %44 = vector.load %arg2[%c0_31, %43, %c1_32, %c0_33] : memref<1x18x18x128xbf16, #tpu.memory_space<vmem>>, vector<1x2x16x128xbf16>
    %45 = vector.shape_cast %44 : vector<1x2x16x128xbf16> to vector<2x16x128xbf16>
    %46 = vector.shape_cast %45 : vector<2x16x128xbf16> to vector<32x128xbf16>
    %c4 = arith.constant 4 : index
    %c0_34 = arith.constant 0 : index
    %c0_35 = arith.constant 0 : index
    %47 = vector.load %arg3[%c4, %c0_34, %c0_35] : memref<9x128x128xbf16, #tpu.memory_space<vmem>>, vector<1x128x128xbf16>
    %48 = vector.shape_cast %47 : vector<1x128x128xbf16> to vector<128x128xbf16>
    %cst_36 = arith.constant dense<0.000000e+00> : vector<32x128xf32>
    %49 = tpu.matmul %46, %48, %cst_36 {dimension_numbers = #tpu.dot_dimension_numbers<[1], [0], [0], [1], [0, 0, 1, 1], [], []>} : vector<32x128xbf16>, vector<128x128xbf16>, vector<32x128xf32> -> vector<32x128xf32>
    %50 = arith.addf %40, %49 : vector<32x128xf32>
    %c2_i32_37 = arith.constant 2 : i32
    %51 = arith.muli %c2_i32_37, %arg1 : i32
    %c1_i32_38 = arith.constant 1 : i32
    %52 = arith.addi %51, %c1_i32_38 : i32
    %c0_39 = arith.constant 0 : index
    %53 = arith.index_cast %52 : i32 to index
    %c2_40 = arith.constant 2 : index
    %c0_41 = arith.constant 0 : index
    %54 = vector.load %arg2[%c0_39, %53, %c2_40, %c0_41] : memref<1x18x18x128xbf16, #tpu.memory_space<vmem>>, vector<1x2x16x128xbf16>
    %55 = vector.shape_cast %54 : vector<1x2x16x128xbf16> to vector<2x16x128xbf16>
    %56 = vector.shape_cast %55 : vector<2x16x128xbf16> to vector<32x128xbf16>
    %c5 = arith.constant 5 : index
    %c0_42 = arith.constant 0 : index
    %c0_43 = arith.constant 0 : index
    %57 = vector.load %arg3[%c5, %c0_42, %c0_43] : memref<9x128x128xbf16, #tpu.memory_space<vmem>>, vector<1x128x128xbf16>
    %58 = vector.shape_cast %57 : vector<1x128x128xbf16> to vector<128x128xbf16>
    %cst_44 = arith.constant dense<0.000000e+00> : vector<32x128xf32>
    %59 = tpu.matmul %56, %58, %cst_44 {dimension_numbers = #tpu.dot_dimension_numbers<[1], [0], [0], [1], [0, 0, 1, 1], [], []>} : vector<32x128xbf16>, vector<128x128xbf16>, vector<32x128xf32> -> vector<32x128xf32>
    %60 = arith.addf %50, %59 : vector<32x128xf32>
    %c2_i32_45 = arith.constant 2 : i32
    %61 = arith.muli %c2_i32_45, %arg1 : i32
    %c2_i32_46 = arith.constant 2 : i32
    %62 = arith.addi %61, %c2_i32_46 : i32
    %c0_47 = arith.constant 0 : index
    %63 = arith.index_cast %62 : i32 to index
    %c0_48 = arith.constant 0 : index
    %c0_49 = arith.constant 0 : index
    %64 = vector.load %arg2[%c0_47, %63, %c0_48, %c0_49] : memref<1x18x18x128xbf16, #tpu.memory_space<vmem>>, vector<1x2x16x128xbf16>
    %65 = vector.shape_cast %64 : vector<1x2x16x128xbf16> to vector<2x16x128xbf16>
    %66 = vector.shape_cast %65 : vector<2x16x128xbf16> to vector<32x128xbf16>
    %c6 = arith.constant 6 : index
    %c0_50 = arith.constant 0 : index
    %c0_51 = arith.constant 0 : index
    %67 = vector.load %arg3[%c6, %c0_50, %c0_51] : memref<9x128x128xbf16, #tpu.memory_space<vmem>>, vector<1x128x128xbf16>
    %68 = vector.shape_cast %67 : vector<1x128x128xbf16> to vector<128x128xbf16>
    %cst_52 = arith.constant dense<0.000000e+00> : vector<32x128xf32>
    %69 = tpu.matmul %66, %68, %cst_52 {dimension_numbers = #tpu.dot_dimension_numbers<[1], [0], [0], [1], [0, 0, 1, 1], [], []>} : vector<32x128xbf16>, vector<128x128xbf16>, vector<32x128xf32> -> vector<32x128xf32>
    %70 = arith.addf %60, %69 : vector<32x128xf32>
    %c2_i32_53 = arith.constant 2 : i32
    %71 = arith.muli %c2_i32_53, %arg1 : i32
    %c2_i32_54 = arith.constant 2 : i32
    %72 = arith.addi %71, %c2_i32_54 : i32
    %c0_55 = arith.constant 0 : index
    %73 = arith.index_cast %72 : i32 to index
    %c1_56 = arith.constant 1 : index
    %c0_57 = arith.constant 0 : index
    %74 = vector.load %arg2[%c0_55, %73, %c1_56, %c0_57] : memref<1x18x18x128xbf16, #tpu.memory_space<vmem>>, vector<1x2x16x128xbf16>
    %75 = vector.shape_cast %74 : vector<1x2x16x128xbf16> to vector<2x16x128xbf16>
    %76 = vector.shape_cast %75 : vector<2x16x128xbf16> to vector<32x128xbf16>
    %c7 = arith.constant 7 : index
    %c0_58 = arith.constant 0 : index
    %c0_59 = arith.constant 0 : index
    %77 = vector.load %arg3[%c7, %c0_58, %c0_59] : memref<9x128x128xbf16, #tpu.memory_space<vmem>>, vector<1x128x128xbf16>
    %78 = vector.shape_cast %77 : vector<1x128x128xbf16> to vector<128x128xbf16>
    %cst_60 = arith.constant dense<0.000000e+00> : vector<32x128xf32>
    %79 = tpu.matmul %76, %78, %cst_60 {dimension_numbers = #tpu.dot_dimension_numbers<[1], [0], [0], [1], [0, 0, 1, 1], [], []>} : vector<32x128xbf16>, vector<128x128xbf16>, vector<32x128xf32> -> vector<32x128xf32>
    %80 = arith.addf %70, %79 : vector<32x128xf32>
    %c2_i32_61 = arith.constant 2 : i32
    %81 = arith.muli %c2_i32_61, %arg1 : i32
    %c2_i32_62 = arith.constant 2 : i32
    %82 = arith.addi %81, %c2_i32_62 : i32
    %c0_63 = arith.constant 0 : index
    %83 = arith.index_cast %82 : i32 to index
    %c2_64 = arith.constant 2 : index
    %c0_65 = arith.constant 0 : index
    %84 = vector.load %arg2[%c0_63, %83, %c2_64, %c0_65] : memref<1x18x18x128xbf16, #tpu.memory_space<vmem>>, vector<1x2x16x128xbf16>
    %85 = vector.shape_cast %84 : vector<1x2x16x128xbf16> to vector<2x16x128xbf16>
    %86 = vector.shape_cast %85 : vector<2x16x128xbf16> to vector<32x128xbf16>
    %c8 = arith.constant 8 : index
    %c0_66 = arith.constant 0 : index
    %c0_67 = arith.constant 0 : index
    %87 = vector.load %arg3[%c8, %c0_66, %c0_67] : memref<9x128x128xbf16, #tpu.memory_space<vmem>>, vector<1x128x128xbf16>
    %88 = vector.shape_cast %87 : vector<1x128x128xbf16> to vector<128x128xbf16>
    %cst_68 = arith.constant dense<0.000000e+00> : vector<32x128xf32>
    %89 = tpu.matmul %86, %88, %cst_68 {dimension_numbers = #tpu.dot_dimension_numbers<[1], [0], [0], [1], [0, 0, 1, 1], [], []>} : vector<32x128xbf16>, vector<128x128xbf16>, vector<32x128xf32> -> vector<32x128xf32>
    %90 = arith.addf %80, %89 : vector<32x128xf32>
    %c0_69 = arith.constant 0 : index
    %c0_70 = arith.constant 0 : index
    %91 = vector.load %arg4[%c0_69, %c0_70] : memref<1x128xf32, #tpu.memory_space<vmem>>, vector<1x128xf32>
    %92 = vector.broadcast %91 : vector<1x128xf32> to vector<32x128xf32>
    %93 = arith.addf %90, %92 : vector<32x128xf32>
    %cst_71 = arith.constant 0.000000e+00 : f32
    %94 = vector.broadcast %cst_71 : f32 to vector<32x128xf32>
    %95 = arith.maximumf %93, %94 : vector<32x128xf32>
    %96 = vector.extract_strided_slice %95 {offsets = [0, 0], sizes = [16, 128], strides = [1, 1]} : vector<32x128xf32> to vector<16x128xf32>
    %97 = vector.extract_strided_slice %95 {offsets = [16, 0], sizes = [16, 128], strides = [1, 1]} : vector<32x128xf32> to vector<16x128xf32>
    %98 = arith.maximumf %96, %97 : vector<16x128xf32>
    %99 = tpu.iota {dimensions = array<i32: 0>} : vector<8x16xi32>
    %100 = tpu.iota {dimensions = array<i32: 1>} : vector<8x16xi32>
    %c2_i32_72 = arith.constant 2 : i32
    %101 = vector.broadcast %c2_i32_72 : i32 to vector<8x16xi32>
    %102 = arith.muli %101, %99 : vector<8x16xi32>
    %103 = arith.cmpi eq, %100, %102 : vector<8x16xi32>
    %104 = arith.extui %103 : vector<8x16xi1> to vector<8x16xi32>
    %105 = arith.sitofp %104 : vector<8x16xi32> to vector<8x16xf32>
    %c2_i32_73 = arith.constant 2 : i32
    %106 = vector.broadcast %c2_i32_73 : i32 to vector<8x16xi32>
    %107 = arith.muli %106, %99 : vector<8x16xi32>
    %c1_i32_74 = arith.constant 1 : i32
    %108 = vector.broadcast %c1_i32_74 : i32 to vector<8x16xi32>
    %109 = arith.addi %107, %108 : vector<8x16xi32>
    %110 = arith.cmpi eq, %100, %109 : vector<8x16xi32>
    %111 = arith.extui %110 : vector<8x16xi1> to vector<8x16xi32>
    %112 = arith.sitofp %111 : vector<8x16xi32> to vector<8x16xf32>
    %cst_75 = arith.constant dense<0.000000e+00> : vector<8x128xf32>
    %113 = tpu.matmul %105, %98, %cst_75 {dimension_numbers = #tpu.dot_dimension_numbers<[1], [0], [0], [1], [0, 0, 1, 1], [], []>} : vector<8x16xf32>, vector<16x128xf32>, vector<8x128xf32> -> vector<8x128xf32>
    %cst_76 = arith.constant dense<0.000000e+00> : vector<8x128xf32>
    %114 = tpu.matmul %112, %98, %cst_76 {dimension_numbers = #tpu.dot_dimension_numbers<[1], [0], [0], [1], [0, 0, 1, 1], [], []>} : vector<8x16xf32>, vector<16x128xf32>, vector<8x128xf32> -> vector<8x128xf32>
    %115 = arith.maximumf %113, %114 : vector<8x128xf32>
    %116 = arith.truncf %115 : vector<8x128xf32> to vector<8x128xbf16>
    %c0_77 = arith.constant 0 : index
    %c0_78 = arith.constant 0 : index
    %c0_79 = arith.constant 0 : index
    %c0_80 = arith.constant 0 : index
    %117 = vector.load %arg5[%c0_77, %c0_78, %c0_79, %c0_80] : memref<1x1x8x128xbf16, #tpu.memory_space<vmem>>, vector<1x1x8x128xbf16>
    %118 = vector.shape_cast %117 : vector<1x1x8x128xbf16> to vector<8x128xbf16>
    %119 = vector.shape_cast %116 : vector<8x128xbf16> to vector<1x1x8x128xbf16>
    tpu.vector_store %arg5[%c0_77, %c0_78, %c0_79, %c0_80], %119 {strides = array<i32>} : memref<1x1x8x128xbf16, #tpu.memory_space<vmem>>, vector<1x1x8x128xbf16>,
    return
  }
  func.func @transform_0(%arg0: i32, %arg1: i32) -> (i32, i32, i32, i32) {
    %c0_i32 = arith.constant 0 : i32
    %c0_i32_0 = arith.constant 0 : i32
    %c0_i32_1 = arith.constant 0 : i32
    %c0_i32_2 = arith.constant 0 : i32
    return %arg0, %c0_i32, %c0_i32_0, %c0_i32_1 : i32, i32, i32, i32
  }
  func.func @transform_1(%arg0: i32, %arg1: i32) -> (i32, i32, i32) {
    %c0_i32 = arith.constant 0 : i32
    %c0_i32_0 = arith.constant 0 : i32
    %c0_i32_1 = arith.constant 0 : i32
    %c0_i32_2 = arith.constant 0 : i32
    return %c0_i32, %c0_i32_0, %c0_i32_1 : i32, i32, i32
  }
  func.func @transform_2(%arg0: i32, %arg1: i32) -> (i32, i32) {
    %c0_i32 = arith.constant 0 : i32
    %c0_i32_0 = arith.constant 0 : i32
    %c0_i32_1 = arith.constant 0 : i32
    return %c0_i32, %c0_i32_0 : i32, i32
  }
  func.func @transform_3(%arg0: i32, %arg1: i32) -> (i32, i32, i32, i32) {
    %c0_i32 = arith.constant 0 : i32
    %c0_i32_0 = arith.constant 0 : i32
    %c0_i32_1 = arith.constant 0 : i32
    return %arg0, %arg1, %c0_i32, %c0_i32_0 : i32, i32, i32, i32
  }
}

module attributes {stable_mosaic.version = 11 : i64} {
  func.func @_conv_relu_pool_kernel(%arg0: i32, %arg1: i32, %arg2: memref<1x10x10x128xbf16, #tpu.memory_space<vmem>>, %arg3: memref<9x128x128xbf16, #tpu.memory_space<vmem>>, %arg4: memref<1x128xf32, #tpu.memory_space<vmem>>, %arg5: memref<1x1x4x128xbf16, #tpu.memory_space<vmem>>) attributes {dimension_semantics = [#tpu.dimension_semantics<parallel>, #tpu.dimension_semantics<parallel>], iteration_bounds = array<i64: 2, 4>, scalar_prefetch = 0 : i64, scratch_operands = 0 : i64, tpu.core_type = #tpu.core_type<tc>, window_params = [{transform_indices = @transform_0, window_bounds = array<i64: 1, 10, 10, 128>}, {pipeline_mode = #tpu.pipeline_mode<synchronous>, transform_indices = @transform_1, window_bounds = array<i64: 9, 128, 128>}, {pipeline_mode = #tpu.pipeline_mode<synchronous>, transform_indices = @transform_2, window_bounds = array<i64: 1, 128>}, {transform_indices = @transform_3, window_bounds = array<i64: 1, 1, 4, 128>}]} {
    %cst = arith.constant 0.000000e+00 : f32
    %0 = vector.broadcast %cst : f32 to vector<16x128xf32>
    %c2_i32 = arith.constant 2 : i32
    %1 = arith.muli %c2_i32, %arg1 : i32
    %c0_i32 = arith.constant 0 : i32
    %2 = arith.addi %1, %c0_i32 : i32
    %c0 = arith.constant 0 : index
    %3 = arith.index_cast %2 : i32 to index
    %c0_0 = arith.constant 0 : index
    %c0_1 = arith.constant 0 : index
    %4 = vector.load %arg2[%c0, %3, %c0_0, %c0_1] : memref<1x10x10x128xbf16, #tpu.memory_space<vmem>>, vector<1x2x8x128xbf16>
    %5 = vector.shape_cast %4 : vector<1x2x8x128xbf16> to vector<2x8x128xbf16>
    %6 = vector.shape_cast %5 : vector<2x8x128xbf16> to vector<16x128xbf16>
    %c0_2 = arith.constant 0 : index
    %c0_3 = arith.constant 0 : index
    %c0_4 = arith.constant 0 : index
    %7 = vector.load %arg3[%c0_2, %c0_3, %c0_4] : memref<9x128x128xbf16, #tpu.memory_space<vmem>>, vector<1x128x128xbf16>
    %8 = vector.shape_cast %7 : vector<1x128x128xbf16> to vector<128x128xbf16>
    %cst_5 = arith.constant dense<0.000000e+00> : vector<16x128xf32>
    %9 = tpu.matmul %6, %8, %cst_5 {dimension_numbers = #tpu.dot_dimension_numbers<[1], [0], [0], [1], [0, 0, 1, 1], [], []>} : vector<16x128xbf16>, vector<128x128xbf16>, vector<16x128xf32> -> vector<16x128xf32>
    %10 = arith.addf %0, %9 : vector<16x128xf32>
    %c2_i32_6 = arith.constant 2 : i32
    %11 = arith.muli %c2_i32_6, %arg1 : i32
    %c0_i32_7 = arith.constant 0 : i32
    %12 = arith.addi %11, %c0_i32_7 : i32
    %c0_8 = arith.constant 0 : index
    %13 = arith.index_cast %12 : i32 to index
    %c1 = arith.constant 1 : index
    %c0_9 = arith.constant 0 : index
    %14 = vector.load %arg2[%c0_8, %13, %c1, %c0_9] : memref<1x10x10x128xbf16, #tpu.memory_space<vmem>>, vector<1x2x8x128xbf16>
    %15 = vector.shape_cast %14 : vector<1x2x8x128xbf16> to vector<2x8x128xbf16>
    %16 = vector.shape_cast %15 : vector<2x8x128xbf16> to vector<16x128xbf16>
    %c1_10 = arith.constant 1 : index
    %c0_11 = arith.constant 0 : index
    %c0_12 = arith.constant 0 : index
    %17 = vector.load %arg3[%c1_10, %c0_11, %c0_12] : memref<9x128x128xbf16, #tpu.memory_space<vmem>>, vector<1x128x128xbf16>
    %18 = vector.shape_cast %17 : vector<1x128x128xbf16> to vector<128x128xbf16>
    %cst_13 = arith.constant dense<0.000000e+00> : vector<16x128xf32>
    %19 = tpu.matmul %16, %18, %cst_13 {dimension_numbers = #tpu.dot_dimension_numbers<[1], [0], [0], [1], [0, 0, 1, 1], [], []>} : vector<16x128xbf16>, vector<128x128xbf16>, vector<16x128xf32> -> vector<16x128xf32>
    %20 = arith.addf %10, %19 : vector<16x128xf32>
    %c2_i32_14 = arith.constant 2 : i32
    %21 = arith.muli %c2_i32_14, %arg1 : i32
    %c0_i32_15 = arith.constant 0 : i32
    %22 = arith.addi %21, %c0_i32_15 : i32
    %c0_16 = arith.constant 0 : index
    %23 = arith.index_cast %22 : i32 to index
    %c2 = arith.constant 2 : index
    %c0_17 = arith.constant 0 : index
    %24 = vector.load %arg2[%c0_16, %23, %c2, %c0_17] : memref<1x10x10x128xbf16, #tpu.memory_space<vmem>>, vector<1x2x8x128xbf16>
    %25 = vector.shape_cast %24 : vector<1x2x8x128xbf16> to vector<2x8x128xbf16>
    %26 = vector.shape_cast %25 : vector<2x8x128xbf16> to vector<16x128xbf16>
    %c2_18 = arith.constant 2 : index
    %c0_19 = arith.constant 0 : index
    %c0_20 = arith.constant 0 : index
    %27 = vector.load %arg3[%c2_18, %c0_19, %c0_20] : memref<9x128x128xbf16, #tpu.memory_space<vmem>>, vector<1x128x128xbf16>
    %28 = vector.shape_cast %27 : vector<1x128x128xbf16> to vector<128x128xbf16>
    %cst_21 = arith.constant dense<0.000000e+00> : vector<16x128xf32>
    %29 = tpu.matmul %26, %28, %cst_21 {dimension_numbers = #tpu.dot_dimension_numbers<[1], [0], [0], [1], [0, 0, 1, 1], [], []>} : vector<16x128xbf16>, vector<128x128xbf16>, vector<16x128xf32> -> vector<16x128xf32>
    %30 = arith.addf %20, %29 : vector<16x128xf32>
    %c2_i32_22 = arith.constant 2 : i32
    %31 = arith.muli %c2_i32_22, %arg1 : i32
    %c1_i32 = arith.constant 1 : i32
    %32 = arith.addi %31, %c1_i32 : i32
    %c0_23 = arith.constant 0 : index
    %33 = arith.index_cast %32 : i32 to index
    %c0_24 = arith.constant 0 : index
    %c0_25 = arith.constant 0 : index
    %34 = vector.load %arg2[%c0_23, %33, %c0_24, %c0_25] : memref<1x10x10x128xbf16, #tpu.memory_space<vmem>>, vector<1x2x8x128xbf16>
    %35 = vector.shape_cast %34 : vector<1x2x8x128xbf16> to vector<2x8x128xbf16>
    %36 = vector.shape_cast %35 : vector<2x8x128xbf16> to vector<16x128xbf16>
    %c3 = arith.constant 3 : index
    %c0_26 = arith.constant 0 : index
    %c0_27 = arith.constant 0 : index
    %37 = vector.load %arg3[%c3, %c0_26, %c0_27] : memref<9x128x128xbf16, #tpu.memory_space<vmem>>, vector<1x128x128xbf16>
    %38 = vector.shape_cast %37 : vector<1x128x128xbf16> to vector<128x128xbf16>
    %cst_28 = arith.constant dense<0.000000e+00> : vector<16x128xf32>
    %39 = tpu.matmul %36, %38, %cst_28 {dimension_numbers = #tpu.dot_dimension_numbers<[1], [0], [0], [1], [0, 0, 1, 1], [], []>} : vector<16x128xbf16>, vector<128x128xbf16>, vector<16x128xf32> -> vector<16x128xf32>
    %40 = arith.addf %30, %39 : vector<16x128xf32>
    %c2_i32_29 = arith.constant 2 : i32
    %41 = arith.muli %c2_i32_29, %arg1 : i32
    %c1_i32_30 = arith.constant 1 : i32
    %42 = arith.addi %41, %c1_i32_30 : i32
    %c0_31 = arith.constant 0 : index
    %43 = arith.index_cast %42 : i32 to index
    %c1_32 = arith.constant 1 : index
    %c0_33 = arith.constant 0 : index
    %44 = vector.load %arg2[%c0_31, %43, %c1_32, %c0_33] : memref<1x10x10x128xbf16, #tpu.memory_space<vmem>>, vector<1x2x8x128xbf16>
    %45 = vector.shape_cast %44 : vector<1x2x8x128xbf16> to vector<2x8x128xbf16>
    %46 = vector.shape_cast %45 : vector<2x8x128xbf16> to vector<16x128xbf16>
    %c4 = arith.constant 4 : index
    %c0_34 = arith.constant 0 : index
    %c0_35 = arith.constant 0 : index
    %47 = vector.load %arg3[%c4, %c0_34, %c0_35] : memref<9x128x128xbf16, #tpu.memory_space<vmem>>, vector<1x128x128xbf16>
    %48 = vector.shape_cast %47 : vector<1x128x128xbf16> to vector<128x128xbf16>
    %cst_36 = arith.constant dense<0.000000e+00> : vector<16x128xf32>
    %49 = tpu.matmul %46, %48, %cst_36 {dimension_numbers = #tpu.dot_dimension_numbers<[1], [0], [0], [1], [0, 0, 1, 1], [], []>} : vector<16x128xbf16>, vector<128x128xbf16>, vector<16x128xf32> -> vector<16x128xf32>
    %50 = arith.addf %40, %49 : vector<16x128xf32>
    %c2_i32_37 = arith.constant 2 : i32
    %51 = arith.muli %c2_i32_37, %arg1 : i32
    %c1_i32_38 = arith.constant 1 : i32
    %52 = arith.addi %51, %c1_i32_38 : i32
    %c0_39 = arith.constant 0 : index
    %53 = arith.index_cast %52 : i32 to index
    %c2_40 = arith.constant 2 : index
    %c0_41 = arith.constant 0 : index
    %54 = vector.load %arg2[%c0_39, %53, %c2_40, %c0_41] : memref<1x10x10x128xbf16, #tpu.memory_space<vmem>>, vector<1x2x8x128xbf16>
    %55 = vector.shape_cast %54 : vector<1x2x8x128xbf16> to vector<2x8x128xbf16>
    %56 = vector.shape_cast %55 : vector<2x8x128xbf16> to vector<16x128xbf16>
    %c5 = arith.constant 5 : index
    %c0_42 = arith.constant 0 : index
    %c0_43 = arith.constant 0 : index
    %57 = vector.load %arg3[%c5, %c0_42, %c0_43] : memref<9x128x128xbf16, #tpu.memory_space<vmem>>, vector<1x128x128xbf16>
    %58 = vector.shape_cast %57 : vector<1x128x128xbf16> to vector<128x128xbf16>
    %cst_44 = arith.constant dense<0.000000e+00> : vector<16x128xf32>
    %59 = tpu.matmul %56, %58, %cst_44 {dimension_numbers = #tpu.dot_dimension_numbers<[1], [0], [0], [1], [0, 0, 1, 1], [], []>} : vector<16x128xbf16>, vector<128x128xbf16>, vector<16x128xf32> -> vector<16x128xf32>
    %60 = arith.addf %50, %59 : vector<16x128xf32>
    %c2_i32_45 = arith.constant 2 : i32
    %61 = arith.muli %c2_i32_45, %arg1 : i32
    %c2_i32_46 = arith.constant 2 : i32
    %62 = arith.addi %61, %c2_i32_46 : i32
    %c0_47 = arith.constant 0 : index
    %63 = arith.index_cast %62 : i32 to index
    %c0_48 = arith.constant 0 : index
    %c0_49 = arith.constant 0 : index
    %64 = vector.load %arg2[%c0_47, %63, %c0_48, %c0_49] : memref<1x10x10x128xbf16, #tpu.memory_space<vmem>>, vector<1x2x8x128xbf16>
    %65 = vector.shape_cast %64 : vector<1x2x8x128xbf16> to vector<2x8x128xbf16>
    %66 = vector.shape_cast %65 : vector<2x8x128xbf16> to vector<16x128xbf16>
    %c6 = arith.constant 6 : index
    %c0_50 = arith.constant 0 : index
    %c0_51 = arith.constant 0 : index
    %67 = vector.load %arg3[%c6, %c0_50, %c0_51] : memref<9x128x128xbf16, #tpu.memory_space<vmem>>, vector<1x128x128xbf16>
    %68 = vector.shape_cast %67 : vector<1x128x128xbf16> to vector<128x128xbf16>
    %cst_52 = arith.constant dense<0.000000e+00> : vector<16x128xf32>
    %69 = tpu.matmul %66, %68, %cst_52 {dimension_numbers = #tpu.dot_dimension_numbers<[1], [0], [0], [1], [0, 0, 1, 1], [], []>} : vector<16x128xbf16>, vector<128x128xbf16>, vector<16x128xf32> -> vector<16x128xf32>
    %70 = arith.addf %60, %69 : vector<16x128xf32>
    %c2_i32_53 = arith.constant 2 : i32
    %71 = arith.muli %c2_i32_53, %arg1 : i32
    %c2_i32_54 = arith.constant 2 : i32
    %72 = arith.addi %71, %c2_i32_54 : i32
    %c0_55 = arith.constant 0 : index
    %73 = arith.index_cast %72 : i32 to index
    %c1_56 = arith.constant 1 : index
    %c0_57 = arith.constant 0 : index
    %74 = vector.load %arg2[%c0_55, %73, %c1_56, %c0_57] : memref<1x10x10x128xbf16, #tpu.memory_space<vmem>>, vector<1x2x8x128xbf16>
    %75 = vector.shape_cast %74 : vector<1x2x8x128xbf16> to vector<2x8x128xbf16>
    %76 = vector.shape_cast %75 : vector<2x8x128xbf16> to vector<16x128xbf16>
    %c7 = arith.constant 7 : index
    %c0_58 = arith.constant 0 : index
    %c0_59 = arith.constant 0 : index
    %77 = vector.load %arg3[%c7, %c0_58, %c0_59] : memref<9x128x128xbf16, #tpu.memory_space<vmem>>, vector<1x128x128xbf16>
    %78 = vector.shape_cast %77 : vector<1x128x128xbf16> to vector<128x128xbf16>
    %cst_60 = arith.constant dense<0.000000e+00> : vector<16x128xf32>
    %79 = tpu.matmul %76, %78, %cst_60 {dimension_numbers = #tpu.dot_dimension_numbers<[1], [0], [0], [1], [0, 0, 1, 1], [], []>} : vector<16x128xbf16>, vector<128x128xbf16>, vector<16x128xf32> -> vector<16x128xf32>
    %80 = arith.addf %70, %79 : vector<16x128xf32>
    %c2_i32_61 = arith.constant 2 : i32
    %81 = arith.muli %c2_i32_61, %arg1 : i32
    %c2_i32_62 = arith.constant 2 : i32
    %82 = arith.addi %81, %c2_i32_62 : i32
    %c0_63 = arith.constant 0 : index
    %83 = arith.index_cast %82 : i32 to index
    %c2_64 = arith.constant 2 : index
    %c0_65 = arith.constant 0 : index
    %84 = vector.load %arg2[%c0_63, %83, %c2_64, %c0_65] : memref<1x10x10x128xbf16, #tpu.memory_space<vmem>>, vector<1x2x8x128xbf16>
    %85 = vector.shape_cast %84 : vector<1x2x8x128xbf16> to vector<2x8x128xbf16>
    %86 = vector.shape_cast %85 : vector<2x8x128xbf16> to vector<16x128xbf16>
    %c8 = arith.constant 8 : index
    %c0_66 = arith.constant 0 : index
    %c0_67 = arith.constant 0 : index
    %87 = vector.load %arg3[%c8, %c0_66, %c0_67] : memref<9x128x128xbf16, #tpu.memory_space<vmem>>, vector<1x128x128xbf16>
    %88 = vector.shape_cast %87 : vector<1x128x128xbf16> to vector<128x128xbf16>
    %cst_68 = arith.constant dense<0.000000e+00> : vector<16x128xf32>
    %89 = tpu.matmul %86, %88, %cst_68 {dimension_numbers = #tpu.dot_dimension_numbers<[1], [0], [0], [1], [0, 0, 1, 1], [], []>} : vector<16x128xbf16>, vector<128x128xbf16>, vector<16x128xf32> -> vector<16x128xf32>
    %90 = arith.addf %80, %89 : vector<16x128xf32>
    %c0_69 = arith.constant 0 : index
    %c0_70 = arith.constant 0 : index
    %91 = vector.load %arg4[%c0_69, %c0_70] : memref<1x128xf32, #tpu.memory_space<vmem>>, vector<1x128xf32>
    %92 = vector.broadcast %91 : vector<1x128xf32> to vector<16x128xf32>
    %93 = arith.addf %90, %92 : vector<16x128xf32>
    %cst_71 = arith.constant 0.000000e+00 : f32
    %94 = vector.broadcast %cst_71 : f32 to vector<16x128xf32>
    %95 = arith.maximumf %93, %94 : vector<16x128xf32>
    %96 = vector.extract_strided_slice %95 {offsets = [0, 0], sizes = [8, 128], strides = [1, 1]} : vector<16x128xf32> to vector<8x128xf32>
    %97 = vector.extract_strided_slice %95 {offsets = [8, 0], sizes = [8, 128], strides = [1, 1]} : vector<16x128xf32> to vector<8x128xf32>
    %98 = arith.maximumf %96, %97 : vector<8x128xf32>
    %99 = tpu.iota {dimensions = array<i32: 0>} : vector<4x8xi32>
    %100 = tpu.iota {dimensions = array<i32: 1>} : vector<4x8xi32>
    %c2_i32_72 = arith.constant 2 : i32
    %101 = vector.broadcast %c2_i32_72 : i32 to vector<4x8xi32>
    %102 = arith.muli %101, %99 : vector<4x8xi32>
    %103 = arith.cmpi eq, %100, %102 : vector<4x8xi32>
    %104 = arith.extui %103 : vector<4x8xi1> to vector<4x8xi32>
    %105 = arith.sitofp %104 : vector<4x8xi32> to vector<4x8xf32>
    %c2_i32_73 = arith.constant 2 : i32
    %106 = vector.broadcast %c2_i32_73 : i32 to vector<4x8xi32>
    %107 = arith.muli %106, %99 : vector<4x8xi32>
    %c1_i32_74 = arith.constant 1 : i32
    %108 = vector.broadcast %c1_i32_74 : i32 to vector<4x8xi32>
    %109 = arith.addi %107, %108 : vector<4x8xi32>
    %110 = arith.cmpi eq, %100, %109 : vector<4x8xi32>
    %111 = arith.extui %110 : vector<4x8xi1> to vector<4x8xi32>
    %112 = arith.sitofp %111 : vector<4x8xi32> to vector<4x8xf32>
    %cst_75 = arith.constant dense<0.000000e+00> : vector<4x128xf32>
    %113 = tpu.matmul %105, %98, %cst_75 {dimension_numbers = #tpu.dot_dimension_numbers<[1], [0], [0], [1], [0, 0, 1, 1], [], []>} : vector<4x8xf32>, vector<8x128xf32>, vector<4x128xf32> -> vector<4x128xf32>
    %cst_76 = arith.constant dense<0.000000e+00> : vector<4x128xf32>
    %114 = tpu.matmul %112, %98, %cst_76 {dimension_numbers = #tpu.dot_dimension_numbers<[1], [0], [0], [1], [0, 0, 1, 1], [], []>} : vector<4x8xf32>, vector<8x128xf32>, vector<4x128xf32> -> vector<4x128xf32>
    %115 = arith.maximumf %113, %114 : vector<4x128xf32>
    %116 = arith.truncf %115 : vector<4x128xf32> to vector<4x128xbf16>
    %c0_77 = arith.constant 0 : index
    %c0_78 = arith.constant 0 : index
    %c0_79 = arith.constant 0 : index
    %c0_80 = arith.constant 0 : index
    %117 = vector.load %arg5[%c0_77, %c0_78, %c0_79, %c0_80] : memref<1x1x4x128xbf16, #tpu.memory_space<vmem>>, vector<1x1x4x128xbf16>
    %118 = vector.shape_cast %117 : vector<1x1x4x128xbf16> to vector<4x128xbf16>
    %119 = vector.shape_cast %116 : vector<4x128xbf16> to vector<1x1x4x128xbf16>
    tpu.vector_store %arg5[%c0_77, %c0_78, %c0_79, %c0_80], %119 {strides = array<i32>} : memref<1x1x4x128xbf16, #tpu.memory_space<vmem>>, vector<1x1x4x128xbf16>,
    return
  }
  func.func @transform_0(%arg0: i32, %arg1: i32) -> (i32, i32, i32, i32) {
    %c0_i32 = arith.constant 0 : i32
    %c0_i32_0 = arith.constant 0 : i32
    %c0_i32_1 = arith.constant 0 : i32
    %c0_i32_2 = arith.constant 0 : i32
    return %arg0, %c0_i32, %c0_i32_0, %c0_i32_1 : i32, i32, i32, i32
  }
  func.func @transform_1(%arg0: i32, %arg1: i32) -> (i32, i32, i32) {
    %c0_i32 = arith.constant 0 : i32
    %c0_i32_0 = arith.constant 0 : i32
    %c0_i32_1 = arith.constant 0 : i32
    %c0_i32_2 = arith.constant 0 : i32
    return %c0_i32, %c0_i32_0, %c0_i32_1 : i32, i32, i32
  }
  func.func @transform_2(%arg0: i32, %arg1: i32) -> (i32, i32) {
    %c0_i32 = arith.constant 0 : i32
    %c0_i32_0 = arith.constant 0 : i32
    %c0_i32_1 = arith.constant 0 : i32
    return %c0_i32, %c0_i32_0 : i32, i32
  }
  func.func @transform_3(%arg0: i32, %arg1: i32) -> (i32, i32, i32, i32) {
    %c0_i32 = arith.constant 0 : i32
    %c0_i32_0 = arith.constant 0 : i32
    %c0_i32_1 = arith.constant 0 : i32
    return %arg0, %arg1, %c0_i32, %c0_i32_0 : i32, i32, i32, i32
  }
}

module attributes {stable_mosaic.version = 11 : i64} {
  func.func @_conv_relu_pool_kernel(%arg0: i32, %arg1: i32, %arg2: memref<1x6x6x128xbf16, #tpu.memory_space<vmem>>, %arg3: memref<9x128x256xbf16, #tpu.memory_space<vmem>>, %arg4: memref<1x256xf32, #tpu.memory_space<vmem>>, %arg5: memref<1x1x2x256xbf16, #tpu.memory_space<vmem>>) attributes {dimension_semantics = [#tpu.dimension_semantics<parallel>, #tpu.dimension_semantics<parallel>], iteration_bounds = array<i64: 2, 2>, scalar_prefetch = 0 : i64, scratch_operands = 0 : i64, tpu.core_type = #tpu.core_type<tc>, window_params = [{transform_indices = @transform_0, window_bounds = array<i64: 1, 6, 6, 128>}, {pipeline_mode = #tpu.pipeline_mode<synchronous>, transform_indices = @transform_1, window_bounds = array<i64: 9, 128, 256>}, {pipeline_mode = #tpu.pipeline_mode<synchronous>, transform_indices = @transform_2, window_bounds = array<i64: 1, 256>}, {transform_indices = @transform_3, window_bounds = array<i64: 1, 1, 2, 256>}]} {
    %cst = arith.constant 0.000000e+00 : f32
    %0 = vector.broadcast %cst : f32 to vector<8x256xf32>
    %c2_i32 = arith.constant 2 : i32
    %1 = arith.muli %c2_i32, %arg1 : i32
    %c0_i32 = arith.constant 0 : i32
    %2 = arith.addi %1, %c0_i32 : i32
    %c0 = arith.constant 0 : index
    %3 = arith.index_cast %2 : i32 to index
    %c0_0 = arith.constant 0 : index
    %c0_1 = arith.constant 0 : index
    %4 = vector.load %arg2[%c0, %3, %c0_0, %c0_1] : memref<1x6x6x128xbf16, #tpu.memory_space<vmem>>, vector<1x2x4x128xbf16>
    %5 = vector.shape_cast %4 : vector<1x2x4x128xbf16> to vector<2x4x128xbf16>
    %6 = vector.shape_cast %5 : vector<2x4x128xbf16> to vector<8x128xbf16>
    %c0_2 = arith.constant 0 : index
    %c0_3 = arith.constant 0 : index
    %c0_4 = arith.constant 0 : index
    %7 = vector.load %arg3[%c0_2, %c0_3, %c0_4] : memref<9x128x256xbf16, #tpu.memory_space<vmem>>, vector<1x128x256xbf16>
    %8 = vector.shape_cast %7 : vector<1x128x256xbf16> to vector<128x256xbf16>
    %cst_5 = arith.constant dense<0.000000e+00> : vector<8x256xf32>
    %9 = tpu.matmul %6, %8, %cst_5 {dimension_numbers = #tpu.dot_dimension_numbers<[1], [0], [0], [1], [0, 0, 1, 1], [], []>} : vector<8x128xbf16>, vector<128x256xbf16>, vector<8x256xf32> -> vector<8x256xf32>
    %10 = arith.addf %0, %9 : vector<8x256xf32>
    %c2_i32_6 = arith.constant 2 : i32
    %11 = arith.muli %c2_i32_6, %arg1 : i32
    %c0_i32_7 = arith.constant 0 : i32
    %12 = arith.addi %11, %c0_i32_7 : i32
    %c0_8 = arith.constant 0 : index
    %13 = arith.index_cast %12 : i32 to index
    %c1 = arith.constant 1 : index
    %c0_9 = arith.constant 0 : index
    %14 = vector.load %arg2[%c0_8, %13, %c1, %c0_9] : memref<1x6x6x128xbf16, #tpu.memory_space<vmem>>, vector<1x2x4x128xbf16>
    %15 = vector.shape_cast %14 : vector<1x2x4x128xbf16> to vector<2x4x128xbf16>
    %16 = vector.shape_cast %15 : vector<2x4x128xbf16> to vector<8x128xbf16>
    %c1_10 = arith.constant 1 : index
    %c0_11 = arith.constant 0 : index
    %c0_12 = arith.constant 0 : index
    %17 = vector.load %arg3[%c1_10, %c0_11, %c0_12] : memref<9x128x256xbf16, #tpu.memory_space<vmem>>, vector<1x128x256xbf16>
    %18 = vector.shape_cast %17 : vector<1x128x256xbf16> to vector<128x256xbf16>
    %cst_13 = arith.constant dense<0.000000e+00> : vector<8x256xf32>
    %19 = tpu.matmul %16, %18, %cst_13 {dimension_numbers = #tpu.dot_dimension_numbers<[1], [0], [0], [1], [0, 0, 1, 1], [], []>} : vector<8x128xbf16>, vector<128x256xbf16>, vector<8x256xf32> -> vector<8x256xf32>
    %20 = arith.addf %10, %19 : vector<8x256xf32>
    %c2_i32_14 = arith.constant 2 : i32
    %21 = arith.muli %c2_i32_14, %arg1 : i32
    %c0_i32_15 = arith.constant 0 : i32
    %22 = arith.addi %21, %c0_i32_15 : i32
    %c0_16 = arith.constant 0 : index
    %23 = arith.index_cast %22 : i32 to index
    %c2 = arith.constant 2 : index
    %c0_17 = arith.constant 0 : index
    %24 = vector.load %arg2[%c0_16, %23, %c2, %c0_17] : memref<1x6x6x128xbf16, #tpu.memory_space<vmem>>, vector<1x2x4x128xbf16>
    %25 = vector.shape_cast %24 : vector<1x2x4x128xbf16> to vector<2x4x128xbf16>
    %26 = vector.shape_cast %25 : vector<2x4x128xbf16> to vector<8x128xbf16>
    %c2_18 = arith.constant 2 : index
    %c0_19 = arith.constant 0 : index
    %c0_20 = arith.constant 0 : index
    %27 = vector.load %arg3[%c2_18, %c0_19, %c0_20] : memref<9x128x256xbf16, #tpu.memory_space<vmem>>, vector<1x128x256xbf16>
    %28 = vector.shape_cast %27 : vector<1x128x256xbf16> to vector<128x256xbf16>
    %cst_21 = arith.constant dense<0.000000e+00> : vector<8x256xf32>
    %29 = tpu.matmul %26, %28, %cst_21 {dimension_numbers = #tpu.dot_dimension_numbers<[1], [0], [0], [1], [0, 0, 1, 1], [], []>} : vector<8x128xbf16>, vector<128x256xbf16>, vector<8x256xf32> -> vector<8x256xf32>
    %30 = arith.addf %20, %29 : vector<8x256xf32>
    %c2_i32_22 = arith.constant 2 : i32
    %31 = arith.muli %c2_i32_22, %arg1 : i32
    %c1_i32 = arith.constant 1 : i32
    %32 = arith.addi %31, %c1_i32 : i32
    %c0_23 = arith.constant 0 : index
    %33 = arith.index_cast %32 : i32 to index
    %c0_24 = arith.constant 0 : index
    %c0_25 = arith.constant 0 : index
    %34 = vector.load %arg2[%c0_23, %33, %c0_24, %c0_25] : memref<1x6x6x128xbf16, #tpu.memory_space<vmem>>, vector<1x2x4x128xbf16>
    %35 = vector.shape_cast %34 : vector<1x2x4x128xbf16> to vector<2x4x128xbf16>
    %36 = vector.shape_cast %35 : vector<2x4x128xbf16> to vector<8x128xbf16>
    %c3 = arith.constant 3 : index
    %c0_26 = arith.constant 0 : index
    %c0_27 = arith.constant 0 : index
    %37 = vector.load %arg3[%c3, %c0_26, %c0_27] : memref<9x128x256xbf16, #tpu.memory_space<vmem>>, vector<1x128x256xbf16>
    %38 = vector.shape_cast %37 : vector<1x128x256xbf16> to vector<128x256xbf16>
    %cst_28 = arith.constant dense<0.000000e+00> : vector<8x256xf32>
    %39 = tpu.matmul %36, %38, %cst_28 {dimension_numbers = #tpu.dot_dimension_numbers<[1], [0], [0], [1], [0, 0, 1, 1], [], []>} : vector<8x128xbf16>, vector<128x256xbf16>, vector<8x256xf32> -> vector<8x256xf32>
    %40 = arith.addf %30, %39 : vector<8x256xf32>
    %c2_i32_29 = arith.constant 2 : i32
    %41 = arith.muli %c2_i32_29, %arg1 : i32
    %c1_i32_30 = arith.constant 1 : i32
    %42 = arith.addi %41, %c1_i32_30 : i32
    %c0_31 = arith.constant 0 : index
    %43 = arith.index_cast %42 : i32 to index
    %c1_32 = arith.constant 1 : index
    %c0_33 = arith.constant 0 : index
    %44 = vector.load %arg2[%c0_31, %43, %c1_32, %c0_33] : memref<1x6x6x128xbf16, #tpu.memory_space<vmem>>, vector<1x2x4x128xbf16>
    %45 = vector.shape_cast %44 : vector<1x2x4x128xbf16> to vector<2x4x128xbf16>
    %46 = vector.shape_cast %45 : vector<2x4x128xbf16> to vector<8x128xbf16>
    %c4 = arith.constant 4 : index
    %c0_34 = arith.constant 0 : index
    %c0_35 = arith.constant 0 : index
    %47 = vector.load %arg3[%c4, %c0_34, %c0_35] : memref<9x128x256xbf16, #tpu.memory_space<vmem>>, vector<1x128x256xbf16>
    %48 = vector.shape_cast %47 : vector<1x128x256xbf16> to vector<128x256xbf16>
    %cst_36 = arith.constant dense<0.000000e+00> : vector<8x256xf32>
    %49 = tpu.matmul %46, %48, %cst_36 {dimension_numbers = #tpu.dot_dimension_numbers<[1], [0], [0], [1], [0, 0, 1, 1], [], []>} : vector<8x128xbf16>, vector<128x256xbf16>, vector<8x256xf32> -> vector<8x256xf32>
    %50 = arith.addf %40, %49 : vector<8x256xf32>
    %c2_i32_37 = arith.constant 2 : i32
    %51 = arith.muli %c2_i32_37, %arg1 : i32
    %c1_i32_38 = arith.constant 1 : i32
    %52 = arith.addi %51, %c1_i32_38 : i32
    %c0_39 = arith.constant 0 : index
    %53 = arith.index_cast %52 : i32 to index
    %c2_40 = arith.constant 2 : index
    %c0_41 = arith.constant 0 : index
    %54 = vector.load %arg2[%c0_39, %53, %c2_40, %c0_41] : memref<1x6x6x128xbf16, #tpu.memory_space<vmem>>, vector<1x2x4x128xbf16>
    %55 = vector.shape_cast %54 : vector<1x2x4x128xbf16> to vector<2x4x128xbf16>
    %56 = vector.shape_cast %55 : vector<2x4x128xbf16> to vector<8x128xbf16>
    %c5 = arith.constant 5 : index
    %c0_42 = arith.constant 0 : index
    %c0_43 = arith.constant 0 : index
    %57 = vector.load %arg3[%c5, %c0_42, %c0_43] : memref<9x128x256xbf16, #tpu.memory_space<vmem>>, vector<1x128x256xbf16>
    %58 = vector.shape_cast %57 : vector<1x128x256xbf16> to vector<128x256xbf16>
    %cst_44 = arith.constant dense<0.000000e+00> : vector<8x256xf32>
    %59 = tpu.matmul %56, %58, %cst_44 {dimension_numbers = #tpu.dot_dimension_numbers<[1], [0], [0], [1], [0, 0, 1, 1], [], []>} : vector<8x128xbf16>, vector<128x256xbf16>, vector<8x256xf32> -> vector<8x256xf32>
    %60 = arith.addf %50, %59 : vector<8x256xf32>
    %c2_i32_45 = arith.constant 2 : i32
    %61 = arith.muli %c2_i32_45, %arg1 : i32
    %c2_i32_46 = arith.constant 2 : i32
    %62 = arith.addi %61, %c2_i32_46 : i32
    %c0_47 = arith.constant 0 : index
    %63 = arith.index_cast %62 : i32 to index
    %c0_48 = arith.constant 0 : index
    %c0_49 = arith.constant 0 : index
    %64 = vector.load %arg2[%c0_47, %63, %c0_48, %c0_49] : memref<1x6x6x128xbf16, #tpu.memory_space<vmem>>, vector<1x2x4x128xbf16>
    %65 = vector.shape_cast %64 : vector<1x2x4x128xbf16> to vector<2x4x128xbf16>
    %66 = vector.shape_cast %65 : vector<2x4x128xbf16> to vector<8x128xbf16>
    %c6 = arith.constant 6 : index
    %c0_50 = arith.constant 0 : index
    %c0_51 = arith.constant 0 : index
    %67 = vector.load %arg3[%c6, %c0_50, %c0_51] : memref<9x128x256xbf16, #tpu.memory_space<vmem>>, vector<1x128x256xbf16>
    %68 = vector.shape_cast %67 : vector<1x128x256xbf16> to vector<128x256xbf16>
    %cst_52 = arith.constant dense<0.000000e+00> : vector<8x256xf32>
    %69 = tpu.matmul %66, %68, %cst_52 {dimension_numbers = #tpu.dot_dimension_numbers<[1], [0], [0], [1], [0, 0, 1, 1], [], []>} : vector<8x128xbf16>, vector<128x256xbf16>, vector<8x256xf32> -> vector<8x256xf32>
    %70 = arith.addf %60, %69 : vector<8x256xf32>
    %c2_i32_53 = arith.constant 2 : i32
    %71 = arith.muli %c2_i32_53, %arg1 : i32
    %c2_i32_54 = arith.constant 2 : i32
    %72 = arith.addi %71, %c2_i32_54 : i32
    %c0_55 = arith.constant 0 : index
    %73 = arith.index_cast %72 : i32 to index
    %c1_56 = arith.constant 1 : index
    %c0_57 = arith.constant 0 : index
    %74 = vector.load %arg2[%c0_55, %73, %c1_56, %c0_57] : memref<1x6x6x128xbf16, #tpu.memory_space<vmem>>, vector<1x2x4x128xbf16>
    %75 = vector.shape_cast %74 : vector<1x2x4x128xbf16> to vector<2x4x128xbf16>
    %76 = vector.shape_cast %75 : vector<2x4x128xbf16> to vector<8x128xbf16>
    %c7 = arith.constant 7 : index
    %c0_58 = arith.constant 0 : index
    %c0_59 = arith.constant 0 : index
    %77 = vector.load %arg3[%c7, %c0_58, %c0_59] : memref<9x128x256xbf16, #tpu.memory_space<vmem>>, vector<1x128x256xbf16>
    %78 = vector.shape_cast %77 : vector<1x128x256xbf16> to vector<128x256xbf16>
    %cst_60 = arith.constant dense<0.000000e+00> : vector<8x256xf32>
    %79 = tpu.matmul %76, %78, %cst_60 {dimension_numbers = #tpu.dot_dimension_numbers<[1], [0], [0], [1], [0, 0, 1, 1], [], []>} : vector<8x128xbf16>, vector<128x256xbf16>, vector<8x256xf32> -> vector<8x256xf32>
    %80 = arith.addf %70, %79 : vector<8x256xf32>
    %c2_i32_61 = arith.constant 2 : i32
    %81 = arith.muli %c2_i32_61, %arg1 : i32
    %c2_i32_62 = arith.constant 2 : i32
    %82 = arith.addi %81, %c2_i32_62 : i32
    %c0_63 = arith.constant 0 : index
    %83 = arith.index_cast %82 : i32 to index
    %c2_64 = arith.constant 2 : index
    %c0_65 = arith.constant 0 : index
    %84 = vector.load %arg2[%c0_63, %83, %c2_64, %c0_65] : memref<1x6x6x128xbf16, #tpu.memory_space<vmem>>, vector<1x2x4x128xbf16>
    %85 = vector.shape_cast %84 : vector<1x2x4x128xbf16> to vector<2x4x128xbf16>
    %86 = vector.shape_cast %85 : vector<2x4x128xbf16> to vector<8x128xbf16>
    %c8 = arith.constant 8 : index
    %c0_66 = arith.constant 0 : index
    %c0_67 = arith.constant 0 : index
    %87 = vector.load %arg3[%c8, %c0_66, %c0_67] : memref<9x128x256xbf16, #tpu.memory_space<vmem>>, vector<1x128x256xbf16>
    %88 = vector.shape_cast %87 : vector<1x128x256xbf16> to vector<128x256xbf16>
    %cst_68 = arith.constant dense<0.000000e+00> : vector<8x256xf32>
    %89 = tpu.matmul %86, %88, %cst_68 {dimension_numbers = #tpu.dot_dimension_numbers<[1], [0], [0], [1], [0, 0, 1, 1], [], []>} : vector<8x128xbf16>, vector<128x256xbf16>, vector<8x256xf32> -> vector<8x256xf32>
    %90 = arith.addf %80, %89 : vector<8x256xf32>
    %c0_69 = arith.constant 0 : index
    %c0_70 = arith.constant 0 : index
    %91 = vector.load %arg4[%c0_69, %c0_70] : memref<1x256xf32, #tpu.memory_space<vmem>>, vector<1x256xf32>
    %92 = vector.broadcast %91 : vector<1x256xf32> to vector<8x256xf32>
    %93 = arith.addf %90, %92 : vector<8x256xf32>
    %cst_71 = arith.constant 0.000000e+00 : f32
    %94 = vector.broadcast %cst_71 : f32 to vector<8x256xf32>
    %95 = arith.maximumf %93, %94 : vector<8x256xf32>
    %96 = vector.extract_strided_slice %95 {offsets = [0, 0], sizes = [4, 256], strides = [1, 1]} : vector<8x256xf32> to vector<4x256xf32>
    %97 = vector.extract_strided_slice %95 {offsets = [4, 0], sizes = [4, 256], strides = [1, 1]} : vector<8x256xf32> to vector<4x256xf32>
    %98 = arith.maximumf %96, %97 : vector<4x256xf32>
    %99 = tpu.iota {dimensions = array<i32: 0>} : vector<2x4xi32>
    %100 = tpu.iota {dimensions = array<i32: 1>} : vector<2x4xi32>
    %c2_i32_72 = arith.constant 2 : i32
    %101 = vector.broadcast %c2_i32_72 : i32 to vector<2x4xi32>
    %102 = arith.muli %101, %99 : vector<2x4xi32>
    %103 = arith.cmpi eq, %100, %102 : vector<2x4xi32>
    %104 = arith.extui %103 : vector<2x4xi1> to vector<2x4xi32>
    %105 = arith.sitofp %104 : vector<2x4xi32> to vector<2x4xf32>
    %c2_i32_73 = arith.constant 2 : i32
    %106 = vector.broadcast %c2_i32_73 : i32 to vector<2x4xi32>
    %107 = arith.muli %106, %99 : vector<2x4xi32>
    %c1_i32_74 = arith.constant 1 : i32
    %108 = vector.broadcast %c1_i32_74 : i32 to vector<2x4xi32>
    %109 = arith.addi %107, %108 : vector<2x4xi32>
    %110 = arith.cmpi eq, %100, %109 : vector<2x4xi32>
    %111 = arith.extui %110 : vector<2x4xi1> to vector<2x4xi32>
    %112 = arith.sitofp %111 : vector<2x4xi32> to vector<2x4xf32>
    %cst_75 = arith.constant dense<0.000000e+00> : vector<2x256xf32>
    %113 = tpu.matmul %105, %98, %cst_75 {dimension_numbers = #tpu.dot_dimension_numbers<[1], [0], [0], [1], [0, 0, 1, 1], [], []>} : vector<2x4xf32>, vector<4x256xf32>, vector<2x256xf32> -> vector<2x256xf32>
    %cst_76 = arith.constant dense<0.000000e+00> : vector<2x256xf32>
    %114 = tpu.matmul %112, %98, %cst_76 {dimension_numbers = #tpu.dot_dimension_numbers<[1], [0], [0], [1], [0, 0, 1, 1], [], []>} : vector<2x4xf32>, vector<4x256xf32>, vector<2x256xf32> -> vector<2x256xf32>
    %115 = arith.maximumf %113, %114 : vector<2x256xf32>
    %116 = arith.truncf %115 : vector<2x256xf32> to vector<2x256xbf16>
    %c0_77 = arith.constant 0 : index
    %c0_78 = arith.constant 0 : index
    %c0_79 = arith.constant 0 : index
    %c0_80 = arith.constant 0 : index
    %117 = vector.load %arg5[%c0_77, %c0_78, %c0_79, %c0_80] : memref<1x1x2x256xbf16, #tpu.memory_space<vmem>>, vector<1x1x2x256xbf16>
    %118 = vector.shape_cast %117 : vector<1x1x2x256xbf16> to vector<2x256xbf16>
    %119 = vector.shape_cast %116 : vector<2x256xbf16> to vector<1x1x2x256xbf16>
    tpu.vector_store %arg5[%c0_77, %c0_78, %c0_79, %c0_80], %119 {strides = array<i32>} : memref<1x1x2x256xbf16, #tpu.memory_space<vmem>>, vector<1x1x2x256xbf16>,
    return
  }
  func.func @transform_0(%arg0: i32, %arg1: i32) -> (i32, i32, i32, i32) {
    %c0_i32 = arith.constant 0 : i32
    %c0_i32_0 = arith.constant 0 : i32
    %c0_i32_1 = arith.constant 0 : i32
    %c0_i32_2 = arith.constant 0 : i32
    return %arg0, %c0_i32, %c0_i32_0, %c0_i32_1 : i32, i32, i32, i32
  }
  func.func @transform_1(%arg0: i32, %arg1: i32) -> (i32, i32, i32) {
    %c0_i32 = arith.constant 0 : i32
    %c0_i32_0 = arith.constant 0 : i32
    %c0_i32_1 = arith.constant 0 : i32
    %c0_i32_2 = arith.constant 0 : i32
    return %c0_i32, %c0_i32_0, %c0_i32_1 : i32, i32, i32
  }
  func.func @transform_2(%arg0: i32, %arg1: i32) -> (i32, i32) {
    %c0_i32 = arith.constant 0 : i32
    %c0_i32_0 = arith.constant 0 : i32
    %c0_i32_1 = arith.constant 0 : i32
    return %c0_i32, %c0_i32_0 : i32, i32
  }
  func.func @transform_3(%arg0: i32, %arg1: i32) -> (i32, i32, i32, i32) {
    %c0_i32 = arith.constant 0 : i32
    %c0_i32_0 = arith.constant 0 : i32
    %c0_i32_1 = arith.constant 0 : i32
    return %arg0, %arg1, %c0_i32, %c0_i32_0 : i32, i32, i32, i32
  }
}

module attributes {stable_mosaic.version = 11 : i64} {
  func.func @_fc_kernel(%arg0: i32, %arg1: memref<2x1024xbf16, #tpu.memory_space<vmem>>, %arg2: memref<1024x640xbf16, #tpu.memory_space<vmem>>, %arg3: memref<1x640xf32, #tpu.memory_space<vmem>>, %arg4: memref<640x192xbf16, #tpu.memory_space<vmem>>, %arg5: memref<1x192xf32, #tpu.memory_space<vmem>>, %arg6: memref<192x10xbf16, #tpu.memory_space<vmem>>, %arg7: memref<1x10xf32, #tpu.memory_space<vmem>>, %arg8: memref<2x10xf32, #tpu.memory_space<vmem>>) attributes {dimension_semantics = [#tpu.dimension_semantics<arbitrary>], iteration_bounds = array<i64: 1>, scalar_prefetch = 0 : i64, scratch_operands = 0 : i64, tpu.core_type = #tpu.core_type<tc>, window_params = [{pipeline_mode = #tpu.pipeline_mode<synchronous>, transform_indices = @transform_0, window_bounds = array<i64: 2, 1024>}, {pipeline_mode = #tpu.pipeline_mode<synchronous>, transform_indices = @transform_1, window_bounds = array<i64: 1024, 640>}, {pipeline_mode = #tpu.pipeline_mode<synchronous>, transform_indices = @transform_2, window_bounds = array<i64: 1, 640>}, {pipeline_mode = #tpu.pipeline_mode<synchronous>, transform_indices = @transform_3, window_bounds = array<i64: 640, 192>}, {pipeline_mode = #tpu.pipeline_mode<synchronous>, transform_indices = @transform_4, window_bounds = array<i64: 1, 192>}, {pipeline_mode = #tpu.pipeline_mode<synchronous>, transform_indices = @transform_5, window_bounds = array<i64: 192, 10>}, {pipeline_mode = #tpu.pipeline_mode<synchronous>, transform_indices = @transform_6, window_bounds = array<i64: 1, 10>}, {pipeline_mode = #tpu.pipeline_mode<synchronous>, transform_indices = @transform_7, window_bounds = array<i64: 2, 10>}]} {
    %c0 = arith.constant 0 : index
    %c0_0 = arith.constant 0 : index
    %0 = vector.load %arg1[%c0, %c0_0] : memref<2x1024xbf16, #tpu.memory_space<vmem>>, vector<2x1024xbf16>
    %c0_1 = arith.constant 0 : index
    %c0_2 = arith.constant 0 : index
    %1 = vector.load %arg2[%c0_1, %c0_2] : memref<1024x640xbf16, #tpu.memory_space<vmem>>, vector<1024x640xbf16>
    %cst = arith.constant dense<0.000000e+00> : vector<2x640xf32>
    %2 = tpu.matmul %0, %1, %cst {dimension_numbers = #tpu.dot_dimension_numbers<[1], [0], [0], [1], [0, 0, 1, 1], [], []>} : vector<2x1024xbf16>, vector<1024x640xbf16>, vector<2x640xf32> -> vector<2x640xf32>
    %c0_3 = arith.constant 0 : index
    %c0_4 = arith.constant 0 : index
    %3 = vector.load %arg3[%c0_3, %c0_4] : memref<1x640xf32, #tpu.memory_space<vmem>>, vector<1x640xf32>
    %4 = vector.broadcast %3 : vector<1x640xf32> to vector<2x640xf32>
    %5 = arith.addf %2, %4 : vector<2x640xf32>
    %cst_5 = arith.constant 0.000000e+00 : f32
    %6 = vector.broadcast %cst_5 : f32 to vector<2x640xf32>
    %7 = arith.maximumf %5, %6 : vector<2x640xf32>
    %8 = arith.truncf %7 : vector<2x640xf32> to vector<2x640xbf16>
    %c0_6 = arith.constant 0 : index
    %c0_7 = arith.constant 0 : index
    %9 = vector.load %arg4[%c0_6, %c0_7] : memref<640x192xbf16, #tpu.memory_space<vmem>>, vector<640x192xbf16>
    %cst_8 = arith.constant dense<0.000000e+00> : vector<2x192xf32>
    %10 = tpu.matmul %8, %9, %cst_8 {dimension_numbers = #tpu.dot_dimension_numbers<[1], [0], [0], [1], [0, 0, 1, 1], [], []>} : vector<2x640xbf16>, vector<640x192xbf16>, vector<2x192xf32> -> vector<2x192xf32>
    %c0_9 = arith.constant 0 : index
    %c0_10 = arith.constant 0 : index
    %11 = vector.load %arg5[%c0_9, %c0_10] : memref<1x192xf32, #tpu.memory_space<vmem>>, vector<1x192xf32>
    %12 = vector.broadcast %11 : vector<1x192xf32> to vector<2x192xf32>
    %13 = arith.addf %10, %12 : vector<2x192xf32>
    %cst_11 = arith.constant 0.000000e+00 : f32
    %14 = vector.broadcast %cst_11 : f32 to vector<2x192xf32>
    %15 = arith.maximumf %13, %14 : vector<2x192xf32>
    %16 = arith.truncf %15 : vector<2x192xf32> to vector<2x192xbf16>
    %c0_12 = arith.constant 0 : index
    %c0_13 = arith.constant 0 : index
    %17 = vector.load %arg6[%c0_12, %c0_13] : memref<192x10xbf16, #tpu.memory_space<vmem>>, vector<192x10xbf16>
    %cst_14 = arith.constant dense<0.000000e+00> : vector<2x10xf32>
    %18 = tpu.matmul %16, %17, %cst_14 {dimension_numbers = #tpu.dot_dimension_numbers<[1], [0], [0], [1], [0, 0, 1, 1], [], []>} : vector<2x192xbf16>, vector<192x10xbf16>, vector<2x10xf32> -> vector<2x10xf32>
    %c0_15 = arith.constant 0 : index
    %c0_16 = arith.constant 0 : index
    %19 = vector.load %arg7[%c0_15, %c0_16] : memref<1x10xf32, #tpu.memory_space<vmem>>, vector<1x10xf32>
    %20 = vector.broadcast %19 : vector<1x10xf32> to vector<2x10xf32>
    %21 = arith.addf %18, %20 : vector<2x10xf32>
    %c0_17 = arith.constant 0 : index
    %c0_18 = arith.constant 0 : index
    %22 = vector.load %arg8[%c0_17, %c0_18] : memref<2x10xf32, #tpu.memory_space<vmem>>, vector<2x10xf32>
    tpu.vector_store %arg8[%c0_17, %c0_18], %21 {strides = array<i32>} : memref<2x10xf32, #tpu.memory_space<vmem>>, vector<2x10xf32>,
    return
  }
  func.func @transform_0(%arg0: i32) -> (i32, i32) {
    %c0_i32 = arith.constant 0 : i32
    %c0_i32_0 = arith.constant 0 : i32
    %c0_i32_1 = arith.constant 0 : i32
    return %c0_i32, %c0_i32_0 : i32, i32
  }
  func.func @transform_1(%arg0: i32) -> (i32, i32) {
    %c0_i32 = arith.constant 0 : i32
    %c0_i32_0 = arith.constant 0 : i32
    %c0_i32_1 = arith.constant 0 : i32
    return %c0_i32, %c0_i32_0 : i32, i32
  }
  func.func @transform_2(%arg0: i32) -> (i32, i32) {
    %c0_i32 = arith.constant 0 : i32
    %c0_i32_0 = arith.constant 0 : i32
    %c0_i32_1 = arith.constant 0 : i32
    return %c0_i32, %c0_i32_0 : i32, i32
  }
  func.func @transform_3(%arg0: i32) -> (i32, i32) {
    %c0_i32 = arith.constant 0 : i32
    %c0_i32_0 = arith.constant 0 : i32
    %c0_i32_1 = arith.constant 0 : i32
    return %c0_i32, %c0_i32_0 : i32, i32
  }
  func.func @transform_4(%arg0: i32) -> (i32, i32) {
    %c0_i32 = arith.constant 0 : i32
    %c0_i32_0 = arith.constant 0 : i32
    %c0_i32_1 = arith.constant 0 : i32
    return %c0_i32, %c0_i32_0 : i32, i32
  }
  func.func @transform_5(%arg0: i32) -> (i32, i32) {
    %c0_i32 = arith.constant 0 : i32
    %c0_i32_0 = arith.constant 0 : i32
    %c0_i32_1 = arith.constant 0 : i32
    return %c0_i32, %c0_i32_0 : i32, i32
  }
  func.func @transform_6(%arg0: i32) -> (i32, i32) {
    %c0_i32 = arith.constant 0 : i32
    %c0_i32_0 = arith.constant 0 : i32
    %c0_i32_1 = arith.constant 0 : i32
    return %c0_i32, %c0_i32_0 : i32, i32
  }
  func.func @transform_7(%arg0: i32) -> (i32, i32) {
    %c0_i32 = arith.constant 0 : i32
    %c0_i32_0 = arith.constant 0 : i32
    %c0_i32_1 = arith.constant 0 : i32
    return %c0_i32, %c0_i32_0 : i32, i32
  }
}

</mosaic_0001>

<llo_original>
// kernel: modified_lenet_forward.5
$region0: #{modified_lenet_forward.5}
  #allocation0 [shape = 'u32[]', space=smem, size = 0x4, offset = 0x4, fixed_abs, tag = 'smem constant byte address 0x4 - core index']
  #allocation1 [shape = 'u32[144,128]{1,0:T(1,128)}', space=vmem, size = 0x12000, scoped, tag = 'internal scratch']
  %s0 = inlined_call_operand.vmem [shape: bf16[2,32,32,128], index: 0, kind: input, shape index: {}]
  %s1 = inlined_call_operand.vmem [shape: bf16[1,128,128], index: 1, kind: input, shape index: {}]
  %s2 = inlined_call_operand.vmem [shape: f32[1,128], index: 2, kind: input, shape index: {}]
  %s3 = inlined_call_operand.vmem [shape: bf16[2,16,16,128], index: 3, kind: output, shape index: {}]
  %s4 = sld [smem:[#allocation0]]
  $region45: #{modified_lenet_forward.5} parent=0
    _
  %s6 = ssub.s32 1, %s4
  %s7 = scalar_select 0, %s6, %s4
  loop: start=0, step=1, limit=34
  $region2: #{modified_lenet_forward.5} parent=0 // loop_pre_header
    _
  $region3: #{modified_lenet_forward.5} parent=0 // loop_header
    %s9 = sphi 0, %s13
    %p10 = scmp.ge.s32.totalorder %s9, 34
    %s16 = sphi 0, %s28
    %s17 = sphi 0, %s24
    %s18 = sphi 0, %s16
    %s19 = sphi 0, %s17
    %s20 = sphi 0, %s18
    %s21 = sphi 0, %s19
    %s31 = sphi 0, %s33
    %s34 = sphi 0, %s31
    %s35 = sphi 0, %s34
    %s51 = sphi 0, %s35
    %s55 = sphi 0, %s55
    %s57 = sphi 0, %s55
    %s58 = sphi 0, %s57
    %s72 = sphi 0, %s58
    %s76 = sphi 0, %s76
    %s78 = sphi 0, %s76
    %s79 = sphi 0, %s78
    %s93 = sphi 0, %s79
    %s101 = sphi 0, %s103
    %s104 = sphi 0, %s101
    %s105 = sphi 0, %s104
    %s121 = sphi 0, %s105
  $region4: #{modified_lenet_forward.5} parent=0 // loop_header_branch
    %12 = sbr.rel (%p10) target = $region8
  $region5: #{modified_lenet_forward.5} parent=0 // loop_body
    %s14 = ssub.s32 %s9, 1
    %s15 = ssub.s32 %s9, 2
    %s22 = sadd.s32 1, %s17
    %p23 = scmp.ge.s32.totalorder %s22, 16
    %s24 = scalar_select %p23, 0, %s22
    %s25 = sadd.s32 1, %s16
    %s26 = scalar_select %p23, %s25, %s16
    %p27 = scmp.ge.s32.totalorder %s26, 2
    %s28 = scalar_select %p27, 0, %s26
    %s29 = ssub.s32 %s16, %s28
    %p30 = scmp.eq.s32.totalorder %s29, 0
    %s32 = sadd.s32 %s31, 1
    %s33 = scalar_select %p30, %s31, %s32
    %p36 = pneg %p30
    %p37 = scmp.eq.s32.totalorder %s9, 31
    %p38 = por %p36, %p37
    %p39 = scmp.ne.s32.totalorder %s31, %s34
    %p40 = scmp.eq.s32.totalorder %s9, 0
    %p41 = por %p39, %p40
    %p42 = scmp.ne.s32.totalorder %s31, %s34
    %p43 = scmp.eq.s32.totalorder %s14, 31
    %p44 = por %p42, %p43
    %p45 = scmp.ne.s32.totalorder %s34, %s35
    %p46 = scmp.eq.s32.totalorder %s14, 0
    %p47 = por %p45, %p46
    %p48 = scmp.ne.s32.totalorder %s34, %s35
    %p49 = scmp.eq.s32.totalorder %s15, 31
    %p50 = por %p48, %p49
    %p52 = scmp.ne.s32.totalorder %s35, %s51
    %p53 = scmp.eq.s32.totalorder %s15, 0
    %p54 = por %p52, %p53
    %s56 = sadd.s32 %s55, 1
    %p59 = scmp.eq.s32.totalorder %s9, 31
    %p60 = scmp.ne.s32.totalorder %s55, %s57
    %p61 = scmp.eq.s32.totalorder %s9, 0
    %p62 = por %p60, %p61
    %p63 = scmp.ne.s32.totalorder %s55, %s57
    %p64 = scmp.eq.s32.totalorder %s14, 31
    %p65 = por %p63, %p64
    %p66 = scmp.ne.s32.totalorder %s57, %s58
    %p67 = scmp.eq.s32.totalorder %s14, 0
    %p68 = por %p66, %p67
    %p69 = scmp.ne.s32.totalorder %s57, %s58
    %p70 = scmp.eq.s32.totalorder %s15, 31
    %p71 = por %p69, %p70
    %p73 = scmp.ne.s32.totalorder %s58, %s72
    %p74 = scmp.eq.s32.totalorder %s15, 0
    %p75 = por %p73, %p74
    %s77 = sadd.s32 %s76, 1
    %p80 = scmp.eq.s32.totalorder %s9, 31
    %p81 = scmp.ne.s32.totalorder %s76, %s78
    %p82 = scmp.eq.s32.totalorder %s9, 0
    %p83 = por %p81, %p82
    %p84 = scmp.ne.s32.totalorder %s76, %s78
    %p85 = scmp.eq.s32.totalorder %s14, 31
    %p86 = por %p84, %p85
    %p87 = scmp.ne.s32.totalorder %s78, %s79
    %p88 = scmp.eq.s32.totalorder %s14, 0
    %p89 = por %p87, %p88
    %p90 = scmp.ne.s32.totalorder %s78, %s79
    %p91 = scmp.eq.s32.totalorder %s15, 31
    %p92 = por %p90, %p91
    %p94 = scmp.ne.s32.totalorder %s79, %s93
    %p95 = scmp.eq.s32.totalorder %s15, 0
    %p96 = por %p94, %p95
    %s97 = ssub.s32 %s16, %s28
    %s98 = ssub.s32 %s17, %s24
    %s99 = sor.u32 %s97, %s98
    %p100 = scmp.eq.s32.totalorder %s99, 0
    %s102 = sadd.s32 %s101, 1
    %s103 = scalar_select %p100, %s101, %s102
    %p106 = pneg %p100
    %p107 = scmp.eq.s32.totalorder %s9, 31
    %p108 = por %p106, %p107
    %p109 = scmp.ne.s32.totalorder %s101, %s104
    %p110 = scmp.eq.s32.totalorder %s9, 0
    %p111 = por %p109, %p110
    %p112 = scmp.ne.s32.totalorder %s101, %s104
    %p113 = scmp.eq.s32.totalorder %s14, 31
    %p114 = por %p112, %p113
    %p115 = scmp.ne.s32.totalorder %s104, %s105
    %p116 = scmp.eq.s32.totalorder %s14, 0
    %p117 = por %p115, %p116
    %p118 = scmp.ne.s32.totalorder %s104, %s105
    %p119 = scmp.eq.s32.totalorder %s15, 31
    %p120 = por %p118, %p119
    %p122 = scmp.ne.s32.totalorder %s105, %s121
    %p123 = scmp.eq.s32.totalorder %s15, 0
    %p124 = por %p122, %p123
    %p125 = scmp.le.s32.totalorder 1, %s9
    %p126 = scmp.lt.s32.totalorder %s9, 33
    %p127 = pnand %p125, %p126
    %p128 = pneg %p127
    // Predicated region
    $region9: #{modified_lenet_forward.5} parent=5 // pred_check
      _
    $region10: #{modified_lenet_forward.5} parent=5 // pred_check_branch
      %130 = sbr.rel (%p127) target = $region12
    $region11: #{modified_lenet_forward.5} parent=5 // pred_region
      %s131 = ssub.s32 %s9, 1
      // Predicated region
      $region13: #{modified_lenet_forward.5} parent=11 // pred_check
        %p132 = pneg %p68
      $region14: #{modified_lenet_forward.5} parent=11 // pred_check_branch
        %134 = sbr.rel (%p132) target = $region16
      $region15: #{modified_lenet_forward.5} parent=11 // pred_region
        _
      $region16: #{modified_lenet_forward.5} parent=11 // pred_fallthru
        _
      // Predicated region
      $region17: #{modified_lenet_forward.5} parent=11 // pred_check
        %p135 = pneg %p89
      $region18: #{modified_lenet_forward.5} parent=11 // pred_check_branch
        %137 = sbr.rel (%p135) target = $region20
      $region19: #{modified_lenet_forward.5} parent=11 // pred_region
        _
      $region20: #{modified_lenet_forward.5} parent=11 // pred_fallthru
        _
    $region12: #{modified_lenet_forward.5} parent=5 // pred_fallthru
      _
    %p138 = scmp.lt.s32.totalorder %s9, 32
    // Predicated region
    $region21: #{modified_lenet_forward.5} parent=5 // pred_check
      %p139 = pneg %p138
    $region22: #{modified_lenet_forward.5} parent=5 // pred_check_branch
      %141 = sbr.rel (%p139) target = $region24
    $region23: #{modified_lenet_forward.5} parent=5 // pred_region
      // Predicated region
      $region25: #{modified_lenet_forward.5} parent=23 // pred_check
        %p142 = pneg %p41
      $region26: #{modified_lenet_forward.5} parent=23 // pred_check_branch
        %144 = sbr.rel (%p142) target = $region28
      $region27: #{modified_lenet_forward.5} parent=23 // pred_region
        %p145 = scmp.lt.s32.totalorder %s16, 1
        %s146 = scalar_select %p145, %s16, 1
        %s147 = smul.addr %s146, 128
        %s148 = smul.addr %s147, 4
        %s149 = scalar_lea.vmem %s0, %s148
      $region28: #{modified_lenet_forward.5} parent=23 // pred_fallthru
        _
    $region24: #{modified_lenet_forward.5} parent=5 // pred_fallthru
      _
    %p150 = scmp.le.s32.totalorder 1, %s9
    %p151 = scmp.lt.s32.totalorder %s9, 33
    %p152 = pnand %p150, %p151
    %p153 = pneg %p152
    // Predicated region
    $region29: #{modified_lenet_forward.5} parent=5 // pred_check
      _
    $region30: #{modified_lenet_forward.5} parent=5 // pred_check_branch
      %155 = sbr.rel (%p152) target = $region32
    $region31: #{modified_lenet_forward.5} parent=5 // pred_region
      %s156 = ssub.s32 %s9, 1
      %p157 = scmp.lt.s32.totalorder %s18, 1
      %s158 = scalar_select %p157, %s18, 1
      %s159 = smul.addr %s158, 128
      %s160 = smul.addr %s159, 4
      %s161 = scalar_lea.vmem %s0, %s160
      %p162 = pneg %p47
      %p163 = pneg %p44
      %p164 = pneg %p68
      %p165 = pneg %p65
      %p166 = pneg %p89
      %p167 = pneg %p86
      %p168 = pneg %p117
      %p169 = pneg %p114
      %p170 = scmp.lt.s32.totalorder %s18, 1
      %s171 = scalar_select %p170, %s18, 1
      %p172 = scmp.lt.s32.totalorder %s19, 15
      %s173 = scalar_select %p172, %s19, 15
      %s174 = smul.addr %s173, 2
      %s175 = smul.addr %s171, 32
      %s176 = sadd.s32 %s174, %s175
      %s177 = smul.addr %s176, 4
      %s178 = scalar_lea.vmem %s3, %s177
      %p179 = scmp.lt.s32.totalorder %s18, 1
      %s180 = scalar_select %p179, %s18, 1
      %s181 = smul.addr %s180, 128
      %s182 = smul.addr %s181, 4
      %s183 = scalar_lea.vmem %s0, %s182
      %p184 = scmp.lt.s32.totalorder %s18, 1
      %s185 = scalar_select %p184, %s18, 1
      %p186 = scmp.lt.s32.totalorder %s19, 15
      %s187 = scalar_select %p186, %s19, 15
      %s188 = smul.addr %s187, 2
      %s189 = smul.addr %s185, 32
      %s190 = sadd.s32 %s188, %s189
      %s191 = smul.addr %s190, 4
      %s192 = scalar_lea.vmem %s3, %s191
      %s194 = smul.u32 %s19, 2
      %s195 = smul.u32 %s194, 4
      %s196 = smul.addr %s195, 4
      %s197 = scalar_lea.vmem %s183, %s196
      %v198 = vld [vmem:[%s197] sm:$0xf]
      %v199 = vld [vmem:[%s197 + $0x4] sm:$0xf]
      %v200 = vld [vmem:[%s197 + $0x8] sm:$0xf]
      %v201 = vld [vmem:[%s197 + $0xc] sm:$0xf]
      %v202 = vld [vmem:[%s197 + $0x10] sm:$0xf]
      %v203 = vld [vmem:[%s197 + $0x14] sm:$0xf]
      %v204 = vld [vmem:[%s197 + $0x18] sm:$0xf]
      %v205 = vld [vmem:[%s197 + $0x1c] sm:$0xf]
      %v206 = vld [vmem:[%s1] sm:$0xf]
      %v207 = vld [vmem:[%s1 + $0x4] sm:$0xf]
      %v208 = vld [vmem:[%s1 + $0x8] sm:$0xf]
      %v209 = vld [vmem:[%s1 + $0xc] sm:$0xf]
      %v210 = vld [vmem:[%s1 + $0x10] sm:$0xf]
      %v211 = vld [vmem:[%s1 + $0x14] sm:$0xf]
      %v212 = vld [vmem:[%s1 + $0x18] sm:$0xf]
      %v213 = vld [vmem:[%s1 + $0x1c] sm:$0xf]
      %v214 = vld [vmem:[%s1 + $0x20] sm:$0xf]
      %v215 = vld [vmem:[%s1 + $0x24] sm:$0xf]
      %v216 = vld [vmem:[%s1 + $0x28] sm:$0xf]
      %v217 = vld [vmem:[%s1 + $0x2c] sm:$0xf]
      %v218 = vld [vmem:[%s1 + $0x30] sm:$0xf]
      %v219 = vld [vmem:[%s1 + $0x34] sm:$0xf]
      %v220 = vld [vmem:[%s1 + $0x38] sm:$0xf]
      %v221 = vld [vmem:[%s1 + $0x3c] sm:$0xf]
      %v222 = vld [vmem:[%s2] sm:$0x1]
      %v224 = vlaneseq
      %v225 = vshrl.u32 %v224, 7
      %v226 = vsub.s32 0, %v225
      %v227 = vrot.slane %v222, %v226
      %v237 = vunpack.c.l.b16 %v198
      %v238 = vunpack.c.l.b16 %v199
      %v239 = vunpack.c.l.b16 %v200
      %v240 = vunpack.c.l.b16 %v201
      %v241 = vunpack.c.l.b16 %v202
      %v242 = vunpack.c.l.b16 %v203
      %v243 = vunpack.c.l.b16 %v204
      %v244 = vunpack.c.l.b16 %v205
      %v245 = vpack.c.b16 %v238, %v237
      %v246 = vpack.c.b16 %v240, %v239
      %v247 = vpack.c.b16 %v242, %v241
      %v248 = vpack.c.b16 %v244, %v243
      %v269 = vunpack.c.l.b16 %v206
      %v270 = vunpack.c.l.b16 %v207
      %v271 = vunpack.c.l.b16 %v208
      %v272 = vunpack.c.l.b16 %v209
      %v273 = vunpack.c.l.b16 %v210
      %v274 = vunpack.c.l.b16 %v211
      %v275 = vunpack.c.l.b16 %v212
      %v276 = vunpack.c.l.b16 %v213
      %v277 = vunpack.c.l.b16 %v214
      %v278 = vunpack.c.l.b16 %v215
      %v279 = vunpack.c.l.b16 %v216
      %v280 = vunpack.c.l.b16 %v217
      %v281 = vunpack.c.l.b16 %v218
      %v282 = vunpack.c.l.b16 %v219
      %v283 = vunpack.c.l.b16 %v220
      %v284 = vunpack.c.l.b16 %v221
      %v285 = vpack.c.b16 %v270, %v269
      %v286 = vpack.c.b16 %v272, %v271
      %v287 = vpack.c.b16 %v274, %v273
      %v288 = vpack.c.b16 %v276, %v275
      %v289 = vpack.c.b16 %v278, %v277
      %v290 = vpack.c.b16 %v280, %v279
      %v291 = vpack.c.b16 %v282, %v281
      %v292 = vpack.c.b16 %v284, %v283
      %301 = vmatprep.subr.bf16.mxu0 0
      %302 = vmatpush1.bf16.msra.mxu0 %v292
      %303 = vmatprep.subr.bf16.mxu0 0
      %304 = vmatpush1.bf16.msra.mxu0 %v291
      %305 = vmatprep.subr.bf16.mxu0 0
      %306 = vmatpush1.bf16.msra.mxu0 %v290
      %307 = vmatprep.subr.bf16.mxu0 0
      %308 = vmatpush1.bf16.msra.mxu0 %v289
      %309 = vmatprep.subr.bf16.mxu0 0
      %310 = vmatpush1.bf16.msra.mxu0 %v288
      %311 = vmatprep.subr.bf16.mxu0 0
      %312 = vmatpush1.bf16.msra.mxu0 %v287
      %313 = vmatprep.subr.bf16.mxu0 0
      %314 = vmatpush1.bf16.msra.mxu0 %v286
      %315 = vmatprep.subr.bf16.mxu0 0
      %316 = vmatpush1.bf16.msra.mxu0 %v285
      %317 = vmatprep.subr.bf16.mxu0 0
      %318 = vmatpush2.bf16.msra.mxu0 0
      %319 = vmatprep.subr.bf16.mxu0 0
      %320 = vmatpush2.bf16.msra.mxu0 0
      %321 = vmatprep.subr.bf16.mxu0 0
      %322 = vmatpush2.bf16.msra.mxu0 0
      %323 = vmatprep.subr.bf16.mxu0 0
      %324 = vmatpush2.bf16.msra.mxu0 0
      %325 = vmatprep.subr.bf16.mxu0 0
      %326 = vmatpush2.bf16.msra.mxu0 0
      %327 = vmatprep.subr.bf16.mxu0 0
      %328 = vmatpush2.bf16.msra.mxu0 0
      %329 = vmatprep.subr.bf16.mxu0 0
      %330 = vmatpush2.bf16.msra.mxu0 0
      %331 = vmatprep.subr.bf16.mxu0 0
      %332 = vmatpush2.bf16.msra.mxu0 0
      %333 = vmatprep.mubr.bf16.mxu0 0
      %334 = vmatmul.mubr.bf16.gmra.mxu0 %v245
      %v335 = vpop.f32.mrf.mxu0
      %v336 = vadd.f32 %v227, %v335
      %v337 = vpop.f32.mrf.mxu0
      %v338 = vpop.f32.mrf.mxu0
      %v339 = vadd.f32 %v227, %v338
      %v340 = vpop.f32.mrf.mxu0
      %341 = vmatprep.mubr.bf16.mxu0 0
      %342 = vmatmul.mubr.bf16.gmra.mxu0 %v246
      %v343 = vpop.f32.mrf.mxu0
      %v344 = vadd.f32 %v227, %v343
      %v345 = vpop.f32.mrf.mxu0
      %v346 = vpop.f32.mrf.mxu0
      %v347 = vadd.f32 %v227, %v346
      %v348 = vpop.f32.mrf.mxu0
      %349 = vmatprep.mubr.bf16.mxu0 0
      %350 = vmatmul.mubr.bf16.gmra.mxu0 %v247
      %v351 = vpop.f32.mrf.mxu0
      %v352 = vadd.f32 %v227, %v351
      %v353 = vpop.f32.mrf.mxu0
      %v354 = vpop.f32.mrf.mxu0
      %v355 = vadd.f32 %v227, %v354
      %v356 = vpop.f32.mrf.mxu0
      %357 = vmatprep.mubr.bf16.mxu0 0
      %358 = vmatmul.mubr.bf16.gmra.mxu0 %v248
      %v359 = vpop.f32.mrf.mxu0
      %v360 = vadd.f32 %v227, %v359
      %v361 = vpop.f32.mrf.mxu0
      %v362 = vpop.f32.mrf.mxu0
      %v363 = vadd.f32 %v227, %v362
      %v364 = vpop.f32.mrf.mxu0
      %365 = vdwg.mxu0
      %v366 = vmax.f32 %v336, 0.0
      %v367 = vmax.f32 %v339, 0.0
      %v368 = vmax.f32 %v344, 0.0
      %v369 = vmax.f32 %v347, 0.0
      %v370 = vmax.f32 %v352, 0.0
      %v371 = vmax.f32 %v355, 0.0
      %v372 = vmax.f32 %v360, 0.0
      %v373 = vmax.f32 %v363, 0.0
      %v374 = vmax.f32 %v366, %v370
      %v375 = vmax.f32 %v367, %v371
      %v376 = vmax.f32 %v368, %v372
      %v377 = vmax.f32 %v369, %v373
      %v378 = vlaneseq
      %v379 = vshrl.u32 %v378, 7
      %v380 = vadd.s32 %v379, 8
      %v381 = vlaneseq
      %v382 = vand.u32 %v381, 127
      %v383 = vmul.u32 %v379, 2
      %v384 = vmul.u32 %v380, 2
      %vm385 = vcmp.eq.s32.totalorder %v382, %v383
      %vm386 = vcmp.eq.s32.totalorder %v382, %v384
      %v387 = vsel %vm385, 1, 0
      %v388 = vsel %vm386, 1, 0
      %v389 = vcvt.s32.f32 %v387
      %v390 = vcvt.s32.f32 %v388
      %v391 = vadd.s32 %v383, 1
      %v392 = vadd.s32 %v384, 1
      %vm393 = vcmp.eq.s32.totalorder %v382, %v391
      %vm394 = vcmp.eq.s32.totalorder %v382, %v392
      %v395 = vsel %vm393, 1, 0
      %v396 = vsel %vm394, 1, 0
      %v397 = vcvt.s32.f32 %v395
      %v398 = vcvt.s32.f32 %v396
      %vm399 = vcmask 261120
      %v401 = vsel %vm399, %v389, 0
      %v404 = vsel %vm399, %v390, 0
      %406 = vmatprep.subr.mxu0 0.0
      %407 = vmatpush1.msra.mxu0 0.0
      %408 = vmatprep.subr.mxu0 0.0
      %409 = vmatpush1.msra.mxu0 0.0
      %410 = vmatprep.subr.mxu0 0.0
      %411 = vmatpush1.msra.mxu0 0.0
      %412 = vmatprep.subr.mxu0 0.0
      %413 = vmatpush1.msra.mxu0 0.0
      %414 = vmatprep.subr.mxu0 0.0
      %415 = vmatpush1.msra.mxu0 0.0
      %416 = vmatprep.subr.mxu0 0.0
      %417 = vmatpush1.msra.mxu0 0.0
      %418 = vmatprep.subr.mxu0 0.0
      %419 = vmatpush1.msra.mxu0 0.0
      %420 = vmatprep.subr.mxu0 0.0
      %421 = vmatpush1.msra.mxu0 0.0
      %422 = vmatprep.subr.mxu0 0.0
      %423 = vmatpush1.msra.mxu0 0.0
      %424 = vmatprep.subr.mxu0 0.0
      %425 = vmatpush1.msra.mxu0 0.0
      %426 = vmatprep.subr.mxu0 0.0
      %427 = vmatpush1.msra.mxu0 0.0
      %428 = vmatprep.subr.mxu0 0.0
      %429 = vmatpush1.msra.mxu0 0.0
      %430 = vmatprep.subr.mxu0 0.0
      %431 = vmatpush1.msra.mxu0 %v377
      %432 = vmatprep.subr.mxu0 0.0
      %433 = vmatpush1.msra.mxu0 %v376
      %434 = vmatprep.subr.mxu0 0.0
      %435 = vmatpush1.msra.mxu0 %v375
      %436 = vmatprep.subr.mxu0 0.0
      %437 = vmatpush1.msra.mxu0 %v374
      %438 = vmatprep.subr.mxu0 0.0
      %439 = vmatpush2.msra.mxu0 0.0
      %440 = vmatprep.subr.mxu0 0.0
      %441 = vmatpush2.msra.mxu0 0.0
      %442 = vmatprep.subr.mxu0 0.0
      %443 = vmatpush2.msra.mxu0 0.0
      %444 = vmatprep.subr.mxu0 0.0
      %445 = vmatpush2.msra.mxu0 0.0
      %446 = vmatprep.subr.mxu0 0.0
      %447 = vmatpush2.msra.mxu0 0.0
      %448 = vmatprep.subr.mxu0 0.0
      %449 = vmatpush2.msra.mxu0 0.0
      %450 = vmatprep.subr.mxu0 0.0
      %451 = vmatpush2.msra.mxu0 0.0
      %452 = vmatprep.subr.mxu0 0.0
      %453 = vmatpush2.msra.mxu0 0.0
      %454 = vmatprep.subr.mxu0 0.0
      %455 = vmatpush2.msra.mxu0 0.0
      %456 = vmatprep.subr.mxu0 0.0
      %457 = vmatpush2.msra.mxu0 0.0
      %458 = vmatprep.subr.mxu0 0.0
      %459 = vmatpush2.msra.mxu0 0.0
      %460 = vmatprep.subr.mxu0 0.0
      %461 = vmatpush2.msra.mxu0 0.0
      %462 = vmatprep.subr.mxu0 0.0
      %463 = vmatpush2.msra.mxu0 0.0
      %464 = vmatprep.subr.mxu0 0.0
      %465 = vmatpush2.msra.mxu0 0.0
      %466 = vmatprep.subr.mxu0 0.0
      %467 = vmatpush2.msra.mxu0 0.0
      %468 = vmatprep.subr.mxu0 0.0
      %469 = vmatpush2.msra.mxu0 0.0
      %470 = vmatprep.mubr.f32.mxu0 0.0
      %471 = vmatmul.mubr.f32.gmra.mxu0 %v401
      %v472 = vpop.f32.mrf.mxu0
      %v473 = vadd.f32 0.0, %v472
      %v474 = vpop.f32.mrf.mxu0
      %475 = vmatprep.mubr.f32.mxu0 0.0
      %476 = vmatmul.mubr.f32.gmra.mxu0 %v404
      %v477 = vpop.f32.mrf.mxu0
      %v478 = vadd.f32 0.0, %v477
      %v479 = vpop.f32.mrf.mxu0
      %480 = vdwg.mxu0
      %v482 = vsel %vm399, %v397, 0
      %v485 = vsel %vm399, %v398, 0
      %487 = vmatprep.subr.mxu0 0.0
      %488 = vmatpush1.msra.mxu0 0.0
      %489 = vmatprep.subr.mxu0 0.0
      %490 = vmatpush1.msra.mxu0 0.0
      %491 = vmatprep.subr.mxu0 0.0
      %492 = vmatpush1.msra.mxu0 0.0
      %493 = vmatprep.subr.mxu0 0.0
      %494 = vmatpush1.msra.mxu0 0.0
      %495 = vmatprep.subr.mxu0 0.0
      %496 = vmatpush1.msra.mxu0 0.0
      %497 = vmatprep.subr.mxu0 0.0
      %498 = vmatpush1.msra.mxu0 0.0
      %499 = vmatprep.subr.mxu0 0.0
      %500 = vmatpush1.msra.mxu0 0.0
      %501 = vmatprep.subr.mxu0 0.0
      %502 = vmatpush1.msra.mxu0 0.0
      %503 = vmatprep.subr.mxu0 0.0
      %504 = vmatpush1.msra.mxu0 0.0
      %505 = vmatprep.subr.mxu0 0.0
      %506 = vmatpush1.msra.mxu0 0.0
      %507 = vmatprep.subr.mxu0 0.0
      %508 = vmatpush1.msra.mxu0 0.0
      %509 = vmatprep.subr.mxu0 0.0
      %510 = vmatpush1.msra.mxu0 0.0
      %511 = vmatprep.subr.mxu0 0.0
      %512 = vmatpush1.msra.mxu0 %v377
      %513 = vmatprep.subr.mxu0 0.0
      %514 = vmatpush1.msra.mxu0 %v376
      %515 = vmatprep.subr.mxu0 0.0
      %516 = vmatpush1.msra.mxu0 %v375
      %517 = vmatprep.subr.mxu0 0.0
      %518 = vmatpush1.msra.mxu0 %v374
      %519 = vmatprep.subr.mxu0 0.0
      %520 = vmatpush2.msra.mxu0 0.0
      %521 = vmatprep.subr.mxu0 0.0
      %522 = vmatpush2.msra.mxu0 0.0
      %523 = vmatprep.subr.mxu0 0.0
      %524 = vmatpush2.msra.mxu0 0.0
      %525 = vmatprep.subr.mxu0 0.0
      %526 = vmatpush2.msra.mxu0 0.0
      %527 = vmatprep.subr.mxu0 0.0
      %528 = vmatpush2.msra.mxu0 0.0
      %529 = vmatprep.subr.mxu0 0.0
      %530 = vmatpush2.msra.mxu0 0.0
      %531 = vmatprep.subr.mxu0 0.0
      %532 = vmatpush2.msra.mxu0 0.0
      %533 = vmatprep.subr.mxu0 0.0
      %534 = vmatpush2.msra.mxu0 0.0
      %535 = vmatprep.subr.mxu0 0.0
      %536 = vmatpush2.msra.mxu0 0.0
      %537 = vmatprep.subr.mxu0 0.0
      %538 = vmatpush2.msra.mxu0 0.0
      %539 = vmatprep.subr.mxu0 0.0
      %540 = vmatpush2.msra.mxu0 0.0
      %541 = vmatprep.subr.mxu0 0.0
      %542 = vmatpush2.msra.mxu0 0.0
      %543 = vmatprep.subr.mxu0 0.0
      %544 = vmatpush2.msra.mxu0 0.0
      %545 = vmatprep.subr.mxu0 0.0
      %546 = vmatpush2.msra.mxu0 0.0
      %547 = vmatprep.subr.mxu0 0.0
      %548 = vmatpush2.msra.mxu0 0.0
      %549 = vmatprep.subr.mxu0 0.0
      %550 = vmatpush2.msra.mxu0 0.0
      %551 = vmatprep.mubr.f32.mxu0 0.0
      %552 = vmatmul.mubr.f32.gmra.mxu0 %v482
      %v553 = vpop.f32.mrf.mxu0
      %v554 = vadd.f32 0.0, %v553
      %v555 = vpop.f32.mrf.mxu0
      %556 = vmatprep.mubr.f32.mxu0 0.0
      %557 = vmatmul.mubr.f32.gmra.mxu0 %v485
      %v558 = vpop.f32.mrf.mxu0
      %v559 = vadd.f32 0.0, %v558
      %v560 = vpop.f32.mrf.mxu0
      %561 = vdwg.mxu0
      %v562 = vmax.f32 %v473, %v554
      %v563 = vmax.f32 %v478, %v559
      %v564 = vpack.c.bf16 %v563, %v562
      %v566 = vunpack.c.l.b16 %v564
      %v567 = vunpack.c.h.b16 %v564
      %v568 = vpack.c.b16 %v566, %v566
      %v569 = vpack.c.b16 %v567, %v567
      %572 = vst [vmem:[%s192] sm:$0xf] %v568
      %573 = vst [vmem:[%s192 + $0x4] sm:$0xf] %v569
      %p574 = scmp.lt.s32.totalorder %s18, 1
      %s575 = scalar_select %p574, %s18, 1
      %p576 = scmp.lt.s32.totalorder %s19, 15
      %s577 = scalar_select %p576, %s19, 15
      %s578 = smul.addr %s577, 2
      %s579 = smul.addr %s575, 32
      %s580 = sadd.s32 %s578, %s579
      %s581 = smul.addr %s580, 4
      %s582 = scalar_lea.vmem %s3, %s581
      // Predicated region
      $region33: #{modified_lenet_forward.5} parent=31 // pred_check
        %p583 = pneg %p114
      $region34: #{modified_lenet_forward.5} parent=31 // pred_check_branch
        %585 = sbr.rel (%p583) target = $region36
      $region35: #{modified_lenet_forward.5} parent=31 // pred_region
        _
      $region36: #{modified_lenet_forward.5} parent=31 // pred_fallthru
        _
    $region32: #{modified_lenet_forward.5} parent=5 // pred_fallthru
      _
    %p586 = scmp.le.s32.totalorder 2, %s9
    // Predicated region
    $region37: #{modified_lenet_forward.5} parent=5 // pred_check
      %p587 = pneg %p586
    $region38: #{modified_lenet_forward.5} parent=5 // pred_check_branch
      %589 = sbr.rel (%p587) target = $region40
    $region39: #{modified_lenet_forward.5} parent=5 // pred_region
      %s590 = ssub.s32 %s9, 2
      // Predicated region
      $region41: #{modified_lenet_forward.5} parent=39 // pred_check
        %p591 = pneg %p120
      $region42: #{modified_lenet_forward.5} parent=39 // pred_check_branch
        %593 = sbr.rel (%p591) target = $region44
      $region43: #{modified_lenet_forward.5} parent=39 // pred_region
        %p594 = scmp.lt.s32.totalorder %s20, 1
        %s595 = scalar_select %p594, %s20, 1
        %p596 = scmp.lt.s32.totalorder %s21, 15
        %s597 = scalar_select %p596, %s21, 15
        %s598 = smul.addr %s597, 2
        %s599 = smul.addr %s595, 32
        %s600 = sadd.s32 %s598, %s599
        %s601 = smul.addr %s600, 4
        %s602 = scalar_lea.vmem %s3, %s601
      $region44: #{modified_lenet_forward.5} parent=39 // pred_fallthru
        _
    $region40: #{modified_lenet_forward.5} parent=5 // pred_fallthru
      _
  $region6: #{modified_lenet_forward.5} parent=0 // loop_footer
    %s13 = sadd.s32 1, %s9
  $region7: #{modified_lenet_forward.5} parent=0 // loop_footer_branch
    %8 = sbr.rel target = $region3
  $region8: #{modified_lenet_forward.5} parent=0 // loop_exit
    _

// kernel: modified_lenet_forward.7
$region0: #{modified_lenet_forward.7}
  #allocation0 [shape = 'u32[]', space=smem, size = 0x4, offset = 0x4, fixed_abs, tag = 'smem constant byte address 0x4 - core index']
  #allocation1 [shape = 'u32[144,128]{1,0:T(1,128)}', space=vmem, size = 0x12000, scoped, tag = 'internal scratch']
  %s0 = inlined_call_operand.vmem [shape: bf16[2,10,10,128], index: 0, kind: input, shape index: {}]
  %s1 = inlined_call_operand.vmem [shape: bf16[9,128,128], index: 1, kind: input, shape index: {}]
  %s2 = inlined_call_operand.vmem [shape: f32[1,128], index: 2, kind: input, shape index: {}]
  %s3 = inlined_call_operand.vmem [shape: bf16[2,4,4,128], index: 3, kind: output, shape index: {}]
  %s4 = sld [smem:[#allocation0]]
  $region45: #{modified_lenet_forward.7} parent=0
    _
  %s6 = ssub.s32 1, %s4
  %s7 = scalar_select 0, %s6, %s4
  loop: start=0, step=1, limit=10
  $region2: #{modified_lenet_forward.7} parent=0 // loop_pre_header
    _
  $region3: #{modified_lenet_forward.7} parent=0 // loop_header
    %s9 = sphi 0, %s13
    %p10 = scmp.ge.s32.totalorder %s9, 10
    %s16 = sphi 0, %s28
    %s17 = sphi 0, %s24
    %s18 = sphi 0, %s16
    %s19 = sphi 0, %s17
    %s20 = sphi 0, %s18
    %s21 = sphi 0, %s19
    %s31 = sphi 0, %s33
    %s34 = sphi 0, %s31
    %s35 = sphi 0, %s34
    %s51 = sphi 0, %s35
    %s55 = sphi 0, %s55
    %s57 = sphi 0, %s55
    %s58 = sphi 0, %s57
    %s72 = sphi 0, %s58
    %s76 = sphi 0, %s76
    %s78 = sphi 0, %s76
    %s79 = sphi 0, %s78
    %s93 = sphi 0, %s79
    %s101 = sphi 0, %s103
    %s104 = sphi 0, %s101
    %s105 = sphi 0, %s104
    %s121 = sphi 0, %s105
  $region4: #{modified_lenet_forward.7} parent=0 // loop_header_branch
    %12 = sbr.rel (%p10) target = $region8
  $region5: #{modified_lenet_forward.7} parent=0 // loop_body
    %s14 = ssub.s32 %s9, 1
    %s15 = ssub.s32 %s9, 2
    %s22 = sadd.s32 1, %s17
    %p23 = scmp.ge.s32.totalorder %s22, 4
    %s24 = scalar_select %p23, 0, %s22
    %s25 = sadd.s32 1, %s16
    %s26 = scalar_select %p23, %s25, %s16
    %p27 = scmp.ge.s32.totalorder %s26, 2
    %s28 = scalar_select %p27, 0, %s26
    %s29 = ssub.s32 %s16, %s28
    %p30 = scmp.eq.s32.totalorder %s29, 0
    %s32 = sadd.s32 %s31, 1
    %s33 = scalar_select %p30, %s31, %s32
    %p36 = pneg %p30
    %p37 = scmp.eq.s32.totalorder %s9, 7
    %p38 = por %p36, %p37
    %p39 = scmp.ne.s32.totalorder %s31, %s34
    %p40 = scmp.eq.s32.totalorder %s9, 0
    %p41 = por %p39, %p40
    %p42 = scmp.ne.s32.totalorder %s31, %s34
    %p43 = scmp.eq.s32.totalorder %s14, 7
    %p44 = por %p42, %p43
    %p45 = scmp.ne.s32.totalorder %s34, %s35
    %p46 = scmp.eq.s32.totalorder %s14, 0
    %p47 = por %p45, %p46
    %p48 = scmp.ne.s32.totalorder %s34, %s35
    %p49 = scmp.eq.s32.totalorder %s15, 7
    %p50 = por %p48, %p49
    %p52 = scmp.ne.s32.totalorder %s35, %s51
    %p53 = scmp.eq.s32.totalorder %s15, 0
    %p54 = por %p52, %p53
    %s56 = sadd.s32 %s55, 1
    %p59 = scmp.eq.s32.totalorder %s9, 7
    %p60 = scmp.ne.s32.totalorder %s55, %s57
    %p61 = scmp.eq.s32.totalorder %s9, 0
    %p62 = por %p60, %p61
    %p63 = scmp.ne.s32.totalorder %s55, %s57
    %p64 = scmp.eq.s32.totalorder %s14, 7
    %p65 = por %p63, %p64
    %p66 = scmp.ne.s32.totalorder %s57, %s58
    %p67 = scmp.eq.s32.totalorder %s14, 0
    %p68 = por %p66, %p67
    %p69 = scmp.ne.s32.totalorder %s57, %s58
    %p70 = scmp.eq.s32.totalorder %s15, 7
    %p71 = por %p69, %p70
    %p73 = scmp.ne.s32.totalorder %s58, %s72
    %p74 = scmp.eq.s32.totalorder %s15, 0
    %p75 = por %p73, %p74
    %s77 = sadd.s32 %s76, 1
    %p80 = scmp.eq.s32.totalorder %s9, 7
    %p81 = scmp.ne.s32.totalorder %s76, %s78
    %p82 = scmp.eq.s32.totalorder %s9, 0
    %p83 = por %p81, %p82
    %p84 = scmp.ne.s32.totalorder %s76, %s78
    %p85 = scmp.eq.s32.totalorder %s14, 7
    %p86 = por %p84, %p85
    %p87 = scmp.ne.s32.totalorder %s78, %s79
    %p88 = scmp.eq.s32.totalorder %s14, 0
    %p89 = por %p87, %p88
    %p90 = scmp.ne.s32.totalorder %s78, %s79
    %p91 = scmp.eq.s32.totalorder %s15, 7
    %p92 = por %p90, %p91
    %p94 = scmp.ne.s32.totalorder %s79, %s93
    %p95 = scmp.eq.s32.totalorder %s15, 0
    %p96 = por %p94, %p95
    %s97 = ssub.s32 %s16, %s28
    %s98 = ssub.s32 %s17, %s24
    %s99 = sor.u32 %s97, %s98
    %p100 = scmp.eq.s32.totalorder %s99, 0
    %s102 = sadd.s32 %s101, 1
    %s103 = scalar_select %p100, %s101, %s102
    %p106 = pneg %p100
    %p107 = scmp.eq.s32.totalorder %s9, 7
    %p108 = por %p106, %p107
    %p109 = scmp.ne.s32.totalorder %s101, %s104
    %p110 = scmp.eq.s32.totalorder %s9, 0
    %p111 = por %p109, %p110
    %p112 = scmp.ne.s32.totalorder %s101, %s104
    %p113 = scmp.eq.s32.totalorder %s14, 7
    %p114 = por %p112, %p113
    %p115 = scmp.ne.s32.totalorder %s104, %s105
    %p116 = scmp.eq.s32.totalorder %s14, 0
    %p117 = por %p115, %p116
    %p118 = scmp.ne.s32.totalorder %s104, %s105
    %p119 = scmp.eq.s32.totalorder %s15, 7
    %p120 = por %p118, %p119
    %p122 = scmp.ne.s32.totalorder %s105, %s121
    %p123 = scmp.eq.s32.totalorder %s15, 0
    %p124 = por %p122, %p123
    %p125 = scmp.le.s32.totalorder 1, %s9
    %p126 = scmp.lt.s32.totalorder %s9, 9
    %p127 = pnand %p125, %p126
    %p128 = pneg %p127
    // Predicated region
    $region9: #{modified_lenet_forward.7} parent=5 // pred_check
      _
    $region10: #{modified_lenet_forward.7} parent=5 // pred_check_branch
      %130 = sbr.rel (%p127) target = $region12
    $region11: #{modified_lenet_forward.7} parent=5 // pred_region
      %s131 = ssub.s32 %s9, 1
      // Predicated region
      $region13: #{modified_lenet_forward.7} parent=11 // pred_check
        %p132 = pneg %p68
      $region14: #{modified_lenet_forward.7} parent=11 // pred_check_branch
        %134 = sbr.rel (%p132) target = $region16
      $region15: #{modified_lenet_forward.7} parent=11 // pred_region
        _
      $region16: #{modified_lenet_forward.7} parent=11 // pred_fallthru
        _
      // Predicated region
      $region17: #{modified_lenet_forward.7} parent=11 // pred_check
        %p135 = pneg %p89
      $region18: #{modified_lenet_forward.7} parent=11 // pred_check_branch
        %137 = sbr.rel (%p135) target = $region20
      $region19: #{modified_lenet_forward.7} parent=11 // pred_region
        _
      $region20: #{modified_lenet_forward.7} parent=11 // pred_fallthru
        _
    $region12: #{modified_lenet_forward.7} parent=5 // pred_fallthru
      _
    %p138 = scmp.lt.s32.totalorder %s9, 8
    // Predicated region
    $region21: #{modified_lenet_forward.7} parent=5 // pred_check
      %p139 = pneg %p138
    $region22: #{modified_lenet_forward.7} parent=5 // pred_check_branch
      %141 = sbr.rel (%p139) target = $region24
    $region23: #{modified_lenet_forward.7} parent=5 // pred_region
      // Predicated region
      $region25: #{modified_lenet_forward.7} parent=23 // pred_check
        %p142 = pneg %p41
      $region26: #{modified_lenet_forward.7} parent=23 // pred_check_branch
        %144 = sbr.rel (%p142) target = $region28
      $region27: #{modified_lenet_forward.7} parent=23 // pred_region
        %p145 = scmp.lt.s32.totalorder %s16, 1
        %s146 = scalar_select %p145, %s16, 1
        %s147 = smul.addr %s146, 20
        %s148 = smul.addr %s147, 4
        %s149 = scalar_lea.vmem %s0, %s148
      $region28: #{modified_lenet_forward.7} parent=23 // pred_fallthru
        _
    $region24: #{modified_lenet_forward.7} parent=5 // pred_fallthru
      _
    %p150 = scmp.le.s32.totalorder 1, %s9
    %p151 = scmp.lt.s32.totalorder %s9, 9
    %p152 = pnand %p150, %p151
    %p153 = pneg %p152
    // Predicated region
    $region29: #{modified_lenet_forward.7} parent=5 // pred_check
      _
    $region30: #{modified_lenet_forward.7} parent=5 // pred_check_branch
      %155 = sbr.rel (%p152) target = $region32
    $region31: #{modified_lenet_forward.7} parent=5 // pred_region
      %s156 = ssub.s32 %s9, 1
      %p157 = scmp.lt.s32.totalorder %s18, 1
      %s158 = scalar_select %p157, %s18, 1
      %s159 = smul.addr %s158, 20
      %s160 = smul.addr %s159, 4
      %s161 = scalar_lea.vmem %s0, %s160
      %p162 = pneg %p47
      %p163 = pneg %p44
      %p164 = pneg %p68
      %p165 = pneg %p65
      %p166 = pneg %p89
      %p167 = pneg %p86
      %p168 = pneg %p117
      %p169 = pneg %p114
      %p170 = scmp.lt.s32.totalorder %s18, 1
      %s171 = scalar_select %p170, %s18, 1
      %p172 = scmp.lt.s32.totalorder %s19, 3
      %s173 = scalar_select %p172, %s19, 3
      %s174 = smul.addr %s171, 4
      %s175 = sadd.s32 %s173, %s174
      %s176 = smul.addr %s175, 2
      %s177 = scalar_lea.vmem %s3, %s176
      %p178 = scmp.lt.s32.totalorder %s18, 1
      %s179 = scalar_select %p178, %s18, 1
      %s180 = smul.addr %s179, 20
      %s181 = smul.addr %s180, 4
      %s182 = scalar_lea.vmem %s0, %s181
      %p183 = scmp.lt.s32.totalorder %s18, 1
      %s184 = scalar_select %p183, %s18, 1
      %p185 = scmp.lt.s32.totalorder %s19, 3
      %s186 = scalar_select %p185, %s19, 3
      %s187 = smul.addr %s184, 4
      %s188 = sadd.s32 %s186, %s187
      %s189 = smul.addr %s188, 2
      %s190 = scalar_lea.vmem %s3, %s189
      %s192 = smul.u32 %s19, 2
      %s193 = smul.u32 %s192, 2
      %s194 = smul.addr %s193, 4
      %s195 = scalar_lea.vmem %s182, %s194
      %v196 = vld [vmem:[%s195] sm:$0xf]
      %v197 = vld [vmem:[%s195 + $0x8] sm:$0xf]
      %v198 = vld [vmem:[%s1] sm:$0xf]
      %v199 = vld [vmem:[%s1 + $0x4] sm:$0xf]
      %v200 = vld [vmem:[%s1 + $0x8] sm:$0xf]
      %v201 = vld [vmem:[%s1 + $0xc] sm:$0xf]
      %v202 = vld [vmem:[%s1 + $0x10] sm:$0xf]
      %v203 = vld [vmem:[%s1 + $0x14] sm:$0xf]
      %v204 = vld [vmem:[%s1 + $0x18] sm:$0xf]
      %v205 = vld [vmem:[%s1 + $0x1c] sm:$0xf]
      %v206 = vld [vmem:[%s1 + $0x20] sm:$0xf]
      %v207 = vld [vmem:[%s1 + $0x24] sm:$0xf]
      %v208 = vld [vmem:[%s1 + $0x28] sm:$0xf]
      %v209 = vld [vmem:[%s1 + $0x2c] sm:$0xf]
      %v210 = vld [vmem:[%s1 + $0x30] sm:$0xf]
      %v211 = vld [vmem:[%s1 + $0x34] sm:$0xf]
      %v212 = vld [vmem:[%s1 + $0x38] sm:$0xf]
      %v213 = vld [vmem:[%s1 + $0x3c] sm:$0xf]
      %v214 = vld [vmem:[%s195 + $0x4] sm:$0x1]
      %v215 = vld [vmem:[%s195 + $0xc] sm:$0x1]
      %vm216 = vsmask.f32 3328
      %vm217 = vsmask.f32 7440
      %vm218 = vmor %vm216, %vm217
      %v220 = vshrl.u32 %v196, 16
      %v222 = vrot.slane %v220, 4
      %v223 = vshll.u32 %v196, 16
      %v225 = vrot.slane %v223, 5
      %v226 = vor.u32 %v222, %v225
      %v227 = vrot.slane %v226, 4
      %v229 = vshll.u32 %v214, 16
      %v231 = vrot.slane %v229, 5
      %v232 = vsel %vm218, %v227, %v231
      %v234 = vshrl.u32 %v197, 16
      %v236 = vrot.slane %v234, 4
      %v237 = vshll.u32 %v197, 16
      %v239 = vrot.slane %v237, 5
      %v240 = vor.u32 %v236, %v239
      %v241 = vrot.slane %v240, 4
      %v243 = vshll.u32 %v215, 16
      %v245 = vrot.slane %v243, 5
      %v246 = vsel %vm218, %v241, %v245
      %s247 = scalar_lea.vmem %s1, 64
      %v248 = vld [vmem:[%s247] sm:$0xf]
      %v249 = vld [vmem:[%s247 + $0x4] sm:$0xf]
      %v250 = vld [vmem:[%s247 + $0x8] sm:$0xf]
      %v251 = vld [vmem:[%s247 + $0xc] sm:$0xf]
      %v252 = vld [vmem:[%s247 + $0x10] sm:$0xf]
      %v253 = vld [vmem:[%s247 + $0x14] sm:$0xf]
      %v254 = vld [vmem:[%s247 + $0x18] sm:$0xf]
      %v255 = vld [vmem:[%s247 + $0x1c] sm:$0xf]
      %v256 = vld [vmem:[%s247 + $0x20] sm:$0xf]
      %v257 = vld [vmem:[%s247 + $0x24] sm:$0xf]
      %v258 = vld [vmem:[%s247 + $0x28] sm:$0xf]
      %v259 = vld [vmem:[%s247 + $0x2c] sm:$0xf]
      %v260 = vld [vmem:[%s247 + $0x30] sm:$0xf]
      %v261 = vld [vmem:[%s247 + $0x34] sm:$0xf]
      %v262 = vld [vmem:[%s247 + $0x38] sm:$0xf]
      %v263 = vld [vmem:[%s247 + $0x3c] sm:$0xf]
      %v264 = vunpack.c.l.b16 %v232
      %v265 = vunpack.c.l.b16 %v246
      %v266 = vpack.c.b16 %v265, %v264
      %v284 = vunpack.c.l.b16 %v248
      %v285 = vunpack.c.l.b16 %v249
      %v286 = vunpack.c.l.b16 %v250
      %v287 = vunpack.c.l.b16 %v251
      %v288 = vunpack.c.l.b16 %v252
      %v289 = vunpack.c.l.b16 %v253
      %v290 = vunpack.c.l.b16 %v254
      %v291 = vunpack.c.l.b16 %v255
      %v292 = vunpack.c.l.b16 %v256
      %v293 = vunpack.c.l.b16 %v257
      %v294 = vunpack.c.l.b16 %v258
      %v295 = vunpack.c.l.b16 %v259
      %v296 = vunpack.c.l.b16 %v260
      %v297 = vunpack.c.l.b16 %v261
      %v298 = vunpack.c.l.b16 %v262
      %v299 = vunpack.c.l.b16 %v263
      %v300 = vpack.c.b16 %v285, %v284
      %v301 = vpack.c.b16 %v287, %v286
      %v302 = vpack.c.b16 %v289, %v288
      %v303 = vpack.c.b16 %v291, %v290
      %v304 = vpack.c.b16 %v293, %v292
      %v305 = vpack.c.b16 %v295, %v294
      %v306 = vpack.c.b16 %v297, %v296
      %v307 = vpack.c.b16 %v299, %v298
      %316 = vmatprep.subr.bf16.mxu0 0
      %317 = vmatpush1.bf16.msra.mxu0 %v307
      %318 = vmatprep.subr.bf16.mxu0 0
      %319 = vmatpush1.bf16.msra.mxu0 %v306
      %320 = vmatprep.subr.bf16.mxu0 0
      %321 = vmatpush1.bf16.msra.mxu0 %v305
      %322 = vmatprep.subr.bf16.mxu0 0
      %323 = vmatpush1.bf16.msra.mxu0 %v304
      %324 = vmatprep.subr.bf16.mxu0 0
      %325 = vmatpush1.bf16.msra.mxu0 %v303
      %326 = vmatprep.subr.bf16.mxu0 0
      %327 = vmatpush1.bf16.msra.mxu0 %v302
      %328 = vmatprep.subr.bf16.mxu0 0
      %329 = vmatpush1.bf16.msra.mxu0 %v301
      %330 = vmatprep.subr.bf16.mxu0 0
      %331 = vmatpush1.bf16.msra.mxu0 %v300
      %332 = vmatprep.subr.bf16.mxu0 0
      %333 = vmatpush2.bf16.msra.mxu0 0
      %334 = vmatprep.subr.bf16.mxu0 0
      %335 = vmatpush2.bf16.msra.mxu0 0
      %336 = vmatprep.subr.bf16.mxu0 0
      %337 = vmatpush2.bf16.msra.mxu0 0
      %338 = vmatprep.subr.bf16.mxu0 0
      %339 = vmatpush2.bf16.msra.mxu0 0
      %340 = vmatprep.subr.bf16.mxu0 0
      %341 = vmatpush2.bf16.msra.mxu0 0
      %342 = vmatprep.subr.bf16.mxu0 0
      %343 = vmatpush2.bf16.msra.mxu0 0
      %344 = vmatprep.subr.bf16.mxu0 0
      %345 = vmatpush2.bf16.msra.mxu0 0
      %346 = vmatprep.subr.bf16.mxu0 0
      %347 = vmatpush2.bf16.msra.mxu0 0
      %348 = vmatprep.mubr.bf16.mxu0 0
      %349 = vmatmul.mubr.bf16.gmra.mxu0 %v266
      %v350 = vpop.f32.mrf.mxu0
      %v351 = vadd.f32 0.0, %v350
      %v352 = vpop.f32.mrf.mxu0
      %v353 = vpop.f32.mrf.mxu0
      %v354 = vadd.f32 0.0, %v353
      %v355 = vpop.f32.mrf.mxu0
      %356 = vdwg.mxu0
      %v359 = vunpack.c.l.b16 %v196
      %v360 = vunpack.c.l.b16 %v197
      %v361 = vpack.c.b16 %v360, %v359
      %v379 = vunpack.c.l.b16 %v198
      %v380 = vunpack.c.l.b16 %v199
      %v381 = vunpack.c.l.b16 %v200
      %v382 = vunpack.c.l.b16 %v201
      %v383 = vunpack.c.l.b16 %v202
      %v384 = vunpack.c.l.b16 %v203
      %v385 = vunpack.c.l.b16 %v204
      %v386 = vunpack.c.l.b16 %v205
      %v387 = vunpack.c.l.b16 %v206
      %v388 = vunpack.c.l.b16 %v207
      %v389 = vunpack.c.l.b16 %v208
      %v390 = vunpack.c.l.b16 %v209
      %v391 = vunpack.c.l.b16 %v210
      %v392 = vunpack.c.l.b16 %v211
      %v393 = vunpack.c.l.b16 %v212
      %v394 = vunpack.c.l.b16 %v213
      %v395 = vpack.c.b16 %v380, %v379
      %v396 = vpack.c.b16 %v382, %v381
      %v397 = vpack.c.b16 %v384, %v383
      %v398 = vpack.c.b16 %v386, %v385
      %v399 = vpack.c.b16 %v388, %v387
      %v400 = vpack.c.b16 %v390, %v389
      %v401 = vpack.c.b16 %v392, %v391
      %v402 = vpack.c.b16 %v394, %v393
      %411 = vmatprep.subr.bf16.mxu0 0
      %412 = vmatpush1.bf16.msra.mxu0 %v402
      %413 = vmatprep.subr.bf16.mxu0 0
      %414 = vmatpush1.bf16.msra.mxu0 %v401
      %415 = vmatprep.subr.bf16.mxu0 0
      %416 = vmatpush1.bf16.msra.mxu0 %v400
      %417 = vmatprep.subr.bf16.mxu0 0
      %418 = vmatpush1.bf16.msra.mxu0 %v399
      %419 = vmatprep.subr.bf16.mxu0 0
      %420 = vmatpush1.bf16.msra.mxu0 %v398
      %421 = vmatprep.subr.bf16.mxu0 0
      %422 = vmatpush1.bf16.msra.mxu0 %v397
      %423 = vmatprep.subr.bf16.mxu0 0
      %424 = vmatpush1.bf16.msra.mxu0 %v396
      %425 = vmatprep.subr.bf16.mxu0 0
      %426 = vmatpush1.bf16.msra.mxu0 %v395
      %427 = vmatprep.subr.bf16.mxu0 0
      %428 = vmatpush2.bf16.msra.mxu0 0
      %429 = vmatprep.subr.bf16.mxu0 0
      %430 = vmatpush2.bf16.msra.mxu0 0
      %431 = vmatprep.subr.bf16.mxu0 0
      %432 = vmatpush2.bf16.msra.mxu0 0
      %433 = vmatprep.subr.bf16.mxu0 0
      %434 = vmatpush2.bf16.msra.mxu0 0
      %435 = vmatprep.subr.bf16.mxu0 0
      %436 = vmatpush2.bf16.msra.mxu0 0
      %437 = vmatprep.subr.bf16.mxu0 0
      %438 = vmatpush2.bf16.msra.mxu0 0
      %439 = vmatprep.subr.bf16.mxu0 0
      %440 = vmatpush2.bf16.msra.mxu0 0
      %441 = vmatprep.subr.bf16.mxu0 0
      %442 = vmatpush2.bf16.msra.mxu0 0
      %443 = vmatprep.mubr.bf16.mxu0 0
      %444 = vmatmul.mubr.bf16.gmra.mxu0 %v361
      %v445 = vpop.f32.mrf.mxu0
      %v446 = vadd.f32 %v351, %v445
      %v447 = vpop.f32.mrf.mxu0
      %v448 = vpop.f32.mrf.mxu0
      %v449 = vadd.f32 %v354, %v448
      %v450 = vpop.f32.mrf.mxu0
      %451 = vdwg.mxu0
      %v452 = vld [vmem:[%s195] sm:$0xe]
      %v453 = vld [vmem:[%s195 + $0x8] sm:$0xe]
      %vm458 = vcmask 1042432
      %vm459 = vcmask 1046532
      %vm460 = vmor %vm458, %vm459
      %v461 = vrot.slane %v452, 5
      %v462 = vrot.slane %v461, 4
      %v463 = vrot.slane %v214, 5
      %v464 = vsel %vm460, %v462, %v463
      %v465 = vrot.slane %v453, 5
      %v466 = vrot.slane %v465, 4
      %v467 = vrot.slane %v215, 5
      %v468 = vsel %vm460, %v466, %v467
      %s469 = scalar_lea.vmem %s1, 128
      %v470 = vld [vmem:[%s469] sm:$0xf]
      %v471 = vld [vmem:[%s469 + $0x4] sm:$0xf]
      %v472 = vld [vmem:[%s469 + $0x8] sm:$0xf]
      %v473 = vld [vmem:[%s469 + $0xc] sm:$0xf]
      %v474 = vld [vmem:[%s469 + $0x10] sm:$0xf]
      %v475 = vld [vmem:[%s469 + $0x14] sm:$0xf]
      %v476 = vld [vmem:[%s469 + $0x18] sm:$0xf]
      %v477 = vld [vmem:[%s469 + $0x1c] sm:$0xf]
      %v478 = vld [vmem:[%s469 + $0x20] sm:$0xf]
      %v479 = vld [vmem:[%s469 + $0x24] sm:$0xf]
      %v480 = vld [vmem:[%s469 + $0x28] sm:$0xf]
      %v481 = vld [vmem:[%s469 + $0x2c] sm:$0xf]
      %v482 = vld [vmem:[%s469 + $0x30] sm:$0xf]
      %v483 = vld [vmem:[%s469 + $0x34] sm:$0xf]
      %v484 = vld [vmem:[%s469 + $0x38] sm:$0xf]
      %v485 = vld [vmem:[%s469 + $0x3c] sm:$0xf]
      %v486 = vunpack.c.l.b16 %v464
      %v487 = vunpack.c.l.b16 %v468
      %v488 = vpack.c.b16 %v487, %v486
      %v506 = vunpack.c.l.b16 %v470
      %v507 = vunpack.c.l.b16 %v471
      %v508 = vunpack.c.l.b16 %v472
      %v509 = vunpack.c.l.b16 %v473
      %v510 = vunpack.c.l.b16 %v474
      %v511 = vunpack.c.l.b16 %v475
      %v512 = vunpack.c.l.b16 %v476
      %v513 = vunpack.c.l.b16 %v477
      %v514 = vunpack.c.l.b16 %v478
      %v515 = vunpack.c.l.b16 %v479
      %v516 = vunpack.c.l.b16 %v480
      %v517 = vunpack.c.l.b16 %v481
      %v518 = vunpack.c.l.b16 %v482
      %v519 = vunpack.c.l.b16 %v483
      %v520 = vunpack.c.l.b16 %v484
      %v521 = vunpack.c.l.b16 %v485
      %v522 = vpack.c.b16 %v507, %v506
      %v523 = vpack.c.b16 %v509, %v508
      %v524 = vpack.c.b16 %v511, %v510
      %v525 = vpack.c.b16 %v513, %v512
      %v526 = vpack.c.b16 %v515, %v514
      %v527 = vpack.c.b16 %v517, %v516
      %v528 = vpack.c.b16 %v519, %v518
      %v529 = vpack.c.b16 %v521, %v520
      %538 = vmatprep.subr.bf16.mxu0 0
      %539 = vmatpush1.bf16.msra.mxu0 %v529
      %540 = vmatprep.subr.bf16.mxu0 0
      %541 = vmatpush1.bf16.msra.mxu0 %v528
      %542 = vmatprep.subr.bf16.mxu0 0
      %543 = vmatpush1.bf16.msra.mxu0 %v527
      %544 = vmatprep.subr.bf16.mxu0 0
      %545 = vmatpush1.bf16.msra.mxu0 %v526
      %546 = vmatprep.subr.bf16.mxu0 0
      %547 = vmatpush1.bf16.msra.mxu0 %v525
      %548 = vmatprep.subr.bf16.mxu0 0
      %549 = vmatpush1.bf16.msra.mxu0 %v524
      %550 = vmatprep.subr.bf16.mxu0 0
      %551 = vmatpush1.bf16.msra.mxu0 %v523
      %552 = vmatprep.subr.bf16.mxu0 0
      %553 = vmatpush1.bf16.msra.mxu0 %v522
      %554 = vmatprep.subr.bf16.mxu0 0
      %555 = vmatpush2.bf16.msra.mxu0 0
      %556 = vmatprep.subr.bf16.mxu0 0
      %557 = vmatpush2.bf16.msra.mxu0 0
      %558 = vmatprep.subr.bf16.mxu0 0
      %559 = vmatpush2.bf16.msra.mxu0 0
      %560 = vmatprep.subr.bf16.mxu0 0
      %561 = vmatpush2.bf16.msra.mxu0 0
      %562 = vmatprep.subr.bf16.mxu0 0
      %563 = vmatpush2.bf16.msra.mxu0 0
      %564 = vmatprep.subr.bf16.mxu0 0
      %565 = vmatpush2.bf16.msra.mxu0 0
      %566 = vmatprep.subr.bf16.mxu0 0
      %567 = vmatpush2.bf16.msra.mxu0 0
      %568 = vmatprep.subr.bf16.mxu0 0
      %569 = vmatpush2.bf16.msra.mxu0 0
      %570 = vmatprep.mubr.bf16.mxu0 0
      %571 = vmatmul.mubr.bf16.gmra.mxu0 %v488
      %v572 = vpop.f32.mrf.mxu0
      %v573 = vadd.f32 0.0, %v572
      %v574 = vpop.f32.mrf.mxu0
      %v575 = vpop.f32.mrf.mxu0
      %v576 = vadd.f32 0.0, %v575
      %v577 = vpop.f32.mrf.mxu0
      %578 = vdwg.mxu0
      %v579 = vadd.f32 %v446, %v573
      %v580 = vadd.f32 %v449, %v576
      %s581 = sadd.s32 %s192, 1
      %s582 = smul.u32 %s581, 2
      %s583 = smul.addr %s582, 4
      %s584 = scalar_lea.vmem %s182, %s583
      %v585 = vld [vmem:[%s584] sm:$0xf]
      %v586 = vld [vmem:[%s584 + $0x8] sm:$0xf]
      %s587 = scalar_lea.vmem %s1, 192
      %v588 = vld [vmem:[%s587] sm:$0xf]
      %v589 = vld [vmem:[%s587 + $0x4] sm:$0xf]
      %v590 = vld [vmem:[%s587 + $0x8] sm:$0xf]
      %v591 = vld [vmem:[%s587 + $0xc] sm:$0xf]
      %v592 = vld [vmem:[%s587 + $0x10] sm:$0xf]
      %v593 = vld [vmem:[%s587 + $0x14] sm:$0xf]
      %v594 = vld [vmem:[%s587 + $0x18] sm:$0xf]
      %v595 = vld [vmem:[%s587 + $0x1c] sm:$0xf]
      %v596 = vld [vmem:[%s587 + $0x20] sm:$0xf]
      %v597 = vld [vmem:[%s587 + $0x24] sm:$0xf]
      %v598 = vld [vmem:[%s587 + $0x28] sm:$0xf]
      %v599 = vld [vmem:[%s587 + $0x2c] sm:$0xf]
      %v600 = vld [vmem:[%s587 + $0x30] sm:$0xf]
      %v601 = vld [vmem:[%s587 + $0x34] sm:$0xf]
      %v602 = vld [vmem:[%s587 + $0x38] sm:$0xf]
      %v603 = vld [vmem:[%s587 + $0x3c] sm:$0xf]
      %v606 = vunpack.c.l.b16 %v585
      %v607 = vunpack.c.l.b16 %v586
      %v608 = vpack.c.b16 %v607, %v606
      %v626 = vunpack.c.l.b16 %v588
      %v627 = vunpack.c.l.b16 %v589
      %v628 = vunpack.c.l.b16 %v590
      %v629 = vunpack.c.l.b16 %v591
      %v630 = vunpack.c.l.b16 %v592
      %v631 = vunpack.c.l.b16 %v593
      %v632 = vunpack.c.l.b16 %v594
      %v633 = vunpack.c.l.b16 %v595
      %v634 = vunpack.c.l.b16 %v596
      %v635 = vunpack.c.l.b16 %v597
      %v636 = vunpack.c.l.b16 %v598
      %v637 = vunpack.c.l.b16 %v599
      %v638 = vunpack.c.l.b16 %v600
      %v639 = vunpack.c.l.b16 %v601
      %v640 = vunpack.c.l.b16 %v602
      %v641 = vunpack.c.l.b16 %v603
      %v642 = vpack.c.b16 %v627, %v626
      %v643 = vpack.c.b16 %v629, %v628
      %v644 = vpack.c.b16 %v631, %v630
      %v645 = vpack.c.b16 %v633, %v632
      %v646 = vpack.c.b16 %v635, %v634
      %v647 = vpack.c.b16 %v637, %v636
      %v648 = vpack.c.b16 %v639, %v638
      %v649 = vpack.c.b16 %v641, %v640
      %658 = vmatprep.subr.bf16.mxu0 0
      %659 = vmatpush1.bf16.msra.mxu0 %v649
      %660 = vmatprep.subr.bf16.mxu0 0
      %661 = vmatpush1.bf16.msra.mxu0 %v648
      %662 = vmatprep.subr.bf16.mxu0 0
      %663 = vmatpush1.bf16.msra.mxu0 %v647
      %664 = vmatprep.subr.bf16.mxu0 0
      %665 = vmatpush1.bf16.msra.mxu0 %v646
      %666 = vmatprep.subr.bf16.mxu0 0
      %667 = vmatpush1.bf16.msra.mxu0 %v645
      %668 = vmatprep.subr.bf16.mxu0 0
      %669 = vmatpush1.bf16.msra.mxu0 %v644
      %670 = vmatprep.subr.bf16.mxu0 0
      %671 = vmatpush1.bf16.msra.mxu0 %v643
      %672 = vmatprep.subr.bf16.mxu0 0
      %673 = vmatpush1.bf16.msra.mxu0 %v642
      %674 = vmatprep.subr.bf16.mxu0 0
      %675 = vmatpush2.bf16.msra.mxu0 0
      %676 = vmatprep.subr.bf16.mxu0 0
      %677 = vmatpush2.bf16.msra.mxu0 0
      %678 = vmatprep.subr.bf16.mxu0 0
      %679 = vmatpush2.bf16.msra.mxu0 0
      %680 = vmatprep.subr.bf16.mxu0 0
      %681 = vmatpush2.bf16.msra.mxu0 0
      %682 = vmatprep.subr.bf16.mxu0 0
      %683 = vmatpush2.bf16.msra.mxu0 0
      %684 = vmatprep.subr.bf16.mxu0 0
      %685 = vmatpush2.bf16.msra.mxu0 0
      %686 = vmatprep.subr.bf16.mxu0 0
      %687 = vmatpush2.bf16.msra.mxu0 0
      %688 = vmatprep.subr.bf16.mxu0 0
      %689 = vmatpush2.bf16.msra.mxu0 0
      %690 = vmatprep.mubr.bf16.mxu0 0
      %691 = vmatmul.mubr.bf16.gmra.mxu0 %v608
      %v692 = vpop.f32.mrf.mxu0
      %v693 = vadd.f32 0.0, %v692
      %v694 = vpop.f32.mrf.mxu0
      %v695 = vpop.f32.mrf.mxu0
      %v696 = vadd.f32 0.0, %v695
      %v697 = vpop.f32.mrf.mxu0
      %698 = vdwg.mxu0
      %v699 = vadd.f32 %v579, %v693
      %v700 = vadd.f32 %v580, %v696
      %v701 = vld [vmem:[%s584] sm:$0xf]
      %v702 = vld [vmem:[%s584 + $0x4] sm:$0x1]
      %v703 = vld [vmem:[%s584 + $0x8] sm:$0xf]
      %v704 = vld [vmem:[%s584 + $0xc] sm:$0x1]
      %v706 = vshrl.u32 %v701, 16
      %v708 = vrot.slane %v706, 4
      %v709 = vshll.u32 %v701, 16
      %v711 = vrot.slane %v709, 5
      %v712 = vor.u32 %v708, %v711
      %v713 = vrot.slane %v712, 4
      %v715 = vshll.u32 %v702, 16
      %v717 = vrot.slane %v715, 5
      %v718 = vsel %vm218, %v713, %v717
      %v720 = vshrl.u32 %v703, 16
      %v722 = vrot.slane %v720, 4
      %v723 = vshll.u32 %v703, 16
      %v725 = vrot.slane %v723, 5
      %v726 = vor.u32 %v722, %v725
      %v727 = vrot.slane %v726, 4
      %v729 = vshll.u32 %v704, 16
      %v731 = vrot.slane %v729, 5
      %v732 = vsel %vm218, %v727, %v731
      %s733 = scalar_lea.vmem %s1, 256
      %v734 = vld [vmem:[%s733] sm:$0xf]
      %v735 = vld [vmem:[%s733 + $0x4] sm:$0xf]
      %v736 = vld [vmem:[%s733 + $0x8] sm:$0xf]
      %v737 = vld [vmem:[%s733 + $0xc] sm:$0xf]
      %v738 = vld [vmem:[%s733 + $0x10] sm:$0xf]
      %v739 = vld [vmem:[%s733 + $0x14] sm:$0xf]
      %v740 = vld [vmem:[%s733 + $0x18] sm:$0xf]
      %v741 = vld [vmem:[%s733 + $0x1c] sm:$0xf]
      %v742 = vld [vmem:[%s733 + $0x20] sm:$0xf]
      %v743 = vld [vmem:[%s733 + $0x24] sm:$0xf]
      %v744 = vld [vmem:[%s733 + $0x28] sm:$0xf]
      %v745 = vld [vmem:[%s733 + $0x2c] sm:$0xf]
      %v746 = vld [vmem:[%s733 + $0x30] sm:$0xf]
      %v747 = vld [vmem:[%s733 + $0x34] sm:$0xf]
      %v748 = vld [vmem:[%s733 + $0x38] sm:$0xf]
      %v749 = vld [vmem:[%s733 + $0x3c] sm:$0xf]
      %v750 = vunpack.c.l.b16 %v718
      %v751 = vunpack.c.l.b16 %v732
      %v752 = vpack.c.b16 %v751, %v750
      %v770 = vunpack.c.l.b16 %v734
      %v771 = vunpack.c.l.b16 %v735
      %v772 = vunpack.c.l.b16 %v736
      %v773 = vunpack.c.l.b16 %v737
      %v774 = vunpack.c.l.b16 %v738
      %v775 = vunpack.c.l.b16 %v739
      %v776 = vunpack.c.l.b16 %v740
      %v777 = vunpack.c.l.b16 %v741
      %v778 = vunpack.c.l.b16 %v742
      %v779 = vunpack.c.l.b16 %v743
      %v780 = vunpack.c.l.b16 %v744
      %v781 = vunpack.c.l.b16 %v745
      %v782 = vunpack.c.l.b16 %v746
      %v783 = vunpack.c.l.b16 %v747
      %v784 = vunpack.c.l.b16 %v748
      %v785 = vunpack.c.l.b16 %v749
      %v786 = vpack.c.b16 %v771, %v770
      %v787 = vpack.c.b16 %v773, %v772
      %v788 = vpack.c.b16 %v775, %v774
      %v789 = vpack.c.b16 %v777, %v776
      %v790 = vpack.c.b16 %v779, %v778
      %v791 = vpack.c.b16 %v781, %v780
      %v792 = vpack.c.b16 %v783, %v782
      %v793 = vpack.c.b16 %v785, %v784
      %802 = vmatprep.subr.bf16.mxu0 0
      %803 = vmatpush1.bf16.msra.mxu0 %v793
      %804 = vmatprep.subr.bf16.mxu0 0
      %805 = vmatpush1.bf16.msra.mxu0 %v792
      %806 = vmatprep.subr.bf16.mxu0 0
      %807 = vmatpush1.bf16.msra.mxu0 %v791
      %808 = vmatprep.subr.bf16.mxu0 0
      %809 = vmatpush1.bf16.msra.mxu0 %v790
      %810 = vmatprep.subr.bf16.mxu0 0
      %811 = vmatpush1.bf16.msra.mxu0 %v789
      %812 = vmatprep.subr.bf16.mxu0 0
      %813 = vmatpush1.bf16.msra.mxu0 %v788
      %814 = vmatprep.subr.bf16.mxu0 0
      %815 = vmatpush1.bf16.msra.mxu0 %v787
      %816 = vmatprep.subr.bf16.mxu0 0
      %817 = vmatpush1.bf16.msra.mxu0 %v786
      %818 = vmatprep.subr.bf16.mxu0 0
      %819 = vmatpush2.bf16.msra.mxu0 0
      %820 = vmatprep.subr.bf16.mxu0 0
      %821 = vmatpush2.bf16.msra.mxu0 0
      %822 = vmatprep.subr.bf16.mxu0 0
      %823 = vmatpush2.bf16.msra.mxu0 0
      %824 = vmatprep.subr.bf16.mxu0 0
      %825 = vmatpush2.bf16.msra.mxu0 0
      %826 = vmatprep.subr.bf16.mxu0 0
      %827 = vmatpush2.bf16.msra.mxu0 0
      %828 = vmatprep.subr.bf16.mxu0 0
      %829 = vmatpush2.bf16.msra.mxu0 0
      %830 = vmatprep.subr.bf16.mxu0 0
      %831 = vmatpush2.bf16.msra.mxu0 0
      %832 = vmatprep.subr.bf16.mxu0 0
      %833 = vmatpush2.bf16.msra.mxu0 0
      %834 = vmatprep.mubr.bf16.mxu0 0
      %835 = vmatmul.mubr.bf16.gmra.mxu0 %v752
      %v836 = vpop.f32.mrf.mxu0
      %v837 = vadd.f32 0.0, %v836
      %v838 = vpop.f32.mrf.mxu0
      %v839 = vpop.f32.mrf.mxu0
      %v840 = vadd.f32 0.0, %v839
      %v841 = vpop.f32.mrf.mxu0
      %842 = vdwg.mxu0
      %v843 = vadd.f32 %v699, %v837
      %v844 = vadd.f32 %v700, %v840
      %v845 = vld [vmem:[%s584] sm:$0xe]
      %v846 = vld [vmem:[%s584 + $0x8] sm:$0xe]
      %v851 = vrot.slane %v845, 5
      %v852 = vrot.slane %v851, 4
      %v853 = vrot.slane %v702, 5
      %v854 = vsel %vm460, %v852, %v853
      %v855 = vrot.slane %v846, 5
      %v856 = vrot.slane %v855, 4
      %v857 = vrot.slane %v704, 5
      %v858 = vsel %vm460, %v856, %v857
      %s859 = scalar_lea.vmem %s1, 320
      %v860 = vld [vmem:[%s859] sm:$0xf]
      %v861 = vld [vmem:[%s859 + $0x4] sm:$0xf]
      %v862 = vld [vmem:[%s859 + $0x8] sm:$0xf]
      %v863 = vld [vmem:[%s859 + $0xc] sm:$0xf]
      %v864 = vld [vmem:[%s859 + $0x10] sm:$0xf]
      %v865 = vld [vmem:[%s859 + $0x14] sm:$0xf]
      %v866 = vld [vmem:[%s859 + $0x18] sm:$0xf]
      %v867 = vld [vmem:[%s859 + $0x1c] sm:$0xf]
      %v868 = vld [vmem:[%s859 + $0x20] sm:$0xf]
      %v869 = vld [vmem:[%s859 + $0x24] sm:$0xf]
      %v870 = vld [vmem:[%s859 + $0x28] sm:$0xf]
      %v871 = vld [vmem:[%s859 + $0x2c] sm:$0xf]
      %v872 = vld [vmem:[%s859 + $0x30] sm:$0xf]
      %v873 = vld [vmem:[%s859 + $0x34] sm:$0xf]
      %v874 = vld [vmem:[%s859 + $0x38] sm:$0xf]
      %v875 = vld [vmem:[%s859 + $0x3c] sm:$0xf]
      %v876 = vunpack.c.l.b16 %v854
      %v877 = vunpack.c.l.b16 %v858
      %v878 = vpack.c.b16 %v877, %v876
      %v896 = vunpack.c.l.b16 %v860
      %v897 = vunpack.c.l.b16 %v861
      %v898 = vunpack.c.l.b16 %v862
      %v899 = vunpack.c.l.b16 %v863
      %v900 = vunpack.c.l.b16 %v864
      %v901 = vunpack.c.l.b16 %v865
      %v902 = vunpack.c.l.b16 %v866
      %v903 = vunpack.c.l.b16 %v867
      %v904 = vunpack.c.l.b16 %v868
      %v905 = vunpack.c.l.b16 %v869
      %v906 = vunpack.c.l.b16 %v870
      %v907 = vunpack.c.l.b16 %v871
      %v908 = vunpack.c.l.b16 %v872
      %v909 = vunpack.c.l.b16 %v873
      %v910 = vunpack.c.l.b16 %v874
      %v911 = vunpack.c.l.b16 %v875
      %v912 = vpack.c.b16 %v897, %v896
      %v913 = vpack.c.b16 %v899, %v898
      %v914 = vpack.c.b16 %v901, %v900
      %v915 = vpack.c.b16 %v903, %v902
      %v916 = vpack.c.b16 %v905, %v904
      %v917 = vpack.c.b16 %v907, %v906
      %v918 = vpack.c.b16 %v909, %v908
      %v919 = vpack.c.b16 %v911, %v910
      %928 = vmatprep.subr.bf16.mxu0 0
      %929 = vmatpush1.bf16.msra.mxu0 %v919
      %930 = vmatprep.subr.bf16.mxu0 0
      %931 = vmatpush1.bf16.msra.mxu0 %v918
      %932 = vmatprep.subr.bf16.mxu0 0
      %933 = vmatpush1.bf16.msra.mxu0 %v917
      %934 = vmatprep.subr.bf16.mxu0 0
      %935 = vmatpush1.bf16.msra.mxu0 %v916
      %936 = vmatprep.subr.bf16.mxu0 0
      %937 = vmatpush1.bf16.msra.mxu0 %v915
      %938 = vmatprep.subr.bf16.mxu0 0
      %939 = vmatpush1.bf16.msra.mxu0 %v914
      %940 = vmatprep.subr.bf16.mxu0 0
      %941 = vmatpush1.bf16.msra.mxu0 %v913
      %942 = vmatprep.subr.bf16.mxu0 0
      %943 = vmatpush1.bf16.msra.mxu0 %v912
      %944 = vmatprep.subr.bf16.mxu0 0
      %945 = vmatpush2.bf16.msra.mxu0 0
      %946 = vmatprep.subr.bf16.mxu0 0
      %947 = vmatpush2.bf16.msra.mxu0 0
      %948 = vmatprep.subr.bf16.mxu0 0
      %949 = vmatpush2.bf16.msra.mxu0 0
      %950 = vmatprep.subr.bf16.mxu0 0
      %951 = vmatpush2.bf16.msra.mxu0 0
      %952 = vmatprep.subr.bf16.mxu0 0
      %953 = vmatpush2.bf16.msra.mxu0 0
      %954 = vmatprep.subr.bf16.mxu0 0
      %955 = vmatpush2.bf16.msra.mxu0 0
      %956 = vmatprep.subr.bf16.mxu0 0
      %957 = vmatpush2.bf16.msra.mxu0 0
      %958 = vmatprep.subr.bf16.mxu0 0
      %959 = vmatpush2.bf16.msra.mxu0 0
      %960 = vmatprep.mubr.bf16.mxu0 0
      %961 = vmatmul.mubr.bf16.gmra.mxu0 %v878
      %v962 = vpop.f32.mrf.mxu0
      %v963 = vadd.f32 0.0, %v962
      %v964 = vpop.f32.mrf.mxu0
      %v965 = vpop.f32.mrf.mxu0
      %v966 = vadd.f32 0.0, %v965
      %v967 = vpop.f32.mrf.mxu0
      %968 = vdwg.mxu0
      %v969 = vadd.f32 %v843, %v963
      %v970 = vadd.f32 %v844, %v966
      %s971 = sadd.s32 %s192, 2
      %s972 = smul.u32 %s971, 2
      %s973 = smul.addr %s972, 4
      %s974 = scalar_lea.vmem %s182, %s973
      %v975 = vld [vmem:[%s974] sm:$0xf]
      %v976 = vld [vmem:[%s974 + $0x8] sm:$0xf]
      %s977 = scalar_lea.vmem %s1, 384
      %v978 = vld [vmem:[%s977] sm:$0xf]
      %v979 = vld [vmem:[%s977 + $0x4] sm:$0xf]
      %v980 = vld [vmem:[%s977 + $0x8] sm:$0xf]
      %v981 = vld [vmem:[%s977 + $0xc] sm:$0xf]
      %v982 = vld [vmem:[%s977 + $0x10] sm:$0xf]
      %v983 = vld [vmem:[%s977 + $0x14] sm:$0xf]
      %v984 = vld [vmem:[%s977 + $0x18] sm:$0xf]
      %v985 = vld [vmem:[%s977 + $0x1c] sm:$0xf]
      %v986 = vld [vmem:[%s977 + $0x20] sm:$0xf]
      %v987 = vld [vmem:[%s977 + $0x24] sm:$0xf]
      %v988 = vld [vmem:[%s977 + $0x28] sm:$0xf]
      %v989 = vld [vmem:[%s977 + $0x2c] sm:$0xf]
      %v990 = vld [vmem:[%s977 + $0x30] sm:$0xf]
      %v991 = vld [vmem:[%s977 + $0x34] sm:$0xf]
      %v992 = vld [vmem:[%s977 + $0x38] sm:$0xf]
      %v993 = vld [vmem:[%s977 + $0x3c] sm:$0xf]
      %v996 = vunpack.c.l.b16 %v975
      %v997 = vunpack.c.l.b16 %v976
      %v998 = vpack.c.b16 %v997, %v996
      %v1016 = vunpack.c.l.b16 %v978
      %v1017 = vunpack.c.l.b16 %v979
      %v1018 = vunpack.c.l.b16 %v980
      %v1019 = vunpack.c.l.b16 %v981
      %v1020 = vunpack.c.l.b16 %v982
      %v1021 = vunpack.c.l.b16 %v983
      %v1022 = vunpack.c.l.b16 %v984
      %v1023 = vunpack.c.l.b16 %v985
      %v1024 = vunpack.c.l.b16 %v986
      %v1025 = vunpack.c.l.b16 %v987
      %v1026 = vunpack.c.l.b16 %v988
      %v1027 = vunpack.c.l.b16 %v989
      %v1028 = vunpack.c.l.b16 %v990
      %v1029 = vunpack.c.l.b16 %v991
      %v1030 = vunpack.c.l.b16 %v992
      %v1031 = vunpack.c.l.b16 %v993
      %v1032 = vpack.c.b16 %v1017, %v1016
      %v1033 = vpack.c.b16 %v1019, %v1018
      %v1034 = vpack.c.b16 %v1021, %v1020
      %v1035 = vpack.c.b16 %v1023, %v1022
      %v1036 = vpack.c.b16 %v1025, %v1024
      %v1037 = vpack.c.b16 %v1027, %v1026
      %v1038 = vpack.c.b16 %v1029, %v1028
      %v1039 = vpack.c.b16 %v1031, %v1030
      %1048 = vmatprep.subr.bf16.mxu0 0
      %1049 = vmatpush1.bf16.msra.mxu0 %v1039
      %1050 = vmatprep.subr.bf16.mxu0 0
      %1051 = vmatpush1.bf16.msra.mxu0 %v1038
      %1052 = vmatprep.subr.bf16.mxu0 0
      %1053 = vmatpush1.bf16.msra.mxu0 %v1037
      %1054 = vmatprep.subr.bf16.mxu0 0
      %1055 = vmatpush1.bf16.msra.mxu0 %v1036
      %1056 = vmatprep.subr.bf16.mxu0 0
      %1057 = vmatpush1.bf16.msra.mxu0 %v1035
      %1058 = vmatprep.subr.bf16.mxu0 0
      %1059 = vmatpush1.bf16.msra.mxu0 %v1034
      %1060 = vmatprep.subr.bf16.mxu0 0
      %1061 = vmatpush1.bf16.msra.mxu0 %v1033
      %1062 = vmatprep.subr.bf16.mxu0 0
      %1063 = vmatpush1.bf16.msra.mxu0 %v1032
      %1064 = vmatprep.subr.bf16.mxu0 0
      %1065 = vmatpush2.bf16.msra.mxu0 0
      %1066 = vmatprep.subr.bf16.mxu0 0
      %1067 = vmatpush2.bf16.msra.mxu0 0
      %1068 = vmatprep.subr.bf16.mxu0 0
      %1069 = vmatpush2.bf16.msra.mxu0 0
      %1070 = vmatprep.subr.bf16.mxu0 0
      %1071 = vmatpush2.bf16.msra.mxu0 0
      %1072 = vmatprep.subr.bf16.mxu0 0
      %1073 = vmatpush2.bf16.msra.mxu0 0
      %1074 = vmatprep.subr.bf16.mxu0 0
      %1075 = vmatpush2.bf16.msra.mxu0 0
      %1076 = vmatprep.subr.bf16.mxu0 0
      %1077 = vmatpush2.bf16.msra.mxu0 0
      %1078 = vmatprep.subr.bf16.mxu0 0
      %1079 = vmatpush2.bf16.msra.mxu0 0
      %1080 = vmatprep.mubr.bf16.mxu0 0
      %1081 = vmatmul.mubr.bf16.gmra.mxu0 %v998
      %v1082 = vpop.f32.mrf.mxu0
      %v1083 = vadd.f32 0.0, %v1082
      %v1084 = vpop.f32.mrf.mxu0
      %v1085 = vpop.f32.mrf.mxu0
      %v1086 = vadd.f32 0.0, %v1085
      %v1087 = vpop.f32.mrf.mxu0
      %1088 = vdwg.mxu0
      %v1089 = vadd.f32 %v969, %v1083
      %v1090 = vadd.f32 %v970, %v1086
      %v1091 = vld [vmem:[%s974] sm:$0xf]
      %v1092 = vld [vmem:[%s974 + $0x4] sm:$0x1]
      %v1093 = vld [vmem:[%s974 + $0x8] sm:$0xf]
      %v1094 = vld [vmem:[%s974 + $0xc] sm:$0x1]
      %v1096 = vshrl.u32 %v1091, 16
      %v1098 = vrot.slane %v1096, 4
      %v1099 = vshll.u32 %v1091, 16
      %v1101 = vrot.slane %v1099, 5
      %v1102 = vor.u32 %v1098, %v1101
      %v1103 = vrot.slane %v1102, 4
      %v1105 = vshll.u32 %v1092, 16
      %v1107 = vrot.slane %v1105, 5
      %v1108 = vsel %vm218, %v1103, %v1107
      %v1110 = vshrl.u32 %v1093, 16
      %v1112 = vrot.slane %v1110, 4
      %v1113 = vshll.u32 %v1093, 16
      %v1115 = vrot.slane %v1113, 5
      %v1116 = vor.u32 %v1112, %v1115
      %v1117 = vrot.slane %v1116, 4
      %v1119 = vshll.u32 %v1094, 16
      %v1121 = vrot.slane %v1119, 5
      %v1122 = vsel %vm218, %v1117, %v1121
      %s1123 = scalar_lea.vmem %s1, 448
      %v1124 = vld [vmem:[%s1123] sm:$0xf]
      %v1125 = vld [vmem:[%s1123 + $0x4] sm:$0xf]
      %v1126 = vld [vmem:[%s1123 + $0x8] sm:$0xf]
      %v1127 = vld [vmem:[%s1123 + $0xc] sm:$0xf]
      %v1128 = vld [vmem:[%s1123 + $0x10] sm:$0xf]
      %v1129 = vld [vmem:[%s1123 + $0x14] sm:$0xf]
      %v1130 = vld [vmem:[%s1123 + $0x18] sm:$0xf]
      %v1131 = vld [vmem:[%s1123 + $0x1c] sm:$0xf]
      %v1132 = vld [vmem:[%s1123 + $0x20] sm:$0xf]
      %v1133 = vld [vmem:[%s1123 + $0x24] sm:$0xf]
      %v1134 = vld [vmem:[%s1123 + $0x28] sm:$0xf]
      %v1135 = vld [vmem:[%s1123 + $0x2c] sm:$0xf]
      %v1136 = vld [vmem:[%s1123 + $0x30] sm:$0xf]
      %v1137 = vld [vmem:[%s1123 + $0x34] sm:$0xf]
      %v1138 = vld [vmem:[%s1123 + $0x38] sm:$0xf]
      %v1139 = vld [vmem:[%s1123 + $0x3c] sm:$0xf]
      %v1140 = vunpack.c.l.b16 %v1108
      %v1141 = vunpack.c.l.b16 %v1122
      %v1142 = vpack.c.b16 %v1141, %v1140
      %v1160 = vunpack.c.l.b16 %v1124
      %v1161 = vunpack.c.l.b16 %v1125
      %v1162 = vunpack.c.l.b16 %v1126
      %v1163 = vunpack.c.l.b16 %v1127
      %v1164 = vunpack.c.l.b16 %v1128
      %v1165 = vunpack.c.l.b16 %v1129
      %v1166 = vunpack.c.l.b16 %v1130
      %v1167 = vunpack.c.l.b16 %v1131
      %v1168 = vunpack.c.l.b16 %v1132
      %v1169 = vunpack.c.l.b16 %v1133
      %v1170 = vunpack.c.l.b16 %v1134
      %v1171 = vunpack.c.l.b16 %v1135
      %v1172 = vunpack.c.l.b16 %v1136
      %v1173 = vunpack.c.l.b16 %v1137
      %v1174 = vunpack.c.l.b16 %v1138
      %v1175 = vunpack.c.l.b16 %v1139
      %v1176 = vpack.c.b16 %v1161, %v1160
      %v1177 = vpack.c.b16 %v1163, %v1162
      %v1178 = vpack.c.b16 %v1165, %v1164
      %v1179 = vpack.c.b16 %v1167, %v1166
      %v1180 = vpack.c.b16 %v1169, %v1168
      %v1181 = vpack.c.b16 %v1171, %v1170
      %v1182 = vpack.c.b16 %v1173, %v1172
      %v1183 = vpack.c.b16 %v1175, %v1174
      %1192 = vmatprep.subr.bf16.mxu0 0
      %1193 = vmatpush1.bf16.msra.mxu0 %v1183
      %1194 = vmatprep.subr.bf16.mxu0 0
      %1195 = vmatpush1.bf16.msra.mxu0 %v1182
      %1196 = vmatprep.subr.bf16.mxu0 0
      %1197 = vmatpush1.bf16.msra.mxu0 %v1181
      %1198 = vmatprep.subr.bf16.mxu0 0
      %1199 = vmatpush1.bf16.msra.mxu0 %v1180
      %1200 = vmatprep.subr.bf16.mxu0 0
      %1201 = vmatpush1.bf16.msra.mxu0 %v1179
      %1202 = vmatprep.subr.bf16.mxu0 0
      %1203 = vmatpush1.bf16.msra.mxu0 %v1178
      %1204 = vmatprep.subr.bf16.mxu0 0
      %1205 = vmatpush1.bf16.msra.mxu0 %v1177
      %1206 = vmatprep.subr.bf16.mxu0 0
      %1207 = vmatpush1.bf16.msra.mxu0 %v1176
      %1208 = vmatprep.subr.bf16.mxu0 0
      %1209 = vmatpush2.bf16.msra.mxu0 0
      %1210 = vmatprep.subr.bf16.mxu0 0
      %1211 = vmatpush2.bf16.msra.mxu0 0
      %1212 = vmatprep.subr.bf16.mxu0 0
      %1213 = vmatpush2.bf16.msra.mxu0 0
      %1214 = vmatprep.subr.bf16.mxu0 0
      %1215 = vmatpush2.bf16.msra.mxu0 0
      %1216 = vmatprep.subr.bf16.mxu0 0
      %1217 = vmatpush2.bf16.msra.mxu0 0
      %1218 = vmatprep.subr.bf16.mxu0 0
      %1219 = vmatpush2.bf16.msra.mxu0 0
      %1220 = vmatprep.subr.bf16.mxu0 0
      %1221 = vmatpush2.bf16.msra.mxu0 0
      %1222 = vmatprep.subr.bf16.mxu0 0
      %1223 = vmatpush2.bf16.msra.mxu0 0
      %1224 = vmatprep.mubr.bf16.mxu0 0
      %1225 = vmatmul.mubr.bf16.gmra.mxu0 %v1142
      %v1226 = vpop.f32.mrf.mxu0
      %v1227 = vadd.f32 0.0, %v1226
      %v1228 = vpop.f32.mrf.mxu0
      %v1229 = vpop.f32.mrf.mxu0
      %v1230 = vadd.f32 0.0, %v1229
      %v1231 = vpop.f32.mrf.mxu0
      %1232 = vdwg.mxu0
      %v1233 = vadd.f32 %v1089, %v1227
      %v1234 = vadd.f32 %v1090, %v1230
      %v1235 = vld [vmem:[%s974] sm:$0xe]
      %v1236 = vld [vmem:[%s974 + $0x8] sm:$0xe]
      %v1241 = vrot.slane %v1235, 5
      %v1242 = vrot.slane %v1241, 4
      %v1243 = vrot.slane %v1092, 5
      %v1244 = vsel %vm460, %v1242, %v1243
      %v1245 = vrot.slane %v1236, 5
      %v1246 = vrot.slane %v1245, 4
      %v1247 = vrot.slane %v1094, 5
      %v1248 = vsel %vm460, %v1246, %v1247
      %s1249 = scalar_lea.vmem %s1, 512
      %v1250 = vld [vmem:[%s1249] sm:$0xf]
      %v1251 = vld [vmem:[%s1249 + $0x4] sm:$0xf]
      %v1252 = vld [vmem:[%s1249 + $0x8] sm:$0xf]
      %v1253 = vld [vmem:[%s1249 + $0xc] sm:$0xf]
      %v1254 = vld [vmem:[%s1249 + $0x10] sm:$0xf]
      %v1255 = vld [vmem:[%s1249 + $0x14] sm:$0xf]
      %v1256 = vld [vmem:[%s1249 + $0x18] sm:$0xf]
      %v1257 = vld [vmem:[%s1249 + $0x1c] sm:$0xf]
      %v1258 = vld [vmem:[%s1249 + $0x20] sm:$0xf]
      %v1259 = vld [vmem:[%s1249 + $0x24] sm:$0xf]
      %v1260 = vld [vmem:[%s1249 + $0x28] sm:$0xf]
      %v1261 = vld [vmem:[%s1249 + $0x2c] sm:$0xf]
      %v1262 = vld [vmem:[%s1249 + $0x30] sm:$0xf]
      %v1263 = vld [vmem:[%s1249 + $0x34] sm:$0xf]
      %v1264 = vld [vmem:[%s1249 + $0x38] sm:$0xf]
      %v1265 = vld [vmem:[%s1249 + $0x3c] sm:$0xf]
      %v1266 = vunpack.c.l.b16 %v1244
      %v1267 = vunpack.c.l.b16 %v1248
      %v1268 = vpack.c.b16 %v1267, %v1266
      %v1286 = vunpack.c.l.b16 %v1250
      %v1287 = vunpack.c.l.b16 %v1251
      %v1288 = vunpack.c.l.b16 %v1252
      %v1289 = vunpack.c.l.b16 %v1253
      %v1290 = vunpack.c.l.b16 %v1254
      %v1291 = vunpack.c.l.b16 %v1255
      %v1292 = vunpack.c.l.b16 %v1256
      %v1293 = vunpack.c.l.b16 %v1257
      %v1294 = vunpack.c.l.b16 %v1258
      %v1295 = vunpack.c.l.b16 %v1259
      %v1296 = vunpack.c.l.b16 %v1260
      %v1297 = vunpack.c.l.b16 %v1261
      %v1298 = vunpack.c.l.b16 %v1262
      %v1299 = vunpack.c.l.b16 %v1263
      %v1300 = vunpack.c.l.b16 %v1264
      %v1301 = vunpack.c.l.b16 %v1265
      %v1302 = vpack.c.b16 %v1287, %v1286
      %v1303 = vpack.c.b16 %v1289, %v1288
      %v1304 = vpack.c.b16 %v1291, %v1290
      %v1305 = vpack.c.b16 %v1293, %v1292
      %v1306 = vpack.c.b16 %v1295, %v1294
      %v1307 = vpack.c.b16 %v1297, %v1296
      %v1308 = vpack.c.b16 %v1299, %v1298
      %v1309 = vpack.c.b16 %v1301, %v1300
      %1318 = vmatprep.subr.bf16.mxu0 0
      %1319 = vmatpush1.bf16.msra.mxu0 %v1309
      %1320 = vmatprep.subr.bf16.mxu0 0
      %1321 = vmatpush1.bf16.msra.mxu0 %v1308
      %1322 = vmatprep.subr.bf16.mxu0 0
      %1323 = vmatpush1.bf16.msra.mxu0 %v1307
      %1324 = vmatprep.subr.bf16.mxu0 0
      %1325 = vmatpush1.bf16.msra.mxu0 %v1306
      %1326 = vmatprep.subr.bf16.mxu0 0
      %1327 = vmatpush1.bf16.msra.mxu0 %v1305
      %1328 = vmatprep.subr.bf16.mxu0 0
      %1329 = vmatpush1.bf16.msra.mxu0 %v1304
      %1330 = vmatprep.subr.bf16.mxu0 0
      %1331 = vmatpush1.bf16.msra.mxu0 %v1303
      %1332 = vmatprep.subr.bf16.mxu0 0
      %1333 = vmatpush1.bf16.msra.mxu0 %v1302
      %1334 = vmatprep.subr.bf16.mxu0 0
      %1335 = vmatpush2.bf16.msra.mxu0 0
      %1336 = vmatprep.subr.bf16.mxu0 0
      %1337 = vmatpush2.bf16.msra.mxu0 0
      %1338 = vmatprep.subr.bf16.mxu0 0
      %1339 = vmatpush2.bf16.msra.mxu0 0
      %1340 = vmatprep.subr.bf16.mxu0 0
      %1341 = vmatpush2.bf16.msra.mxu0 0
      %1342 = vmatprep.subr.bf16.mxu0 0
      %1343 = vmatpush2.bf16.msra.mxu0 0
      %1344 = vmatprep.subr.bf16.mxu0 0
      %1345 = vmatpush2.bf16.msra.mxu0 0
      %1346 = vmatprep.subr.bf16.mxu0 0
      %1347 = vmatpush2.bf16.msra.mxu0 0
      %1348 = vmatprep.subr.bf16.mxu0 0
      %1349 = vmatpush2.bf16.msra.mxu0 0
      %1350 = vmatprep.mubr.bf16.mxu0 0
      %1351 = vmatmul.mubr.bf16.gmra.mxu0 %v1268
      %v1352 = vpop.f32.mrf.mxu0
      %v1353 = vadd.f32 0.0, %v1352
      %v1354 = vpop.f32.mrf.mxu0
      %v1355 = vpop.f32.mrf.mxu0
      %v1356 = vadd.f32 0.0, %v1355
      %v1357 = vpop.f32.mrf.mxu0
      %1358 = vdwg.mxu0
      %v1359 = vadd.f32 %v1233, %v1353
      %v1360 = vadd.f32 %v1234, %v1356
      %v1361 = vld [vmem:[%s2] sm:$0x1]
      %v1363 = vlaneseq
      %v1364 = vshrl.u32 %v1363, 7
      %v1365 = vsub.s32 0, %v1364
      %v1366 = vrot.slane %v1361, %v1365
      %v1368 = vadd.f32 %v1359, %v1366
      %v1369 = vadd.f32 %v1360, %v1366
      %v1370 = vmax.f32 %v1368, 0.0
      %v1371 = vmax.f32 %v1369, 0.0
      %v1372 = vmax.f32 %v1370, %v1371
      %v1373 = vlaneseq
      %v1374 = vshrl.u32 %v1373, 7
      %v1375 = vlaneseq
      %v1376 = vand.u32 %v1375, 127
      %v1377 = vmul.u32 %v1374, 2
      %vm1378 = vcmp.eq.s32.totalorder %v1376, %v1377
      %v1379 = vsel %vm1378, 1, 0
      %v1380 = vcvt.s32.f32 %v1379
      %v1381 = vadd.s32 %v1377, 1
      %vm1382 = vcmp.eq.s32.totalorder %v1376, %v1381
      %v1383 = vsel %vm1382, 1, 0
      %v1384 = vcvt.s32.f32 %v1383
      %vm1385 = vcmask 64512
      %v1387 = vsel %vm1385, %v1380, 0
      %1389 = vmatprep.subr.mxu0 0.0
      %1390 = vmatpush1.msra.mxu0 0.0
      %1391 = vmatprep.subr.mxu0 0.0
      %1392 = vmatpush1.msra.mxu0 0.0
      %1393 = vmatprep.subr.mxu0 0.0
      %1394 = vmatpush1.msra.mxu0 0.0
      %1395 = vmatprep.subr.mxu0 0.0
      %1396 = vmatpush1.msra.mxu0 0.0
      %1397 = vmatprep.subr.mxu0 0.0
      %1398 = vmatpush1.msra.mxu0 0.0
      %1399 = vmatprep.subr.mxu0 0.0
      %1400 = vmatpush1.msra.mxu0 0.0
      %1401 = vmatprep.subr.mxu0 0.0
      %1402 = vmatpush1.msra.mxu0 0.0
      %1403 = vmatprep.subr.mxu0 0.0
      %1404 = vmatpush1.msra.mxu0 0.0
      %1405 = vmatprep.subr.mxu0 0.0
      %1406 = vmatpush1.msra.mxu0 0.0
      %1407 = vmatprep.subr.mxu0 0.0
      %1408 = vmatpush1.msra.mxu0 0.0
      %1409 = vmatprep.subr.mxu0 0.0
      %1410 = vmatpush1.msra.mxu0 0.0
      %1411 = vmatprep.subr.mxu0 0.0
      %1412 = vmatpush1.msra.mxu0 0.0
      %1413 = vmatprep.subr.mxu0 0.0
      %1414 = vmatpush1.msra.mxu0 0.0
      %1415 = vmatprep.subr.mxu0 0.0
      %1416 = vmatpush1.msra.mxu0 0.0
      %1417 = vmatprep.subr.mxu0 0.0
      %1418 = vmatpush1.msra.mxu0 0.0
      %1419 = vmatprep.subr.mxu0 0.0
      %1420 = vmatpush1.msra.mxu0 %v1372
      %1421 = vmatprep.subr.mxu0 0.0
      %1422 = vmatpush2.msra.mxu0 0.0
      %1423 = vmatprep.subr.mxu0 0.0
      %1424 = vmatpush2.msra.mxu0 0.0
      %1425 = vmatprep.subr.mxu0 0.0
      %1426 = vmatpush2.msra.mxu0 0.0
      %1427 = vmatprep.subr.mxu0 0.0
      %1428 = vmatpush2.msra.mxu0 0.0
      %1429 = vmatprep.subr.mxu0 0.0
      %1430 = vmatpush2.msra.mxu0 0.0
      %1431 = vmatprep.subr.mxu0 0.0
      %1432 = vmatpush2.msra.mxu0 0.0
      %1433 = vmatprep.subr.mxu0 0.0
      %1434 = vmatpush2.msra.mxu0 0.0
      %1435 = vmatprep.subr.mxu0 0.0
      %1436 = vmatpush2.msra.mxu0 0.0
      %1437 = vmatprep.subr.mxu0 0.0
      %1438 = vmatpush2.msra.mxu0 0.0
      %1439 = vmatprep.subr.mxu0 0.0
      %1440 = vmatpush2.msra.mxu0 0.0
      %1441 = vmatprep.subr.mxu0 0.0
      %1442 = vmatpush2.msra.mxu0 0.0
      %1443 = vmatprep.subr.mxu0 0.0
      %1444 = vmatpush2.msra.mxu0 0.0
      %1445 = vmatprep.subr.mxu0 0.0
      %1446 = vmatpush2.msra.mxu0 0.0
      %1447 = vmatprep.subr.mxu0 0.0
      %1448 = vmatpush2.msra.mxu0 0.0
      %1449 = vmatprep.subr.mxu0 0.0
      %1450 = vmatpush2.msra.mxu0 0.0
      %1451 = vmatprep.subr.mxu0 0.0
      %1452 = vmatpush2.msra.mxu0 0.0
      %1453 = vmatprep.mubr.f32.mxu0 0.0
      %1454 = vmatmul.mubr.f32.gmra.mxu0 %v1387
      %v1455 = vpop.f32.mrf.mxu0
      %v1456 = vadd.f32 0.0, %v1455
      %v1457 = vpop.f32.mrf.mxu0
      %1458 = vdwg.mxu0
      %v1460 = vsel %vm1385, %v1384, 0
      %1462 = vmatprep.subr.mxu0 0.0
      %1463 = vmatpush1.msra.mxu0 0.0
      %1464 = vmatprep.subr.mxu0 0.0
      %1465 = vmatpush1.msra.mxu0 0.0
      %1466 = vmatprep.subr.mxu0 0.0
      %1467 = vmatpush1.msra.mxu0 0.0
      %1468 = vmatprep.subr.mxu0 0.0
      %1469 = vmatpush1.msra.mxu0 0.0
      %1470 = vmatprep.subr.mxu0 0.0
      %1471 = vmatpush1.msra.mxu0 0.0
      %1472 = vmatprep.subr.mxu0 0.0
      %1473 = vmatpush1.msra.mxu0 0.0
      %1474 = vmatprep.subr.mxu0 0.0
      %1475 = vmatpush1.msra.mxu0 0.0
      %1476 = vmatprep.subr.mxu0 0.0
      %1477 = vmatpush1.msra.mxu0 0.0
      %1478 = vmatprep.subr.mxu0 0.0
      %1479 = vmatpush1.msra.mxu0 0.0
      %1480 = vmatprep.subr.mxu0 0.0
      %1481 = vmatpush1.msra.mxu0 0.0
      %1482 = vmatprep.subr.mxu0 0.0
      %1483 = vmatpush1.msra.mxu0 0.0
      %1484 = vmatprep.subr.mxu0 0.0
      %1485 = vmatpush1.msra.mxu0 0.0
      %1486 = vmatprep.subr.mxu0 0.0
      %1487 = vmatpush1.msra.mxu0 0.0
      %1488 = vmatprep.subr.mxu0 0.0
      %1489 = vmatpush1.msra.mxu0 0.0
      %1490 = vmatprep.subr.mxu0 0.0
      %1491 = vmatpush1.msra.mxu0 0.0
      %1492 = vmatprep.subr.mxu0 0.0
      %1493 = vmatpush1.msra.mxu0 %v1372
      %1494 = vmatprep.subr.mxu0 0.0
      %1495 = vmatpush2.msra.mxu0 0.0
      %1496 = vmatprep.subr.mxu0 0.0
      %1497 = vmatpush2.msra.mxu0 0.0
      %1498 = vmatprep.subr.mxu0 0.0
      %1499 = vmatpush2.msra.mxu0 0.0
      %1500 = vmatprep.subr.mxu0 0.0
      %1501 = vmatpush2.msra.mxu0 0.0
      %1502 = vmatprep.subr.mxu0 0.0
      %1503 = vmatpush2.msra.mxu0 0.0
      %1504 = vmatprep.subr.mxu0 0.0
      %1505 = vmatpush2.msra.mxu0 0.0
      %1506 = vmatprep.subr.mxu0 0.0
      %1507 = vmatpush2.msra.mxu0 0.0
      %1508 = vmatprep.subr.mxu0 0.0
      %1509 = vmatpush2.msra.mxu0 0.0
      %1510 = vmatprep.subr.mxu0 0.0
      %1511 = vmatpush2.msra.mxu0 0.0
      %1512 = vmatprep.subr.mxu0 0.0
      %1513 = vmatpush2.msra.mxu0 0.0
      %1514 = vmatprep.subr.mxu0 0.0
      %1515 = vmatpush2.msra.mxu0 0.0
      %1516 = vmatprep.subr.mxu0 0.0
      %1517 = vmatpush2.msra.mxu0 0.0
      %1518 = vmatprep.subr.mxu0 0.0
      %1519 = vmatpush2.msra.mxu0 0.0
      %1520 = vmatprep.subr.mxu0 0.0
      %1521 = vmatpush2.msra.mxu0 0.0
      %1522 = vmatprep.subr.mxu0 0.0
      %1523 = vmatpush2.msra.mxu0 0.0
      %1524 = vmatprep.subr.mxu0 0.0
      %1525 = vmatpush2.msra.mxu0 0.0
      %1526 = vmatprep.mubr.f32.mxu0 0.0
      %1527 = vmatmul.mubr.f32.gmra.mxu0 %v1460
      %v1528 = vpop.f32.mrf.mxu0
      %v1529 = vadd.f32 0.0, %v1528
      %v1530 = vpop.f32.mrf.mxu0
      %1531 = vdwg.mxu0
      %v1532 = vmax.f32 %v1456, %v1529
      %v1533 = vpack.c.bf16 %v1532, %v1532
      %1534 = vst [vmem:[%s190] sm:$0x3] %v1533
      %p1535 = scmp.lt.s32.totalorder %s18, 1
      %s1536 = scalar_select %p1535, %s18, 1
      %p1537 = scmp.lt.s32.totalorder %s19, 3
      %s1538 = scalar_select %p1537, %s19, 3
      %s1539 = smul.addr %s1536, 4
      %s1540 = sadd.s32 %s1538, %s1539
      %s1541 = smul.addr %s1540, 2
      %s1542 = scalar_lea.vmem %s3, %s1541
      // Predicated region
      $region33: #{modified_lenet_forward.7} parent=31 // pred_check
        %p1543 = pneg %p114
      $region34: #{modified_lenet_forward.7} parent=31 // pred_check_branch
        %1545 = sbr.rel (%p1543) target = $region36
      $region35: #{modified_lenet_forward.7} parent=31 // pred_region
        _
      $region36: #{modified_lenet_forward.7} parent=31 // pred_fallthru
        _
    $region32: #{modified_lenet_forward.7} parent=5 // pred_fallthru
      _
    %p1546 = scmp.le.s32.totalorder 2, %s9
    // Predicated region
    $region37: #{modified_lenet_forward.7} parent=5 // pred_check
      %p1547 = pneg %p1546
    $region38: #{modified_lenet_forward.7} parent=5 // pred_check_branch
      %1549 = sbr.rel (%p1547) target = $region40
    $region39: #{modified_lenet_forward.7} parent=5 // pred_region
      %s1550 = ssub.s32 %s9, 2
      // Predicated region
      $region41: #{modified_lenet_forward.7} parent=39 // pred_check
        %p1551 = pneg %p120
      $region42: #{modified_lenet_forward.7} parent=39 // pred_check_branch
        %1553 = sbr.rel (%p1551) target = $region44
      $region43: #{modified_lenet_forward.7} parent=39 // pred_region
        %p1554 = scmp.lt.s32.totalorder %s20, 1
        %s1555 = scalar_select %p1554, %s20, 1
        %p1556 = scmp.lt.s32.totalorder %s21, 3
        %s1557 = scalar_select %p1556, %s21, 3
        %s1558 = smul.addr %s1555, 4
        %s1559 = sadd.s32 %s1557, %s1558
        %s1560 = smul.addr %s1559, 2
        %s1561 = scalar_lea.vmem %s3, %s1560
      $region44: #{modified_lenet_forward.7} parent=39 // pred_fallthru
        _
    $region40: #{modified_lenet_forward.7} parent=5 // pred_fallthru
      _
  $region6: #{modified_lenet_forward.7} parent=0 // loop_footer
    %s13 = sadd.s32 1, %s9
  $region7: #{modified_lenet_forward.7} parent=0 // loop_footer_branch
    %8 = sbr.rel target = $region3
  $region8: #{modified_lenet_forward.7} parent=0 // loop_exit
    _

// kernel: modified_lenet_forward.6
$region0: #{modified_lenet_forward.6}
  #allocation0 [shape = 'u32[]', space=smem, size = 0x4, offset = 0x4, fixed_abs, tag = 'smem constant byte address 0x4 - core index']
  #allocation1 [shape = 'u32[144,128]{1,0:T(1,128)}', space=vmem, size = 0x12000, scoped, tag = 'internal scratch']
  %s0 = inlined_call_operand.vmem [shape: bf16[2,18,18,128], index: 0, kind: input, shape index: {}]
  %s1 = inlined_call_operand.vmem [shape: bf16[9,128,128], index: 1, kind: input, shape index: {}]
  %s2 = inlined_call_operand.vmem [shape: f32[1,128], index: 2, kind: input, shape index: {}]
  %s3 = inlined_call_operand.vmem [shape: bf16[2,8,8,128], index: 3, kind: output, shape index: {}]
  %s4 = sld [smem:[#allocation0]]
  $region45: #{modified_lenet_forward.6} parent=0
    _
  %s6 = ssub.s32 1, %s4
  %s7 = scalar_select 0, %s6, %s4
  loop: start=0, step=1, limit=18
  $region2: #{modified_lenet_forward.6} parent=0 // loop_pre_header
    _
  $region3: #{modified_lenet_forward.6} parent=0 // loop_header
    %s9 = sphi 0, %s13
    %p10 = scmp.ge.s32.totalorder %s9, 18
    %s16 = sphi 0, %s28
    %s17 = sphi 0, %s24
    %s18 = sphi 0, %s16
    %s19 = sphi 0, %s17
    %s20 = sphi 0, %s18
    %s21 = sphi 0, %s19
    %s31 = sphi 0, %s33
    %s34 = sphi 0, %s31
    %s35 = sphi 0, %s34
    %s51 = sphi 0, %s35
    %s55 = sphi 0, %s55
    %s57 = sphi 0, %s55
    %s58 = sphi 0, %s57
    %s72 = sphi 0, %s58
    %s76 = sphi 0, %s76
    %s78 = sphi 0, %s76
    %s79 = sphi 0, %s78
    %s93 = sphi 0, %s79
    %s101 = sphi 0, %s103
    %s104 = sphi 0, %s101
    %s105 = sphi 0, %s104
    %s121 = sphi 0, %s105
  $region4: #{modified_lenet_forward.6} parent=0 // loop_header_branch
    %12 = sbr.rel (%p10) target = $region8
  $region5: #{modified_lenet_forward.6} parent=0 // loop_body
    %s14 = ssub.s32 %s9, 1
    %s15 = ssub.s32 %s9, 2
    %s22 = sadd.s32 1, %s17
    %p23 = scmp.ge.s32.totalorder %s22, 8
    %s24 = scalar_select %p23, 0, %s22
    %s25 = sadd.s32 1, %s16
    %s26 = scalar_select %p23, %s25, %s16
    %p27 = scmp.ge.s32.totalorder %s26, 2
    %s28 = scalar_select %p27, 0, %s26
    %s29 = ssub.s32 %s16, %s28
    %p30 = scmp.eq.s32.totalorder %s29, 0
    %s32 = sadd.s32 %s31, 1
    %s33 = scalar_select %p30, %s31, %s32
    %p36 = pneg %p30
    %p37 = scmp.eq.s32.totalorder %s9, 15
    %p38 = por %p36, %p37
    %p39 = scmp.ne.s32.totalorder %s31, %s34
    %p40 = scmp.eq.s32.totalorder %s9, 0
    %p41 = por %p39, %p40
    %p42 = scmp.ne.s32.totalorder %s31, %s34
    %p43 = scmp.eq.s32.totalorder %s14, 15
    %p44 = por %p42, %p43
    %p45 = scmp.ne.s32.totalorder %s34, %s35
    %p46 = scmp.eq.s32.totalorder %s14, 0
    %p47 = por %p45, %p46
    %p48 = scmp.ne.s32.totalorder %s34, %s35
    %p49 = scmp.eq.s32.totalorder %s15, 15
    %p50 = por %p48, %p49
    %p52 = scmp.ne.s32.totalorder %s35, %s51
    %p53 = scmp.eq.s32.totalorder %s15, 0
    %p54 = por %p52, %p53
    %s56 = sadd.s32 %s55, 1
    %p59 = scmp.eq.s32.totalorder %s9, 15
    %p60 = scmp.ne.s32.totalorder %s55, %s57
    %p61 = scmp.eq.s32.totalorder %s9, 0
    %p62 = por %p60, %p61
    %p63 = scmp.ne.s32.totalorder %s55, %s57
    %p64 = scmp.eq.s32.totalorder %s14, 15
    %p65 = por %p63, %p64
    %p66 = scmp.ne.s32.totalorder %s57, %s58
    %p67 = scmp.eq.s32.totalorder %s14, 0
    %p68 = por %p66, %p67
    %p69 = scmp.ne.s32.totalorder %s57, %s58
    %p70 = scmp.eq.s32.totalorder %s15, 15
    %p71 = por %p69, %p70
    %p73 = scmp.ne.s32.totalorder %s58, %s72
    %p74 = scmp.eq.s32.totalorder %s15, 0
    %p75 = por %p73, %p74
    %s77 = sadd.s32 %s76, 1
    %p80 = scmp.eq.s32.totalorder %s9, 15
    %p81 = scmp.ne.s32.totalorder %s76, %s78
    %p82 = scmp.eq.s32.totalorder %s9, 0
    %p83 = por %p81, %p82
    %p84 = scmp.ne.s32.totalorder %s76, %s78
    %p85 = scmp.eq.s32.totalorder %s14, 15
    %p86 = por %p84, %p85
    %p87 = scmp.ne.s32.totalorder %s78, %s79
    %p88 = scmp.eq.s32.totalorder %s14, 0
    %p89 = por %p87, %p88
    %p90 = scmp.ne.s32.totalorder %s78, %s79
    %p91 = scmp.eq.s32.totalorder %s15, 15
    %p92 = por %p90, %p91
    %p94 = scmp.ne.s32.totalorder %s79, %s93
    %p95 = scmp.eq.s32.totalorder %s15, 0
    %p96 = por %p94, %p95
    %s97 = ssub.s32 %s16, %s28
    %s98 = ssub.s32 %s17, %s24
    %s99 = sor.u32 %s97, %s98
    %p100 = scmp.eq.s32.totalorder %s99, 0
    %s102 = sadd.s32 %s101, 1
    %s103 = scalar_select %p100, %s101, %s102
    %p106 = pneg %p100
    %p107 = scmp.eq.s32.totalorder %s9, 15
    %p108 = por %p106, %p107
    %p109 = scmp.ne.s32.totalorder %s101, %s104
    %p110 = scmp.eq.s32.totalorder %s9, 0
    %p111 = por %p109, %p110
    %p112 = scmp.ne.s32.totalorder %s101, %s104
    %p113 = scmp.eq.s32.totalorder %s14, 15
    %p114 = por %p112, %p113
    %p115 = scmp.ne.s32.totalorder %s104, %s105
    %p116 = scmp.eq.s32.totalorder %s14, 0
    %p117 = por %p115, %p116
    %p118 = scmp.ne.s32.totalorder %s104, %s105
    %p119 = scmp.eq.s32.totalorder %s15, 15
    %p120 = por %p118, %p119
    %p122 = scmp.ne.s32.totalorder %s105, %s121
    %p123 = scmp.eq.s32.totalorder %s15, 0
    %p124 = por %p122, %p123
    %p125 = scmp.le.s32.totalorder 1, %s9
    %p126 = scmp.lt.s32.totalorder %s9, 17
    %p127 = pnand %p125, %p126
    %p128 = pneg %p127
    // Predicated region
    $region9: #{modified_lenet_forward.6} parent=5 // pred_check
      _
    $region10: #{modified_lenet_forward.6} parent=5 // pred_check_branch
      %130 = sbr.rel (%p127) target = $region12
    $region11: #{modified_lenet_forward.6} parent=5 // pred_region
      %s131 = ssub.s32 %s9, 1
      // Predicated region
      $region13: #{modified_lenet_forward.6} parent=11 // pred_check
        %p132 = pneg %p68
      $region14: #{modified_lenet_forward.6} parent=11 // pred_check_branch
        %134 = sbr.rel (%p132) target = $region16
      $region15: #{modified_lenet_forward.6} parent=11 // pred_region
        _
      $region16: #{modified_lenet_forward.6} parent=11 // pred_fallthru
        _
      // Predicated region
      $region17: #{modified_lenet_forward.6} parent=11 // pred_check
        %p135 = pneg %p89
      $region18: #{modified_lenet_forward.6} parent=11 // pred_check_branch
        %137 = sbr.rel (%p135) target = $region20
      $region19: #{modified_lenet_forward.6} parent=11 // pred_region
        _
      $region20: #{modified_lenet_forward.6} parent=11 // pred_fallthru
        _
    $region12: #{modified_lenet_forward.6} parent=5 // pred_fallthru
      _
    %p138 = scmp.lt.s32.totalorder %s9, 16
    // Predicated region
    $region21: #{modified_lenet_forward.6} parent=5 // pred_check
      %p139 = pneg %p138
    $region22: #{modified_lenet_forward.6} parent=5 // pred_check_branch
      %141 = sbr.rel (%p139) target = $region24
    $region23: #{modified_lenet_forward.6} parent=5 // pred_region
      // Predicated region
      $region25: #{modified_lenet_forward.6} parent=23 // pred_check
        %p142 = pneg %p41
      $region26: #{modified_lenet_forward.6} parent=23 // pred_check_branch
        %144 = sbr.rel (%p142) target = $region28
      $region27: #{modified_lenet_forward.6} parent=23 // pred_region
        %p145 = scmp.lt.s32.totalorder %s16, 1
        %s146 = scalar_select %p145, %s16, 1
        %s147 = smul.addr %s146, 54
        %s148 = smul.addr %s147, 4
        %s149 = scalar_lea.vmem %s0, %s148
      $region28: #{modified_lenet_forward.6} parent=23 // pred_fallthru
        _
    $region24: #{modified_lenet_forward.6} parent=5 // pred_fallthru
      _
    %p150 = scmp.le.s32.totalorder 1, %s9
    %p151 = scmp.lt.s32.totalorder %s9, 17
    %p152 = pnand %p150, %p151
    %p153 = pneg %p152
    // Predicated region
    $region29: #{modified_lenet_forward.6} parent=5 // pred_check
      _
    $region30: #{modified_lenet_forward.6} parent=5 // pred_check_branch
      %155 = sbr.rel (%p152) target = $region32
    $region31: #{modified_lenet_forward.6} parent=5 // pred_region
      %s156 = ssub.s32 %s9, 1
      %p157 = scmp.lt.s32.totalorder %s18, 1
      %s158 = scalar_select %p157, %s18, 1
      %s159 = smul.addr %s158, 54
      %s160 = smul.addr %s159, 4
      %s161 = scalar_lea.vmem %s0, %s160
      %p162 = pneg %p47
      %p163 = pneg %p44
      %p164 = pneg %p68
      %p165 = pneg %p65
      %p166 = pneg %p89
      %p167 = pneg %p86
      %p168 = pneg %p117
      %p169 = pneg %p114
      %p170 = scmp.lt.s32.totalorder %s18, 1
      %s171 = scalar_select %p170, %s18, 1
      %p172 = scmp.lt.s32.totalorder %s19, 7
      %s173 = scalar_select %p172, %s19, 7
      %s174 = smul.addr %s171, 8
      %s175 = sadd.s32 %s173, %s174
      %s176 = smul.addr %s175, 4
      %s177 = scalar_lea.vmem %s3, %s176
      %p178 = scmp.lt.s32.totalorder %s18, 1
      %s179 = scalar_select %p178, %s18, 1
      %s180 = smul.addr %s179, 54
      %s181 = smul.addr %s180, 4
      %s182 = scalar_lea.vmem %s0, %s181
      %p183 = scmp.lt.s32.totalorder %s18, 1
      %s184 = scalar_select %p183, %s18, 1
      %p185 = scmp.lt.s32.totalorder %s19, 7
      %s186 = scalar_select %p185, %s19, 7
      %s187 = smul.addr %s184, 8
      %s188 = sadd.s32 %s186, %s187
      %s189 = smul.addr %s188, 4
      %s190 = scalar_lea.vmem %s3, %s189
      %s192 = smul.u32 %s19, 2
      %s193 = smul.u32 %s192, 3
      %s194 = smul.addr %s193, 4
      %s195 = scalar_lea.vmem %s182, %s194
      %v196 = vld [vmem:[%s195] sm:$0xf]
      %v197 = vld [vmem:[%s195 + $0x4] sm:$0xf]
      %v198 = vld [vmem:[%s195 + $0xc] sm:$0xf]
      %v199 = vld [vmem:[%s195 + $0x10] sm:$0xf]
      %v200 = vld [vmem:[%s1] sm:$0xf]
      %v201 = vld [vmem:[%s1 + $0x4] sm:$0xf]
      %v202 = vld [vmem:[%s1 + $0x8] sm:$0xf]
      %v203 = vld [vmem:[%s1 + $0xc] sm:$0xf]
      %v204 = vld [vmem:[%s1 + $0x10] sm:$0xf]
      %v205 = vld [vmem:[%s1 + $0x14] sm:$0xf]
      %v206 = vld [vmem:[%s1 + $0x18] sm:$0xf]
      %v207 = vld [vmem:[%s1 + $0x1c] sm:$0xf]
      %v208 = vld [vmem:[%s1 + $0x20] sm:$0xf]
      %v209 = vld [vmem:[%s1 + $0x24] sm:$0xf]
      %v210 = vld [vmem:[%s1 + $0x28] sm:$0xf]
      %v211 = vld [vmem:[%s1 + $0x2c] sm:$0xf]
      %v212 = vld [vmem:[%s1 + $0x30] sm:$0xf]
      %v213 = vld [vmem:[%s1 + $0x34] sm:$0xf]
      %v214 = vld [vmem:[%s1 + $0x38] sm:$0xf]
      %v215 = vld [vmem:[%s1 + $0x3c] sm:$0xf]
      %v216 = vld [vmem:[%s195 + $0x8] sm:$0x1]
      %v217 = vld [vmem:[%s195 + $0x14] sm:$0x1]
      %vm218 = vsmask.f32 3328
      %vm219 = vsmask.f32 7440
      %vm220 = vmor %vm218, %vm219
      %v222 = vshrl.u32 %v196, 16
      %v224 = vrot.slane %v222, 4
      %v225 = vshll.u32 %v196, 16
      %v227 = vrot.slane %v225, 5
      %v228 = vor.u32 %v224, %v227
      %v229 = vrot.slane %v228, 4
      %v231 = vshll.u32 %v197, 16
      %v233 = vrot.slane %v231, 5
      %v234 = vsel %vm220, %v229, %v233
      %v235 = vshrl.u32 %v197, 16
      %v237 = vrot.slane %v235, 4
      %v238 = vor.u32 %v237, %v233
      %v239 = vrot.slane %v238, 4
      %v241 = vshll.u32 %v216, 16
      %v243 = vrot.slane %v241, 5
      %v244 = vsel %vm220, %v239, %v243
      %v246 = vshrl.u32 %v198, 16
      %v248 = vrot.slane %v246, 4
      %v249 = vshll.u32 %v198, 16
      %v251 = vrot.slane %v249, 5
      %v252 = vor.u32 %v248, %v251
      %v253 = vrot.slane %v252, 4
      %v255 = vshll.u32 %v199, 16
      %v257 = vrot.slane %v255, 5
      %v258 = vsel %vm220, %v253, %v257
      %v259 = vshrl.u32 %v199, 16
      %v261 = vrot.slane %v259, 4
      %v262 = vor.u32 %v261, %v257
      %v263 = vrot.slane %v262, 4
      %v265 = vshll.u32 %v217, 16
      %v267 = vrot.slane %v265, 5
      %v268 = vsel %vm220, %v263, %v267
      %s269 = scalar_lea.vmem %s1, 64
      %v270 = vld [vmem:[%s269] sm:$0xf]
      %v271 = vld [vmem:[%s269 + $0x4] sm:$0xf]
      %v272 = vld [vmem:[%s269 + $0x8] sm:$0xf]
      %v273 = vld [vmem:[%s269 + $0xc] sm:$0xf]
      %v274 = vld [vmem:[%s269 + $0x10] sm:$0xf]
      %v275 = vld [vmem:[%s269 + $0x14] sm:$0xf]
      %v276 = vld [vmem:[%s269 + $0x18] sm:$0xf]
      %v277 = vld [vmem:[%s269 + $0x1c] sm:$0xf]
      %v278 = vld [vmem:[%s269 + $0x20] sm:$0xf]
      %v279 = vld [vmem:[%s269 + $0x24] sm:$0xf]
      %v280 = vld [vmem:[%s269 + $0x28] sm:$0xf]
      %v281 = vld [vmem:[%s269 + $0x2c] sm:$0xf]
      %v282 = vld [vmem:[%s269 + $0x30] sm:$0xf]
      %v283 = vld [vmem:[%s269 + $0x34] sm:$0xf]
      %v284 = vld [vmem:[%s269 + $0x38] sm:$0xf]
      %v285 = vld [vmem:[%s269 + $0x3c] sm:$0xf]
      %v286 = vunpack.c.l.b16 %v234
      %v287 = vunpack.c.l.b16 %v244
      %v288 = vunpack.c.l.b16 %v258
      %v289 = vunpack.c.l.b16 %v268
      %v290 = vpack.c.b16 %v287, %v286
      %v291 = vpack.c.b16 %v289, %v288
      %v310 = vunpack.c.l.b16 %v270
      %v311 = vunpack.c.l.b16 %v271
      %v312 = vunpack.c.l.b16 %v272
      %v313 = vunpack.c.l.b16 %v273
      %v314 = vunpack.c.l.b16 %v274
      %v315 = vunpack.c.l.b16 %v275
      %v316 = vunpack.c.l.b16 %v276
      %v317 = vunpack.c.l.b16 %v277
      %v318 = vunpack.c.l.b16 %v278
      %v319 = vunpack.c.l.b16 %v279
      %v320 = vunpack.c.l.b16 %v280
      %v321 = vunpack.c.l.b16 %v281
      %v322 = vunpack.c.l.b16 %v282
      %v323 = vunpack.c.l.b16 %v283
      %v324 = vunpack.c.l.b16 %v284
      %v325 = vunpack.c.l.b16 %v285
      %v326 = vpack.c.b16 %v311, %v310
      %v327 = vpack.c.b16 %v313, %v312
      %v328 = vpack.c.b16 %v315, %v314
      %v329 = vpack.c.b16 %v317, %v316
      %v330 = vpack.c.b16 %v319, %v318
      %v331 = vpack.c.b16 %v321, %v320
      %v332 = vpack.c.b16 %v323, %v322
      %v333 = vpack.c.b16 %v325, %v324
      %342 = vmatprep.subr.bf16.mxu0 0
      %343 = vmatpush1.bf16.msra.mxu0 %v333
      %344 = vmatprep.subr.bf16.mxu0 0
      %345 = vmatpush1.bf16.msra.mxu0 %v332
      %346 = vmatprep.subr.bf16.mxu0 0
      %347 = vmatpush1.bf16.msra.mxu0 %v331
      %348 = vmatprep.subr.bf16.mxu0 0
      %349 = vmatpush1.bf16.msra.mxu0 %v330
      %350 = vmatprep.subr.bf16.mxu0 0
      %351 = vmatpush1.bf16.msra.mxu0 %v329
      %352 = vmatprep.subr.bf16.mxu0 0
      %353 = vmatpush1.bf16.msra.mxu0 %v328
      %354 = vmatprep.subr.bf16.mxu0 0
      %355 = vmatpush1.bf16.msra.mxu0 %v327
      %356 = vmatprep.subr.bf16.mxu0 0
      %357 = vmatpush1.bf16.msra.mxu0 %v326
      %358 = vmatprep.subr.bf16.mxu0 0
      %359 = vmatpush2.bf16.msra.mxu0 0
      %360 = vmatprep.subr.bf16.mxu0 0
      %361 = vmatpush2.bf16.msra.mxu0 0
      %362 = vmatprep.subr.bf16.mxu0 0
      %363 = vmatpush2.bf16.msra.mxu0 0
      %364 = vmatprep.subr.bf16.mxu0 0
      %365 = vmatpush2.bf16.msra.mxu0 0
      %366 = vmatprep.subr.bf16.mxu0 0
      %367 = vmatpush2.bf16.msra.mxu0 0
      %368 = vmatprep.subr.bf16.mxu0 0
      %369 = vmatpush2.bf16.msra.mxu0 0
      %370 = vmatprep.subr.bf16.mxu0 0
      %371 = vmatpush2.bf16.msra.mxu0 0
      %372 = vmatprep.subr.bf16.mxu0 0
      %373 = vmatpush2.bf16.msra.mxu0 0
      %374 = vmatprep.mubr.bf16.mxu0 0
      %375 = vmatmul.mubr.bf16.gmra.mxu0 %v290
      %v376 = vpop.f32.mrf.mxu0
      %v377 = vadd.f32 0.0, %v376
      %v378 = vpop.f32.mrf.mxu0
      %v379 = vpop.f32.mrf.mxu0
      %v380 = vadd.f32 0.0, %v379
      %v381 = vpop.f32.mrf.mxu0
      %382 = vmatprep.mubr.bf16.mxu0 0
      %383 = vmatmul.mubr.bf16.gmra.mxu0 %v291
      %v384 = vpop.f32.mrf.mxu0
      %v385 = vadd.f32 0.0, %v384
      %v386 = vpop.f32.mrf.mxu0
      %v387 = vpop.f32.mrf.mxu0
      %v388 = vadd.f32 0.0, %v387
      %v389 = vpop.f32.mrf.mxu0
      %390 = vdwg.mxu0
      %v395 = vunpack.c.l.b16 %v196
      %v396 = vunpack.c.l.b16 %v197
      %v397 = vunpack.c.l.b16 %v198
      %v398 = vunpack.c.l.b16 %v199
      %v399 = vpack.c.b16 %v396, %v395
      %v400 = vpack.c.b16 %v398, %v397
      %v419 = vunpack.c.l.b16 %v200
      %v420 = vunpack.c.l.b16 %v201
      %v421 = vunpack.c.l.b16 %v202
      %v422 = vunpack.c.l.b16 %v203
      %v423 = vunpack.c.l.b16 %v204
      %v424 = vunpack.c.l.b16 %v205
      %v425 = vunpack.c.l.b16 %v206
      %v426 = vunpack.c.l.b16 %v207
      %v427 = vunpack.c.l.b16 %v208
      %v428 = vunpack.c.l.b16 %v209
      %v429 = vunpack.c.l.b16 %v210
      %v430 = vunpack.c.l.b16 %v211
      %v431 = vunpack.c.l.b16 %v212
      %v432 = vunpack.c.l.b16 %v213
      %v433 = vunpack.c.l.b16 %v214
      %v434 = vunpack.c.l.b16 %v215
      %v435 = vpack.c.b16 %v420, %v419
      %v436 = vpack.c.b16 %v422, %v421
      %v437 = vpack.c.b16 %v424, %v423
      %v438 = vpack.c.b16 %v426, %v425
      %v439 = vpack.c.b16 %v428, %v427
      %v440 = vpack.c.b16 %v430, %v429
      %v441 = vpack.c.b16 %v432, %v431
      %v442 = vpack.c.b16 %v434, %v433
      %451 = vmatprep.subr.bf16.mxu0 0
      %452 = vmatpush1.bf16.msra.mxu0 %v442
      %453 = vmatprep.subr.bf16.mxu0 0
      %454 = vmatpush1.bf16.msra.mxu0 %v441
      %455 = vmatprep.subr.bf16.mxu0 0
      %456 = vmatpush1.bf16.msra.mxu0 %v440
      %457 = vmatprep.subr.bf16.mxu0 0
      %458 = vmatpush1.bf16.msra.mxu0 %v439
      %459 = vmatprep.subr.bf16.mxu0 0
      %460 = vmatpush1.bf16.msra.mxu0 %v438
      %461 = vmatprep.subr.bf16.mxu0 0
      %462 = vmatpush1.bf16.msra.mxu0 %v437
      %463 = vmatprep.subr.bf16.mxu0 0
      %464 = vmatpush1.bf16.msra.mxu0 %v436
      %465 = vmatprep.subr.bf16.mxu0 0
      %466 = vmatpush1.bf16.msra.mxu0 %v435
      %467 = vmatprep.subr.bf16.mxu0 0
      %468 = vmatpush2.bf16.msra.mxu0 0
      %469 = vmatprep.subr.bf16.mxu0 0
      %470 = vmatpush2.bf16.msra.mxu0 0
      %471 = vmatprep.subr.bf16.mxu0 0
      %472 = vmatpush2.bf16.msra.mxu0 0
      %473 = vmatprep.subr.bf16.mxu0 0
      %474 = vmatpush2.bf16.msra.mxu0 0
      %475 = vmatprep.subr.bf16.mxu0 0
      %476 = vmatpush2.bf16.msra.mxu0 0
      %477 = vmatprep.subr.bf16.mxu0 0
      %478 = vmatpush2.bf16.msra.mxu0 0
      %479 = vmatprep.subr.bf16.mxu0 0
      %480 = vmatpush2.bf16.msra.mxu0 0
      %481 = vmatprep.subr.bf16.mxu0 0
      %482 = vmatpush2.bf16.msra.mxu0 0
      %483 = vmatprep.mubr.bf16.mxu0 0
      %484 = vmatmul.mubr.bf16.gmra.mxu0 %v399
      %v485 = vpop.f32.mrf.mxu0
      %v486 = vadd.f32 %v377, %v485
      %v487 = vpop.f32.mrf.mxu0
      %v488 = vpop.f32.mrf.mxu0
      %v489 = vadd.f32 %v380, %v488
      %v490 = vpop.f32.mrf.mxu0
      %491 = vmatprep.mubr.bf16.mxu0 0
      %492 = vmatmul.mubr.bf16.gmra.mxu0 %v400
      %v493 = vpop.f32.mrf.mxu0
      %v494 = vadd.f32 %v385, %v493
      %v495 = vpop.f32.mrf.mxu0
      %v496 = vpop.f32.mrf.mxu0
      %v497 = vadd.f32 %v388, %v496
      %v498 = vpop.f32.mrf.mxu0
      %499 = vdwg.mxu0
      %v500 = vld [vmem:[%s195] sm:$0xe]
      %v501 = vld [vmem:[%s195 + $0xc] sm:$0xe]
      %vm506 = vcmask 1042432
      %vm507 = vcmask 1046532
      %vm508 = vmor %vm506, %vm507
      %v509 = vrot.slane %v500, 5
      %v510 = vrot.slane %v509, 4
      %v511 = vrot.slane %v197, 5
      %v512 = vsel %vm508, %v510, %v511
      %v513 = vrot.slane %v511, 4
      %v514 = vrot.slane %v216, 5
      %v515 = vsel %vm508, %v513, %v514
      %v516 = vrot.slane %v501, 5
      %v517 = vrot.slane %v516, 4
      %v518 = vrot.slane %v199, 5
      %v519 = vsel %vm508, %v517, %v518
      %v520 = vrot.slane %v518, 4
      %v521 = vrot.slane %v217, 5
      %v522 = vsel %vm508, %v520, %v521
      %s523 = scalar_lea.vmem %s1, 128
      %v524 = vld [vmem:[%s523] sm:$0xf]
      %v525 = vld [vmem:[%s523 + $0x4] sm:$0xf]
      %v526 = vld [vmem:[%s523 + $0x8] sm:$0xf]
      %v527 = vld [vmem:[%s523 + $0xc] sm:$0xf]
      %v528 = vld [vmem:[%s523 + $0x10] sm:$0xf]
      %v529 = vld [vmem:[%s523 + $0x14] sm:$0xf]
      %v530 = vld [vmem:[%s523 + $0x18] sm:$0xf]
      %v531 = vld [vmem:[%s523 + $0x1c] sm:$0xf]
      %v532 = vld [vmem:[%s523 + $0x20] sm:$0xf]
      %v533 = vld [vmem:[%s523 + $0x24] sm:$0xf]
      %v534 = vld [vmem:[%s523 + $0x28] sm:$0xf]
      %v535 = vld [vmem:[%s523 + $0x2c] sm:$0xf]
      %v536 = vld [vmem:[%s523 + $0x30] sm:$0xf]
      %v537 = vld [vmem:[%s523 + $0x34] sm:$0xf]
      %v538 = vld [vmem:[%s523 + $0x38] sm:$0xf]
      %v539 = vld [vmem:[%s523 + $0x3c] sm:$0xf]
      %v540 = vunpack.c.l.b16 %v512
      %v541 = vunpack.c.l.b16 %v515
      %v542 = vunpack.c.l.b16 %v519
      %v543 = vunpack.c.l.b16 %v522
      %v544 = vpack.c.b16 %v541, %v540
      %v545 = vpack.c.b16 %v543, %v542
      %v564 = vunpack.c.l.b16 %v524
      %v565 = vunpack.c.l.b16 %v525
      %v566 = vunpack.c.l.b16 %v526
      %v567 = vunpack.c.l.b16 %v527
      %v568 = vunpack.c.l.b16 %v528
      %v569 = vunpack.c.l.b16 %v529
      %v570 = vunpack.c.l.b16 %v530
      %v571 = vunpack.c.l.b16 %v531
      %v572 = vunpack.c.l.b16 %v532
      %v573 = vunpack.c.l.b16 %v533
      %v574 = vunpack.c.l.b16 %v534
      %v575 = vunpack.c.l.b16 %v535
      %v576 = vunpack.c.l.b16 %v536
      %v577 = vunpack.c.l.b16 %v537
      %v578 = vunpack.c.l.b16 %v538
      %v579 = vunpack.c.l.b16 %v539
      %v580 = vpack.c.b16 %v565, %v564
      %v581 = vpack.c.b16 %v567, %v566
      %v582 = vpack.c.b16 %v569, %v568
      %v583 = vpack.c.b16 %v571, %v570
      %v584 = vpack.c.b16 %v573, %v572
      %v585 = vpack.c.b16 %v575, %v574
      %v586 = vpack.c.b16 %v577, %v576
      %v587 = vpack.c.b16 %v579, %v578
      %596 = vmatprep.subr.bf16.mxu0 0
      %597 = vmatpush1.bf16.msra.mxu0 %v587
      %598 = vmatprep.subr.bf16.mxu0 0
      %599 = vmatpush1.bf16.msra.mxu0 %v586
      %600 = vmatprep.subr.bf16.mxu0 0
      %601 = vmatpush1.bf16.msra.mxu0 %v585
      %602 = vmatprep.subr.bf16.mxu0 0
      %603 = vmatpush1.bf16.msra.mxu0 %v584
      %604 = vmatprep.subr.bf16.mxu0 0
      %605 = vmatpush1.bf16.msra.mxu0 %v583
      %606 = vmatprep.subr.bf16.mxu0 0
      %607 = vmatpush1.bf16.msra.mxu0 %v582
      %608 = vmatprep.subr.bf16.mxu0 0
      %609 = vmatpush1.bf16.msra.mxu0 %v581
      %610 = vmatprep.subr.bf16.mxu0 0
      %611 = vmatpush1.bf16.msra.mxu0 %v580
      %612 = vmatprep.subr.bf16.mxu0 0
      %613 = vmatpush2.bf16.msra.mxu0 0
      %614 = vmatprep.subr.bf16.mxu0 0
      %615 = vmatpush2.bf16.msra.mxu0 0
      %616 = vmatprep.subr.bf16.mxu0 0
      %617 = vmatpush2.bf16.msra.mxu0 0
      %618 = vmatprep.subr.bf16.mxu0 0
      %619 = vmatpush2.bf16.msra.mxu0 0
      %620 = vmatprep.subr.bf16.mxu0 0
      %621 = vmatpush2.bf16.msra.mxu0 0
      %622 = vmatprep.subr.bf16.mxu0 0
      %623 = vmatpush2.bf16.msra.mxu0 0
      %624 = vmatprep.subr.bf16.mxu0 0
      %625 = vmatpush2.bf16.msra.mxu0 0
      %626 = vmatprep.subr.bf16.mxu0 0
      %627 = vmatpush2.bf16.msra.mxu0 0
      %628 = vmatprep.mubr.bf16.mxu0 0
      %629 = vmatmul.mubr.bf16.gmra.mxu0 %v544
      %v630 = vpop.f32.mrf.mxu0
      %v631 = vadd.f32 0.0, %v630
      %v632 = vpop.f32.mrf.mxu0
      %v633 = vpop.f32.mrf.mxu0
      %v634 = vadd.f32 0.0, %v633
      %v635 = vpop.f32.mrf.mxu0
      %636 = vmatprep.mubr.bf16.mxu0 0
      %637 = vmatmul.mubr.bf16.gmra.mxu0 %v545
      %v638 = vpop.f32.mrf.mxu0
      %v639 = vadd.f32 0.0, %v638
      %v640 = vpop.f32.mrf.mxu0
      %v641 = vpop.f32.mrf.mxu0
      %v642 = vadd.f32 0.0, %v641
      %v643 = vpop.f32.mrf.mxu0
      %644 = vdwg.mxu0
      %v645 = vadd.f32 %v486, %v631
      %v646 = vadd.f32 %v489, %v634
      %v647 = vadd.f32 %v494, %v639
      %v648 = vadd.f32 %v497, %v642
      %s649 = sadd.s32 %s192, 1
      %s650 = smul.u32 %s649, 3
      %s651 = smul.addr %s650, 4
      %s652 = scalar_lea.vmem %s182, %s651
      %v653 = vld [vmem:[%s652] sm:$0xf]
      %v654 = vld [vmem:[%s652 + $0x4] sm:$0xf]
      %v655 = vld [vmem:[%s652 + $0xc] sm:$0xf]
      %v656 = vld [vmem:[%s652 + $0x10] sm:$0xf]
      %s657 = scalar_lea.vmem %s1, 192
      %v658 = vld [vmem:[%s657] sm:$0xf]
      %v659 = vld [vmem:[%s657 + $0x4] sm:$0xf]
      %v660 = vld [vmem:[%s657 + $0x8] sm:$0xf]
      %v661 = vld [vmem:[%s657 + $0xc] sm:$0xf]
      %v662 = vld [vmem:[%s657 + $0x10] sm:$0xf]
      %v663 = vld [vmem:[%s657 + $0x14] sm:$0xf]
      %v664 = vld [vmem:[%s657 + $0x18] sm:$0xf]
      %v665 = vld [vmem:[%s657 + $0x1c] sm:$0xf]
      %v666 = vld [vmem:[%s657 + $0x20] sm:$0xf]
      %v667 = vld [vmem:[%s657 + $0x24] sm:$0xf]
      %v668 = vld [vmem:[%s657 + $0x28] sm:$0xf]
      %v669 = vld [vmem:[%s657 + $0x2c] sm:$0xf]
      %v670 = vld [vmem:[%s657 + $0x30] sm:$0xf]
      %v671 = vld [vmem:[%s657 + $0x34] sm:$0xf]
      %v672 = vld [vmem:[%s657 + $0x38] sm:$0xf]
      %v673 = vld [vmem:[%s657 + $0x3c] sm:$0xf]
      %v678 = vunpack.c.l.b16 %v653
      %v679 = vunpack.c.l.b16 %v654
      %v680 = vunpack.c.l.b16 %v655
      %v681 = vunpack.c.l.b16 %v656
      %v682 = vpack.c.b16 %v679, %v678
      %v683 = vpack.c.b16 %v681, %v680
      %v702 = vunpack.c.l.b16 %v658
      %v703 = vunpack.c.l.b16 %v659
      %v704 = vunpack.c.l.b16 %v660
      %v705 = vunpack.c.l.b16 %v661
      %v706 = vunpack.c.l.b16 %v662
      %v707 = vunpack.c.l.b16 %v663
      %v708 = vunpack.c.l.b16 %v664
      %v709 = vunpack.c.l.b16 %v665
      %v710 = vunpack.c.l.b16 %v666
      %v711 = vunpack.c.l.b16 %v667
      %v712 = vunpack.c.l.b16 %v668
      %v713 = vunpack.c.l.b16 %v669
      %v714 = vunpack.c.l.b16 %v670
      %v715 = vunpack.c.l.b16 %v671
      %v716 = vunpack.c.l.b16 %v672
      %v717 = vunpack.c.l.b16 %v673
      %v718 = vpack.c.b16 %v703, %v702
      %v719 = vpack.c.b16 %v705, %v704
      %v720 = vpack.c.b16 %v707, %v706
      %v721 = vpack.c.b16 %v709, %v708
      %v722 = vpack.c.b16 %v711, %v710
      %v723 = vpack.c.b16 %v713, %v712
      %v724 = vpack.c.b16 %v715, %v714
      %v725 = vpack.c.b16 %v717, %v716
      %734 = vmatprep.subr.bf16.mxu0 0
      %735 = vmatpush1.bf16.msra.mxu0 %v725
      %736 = vmatprep.subr.bf16.mxu0 0
      %737 = vmatpush1.bf16.msra.mxu0 %v724
      %738 = vmatprep.subr.bf16.mxu0 0
      %739 = vmatpush1.bf16.msra.mxu0 %v723
      %740 = vmatprep.subr.bf16.mxu0 0
      %741 = vmatpush1.bf16.msra.mxu0 %v722
      %742 = vmatprep.subr.bf16.mxu0 0
      %743 = vmatpush1.bf16.msra.mxu0 %v721
      %744 = vmatprep.subr.bf16.mxu0 0
      %745 = vmatpush1.bf16.msra.mxu0 %v720
      %746 = vmatprep.subr.bf16.mxu0 0
      %747 = vmatpush1.bf16.msra.mxu0 %v719
      %748 = vmatprep.subr.bf16.mxu0 0
      %749 = vmatpush1.bf16.msra.mxu0 %v718
      %750 = vmatprep.subr.bf16.mxu0 0
      %751 = vmatpush2.bf16.msra.mxu0 0
      %752 = vmatprep.subr.bf16.mxu0 0
      %753 = vmatpush2.bf16.msra.mxu0 0
      %754 = vmatprep.subr.bf16.mxu0 0
      %755 = vmatpush2.bf16.msra.mxu0 0
      %756 = vmatprep.subr.bf16.mxu0 0
      %757 = vmatpush2.bf16.msra.mxu0 0
      %758 = vmatprep.subr.bf16.mxu0 0
      %759 = vmatpush2.bf16.msra.mxu0 0
      %760 = vmatprep.subr.bf16.mxu0 0
      %761 = vmatpush2.bf16.msra.mxu0 0
      %762 = vmatprep.subr.bf16.mxu0 0
      %763 = vmatpush2.bf16.msra.mxu0 0
      %764 = vmatprep.subr.bf16.mxu0 0
      %765 = vmatpush2.bf16.msra.mxu0 0
      %766 = vmatprep.mubr.bf16.mxu0 0
      %767 = vmatmul.mubr.bf16.gmra.mxu0 %v682
      %v768 = vpop.f32.mrf.mxu0
      %v769 = vadd.f32 0.0, %v768
      %v770 = vpop.f32.mrf.mxu0
      %v771 = vpop.f32.mrf.mxu0
      %v772 = vadd.f32 0.0, %v771
      %v773 = vpop.f32.mrf.mxu0
      %774 = vmatprep.mubr.bf16.mxu0 0
      %775 = vmatmul.mubr.bf16.gmra.mxu0 %v683
      %v776 = vpop.f32.mrf.mxu0
      %v777 = vadd.f32 0.0, %v776
      %v778 = vpop.f32.mrf.mxu0
      %v779 = vpop.f32.mrf.mxu0
      %v780 = vadd.f32 0.0, %v779
      %v781 = vpop.f32.mrf.mxu0
      %782 = vdwg.mxu0
      %v783 = vadd.f32 %v645, %v769
      %v784 = vadd.f32 %v646, %v772
      %v785 = vadd.f32 %v647, %v777
      %v786 = vadd.f32 %v648, %v780
      %v787 = vld [vmem:[%s652] sm:$0xf]
      %v788 = vld [vmem:[%s652 + $0x4] sm:$0xf]
      %v789 = vld [vmem:[%s652 + $0x8] sm:$0x1]
      %v790 = vld [vmem:[%s652 + $0xc] sm:$0xf]
      %v791 = vld [vmem:[%s652 + $0x10] sm:$0xf]
      %v792 = vld [vmem:[%s652 + $0x14] sm:$0x1]
      %v794 = vshrl.u32 %v787, 16
      %v796 = vrot.slane %v794, 4
      %v797 = vshll.u32 %v787, 16
      %v799 = vrot.slane %v797, 5
      %v800 = vor.u32 %v796, %v799
      %v801 = vrot.slane %v800, 4
      %v803 = vshll.u32 %v788, 16
      %v805 = vrot.slane %v803, 5
      %v806 = vsel %vm220, %v801, %v805
      %v807 = vshrl.u32 %v788, 16
      %v809 = vrot.slane %v807, 4
      %v810 = vor.u32 %v809, %v805
      %v811 = vrot.slane %v810, 4
      %v813 = vshll.u32 %v789, 16
      %v815 = vrot.slane %v813, 5
      %v816 = vsel %vm220, %v811, %v815
      %v818 = vshrl.u32 %v790, 16
      %v820 = vrot.slane %v818, 4
      %v821 = vshll.u32 %v790, 16
      %v823 = vrot.slane %v821, 5
      %v824 = vor.u32 %v820, %v823
      %v825 = vrot.slane %v824, 4
      %v827 = vshll.u32 %v791, 16
      %v829 = vrot.slane %v827, 5
      %v830 = vsel %vm220, %v825, %v829
      %v831 = vshrl.u32 %v791, 16
      %v833 = vrot.slane %v831, 4
      %v834 = vor.u32 %v833, %v829
      %v835 = vrot.slane %v834, 4
      %v837 = vshll.u32 %v792, 16
      %v839 = vrot.slane %v837, 5
      %v840 = vsel %vm220, %v835, %v839
      %s841 = scalar_lea.vmem %s1, 256
      %v842 = vld [vmem:[%s841] sm:$0xf]
      %v843 = vld [vmem:[%s841 + $0x4] sm:$0xf]
      %v844 = vld [vmem:[%s841 + $0x8] sm:$0xf]
      %v845 = vld [vmem:[%s841 + $0xc] sm:$0xf]
      %v846 = vld [vmem:[%s841 + $0x10] sm:$0xf]
      %v847 = vld [vmem:[%s841 + $0x14] sm:$0xf]
      %v848 = vld [vmem:[%s841 + $0x18] sm:$0xf]
      %v849 = vld [vmem:[%s841 + $0x1c] sm:$0xf]
      %v850 = vld [vmem:[%s841 + $0x20] sm:$0xf]
      %v851 = vld [vmem:[%s841 + $0x24] sm:$0xf]
      %v852 = vld [vmem:[%s841 + $0x28] sm:$0xf]
      %v853 = vld [vmem:[%s841 + $0x2c] sm:$0xf]
      %v854 = vld [vmem:[%s841 + $0x30] sm:$0xf]
      %v855 = vld [vmem:[%s841 + $0x34] sm:$0xf]
      %v856 = vld [vmem:[%s841 + $0x38] sm:$0xf]
      %v857 = vld [vmem:[%s841 + $0x3c] sm:$0xf]
      %v858 = vunpack.c.l.b16 %v806
      %v859 = vunpack.c.l.b16 %v816
      %v860 = vunpack.c.l.b16 %v830
      %v861 = vunpack.c.l.b16 %v840
      %v862 = vpack.c.b16 %v859, %v858
      %v863 = vpack.c.b16 %v861, %v860
      %v882 = vunpack.c.l.b16 %v842
      %v883 = vunpack.c.l.b16 %v843
      %v884 = vunpack.c.l.b16 %v844
      %v885 = vunpack.c.l.b16 %v845
      %v886 = vunpack.c.l.b16 %v846
      %v887 = vunpack.c.l.b16 %v847
      %v888 = vunpack.c.l.b16 %v848
      %v889 = vunpack.c.l.b16 %v849
      %v890 = vunpack.c.l.b16 %v850
      %v891 = vunpack.c.l.b16 %v851
      %v892 = vunpack.c.l.b16 %v852
      %v893 = vunpack.c.l.b16 %v853
      %v894 = vunpack.c.l.b16 %v854
      %v895 = vunpack.c.l.b16 %v855
      %v896 = vunpack.c.l.b16 %v856
      %v897 = vunpack.c.l.b16 %v857
      %v898 = vpack.c.b16 %v883, %v882
      %v899 = vpack.c.b16 %v885, %v884
      %v900 = vpack.c.b16 %v887, %v886
      %v901 = vpack.c.b16 %v889, %v888
      %v902 = vpack.c.b16 %v891, %v890
      %v903 = vpack.c.b16 %v893, %v892
      %v904 = vpack.c.b16 %v895, %v894
      %v905 = vpack.c.b16 %v897, %v896
      %914 = vmatprep.subr.bf16.mxu0 0
      %915 = vmatpush1.bf16.msra.mxu0 %v905
      %916 = vmatprep.subr.bf16.mxu0 0
      %917 = vmatpush1.bf16.msra.mxu0 %v904
      %918 = vmatprep.subr.bf16.mxu0 0
      %919 = vmatpush1.bf16.msra.mxu0 %v903
      %920 = vmatprep.subr.bf16.mxu0 0
      %921 = vmatpush1.bf16.msra.mxu0 %v902
      %922 = vmatprep.subr.bf16.mxu0 0
      %923 = vmatpush1.bf16.msra.mxu0 %v901
      %924 = vmatprep.subr.bf16.mxu0 0
      %925 = vmatpush1.bf16.msra.mxu0 %v900
      %926 = vmatprep.subr.bf16.mxu0 0
      %927 = vmatpush1.bf16.msra.mxu0 %v899
      %928 = vmatprep.subr.bf16.mxu0 0
      %929 = vmatpush1.bf16.msra.mxu0 %v898
      %930 = vmatprep.subr.bf16.mxu0 0
      %931 = vmatpush2.bf16.msra.mxu0 0
      %932 = vmatprep.subr.bf16.mxu0 0
      %933 = vmatpush2.bf16.msra.mxu0 0
      %934 = vmatprep.subr.bf16.mxu0 0
      %935 = vmatpush2.bf16.msra.mxu0 0
      %936 = vmatprep.subr.bf16.mxu0 0
      %937 = vmatpush2.bf16.msra.mxu0 0
      %938 = vmatprep.subr.bf16.mxu0 0
      %939 = vmatpush2.bf16.msra.mxu0 0
      %940 = vmatprep.subr.bf16.mxu0 0
      %941 = vmatpush2.bf16.msra.mxu0 0
      %942 = vmatprep.subr.bf16.mxu0 0
      %943 = vmatpush2.bf16.msra.mxu0 0
      %944 = vmatprep.subr.bf16.mxu0 0
      %945 = vmatpush2.bf16.msra.mxu0 0
      %946 = vmatprep.mubr.bf16.mxu0 0
      %947 = vmatmul.mubr.bf16.gmra.mxu0 %v862
      %v948 = vpop.f32.mrf.mxu0
      %v949 = vadd.f32 0.0, %v948
      %v950 = vpop.f32.mrf.mxu0
      %v951 = vpop.f32.mrf.mxu0
      %v952 = vadd.f32 0.0, %v951
      %v953 = vpop.f32.mrf.mxu0
      %954 = vmatprep.mubr.bf16.mxu0 0
      %955 = vmatmul.mubr.bf16.gmra.mxu0 %v863
      %v956 = vpop.f32.mrf.mxu0
      %v957 = vadd.f32 0.0, %v956
      %v958 = vpop.f32.mrf.mxu0
      %v959 = vpop.f32.mrf.mxu0
      %v960 = vadd.f32 0.0, %v959
      %v961 = vpop.f32.mrf.mxu0
      %962 = vdwg.mxu0
      %v963 = vadd.f32 %v783, %v949
      %v964 = vadd.f32 %v784, %v952
      %v965 = vadd.f32 %v785, %v957
      %v966 = vadd.f32 %v786, %v960
      %v967 = vld [vmem:[%s652] sm:$0xe]
      %v968 = vld [vmem:[%s652 + $0xc] sm:$0xe]
      %v975 = vrot.slane %v967, 5
      %v976 = vrot.slane %v975, 4
      %v977 = vrot.slane %v788, 5
      %v978 = vsel %vm508, %v976, %v977
      %v979 = vrot.slane %v977, 4
      %v980 = vrot.slane %v789, 5
      %v981 = vsel %vm508, %v979, %v980
      %v982 = vrot.slane %v968, 5
      %v983 = vrot.slane %v982, 4
      %v984 = vrot.slane %v791, 5
      %v985 = vsel %vm508, %v983, %v984
      %v986 = vrot.slane %v984, 4
      %v987 = vrot.slane %v792, 5
      %v988 = vsel %vm508, %v986, %v987
      %s989 = scalar_lea.vmem %s1, 320
      %v990 = vld [vmem:[%s989] sm:$0xf]
      %v991 = vld [vmem:[%s989 + $0x4] sm:$0xf]
      %v992 = vld [vmem:[%s989 + $0x8] sm:$0xf]
      %v993 = vld [vmem:[%s989 + $0xc] sm:$0xf]
      %v994 = vld [vmem:[%s989 + $0x10] sm:$0xf]
      %v995 = vld [vmem:[%s989 + $0x14] sm:$0xf]
      %v996 = vld [vmem:[%s989 + $0x18] sm:$0xf]
      %v997 = vld [vmem:[%s989 + $0x1c] sm:$0xf]
      %v998 = vld [vmem:[%s989 + $0x20] sm:$0xf]
      %v999 = vld [vmem:[%s989 + $0x24] sm:$0xf]
      %v1000 = vld [vmem:[%s989 + $0x28] sm:$0xf]
      %v1001 = vld [vmem:[%s989 + $0x2c] sm:$0xf]
      %v1002 = vld [vmem:[%s989 + $0x30] sm:$0xf]
      %v1003 = vld [vmem:[%s989 + $0x34] sm:$0xf]
      %v1004 = vld [vmem:[%s989 + $0x38] sm:$0xf]
      %v1005 = vld [vmem:[%s989 + $0x3c] sm:$0xf]
      %v1006 = vunpack.c.l.b16 %v978
      %v1007 = vunpack.c.l.b16 %v981
      %v1008 = vunpack.c.l.b16 %v985
      %v1009 = vunpack.c.l.b16 %v988
      %v1010 = vpack.c.b16 %v1007, %v1006
      %v1011 = vpack.c.b16 %v1009, %v1008
      %v1030 = vunpack.c.l.b16 %v990
      %v1031 = vunpack.c.l.b16 %v991
      %v1032 = vunpack.c.l.b16 %v992
      %v1033 = vunpack.c.l.b16 %v993
      %v1034 = vunpack.c.l.b16 %v994
      %v1035 = vunpack.c.l.b16 %v995
      %v1036 = vunpack.c.l.b16 %v996
      %v1037 = vunpack.c.l.b16 %v997
      %v1038 = vunpack.c.l.b16 %v998
      %v1039 = vunpack.c.l.b16 %v999
      %v1040 = vunpack.c.l.b16 %v1000
      %v1041 = vunpack.c.l.b16 %v1001
      %v1042 = vunpack.c.l.b16 %v1002
      %v1043 = vunpack.c.l.b16 %v1003
      %v1044 = vunpack.c.l.b16 %v1004
      %v1045 = vunpack.c.l.b16 %v1005
      %v1046 = vpack.c.b16 %v1031, %v1030
      %v1047 = vpack.c.b16 %v1033, %v1032
      %v1048 = vpack.c.b16 %v1035, %v1034
      %v1049 = vpack.c.b16 %v1037, %v1036
      %v1050 = vpack.c.b16 %v1039, %v1038
      %v1051 = vpack.c.b16 %v1041, %v1040
      %v1052 = vpack.c.b16 %v1043, %v1042
      %v1053 = vpack.c.b16 %v1045, %v1044
      %1062 = vmatprep.subr.bf16.mxu0 0
      %1063 = vmatpush1.bf16.msra.mxu0 %v1053
      %1064 = vmatprep.subr.bf16.mxu0 0
      %1065 = vmatpush1.bf16.msra.mxu0 %v1052
      %1066 = vmatprep.subr.bf16.mxu0 0
      %1067 = vmatpush1.bf16.msra.mxu0 %v1051
      %1068 = vmatprep.subr.bf16.mxu0 0
      %1069 = vmatpush1.bf16.msra.mxu0 %v1050
      %1070 = vmatprep.subr.bf16.mxu0 0
      %1071 = vmatpush1.bf16.msra.mxu0 %v1049
      %1072 = vmatprep.subr.bf16.mxu0 0
      %1073 = vmatpush1.bf16.msra.mxu0 %v1048
      %1074 = vmatprep.subr.bf16.mxu0 0
      %1075 = vmatpush1.bf16.msra.mxu0 %v1047
      %1076 = vmatprep.subr.bf16.mxu0 0
      %1077 = vmatpush1.bf16.msra.mxu0 %v1046
      %1078 = vmatprep.subr.bf16.mxu0 0
      %1079 = vmatpush2.bf16.msra.mxu0 0
      %1080 = vmatprep.subr.bf16.mxu0 0
      %1081 = vmatpush2.bf16.msra.mxu0 0
      %1082 = vmatprep.subr.bf16.mxu0 0
      %1083 = vmatpush2.bf16.msra.mxu0 0
      %1084 = vmatprep.subr.bf16.mxu0 0
      %1085 = vmatpush2.bf16.msra.mxu0 0
      %1086 = vmatprep.subr.bf16.mxu0 0
      %1087 = vmatpush2.bf16.msra.mxu0 0
      %1088 = vmatprep.subr.bf16.mxu0 0
      %1089 = vmatpush2.bf16.msra.mxu0 0
      %1090 = vmatprep.subr.bf16.mxu0 0
      %1091 = vmatpush2.bf16.msra.mxu0 0
      %1092 = vmatprep.subr.bf16.mxu0 0
      %1093 = vmatpush2.bf16.msra.mxu0 0
      %1094 = vmatprep.mubr.bf16.mxu0 0
      %1095 = vmatmul.mubr.bf16.gmra.mxu0 %v1010
      %v1096 = vpop.f32.mrf.mxu0
      %v1097 = vadd.f32 0.0, %v1096
      %v1098 = vpop.f32.mrf.mxu0
      %v1099 = vpop.f32.mrf.mxu0
      %v1100 = vadd.f32 0.0, %v1099
      %v1101 = vpop.f32.mrf.mxu0
      %1102 = vmatprep.mubr.bf16.mxu0 0
      %1103 = vmatmul.mubr.bf16.gmra.mxu0 %v1011
      %v1104 = vpop.f32.mrf.mxu0
      %v1105 = vadd.f32 0.0, %v1104
      %v1106 = vpop.f32.mrf.mxu0
      %v1107 = vpop.f32.mrf.mxu0
      %v1108 = vadd.f32 0.0, %v1107
      %v1109 = vpop.f32.mrf.mxu0
      %1110 = vdwg.mxu0
      %v1111 = vadd.f32 %v963, %v1097
      %v1112 = vadd.f32 %v964, %v1100
      %v1113 = vadd.f32 %v965, %v1105
      %v1114 = vadd.f32 %v966, %v1108
      %s1115 = sadd.s32 %s192, 2
      %s1116 = smul.u32 %s1115, 3
      %s1117 = smul.addr %s1116, 4
      %s1118 = scalar_lea.vmem %s182, %s1117
      %v1119 = vld [vmem:[%s1118] sm:$0xf]
      %v1120 = vld [vmem:[%s1118 + $0x4] sm:$0xf]
      %v1121 = vld [vmem:[%s1118 + $0xc] sm:$0xf]
      %v1122 = vld [vmem:[%s1118 + $0x10] sm:$0xf]
      %s1123 = scalar_lea.vmem %s1, 384
      %v1124 = vld [vmem:[%s1123] sm:$0xf]
      %v1125 = vld [vmem:[%s1123 + $0x4] sm:$0xf]
      %v1126 = vld [vmem:[%s1123 + $0x8] sm:$0xf]
      %v1127 = vld [vmem:[%s1123 + $0xc] sm:$0xf]
      %v1128 = vld [vmem:[%s1123 + $0x10] sm:$0xf]
      %v1129 = vld [vmem:[%s1123 + $0x14] sm:$0xf]
      %v1130 = vld [vmem:[%s1123 + $0x18] sm:$0xf]
      %v1131 = vld [vmem:[%s1123 + $0x1c] sm:$0xf]
      %v1132 = vld [vmem:[%s1123 + $0x20] sm:$0xf]
      %v1133 = vld [vmem:[%s1123 + $0x24] sm:$0xf]
      %v1134 = vld [vmem:[%s1123 + $0x28] sm:$0xf]
      %v1135 = vld [vmem:[%s1123 + $0x2c] sm:$0xf]
      %v1136 = vld [vmem:[%s1123 + $0x30] sm:$0xf]
      %v1137 = vld [vmem:[%s1123 + $0x34] sm:$0xf]
      %v1138 = vld [vmem:[%s1123 + $0x38] sm:$0xf]
      %v1139 = vld [vmem:[%s1123 + $0x3c] sm:$0xf]
      %v1144 = vunpack.c.l.b16 %v1119
      %v1145 = vunpack.c.l.b16 %v1120
      %v1146 = vunpack.c.l.b16 %v1121
      %v1147 = vunpack.c.l.b16 %v1122
      %v1148 = vpack.c.b16 %v1145, %v1144
      %v1149 = vpack.c.b16 %v1147, %v1146
      %v1168 = vunpack.c.l.b16 %v1124
      %v1169 = vunpack.c.l.b16 %v1125
      %v1170 = vunpack.c.l.b16 %v1126
      %v1171 = vunpack.c.l.b16 %v1127
      %v1172 = vunpack.c.l.b16 %v1128
      %v1173 = vunpack.c.l.b16 %v1129
      %v1174 = vunpack.c.l.b16 %v1130
      %v1175 = vunpack.c.l.b16 %v1131
      %v1176 = vunpack.c.l.b16 %v1132
      %v1177 = vunpack.c.l.b16 %v1133
      %v1178 = vunpack.c.l.b16 %v1134
      %v1179 = vunpack.c.l.b16 %v1135
      %v1180 = vunpack.c.l.b16 %v1136
      %v1181 = vunpack.c.l.b16 %v1137
      %v1182 = vunpack.c.l.b16 %v1138
      %v1183 = vunpack.c.l.b16 %v1139
      %v1184 = vpack.c.b16 %v1169, %v1168
      %v1185 = vpack.c.b16 %v1171, %v1170
      %v1186 = vpack.c.b16 %v1173, %v1172
      %v1187 = vpack.c.b16 %v1175, %v1174
      %v1188 = vpack.c.b16 %v1177, %v1176
      %v1189 = vpack.c.b16 %v1179, %v1178
      %v1190 = vpack.c.b16 %v1181, %v1180
      %v1191 = vpack.c.b16 %v1183, %v1182
      %1200 = vmatprep.subr.bf16.mxu0 0
      %1201 = vmatpush1.bf16.msra.mxu0 %v1191
      %1202 = vmatprep.subr.bf16.mxu0 0
      %1203 = vmatpush1.bf16.msra.mxu0 %v1190
      %1204 = vmatprep.subr.bf16.mxu0 0
      %1205 = vmatpush1.bf16.msra.mxu0 %v1189
      %1206 = vmatprep.subr.bf16.mxu0 0
      %1207 = vmatpush1.bf16.msra.mxu0 %v1188
      %1208 = vmatprep.subr.bf16.mxu0 0
      %1209 = vmatpush1.bf16.msra.mxu0 %v1187
      %1210 = vmatprep.subr.bf16.mxu0 0
      %1211 = vmatpush1.bf16.msra.mxu0 %v1186
      %1212 = vmatprep.subr.bf16.mxu0 0
      %1213 = vmatpush1.bf16.msra.mxu0 %v1185
      %1214 = vmatprep.subr.bf16.mxu0 0
      %1215 = vmatpush1.bf16.msra.mxu0 %v1184
      %1216 = vmatprep.subr.bf16.mxu0 0
      %1217 = vmatpush2.bf16.msra.mxu0 0
      %1218 = vmatprep.subr.bf16.mxu0 0
      %1219 = vmatpush2.bf16.msra.mxu0 0
      %1220 = vmatprep.subr.bf16.mxu0 0
      %1221 = vmatpush2.bf16.msra.mxu0 0
      %1222 = vmatprep.subr.bf16.mxu0 0
      %1223 = vmatpush2.bf16.msra.mxu0 0
      %1224 = vmatprep.subr.bf16.mxu0 0
      %1225 = vmatpush2.bf16.msra.mxu0 0
      %1226 = vmatprep.subr.bf16.mxu0 0
      %1227 = vmatpush2.bf16.msra.mxu0 0
      %1228 = vmatprep.subr.bf16.mxu0 0
      %1229 = vmatpush2.bf16.msra.mxu0 0
      %1230 = vmatprep.subr.bf16.mxu0 0
      %1231 = vmatpush2.bf16.msra.mxu0 0
      %1232 = vmatprep.mubr.bf16.mxu0 0
      %1233 = vmatmul.mubr.bf16.gmra.mxu0 %v1148
      %v1234 = vpop.f32.mrf.mxu0
      %v1235 = vadd.f32 0.0, %v1234
      %v1236 = vpop.f32.mrf.mxu0
      %v1237 = vpop.f32.mrf.mxu0
      %v1238 = vadd.f32 0.0, %v1237
      %v1239 = vpop.f32.mrf.mxu0
      %1240 = vmatprep.mubr.bf16.mxu0 0
      %1241 = vmatmul.mubr.bf16.gmra.mxu0 %v1149
      %v1242 = vpop.f32.mrf.mxu0
      %v1243 = vadd.f32 0.0, %v1242
      %v1244 = vpop.f32.mrf.mxu0
      %v1245 = vpop.f32.mrf.mxu0
      %v1246 = vadd.f32 0.0, %v1245
      %v1247 = vpop.f32.mrf.mxu0
      %1248 = vdwg.mxu0
      %v1249 = vadd.f32 %v1111, %v1235
      %v1250 = vadd.f32 %v1112, %v1238
      %v1251 = vadd.f32 %v1113, %v1243
      %v1252 = vadd.f32 %v1114, %v1246
      %v1253 = vld [vmem:[%s1118] sm:$0xf]
      %v1254 = vld [vmem:[%s1118 + $0x4] sm:$0xf]
      %v1255 = vld [vmem:[%s1118 + $0x8] sm:$0x1]
      %v1256 = vld [vmem:[%s1118 + $0xc] sm:$0xf]
      %v1257 = vld [vmem:[%s1118 + $0x10] sm:$0xf]
      %v1258 = vld [vmem:[%s1118 + $0x14] sm:$0x1]
      %v1260 = vshrl.u32 %v1253, 16
      %v1262 = vrot.slane %v1260, 4
      %v1263 = vshll.u32 %v1253, 16
      %v1265 = vrot.slane %v1263, 5
      %v1266 = vor.u32 %v1262, %v1265
      %v1267 = vrot.slane %v1266, 4
      %v1269 = vshll.u32 %v1254, 16
      %v1271 = vrot.slane %v1269, 5
      %v1272 = vsel %vm220, %v1267, %v1271
      %v1273 = vshrl.u32 %v1254, 16
      %v1275 = vrot.slane %v1273, 4
      %v1276 = vor.u32 %v1275, %v1271
      %v1277 = vrot.slane %v1276, 4
      %v1279 = vshll.u32 %v1255, 16
      %v1281 = vrot.slane %v1279, 5
      %v1282 = vsel %vm220, %v1277, %v1281
      %v1284 = vshrl.u32 %v1256, 16
      %v1286 = vrot.slane %v1284, 4
      %v1287 = vshll.u32 %v1256, 16
      %v1289 = vrot.slane %v1287, 5
      %v1290 = vor.u32 %v1286, %v1289
      %v1291 = vrot.slane %v1290, 4
      %v1293 = vshll.u32 %v1257, 16
      %v1295 = vrot.slane %v1293, 5
      %v1296 = vsel %vm220, %v1291, %v1295
      %v1297 = vshrl.u32 %v1257, 16
      %v1299 = vrot.slane %v1297, 4
      %v1300 = vor.u32 %v1299, %v1295
      %v1301 = vrot.slane %v1300, 4
      %v1303 = vshll.u32 %v1258, 16
      %v1305 = vrot.slane %v1303, 5
      %v1306 = vsel %vm220, %v1301, %v1305
      %s1307 = scalar_lea.vmem %s1, 448
      %v1308 = vld [vmem:[%s1307] sm:$0xf]
      %v1309 = vld [vmem:[%s1307 + $0x4] sm:$0xf]
      %v1310 = vld [vmem:[%s1307 + $0x8] sm:$0xf]
      %v1311 = vld [vmem:[%s1307 + $0xc] sm:$0xf]
      %v1312 = vld [vmem:[%s1307 + $0x10] sm:$0xf]
      %v1313 = vld [vmem:[%s1307 + $0x14] sm:$0xf]
      %v1314 = vld [vmem:[%s1307 + $0x18] sm:$0xf]
      %v1315 = vld [vmem:[%s1307 + $0x1c] sm:$0xf]
      %v1316 = vld [vmem:[%s1307 + $0x20] sm:$0xf]
      %v1317 = vld [vmem:[%s1307 + $0x24] sm:$0xf]
      %v1318 = vld [vmem:[%s1307 + $0x28] sm:$0xf]
      %v1319 = vld [vmem:[%s1307 + $0x2c] sm:$0xf]
      %v1320 = vld [vmem:[%s1307 + $0x30] sm:$0xf]
      %v1321 = vld [vmem:[%s1307 + $0x34] sm:$0xf]
      %v1322 = vld [vmem:[%s1307 + $0x38] sm:$0xf]
      %v1323 = vld [vmem:[%s1307 + $0x3c] sm:$0xf]
      %v1324 = vunpack.c.l.b16 %v1272
      %v1325 = vunpack.c.l.b16 %v1282
      %v1326 = vunpack.c.l.b16 %v1296
      %v1327 = vunpack.c.l.b16 %v1306
      %v1328 = vpack.c.b16 %v1325, %v1324
      %v1329 = vpack.c.b16 %v1327, %v1326
      %v1348 = vunpack.c.l.b16 %v1308
      %v1349 = vunpack.c.l.b16 %v1309
      %v1350 = vunpack.c.l.b16 %v1310
      %v1351 = vunpack.c.l.b16 %v1311
      %v1352 = vunpack.c.l.b16 %v1312
      %v1353 = vunpack.c.l.b16 %v1313
      %v1354 = vunpack.c.l.b16 %v1314
      %v1355 = vunpack.c.l.b16 %v1315
      %v1356 = vunpack.c.l.b16 %v1316
      %v1357 = vunpack.c.l.b16 %v1317
      %v1358 = vunpack.c.l.b16 %v1318
      %v1359 = vunpack.c.l.b16 %v1319
      %v1360 = vunpack.c.l.b16 %v1320
      %v1361 = vunpack.c.l.b16 %v1321
      %v1362 = vunpack.c.l.b16 %v1322
      %v1363 = vunpack.c.l.b16 %v1323
      %v1364 = vpack.c.b16 %v1349, %v1348
      %v1365 = vpack.c.b16 %v1351, %v1350
      %v1366 = vpack.c.b16 %v1353, %v1352
      %v1367 = vpack.c.b16 %v1355, %v1354
      %v1368 = vpack.c.b16 %v1357, %v1356
      %v1369 = vpack.c.b16 %v1359, %v1358
      %v1370 = vpack.c.b16 %v1361, %v1360
      %v1371 = vpack.c.b16 %v1363, %v1362
      %1380 = vmatprep.subr.bf16.mxu0 0
      %1381 = vmatpush1.bf16.msra.mxu0 %v1371
      %1382 = vmatprep.subr.bf16.mxu0 0
      %1383 = vmatpush1.bf16.msra.mxu0 %v1370
      %1384 = vmatprep.subr.bf16.mxu0 0
      %1385 = vmatpush1.bf16.msra.mxu0 %v1369
      %1386 = vmatprep.subr.bf16.mxu0 0
      %1387 = vmatpush1.bf16.msra.mxu0 %v1368
      %1388 = vmatprep.subr.bf16.mxu0 0
      %1389 = vmatpush1.bf16.msra.mxu0 %v1367
      %1390 = vmatprep.subr.bf16.mxu0 0
      %1391 = vmatpush1.bf16.msra.mxu0 %v1366
      %1392 = vmatprep.subr.bf16.mxu0 0
      %1393 = vmatpush1.bf16.msra.mxu0 %v1365
      %1394 = vmatprep.subr.bf16.mxu0 0
      %1395 = vmatpush1.bf16.msra.mxu0 %v1364
      %1396 = vmatprep.subr.bf16.mxu0 0
      %1397 = vmatpush2.bf16.msra.mxu0 0
      %1398 = vmatprep.subr.bf16.mxu0 0
      %1399 = vmatpush2.bf16.msra.mxu0 0
      %1400 = vmatprep.subr.bf16.mxu0 0
      %1401 = vmatpush2.bf16.msra.mxu0 0
      %1402 = vmatprep.subr.bf16.mxu0 0
      %1403 = vmatpush2.bf16.msra.mxu0 0
      %1404 = vmatprep.subr.bf16.mxu0 0
      %1405 = vmatpush2.bf16.msra.mxu0 0
      %1406 = vmatprep.subr.bf16.mxu0 0
      %1407 = vmatpush2.bf16.msra.mxu0 0
      %1408 = vmatprep.subr.bf16.mxu0 0
      %1409 = vmatpush2.bf16.msra.mxu0 0
      %1410 = vmatprep.subr.bf16.mxu0 0
      %1411 = vmatpush2.bf16.msra.mxu0 0
      %1412 = vmatprep.mubr.bf16.mxu0 0
      %1413 = vmatmul.mubr.bf16.gmra.mxu0 %v1328
      %v1414 = vpop.f32.mrf.mxu0
      %v1415 = vadd.f32 0.0, %v1414
      %v1416 = vpop.f32.mrf.mxu0
      %v1417 = vpop.f32.mrf.mxu0
      %v1418 = vadd.f32 0.0, %v1417
      %v1419 = vpop.f32.mrf.mxu0
      %1420 = vmatprep.mubr.bf16.mxu0 0
      %1421 = vmatmul.mubr.bf16.gmra.mxu0 %v1329
      %v1422 = vpop.f32.mrf.mxu0
      %v1423 = vadd.f32 0.0, %v1422
      %v1424 = vpop.f32.mrf.mxu0
      %v1425 = vpop.f32.mrf.mxu0
      %v1426 = vadd.f32 0.0, %v1425
      %v1427 = vpop.f32.mrf.mxu0
      %1428 = vdwg.mxu0
      %v1429 = vadd.f32 %v1249, %v1415
      %v1430 = vadd.f32 %v1250, %v1418
      %v1431 = vadd.f32 %v1251, %v1423
      %v1432 = vadd.f32 %v1252, %v1426
      %v1433 = vld [vmem:[%s1118] sm:$0xe]
      %v1434 = vld [vmem:[%s1118 + $0xc] sm:$0xe]
      %v1441 = vrot.slane %v1433, 5
      %v1442 = vrot.slane %v1441, 4
      %v1443 = vrot.slane %v1254, 5
      %v1444 = vsel %vm508, %v1442, %v1443
      %v1445 = vrot.slane %v1443, 4
      %v1446 = vrot.slane %v1255, 5
      %v1447 = vsel %vm508, %v1445, %v1446
      %v1448 = vrot.slane %v1434, 5
      %v1449 = vrot.slane %v1448, 4
      %v1450 = vrot.slane %v1257, 5
      %v1451 = vsel %vm508, %v1449, %v1450
      %v1452 = vrot.slane %v1450, 4
      %v1453 = vrot.slane %v1258, 5
      %v1454 = vsel %vm508, %v1452, %v1453
      %s1455 = scalar_lea.vmem %s1, 512
      %v1456 = vld [vmem:[%s1455] sm:$0xf]
      %v1457 = vld [vmem:[%s1455 + $0x4] sm:$0xf]
      %v1458 = vld [vmem:[%s1455 + $0x8] sm:$0xf]
      %v1459 = vld [vmem:[%s1455 + $0xc] sm:$0xf]
      %v1460 = vld [vmem:[%s1455 + $0x10] sm:$0xf]
      %v1461 = vld [vmem:[%s1455 + $0x14] sm:$0xf]
      %v1462 = vld [vmem:[%s1455 + $0x18] sm:$0xf]
      %v1463 = vld [vmem:[%s1455 + $0x1c] sm:$0xf]
      %v1464 = vld [vmem:[%s1455 + $0x20] sm:$0xf]
      %v1465 = vld [vmem:[%s1455 + $0x24] sm:$0xf]
      %v1466 = vld [vmem:[%s1455 + $0x28] sm:$0xf]
      %v1467 = vld [vmem:[%s1455 + $0x2c] sm:$0xf]
      %v1468 = vld [vmem:[%s1455 + $0x30] sm:$0xf]
      %v1469 = vld [vmem:[%s1455 + $0x34] sm:$0xf]
      %v1470 = vld [vmem:[%s1455 + $0x38] sm:$0xf]
      %v1471 = vld [vmem:[%s1455 + $0x3c] sm:$0xf]
      %v1472 = vunpack.c.l.b16 %v1444
      %v1473 = vunpack.c.l.b16 %v1447
      %v1474 = vunpack.c.l.b16 %v1451
      %v1475 = vunpack.c.l.b16 %v1454
      %v1476 = vpack.c.b16 %v1473, %v1472
      %v1477 = vpack.c.b16 %v1475, %v1474
      %v1496 = vunpack.c.l.b16 %v1456
      %v1497 = vunpack.c.l.b16 %v1457
      %v1498 = vunpack.c.l.b16 %v1458
      %v1499 = vunpack.c.l.b16 %v1459
      %v1500 = vunpack.c.l.b16 %v1460
      %v1501 = vunpack.c.l.b16 %v1461
      %v1502 = vunpack.c.l.b16 %v1462
      %v1503 = vunpack.c.l.b16 %v1463
      %v1504 = vunpack.c.l.b16 %v1464
      %v1505 = vunpack.c.l.b16 %v1465
      %v1506 = vunpack.c.l.b16 %v1466
      %v1507 = vunpack.c.l.b16 %v1467
      %v1508 = vunpack.c.l.b16 %v1468
      %v1509 = vunpack.c.l.b16 %v1469
      %v1510 = vunpack.c.l.b16 %v1470
      %v1511 = vunpack.c.l.b16 %v1471
      %v1512 = vpack.c.b16 %v1497, %v1496
      %v1513 = vpack.c.b16 %v1499, %v1498
      %v1514 = vpack.c.b16 %v1501, %v1500
      %v1515 = vpack.c.b16 %v1503, %v1502
      %v1516 = vpack.c.b16 %v1505, %v1504
      %v1517 = vpack.c.b16 %v1507, %v1506
      %v1518 = vpack.c.b16 %v1509, %v1508
      %v1519 = vpack.c.b16 %v1511, %v1510
      %1528 = vmatprep.subr.bf16.mxu0 0
      %1529 = vmatpush1.bf16.msra.mxu0 %v1519
      %1530 = vmatprep.subr.bf16.mxu0 0
      %1531 = vmatpush1.bf16.msra.mxu0 %v1518
      %1532 = vmatprep.subr.bf16.mxu0 0
      %1533 = vmatpush1.bf16.msra.mxu0 %v1517
      %1534 = vmatprep.subr.bf16.mxu0 0
      %1535 = vmatpush1.bf16.msra.mxu0 %v1516
      %1536 = vmatprep.subr.bf16.mxu0 0
      %1537 = vmatpush1.bf16.msra.mxu0 %v1515
      %1538 = vmatprep.subr.bf16.mxu0 0
      %1539 = vmatpush1.bf16.msra.mxu0 %v1514
      %1540 = vmatprep.subr.bf16.mxu0 0
      %1541 = vmatpush1.bf16.msra.mxu0 %v1513
      %1542 = vmatprep.subr.bf16.mxu0 0
      %1543 = vmatpush1.bf16.msra.mxu0 %v1512
      %1544 = vmatprep.subr.bf16.mxu0 0
      %1545 = vmatpush2.bf16.msra.mxu0 0
      %1546 = vmatprep.subr.bf16.mxu0 0
      %1547 = vmatpush2.bf16.msra.mxu0 0
      %1548 = vmatprep.subr.bf16.mxu0 0
      %1549 = vmatpush2.bf16.msra.mxu0 0
      %1550 = vmatprep.subr.bf16.mxu0 0
      %1551 = vmatpush2.bf16.msra.mxu0 0
      %1552 = vmatprep.subr.bf16.mxu0 0
      %1553 = vmatpush2.bf16.msra.mxu0 0
      %1554 = vmatprep.subr.bf16.mxu0 0
      %1555 = vmatpush2.bf16.msra.mxu0 0
      %1556 = vmatprep.subr.bf16.mxu0 0
      %1557 = vmatpush2.bf16.msra.mxu0 0
      %1558 = vmatprep.subr.bf16.mxu0 0
      %1559 = vmatpush2.bf16.msra.mxu0 0
      %1560 = vmatprep.mubr.bf16.mxu0 0
      %1561 = vmatmul.mubr.bf16.gmra.mxu0 %v1476
      %v1562 = vpop.f32.mrf.mxu0
      %v1563 = vadd.f32 0.0, %v1562
      %v1564 = vpop.f32.mrf.mxu0
      %v1565 = vpop.f32.mrf.mxu0
      %v1566 = vadd.f32 0.0, %v1565
      %v1567 = vpop.f32.mrf.mxu0
      %1568 = vmatprep.mubr.bf16.mxu0 0
      %1569 = vmatmul.mubr.bf16.gmra.mxu0 %v1477
      %v1570 = vpop.f32.mrf.mxu0
      %v1571 = vadd.f32 0.0, %v1570
      %v1572 = vpop.f32.mrf.mxu0
      %v1573 = vpop.f32.mrf.mxu0
      %v1574 = vadd.f32 0.0, %v1573
      %v1575 = vpop.f32.mrf.mxu0
      %1576 = vdwg.mxu0
      %v1577 = vadd.f32 %v1429, %v1563
      %v1578 = vadd.f32 %v1430, %v1566
      %v1579 = vadd.f32 %v1431, %v1571
      %v1580 = vadd.f32 %v1432, %v1574
      %v1581 = vld [vmem:[%s2] sm:$0x1]
      %v1583 = vlaneseq
      %v1584 = vshrl.u32 %v1583, 7
      %v1585 = vsub.s32 0, %v1584
      %v1586 = vrot.slane %v1581, %v1585
      %v1588 = vadd.f32 %v1577, %v1586
      %v1589 = vadd.f32 %v1578, %v1586
      %v1590 = vadd.f32 %v1579, %v1586
      %v1591 = vadd.f32 %v1580, %v1586
      %v1592 = vmax.f32 %v1588, 0.0
      %v1593 = vmax.f32 %v1589, 0.0
      %v1594 = vmax.f32 %v1590, 0.0
      %v1595 = vmax.f32 %v1591, 0.0
      %v1596 = vmax.f32 %v1592, %v1594
      %v1597 = vmax.f32 %v1593, %v1595
      %v1598 = vlaneseq
      %v1599 = vshrl.u32 %v1598, 7
      %v1600 = vlaneseq
      %v1601 = vand.u32 %v1600, 127
      %v1602 = vmul.u32 %v1599, 2
      %vm1603 = vcmp.eq.s32.totalorder %v1601, %v1602
      %v1604 = vsel %vm1603, 1, 0
      %v1605 = vcvt.s32.f32 %v1604
      %v1606 = vadd.s32 %v1602, 1
      %vm1607 = vcmp.eq.s32.totalorder %v1601, %v1606
      %v1608 = vsel %vm1607, 1, 0
      %v1609 = vcvt.s32.f32 %v1608
      %vm1610 = vcmask 130048
      %v1612 = vsel %vm1610, %v1605, 0
      %1614 = vmatprep.subr.mxu0 0.0
      %1615 = vmatpush1.msra.mxu0 0.0
      %1616 = vmatprep.subr.mxu0 0.0
      %1617 = vmatpush1.msra.mxu0 0.0
      %1618 = vmatprep.subr.mxu0 0.0
      %1619 = vmatpush1.msra.mxu0 0.0
      %1620 = vmatprep.subr.mxu0 0.0
      %1621 = vmatpush1.msra.mxu0 0.0
      %1622 = vmatprep.subr.mxu0 0.0
      %1623 = vmatpush1.msra.mxu0 0.0
      %1624 = vmatprep.subr.mxu0 0.0
      %1625 = vmatpush1.msra.mxu0 0.0
      %1626 = vmatprep.subr.mxu0 0.0
      %1627 = vmatpush1.msra.mxu0 0.0
      %1628 = vmatprep.subr.mxu0 0.0
      %1629 = vmatpush1.msra.mxu0 0.0
      %1630 = vmatprep.subr.mxu0 0.0
      %1631 = vmatpush1.msra.mxu0 0.0
      %1632 = vmatprep.subr.mxu0 0.0
      %1633 = vmatpush1.msra.mxu0 0.0
      %1634 = vmatprep.subr.mxu0 0.0
      %1635 = vmatpush1.msra.mxu0 0.0
      %1636 = vmatprep.subr.mxu0 0.0
      %1637 = vmatpush1.msra.mxu0 0.0
      %1638 = vmatprep.subr.mxu0 0.0
      %1639 = vmatpush1.msra.mxu0 0.0
      %1640 = vmatprep.subr.mxu0 0.0
      %1641 = vmatpush1.msra.mxu0 0.0
      %1642 = vmatprep.subr.mxu0 0.0
      %1643 = vmatpush1.msra.mxu0 %v1597
      %1644 = vmatprep.subr.mxu0 0.0
      %1645 = vmatpush1.msra.mxu0 %v1596
      %1646 = vmatprep.subr.mxu0 0.0
      %1647 = vmatpush2.msra.mxu0 0.0
      %1648 = vmatprep.subr.mxu0 0.0
      %1649 = vmatpush2.msra.mxu0 0.0
      %1650 = vmatprep.subr.mxu0 0.0
      %1651 = vmatpush2.msra.mxu0 0.0
      %1652 = vmatprep.subr.mxu0 0.0
      %1653 = vmatpush2.msra.mxu0 0.0
      %1654 = vmatprep.subr.mxu0 0.0
      %1655 = vmatpush2.msra.mxu0 0.0
      %1656 = vmatprep.subr.mxu0 0.0
      %1657 = vmatpush2.msra.mxu0 0.0
      %1658 = vmatprep.subr.mxu0 0.0
      %1659 = vmatpush2.msra.mxu0 0.0
      %1660 = vmatprep.subr.mxu0 0.0
      %1661 = vmatpush2.msra.mxu0 0.0
      %1662 = vmatprep.subr.mxu0 0.0
      %1663 = vmatpush2.msra.mxu0 0.0
      %1664 = vmatprep.subr.mxu0 0.0
      %1665 = vmatpush2.msra.mxu0 0.0
      %1666 = vmatprep.subr.mxu0 0.0
      %1667 = vmatpush2.msra.mxu0 0.0
      %1668 = vmatprep.subr.mxu0 0.0
      %1669 = vmatpush2.msra.mxu0 0.0
      %1670 = vmatprep.subr.mxu0 0.0
      %1671 = vmatpush2.msra.mxu0 0.0
      %1672 = vmatprep.subr.mxu0 0.0
      %1673 = vmatpush2.msra.mxu0 0.0
      %1674 = vmatprep.subr.mxu0 0.0
      %1675 = vmatpush2.msra.mxu0 0.0
      %1676 = vmatprep.subr.mxu0 0.0
      %1677 = vmatpush2.msra.mxu0 0.0
      %1678 = vmatprep.mubr.f32.mxu0 0.0
      %1679 = vmatmul.mubr.f32.gmra.mxu0 %v1612
      %v1680 = vpop.f32.mrf.mxu0
      %v1681 = vadd.f32 0.0, %v1680
      %v1682 = vpop.f32.mrf.mxu0
      %1683 = vdwg.mxu0
      %v1685 = vsel %vm1610, %v1609, 0
      %1687 = vmatprep.subr.mxu0 0.0
      %1688 = vmatpush1.msra.mxu0 0.0
      %1689 = vmatprep.subr.mxu0 0.0
      %1690 = vmatpush1.msra.mxu0 0.0
      %1691 = vmatprep.subr.mxu0 0.0
      %1692 = vmatpush1.msra.mxu0 0.0
      %1693 = vmatprep.subr.mxu0 0.0
      %1694 = vmatpush1.msra.mxu0 0.0
      %1695 = vmatprep.subr.mxu0 0.0
      %1696 = vmatpush1.msra.mxu0 0.0
      %1697 = vmatprep.subr.mxu0 0.0
      %1698 = vmatpush1.msra.mxu0 0.0
      %1699 = vmatprep.subr.mxu0 0.0
      %1700 = vmatpush1.msra.mxu0 0.0
      %1701 = vmatprep.subr.mxu0 0.0
      %1702 = vmatpush1.msra.mxu0 0.0
      %1703 = vmatprep.subr.mxu0 0.0
      %1704 = vmatpush1.msra.mxu0 0.0
      %1705 = vmatprep.subr.mxu0 0.0
      %1706 = vmatpush1.msra.mxu0 0.0
      %1707 = vmatprep.subr.mxu0 0.0
      %1708 = vmatpush1.msra.mxu0 0.0
      %1709 = vmatprep.subr.mxu0 0.0
      %1710 = vmatpush1.msra.mxu0 0.0
      %1711 = vmatprep.subr.mxu0 0.0
      %1712 = vmatpush1.msra.mxu0 0.0
      %1713 = vmatprep.subr.mxu0 0.0
      %1714 = vmatpush1.msra.mxu0 0.0
      %1715 = vmatprep.subr.mxu0 0.0
      %1716 = vmatpush1.msra.mxu0 %v1597
      %1717 = vmatprep.subr.mxu0 0.0
      %1718 = vmatpush1.msra.mxu0 %v1596
      %1719 = vmatprep.subr.mxu0 0.0
      %1720 = vmatpush2.msra.mxu0 0.0
      %1721 = vmatprep.subr.mxu0 0.0
      %1722 = vmatpush2.msra.mxu0 0.0
      %1723 = vmatprep.subr.mxu0 0.0
      %1724 = vmatpush2.msra.mxu0 0.0
      %1725 = vmatprep.subr.mxu0 0.0
      %1726 = vmatpush2.msra.mxu0 0.0
      %1727 = vmatprep.subr.mxu0 0.0
      %1728 = vmatpush2.msra.mxu0 0.0
      %1729 = vmatprep.subr.mxu0 0.0
      %1730 = vmatpush2.msra.mxu0 0.0
      %1731 = vmatprep.subr.mxu0 0.0
      %1732 = vmatpush2.msra.mxu0 0.0
      %1733 = vmatprep.subr.mxu0 0.0
      %1734 = vmatpush2.msra.mxu0 0.0
      %1735 = vmatprep.subr.mxu0 0.0
      %1736 = vmatpush2.msra.mxu0 0.0
      %1737 = vmatprep.subr.mxu0 0.0
      %1738 = vmatpush2.msra.mxu0 0.0
      %1739 = vmatprep.subr.mxu0 0.0
      %1740 = vmatpush2.msra.mxu0 0.0
      %1741 = vmatprep.subr.mxu0 0.0
      %1742 = vmatpush2.msra.mxu0 0.0
      %1743 = vmatprep.subr.mxu0 0.0
      %1744 = vmatpush2.msra.mxu0 0.0
      %1745 = vmatprep.subr.mxu0 0.0
      %1746 = vmatpush2.msra.mxu0 0.0
      %1747 = vmatprep.subr.mxu0 0.0
      %1748 = vmatpush2.msra.mxu0 0.0
      %1749 = vmatprep.subr.mxu0 0.0
      %1750 = vmatpush2.msra.mxu0 0.0
      %1751 = vmatprep.mubr.f32.mxu0 0.0
      %1752 = vmatmul.mubr.f32.gmra.mxu0 %v1685
      %v1753 = vpop.f32.mrf.mxu0
      %v1754 = vadd.f32 0.0, %v1753
      %v1755 = vpop.f32.mrf.mxu0
      %1756 = vdwg.mxu0
      %v1757 = vmax.f32 %v1681, %v1754
      %v1758 = vpack.c.bf16 %v1757, %v1757
      %1759 = vst [vmem:[%s190] sm:$0xf] %v1758
      %p1760 = scmp.lt.s32.totalorder %s18, 1
      %s1761 = scalar_select %p1760, %s18, 1
      %p1762 = scmp.lt.s32.totalorder %s19, 7
      %s1763 = scalar_select %p1762, %s19, 7
      %s1764 = smul.addr %s1761, 8
      %s1765 = sadd.s32 %s1763, %s1764
      %s1766 = smul.addr %s1765, 4
      %s1767 = scalar_lea.vmem %s3, %s1766
      // Predicated region
      $region33: #{modified_lenet_forward.6} parent=31 // pred_check
        %p1768 = pneg %p114
      $region34: #{modified_lenet_forward.6} parent=31 // pred_check_branch
        %1770 = sbr.rel (%p1768) target = $region36
      $region35: #{modified_lenet_forward.6} parent=31 // pred_region
        _
      $region36: #{modified_lenet_forward.6} parent=31 // pred_fallthru
        _
    $region32: #{modified_lenet_forward.6} parent=5 // pred_fallthru
      _
    %p1771 = scmp.le.s32.totalorder 2, %s9
    // Predicated region
    $region37: #{modified_lenet_forward.6} parent=5 // pred_check
      %p1772 = pneg %p1771
    $region38: #{modified_lenet_forward.6} parent=5 // pred_check_branch
      %1774 = sbr.rel (%p1772) target = $region40
    $region39: #{modified_lenet_forward.6} parent=5 // pred_region
      %s1775 = ssub.s32 %s9, 2
      // Predicated region
      $region41: #{modified_lenet_forward.6} parent=39 // pred_check
        %p1776 = pneg %p120
      $region42: #{modified_lenet_forward.6} parent=39 // pred_check_branch
        %1778 = sbr.rel (%p1776) target = $region44
      $region43: #{modified_lenet_forward.6} parent=39 // pred_region
        %p1779 = scmp.lt.s32.totalorder %s20, 1
        %s1780 = scalar_select %p1779, %s20, 1
        %p1781 = scmp.lt.s32.totalorder %s21, 7
        %s1782 = scalar_select %p1781, %s21, 7
        %s1783 = smul.addr %s1780, 8
        %s1784 = sadd.s32 %s1782, %s1783
        %s1785 = smul.addr %s1784, 4
        %s1786 = scalar_lea.vmem %s3, %s1785
      $region44: #{modified_lenet_forward.6} parent=39 // pred_fallthru
        _
    $region40: #{modified_lenet_forward.6} parent=5 // pred_fallthru
      _
  $region6: #{modified_lenet_forward.6} parent=0 // loop_footer
    %s13 = sadd.s32 1, %s9
  $region7: #{modified_lenet_forward.6} parent=0 // loop_footer_branch
    %8 = sbr.rel target = $region3
  $region8: #{modified_lenet_forward.6} parent=0 // loop_exit
    _

// kernel: modified_lenet_forward.8
$region0: #{modified_lenet_forward.8}
  #allocation0 [shape = 'u32[]', space=smem, size = 0x4, offset = 0x4, fixed_abs, tag = 'smem constant byte address 0x4 - core index']
  #allocation1 [shape = 'u32[144,128]{1,0:T(1,128)}', space=vmem, size = 0x12000, scoped, tag = 'internal scratch']
  %s0 = inlined_call_operand.vmem [shape: bf16[2,6,6,128], index: 0, kind: input, shape index: {}]
  %s1 = inlined_call_operand.vmem [shape: bf16[9,128,256], index: 1, kind: input, shape index: {}]
  %s2 = inlined_call_operand.vmem [shape: f32[1,256], index: 2, kind: input, shape index: {}]
  %s3 = inlined_call_operand.vmem [shape: bf16[2,2,2,256], index: 3, kind: output, shape index: {}]
  %s4 = sld [smem:[#allocation0]]
  $region45: #{modified_lenet_forward.8} parent=0
    _
  %s6 = ssub.s32 1, %s4
  %s7 = scalar_select 0, %s6, %s4
  loop: start=0, step=1, limit=6
  $region2: #{modified_lenet_forward.8} parent=0 // loop_pre_header
    _
  $region3: #{modified_lenet_forward.8} parent=0 // loop_header
    %s9 = sphi 0, %s13
    %p10 = scmp.ge.s32.totalorder %s9, 6
    %s16 = sphi 0, %s28
    %s17 = sphi 0, %s24
    %s18 = sphi 0, %s16
    %s19 = sphi 0, %s17
    %s20 = sphi 0, %s18
    %s21 = sphi 0, %s19
    %s31 = sphi 0, %s33
    %s34 = sphi 0, %s31
    %s35 = sphi 0, %s34
    %s51 = sphi 0, %s35
    %s55 = sphi 0, %s55
    %s57 = sphi 0, %s55
    %s58 = sphi 0, %s57
    %s72 = sphi 0, %s58
    %s76 = sphi 0, %s76
    %s78 = sphi 0, %s76
    %s79 = sphi 0, %s78
    %s93 = sphi 0, %s79
    %s101 = sphi 0, %s103
    %s104 = sphi 0, %s101
    %s105 = sphi 0, %s104
    %s121 = sphi 0, %s105
  $region4: #{modified_lenet_forward.8} parent=0 // loop_header_branch
    %12 = sbr.rel (%p10) target = $region8
  $region5: #{modified_lenet_forward.8} parent=0 // loop_body
    %s14 = ssub.s32 %s9, 1
    %s15 = ssub.s32 %s9, 2
    %s22 = sadd.s32 1, %s17
    %p23 = scmp.ge.s32.totalorder %s22, 2
    %s24 = scalar_select %p23, 0, %s22
    %s25 = sadd.s32 1, %s16
    %s26 = scalar_select %p23, %s25, %s16
    %p27 = scmp.ge.s32.totalorder %s26, 2
    %s28 = scalar_select %p27, 0, %s26
    %s29 = ssub.s32 %s16, %s28
    %p30 = scmp.eq.s32.totalorder %s29, 0
    %s32 = sadd.s32 %s31, 1
    %s33 = scalar_select %p30, %s31, %s32
    %p36 = pneg %p30
    %p37 = scmp.eq.s32.totalorder %s9, 3
    %p38 = por %p36, %p37
    %p39 = scmp.ne.s32.totalorder %s31, %s34
    %p40 = scmp.eq.s32.totalorder %s9, 0
    %p41 = por %p39, %p40
    %p42 = scmp.ne.s32.totalorder %s31, %s34
    %p43 = scmp.eq.s32.totalorder %s14, 3
    %p44 = por %p42, %p43
    %p45 = scmp.ne.s32.totalorder %s34, %s35
    %p46 = scmp.eq.s32.totalorder %s14, 0
    %p47 = por %p45, %p46
    %p48 = scmp.ne.s32.totalorder %s34, %s35
    %p49 = scmp.eq.s32.totalorder %s15, 3
    %p50 = por %p48, %p49
    %p52 = scmp.ne.s32.totalorder %s35, %s51
    %p53 = scmp.eq.s32.totalorder %s15, 0
    %p54 = por %p52, %p53
    %s56 = sadd.s32 %s55, 1
    %p59 = scmp.eq.s32.totalorder %s9, 3
    %p60 = scmp.ne.s32.totalorder %s55, %s57
    %p61 = scmp.eq.s32.totalorder %s9, 0
    %p62 = por %p60, %p61
    %p63 = scmp.ne.s32.totalorder %s55, %s57
    %p64 = scmp.eq.s32.totalorder %s14, 3
    %p65 = por %p63, %p64
    %p66 = scmp.ne.s32.totalorder %s57, %s58
    %p67 = scmp.eq.s32.totalorder %s14, 0
    %p68 = por %p66, %p67
    %p69 = scmp.ne.s32.totalorder %s57, %s58
    %p70 = scmp.eq.s32.totalorder %s15, 3
    %p71 = por %p69, %p70
    %p73 = scmp.ne.s32.totalorder %s58, %s72
    %p74 = scmp.eq.s32.totalorder %s15, 0
    %p75 = por %p73, %p74
    %s77 = sadd.s32 %s76, 1
    %p80 = scmp.eq.s32.totalorder %s9, 3
    %p81 = scmp.ne.s32.totalorder %s76, %s78
    %p82 = scmp.eq.s32.totalorder %s9, 0
    %p83 = por %p81, %p82
    %p84 = scmp.ne.s32.totalorder %s76, %s78
    %p85 = scmp.eq.s32.totalorder %s14, 3
    %p86 = por %p84, %p85
    %p87 = scmp.ne.s32.totalorder %s78, %s79
    %p88 = scmp.eq.s32.totalorder %s14, 0
    %p89 = por %p87, %p88
    %p90 = scmp.ne.s32.totalorder %s78, %s79
    %p91 = scmp.eq.s32.totalorder %s15, 3
    %p92 = por %p90, %p91
    %p94 = scmp.ne.s32.totalorder %s79, %s93
    %p95 = scmp.eq.s32.totalorder %s15, 0
    %p96 = por %p94, %p95
    %s97 = ssub.s32 %s16, %s28
    %s98 = ssub.s32 %s17, %s24
    %s99 = sor.u32 %s97, %s98
    %p100 = scmp.eq.s32.totalorder %s99, 0
    %s102 = sadd.s32 %s101, 1
    %s103 = scalar_select %p100, %s101, %s102
    %p106 = pneg %p100
    %p107 = scmp.eq.s32.totalorder %s9, 3
    %p108 = por %p106, %p107
    %p109 = scmp.ne.s32.totalorder %s101, %s104
    %p110 = scmp.eq.s32.totalorder %s9, 0
    %p111 = por %p109, %p110
    %p112 = scmp.ne.s32.totalorder %s101, %s104
    %p113 = scmp.eq.s32.totalorder %s14, 3
    %p114 = por %p112, %p113
    %p115 = scmp.ne.s32.totalorder %s104, %s105
    %p116 = scmp.eq.s32.totalorder %s14, 0
    %p117 = por %p115, %p116
    %p118 = scmp.ne.s32.totalorder %s104, %s105
    %p119 = scmp.eq.s32.totalorder %s15, 3
    %p120 = por %p118, %p119
    %p122 = scmp.ne.s32.totalorder %s105, %s121
    %p123 = scmp.eq.s32.totalorder %s15, 0
    %p124 = por %p122, %p123
    %p125 = scmp.le.s32.totalorder 1, %s9
    %p126 = scmp.lt.s32.totalorder %s9, 5
    %p127 = pnand %p125, %p126
    %p128 = pneg %p127
    // Predicated region
    $region9: #{modified_lenet_forward.8} parent=5 // pred_check
      _
    $region10: #{modified_lenet_forward.8} parent=5 // pred_check_branch
      %130 = sbr.rel (%p127) target = $region12
    $region11: #{modified_lenet_forward.8} parent=5 // pred_region
      %s131 = ssub.s32 %s9, 1
      // Predicated region
      $region13: #{modified_lenet_forward.8} parent=11 // pred_check
        %p132 = pneg %p68
      $region14: #{modified_lenet_forward.8} parent=11 // pred_check_branch
        %134 = sbr.rel (%p132) target = $region16
      $region15: #{modified_lenet_forward.8} parent=11 // pred_region
        _
      $region16: #{modified_lenet_forward.8} parent=11 // pred_fallthru
        _
      // Predicated region
      $region17: #{modified_lenet_forward.8} parent=11 // pred_check
        %p135 = pneg %p89
      $region18: #{modified_lenet_forward.8} parent=11 // pred_check_branch
        %137 = sbr.rel (%p135) target = $region20
      $region19: #{modified_lenet_forward.8} parent=11 // pred_region
        _
      $region20: #{modified_lenet_forward.8} parent=11 // pred_fallthru
        _
    $region12: #{modified_lenet_forward.8} parent=5 // pred_fallthru
      _
    %p138 = scmp.lt.s32.totalorder %s9, 4
    // Predicated region
    $region21: #{modified_lenet_forward.8} parent=5 // pred_check
      %p139 = pneg %p138
    $region22: #{modified_lenet_forward.8} parent=5 // pred_check_branch
      %141 = sbr.rel (%p139) target = $region24
    $region23: #{modified_lenet_forward.8} parent=5 // pred_region
      // Predicated region
      $region25: #{modified_lenet_forward.8} parent=23 // pred_check
        %p142 = pneg %p41
      $region26: #{modified_lenet_forward.8} parent=23 // pred_check_branch
        %144 = sbr.rel (%p142) target = $region28
      $region27: #{modified_lenet_forward.8} parent=23 // pred_region
        %p145 = scmp.lt.s32.totalorder %s16, 1
        %s146 = scalar_select %p145, %s16, 1
        %s147 = smul.addr %s146, 6
        %s148 = smul.addr %s147, 4
        %s149 = scalar_lea.vmem %s0, %s148
      $region28: #{modified_lenet_forward.8} parent=23 // pred_fallthru
        _
    $region24: #{modified_lenet_forward.8} parent=5 // pred_fallthru
      _
    %p150 = scmp.le.s32.totalorder 1, %s9
    %p151 = scmp.lt.s32.totalorder %s9, 5
    %p152 = pnand %p150, %p151
    %p153 = pneg %p152
    // Predicated region
    $region29: #{modified_lenet_forward.8} parent=5 // pred_check
      _
    $region30: #{modified_lenet_forward.8} parent=5 // pred_check_branch
      %155 = sbr.rel (%p152) target = $region32
    $region31: #{modified_lenet_forward.8} parent=5 // pred_region
      %s156 = ssub.s32 %s9, 1
      %p157 = scmp.lt.s32.totalorder %s18, 1
      %s158 = scalar_select %p157, %s18, 1
      %s159 = smul.addr %s158, 6
      %s160 = smul.addr %s159, 4
      %s161 = scalar_lea.vmem %s0, %s160
      %p162 = pneg %p47
      %p163 = pneg %p44
      %p164 = pneg %p68
      %p165 = pneg %p65
      %p166 = pneg %p89
      %p167 = pneg %p86
      %p168 = pneg %p117
      %p169 = pneg %p114
      %p170 = scmp.lt.s32.totalorder %s18, 1
      %s171 = scalar_select %p170, %s18, 1
      %p172 = scmp.lt.s32.totalorder %s19, 1
      %s173 = scalar_select %p172, %s19, 1
      %s174 = smul.addr %s173, 2
      %s175 = smul.addr %s171, 4
      %s176 = sadd.s32 %s174, %s175
      %s177 = scalar_lea.vmem %s3, %s176
      %p178 = scmp.lt.s32.totalorder %s18, 1
      %s179 = scalar_select %p178, %s18, 1
      %s180 = smul.addr %s179, 6
      %s181 = smul.addr %s180, 4
      %s182 = scalar_lea.vmem %s0, %s181
      %p183 = scmp.lt.s32.totalorder %s18, 1
      %s184 = scalar_select %p183, %s18, 1
      %p185 = scmp.lt.s32.totalorder %s19, 1
      %s186 = scalar_select %p185, %s19, 1
      %s187 = smul.addr %s186, 2
      %s188 = smul.addr %s184, 4
      %s189 = sadd.s32 %s187, %s188
      %s190 = scalar_lea.vmem %s3, %s189
      %s192 = smul.u32 %s19, 2
      %s193 = smul.addr %s192, 4
      %s194 = scalar_lea.vmem %s182, %s193
      %v195 = vld [vmem:[%s194] sm:$0x3]
      %v196 = vld [vmem:[%s194 + $0x4] sm:$0x3]
      %v197 = vld [vmem:[%s1] sm:$0xff]
      %v198 = vld [vmem:[%s1 + $0x8] sm:$0xff]
      %v199 = vld [vmem:[%s1 + $0x10] sm:$0xff]
      %v200 = vld [vmem:[%s1 + $0x18] sm:$0xff]
      %v201 = vld [vmem:[%s1 + $0x20] sm:$0xff]
      %v202 = vld [vmem:[%s1 + $0x28] sm:$0xff]
      %v203 = vld [vmem:[%s1 + $0x30] sm:$0xff]
      %v204 = vld [vmem:[%s1 + $0x38] sm:$0xff]
      %v205 = vld [vmem:[%s1 + $0x40] sm:$0xff]
      %v206 = vld [vmem:[%s1 + $0x48] sm:$0xff]
      %v207 = vld [vmem:[%s1 + $0x50] sm:$0xff]
      %v208 = vld [vmem:[%s1 + $0x58] sm:$0xff]
      %v209 = vld [vmem:[%s1 + $0x60] sm:$0xff]
      %v210 = vld [vmem:[%s1 + $0x68] sm:$0xff]
      %v211 = vld [vmem:[%s1 + $0x70] sm:$0xff]
      %v212 = vld [vmem:[%s1 + $0x78] sm:$0xff]
      %v213 = vld [vmem:[%s194] sm:$0x7]
      %v214 = vld [vmem:[%s194 + $0x4] sm:$0x7]
      %v218 = vunpack.c.l.s4 1983009808
      %v219 = vunpack.c.0.s8 %v218
      %v220 = vlaneseq
      %v221 = vshrl.u32 %v220, 7
      %v222 = vsub.s32 %v219, %v221
      %v223 = vrot.slane %v213, %v222
      %v224 = vcombine.high %v223, %v223
      %v226 = vunpack.c.l.s4 1983009808
      %v227 = vunpack.c.0.s8 %v226
      %v228 = vlaneseq
      %v229 = vshrl.u32 %v228, 7
      %v230 = vsub.s32 %v227, %v229
      %v231 = vrot.slane %v214, %v230
      %v232 = vcombine.high %v231, %v231
      %vm233 = vsmask.f32 1280
      %vm234 = vsmask.f32 3336
      %vm235 = vmor %vm233, %vm234
      %vm236 = vsmask.f32 5392
      %vm237 = vmor %vm235, %vm236
      %vm238 = vsmask.f32 7448
      %vm239 = vmor %vm237, %vm238
      %v241 = vshrl.u32 %v223, 16
      %v243 = vrot.slane %v241, 6
      %v244 = vshll.u32 %v223, 16
      %v246 = vrot.slane %v244, 7
      %v247 = vor.u32 %v243, %v246
      %v248 = vrot.slane %v247, 2
      %v250 = vshll.u32 %v224, 16
      %v252 = vrot.slane %v250, 7
      %v253 = vsel %vm239, %v248, %v252
      %v255 = vshrl.u32 %v231, 16
      %v257 = vrot.slane %v255, 6
      %v258 = vshll.u32 %v231, 16
      %v260 = vrot.slane %v258, 7
      %v261 = vor.u32 %v257, %v260
      %v262 = vrot.slane %v261, 2
      %v264 = vshll.u32 %v232, 16
      %v266 = vrot.slane %v264, 7
      %v267 = vsel %vm239, %v262, %v266
      %s268 = scalar_lea.vmem %s1, 128
      %v269 = vld [vmem:[%s268] sm:$0xff]
      %v270 = vld [vmem:[%s268 + $0x8] sm:$0xff]
      %v271 = vld [vmem:[%s268 + $0x10] sm:$0xff]
      %v272 = vld [vmem:[%s268 + $0x18] sm:$0xff]
      %v273 = vld [vmem:[%s268 + $0x20] sm:$0xff]
      %v274 = vld [vmem:[%s268 + $0x28] sm:$0xff]
      %v275 = vld [vmem:[%s268 + $0x30] sm:$0xff]
      %v276 = vld [vmem:[%s268 + $0x38] sm:$0xff]
      %v277 = vld [vmem:[%s268 + $0x40] sm:$0xff]
      %v278 = vld [vmem:[%s268 + $0x48] sm:$0xff]
      %v279 = vld [vmem:[%s268 + $0x50] sm:$0xff]
      %v280 = vld [vmem:[%s268 + $0x58] sm:$0xff]
      %v281 = vld [vmem:[%s268 + $0x60] sm:$0xff]
      %v282 = vld [vmem:[%s268 + $0x68] sm:$0xff]
      %v283 = vld [vmem:[%s268 + $0x70] sm:$0xff]
      %v284 = vld [vmem:[%s268 + $0x78] sm:$0xff]
      %v285 = vcombine.low %v253, %v267
      %v287 = vunpack.c.l.s4 1983009808
      %v288 = vunpack.c.0.s8 %v287
      %v289 = vlaneseq
      %v290 = vshrl.u32 %v289, 7
      %v291 = vsub.s32 %v288, %v290
      %v292 = vrot.slane %v285, %v291
      %v310 = vunpack.c.l.b16 %v269
      %v311 = vunpack.c.h.b16 %v269
      %v312 = vunpack.c.l.b16 %v270
      %v313 = vunpack.c.h.b16 %v270
      %v314 = vunpack.c.l.b16 %v271
      %v315 = vunpack.c.h.b16 %v271
      %v316 = vunpack.c.l.b16 %v272
      %v317 = vunpack.c.h.b16 %v272
      %v318 = vunpack.c.l.b16 %v273
      %v319 = vunpack.c.h.b16 %v273
      %v320 = vunpack.c.l.b16 %v274
      %v321 = vunpack.c.h.b16 %v274
      %v322 = vunpack.c.l.b16 %v275
      %v323 = vunpack.c.h.b16 %v275
      %v324 = vunpack.c.l.b16 %v276
      %v325 = vunpack.c.h.b16 %v276
      %v326 = vunpack.c.l.b16 %v277
      %v327 = vunpack.c.h.b16 %v277
      %v328 = vunpack.c.l.b16 %v278
      %v329 = vunpack.c.h.b16 %v278
      %v330 = vunpack.c.l.b16 %v279
      %v331 = vunpack.c.h.b16 %v279
      %v332 = vunpack.c.l.b16 %v280
      %v333 = vunpack.c.h.b16 %v280
      %v334 = vunpack.c.l.b16 %v281
      %v335 = vunpack.c.h.b16 %v281
      %v336 = vunpack.c.l.b16 %v282
      %v337 = vunpack.c.h.b16 %v282
      %v338 = vunpack.c.l.b16 %v283
      %v339 = vunpack.c.h.b16 %v283
      %v340 = vunpack.c.l.b16 %v284
      %v341 = vunpack.c.h.b16 %v284
      %v342 = vpack.c.b16 %v312, %v310
      %v343 = vpack.c.b16 %v313, %v311
      %v344 = vpack.c.b16 %v316, %v314
      %v345 = vpack.c.b16 %v317, %v315
      %v346 = vpack.c.b16 %v320, %v318
      %v347 = vpack.c.b16 %v321, %v319
      %v348 = vpack.c.b16 %v324, %v322
      %v349 = vpack.c.b16 %v325, %v323
      %v350 = vpack.c.b16 %v328, %v326
      %v351 = vpack.c.b16 %v329, %v327
      %v352 = vpack.c.b16 %v332, %v330
      %v353 = vpack.c.b16 %v333, %v331
      %v354 = vpack.c.b16 %v336, %v334
      %v355 = vpack.c.b16 %v337, %v335
      %v356 = vpack.c.b16 %v340, %v338
      %v357 = vpack.c.b16 %v341, %v339
      %374 = vmatprep.subr.bf16.mxu0 %v357
      %375 = vmatpush1.bf16.msra.mxu0 %v356
      %376 = vmatprep.subr.bf16.mxu0 %v355
      %377 = vmatpush1.bf16.msra.mxu0 %v354
      %378 = vmatprep.subr.bf16.mxu0 %v353
      %379 = vmatpush1.bf16.msra.mxu0 %v352
      %380 = vmatprep.subr.bf16.mxu0 %v351
      %381 = vmatpush1.bf16.msra.mxu0 %v350
      %382 = vmatprep.subr.bf16.mxu0 %v349
      %383 = vmatpush1.bf16.msra.mxu0 %v348
      %384 = vmatprep.subr.bf16.mxu0 %v347
      %385 = vmatpush1.bf16.msra.mxu0 %v346
      %386 = vmatprep.subr.bf16.mxu0 %v345
      %387 = vmatpush1.bf16.msra.mxu0 %v344
      %388 = vmatprep.subr.bf16.mxu0 %v343
      %389 = vmatpush1.bf16.msra.mxu0 %v342
      %390 = vmatprep.subr.bf16.mxu0 0
      %391 = vmatpush2.bf16.msra.mxu0 0
      %392 = vmatprep.subr.bf16.mxu0 0
      %393 = vmatpush2.bf16.msra.mxu0 0
      %394 = vmatprep.subr.bf16.mxu0 0
      %395 = vmatpush2.bf16.msra.mxu0 0
      %396 = vmatprep.subr.bf16.mxu0 0
      %397 = vmatpush2.bf16.msra.mxu0 0
      %398 = vmatprep.subr.bf16.mxu0 0
      %399 = vmatpush2.bf16.msra.mxu0 0
      %400 = vmatprep.subr.bf16.mxu0 0
      %401 = vmatpush2.bf16.msra.mxu0 0
      %402 = vmatprep.subr.bf16.mxu0 0
      %403 = vmatpush2.bf16.msra.mxu0 0
      %404 = vmatprep.subr.bf16.mxu0 0
      %405 = vmatpush2.bf16.msra.mxu0 0
      %406 = vmatprep.mubr.bf16.mxu0 0
      %407 = vmatmul.mubr.bf16.gmra.mxu0 %v292
      %v408 = vpop.f32.mrf.mxu0
      %v409 = vadd.f32 0.0, %v408
      %v410 = vpop.f32.mrf.mxu0
      %v411 = vadd.f32 0.0, %v410
      %v412 = vpop.f32.mrf.mxu0
      %v413 = vpop.f32.mrf.mxu0
      %414 = vdwg.mxu0
      %v417 = vcombine.low %v195, %v196
      %v419 = vunpack.c.l.s4 1983009808
      %v420 = vunpack.c.0.s8 %v419
      %v421 = vlaneseq
      %v422 = vshrl.u32 %v421, 7
      %v423 = vsub.s32 %v420, %v422
      %v424 = vrot.slane %v417, %v423
      %v442 = vunpack.c.l.b16 %v197
      %v443 = vunpack.c.h.b16 %v197
      %v444 = vunpack.c.l.b16 %v198
      %v445 = vunpack.c.h.b16 %v198
      %v446 = vunpack.c.l.b16 %v199
      %v447 = vunpack.c.h.b16 %v199
      %v448 = vunpack.c.l.b16 %v200
      %v449 = vunpack.c.h.b16 %v200
      %v450 = vunpack.c.l.b16 %v201
      %v451 = vunpack.c.h.b16 %v201
      %v452 = vunpack.c.l.b16 %v202
      %v453 = vunpack.c.h.b16 %v202
      %v454 = vunpack.c.l.b16 %v203
      %v455 = vunpack.c.h.b16 %v203
      %v456 = vunpack.c.l.b16 %v204
      %v457 = vunpack.c.h.b16 %v204
      %v458 = vunpack.c.l.b16 %v205
      %v459 = vunpack.c.h.b16 %v205
      %v460 = vunpack.c.l.b16 %v206
      %v461 = vunpack.c.h.b16 %v206
      %v462 = vunpack.c.l.b16 %v207
      %v463 = vunpack.c.h.b16 %v207
      %v464 = vunpack.c.l.b16 %v208
      %v465 = vunpack.c.h.b16 %v208
      %v466 = vunpack.c.l.b16 %v209
      %v467 = vunpack.c.h.b16 %v209
      %v468 = vunpack.c.l.b16 %v210
      %v469 = vunpack.c.h.b16 %v210
      %v470 = vunpack.c.l.b16 %v211
      %v471 = vunpack.c.h.b16 %v211
      %v472 = vunpack.c.l.b16 %v212
      %v473 = vunpack.c.h.b16 %v212
      %v474 = vpack.c.b16 %v444, %v442
      %v475 = vpack.c.b16 %v445, %v443
      %v476 = vpack.c.b16 %v448, %v446
      %v477 = vpack.c.b16 %v449, %v447
      %v478 = vpack.c.b16 %v452, %v450
      %v479 = vpack.c.b16 %v453, %v451
      %v480 = vpack.c.b16 %v456, %v454
      %v481 = vpack.c.b16 %v457, %v455
      %v482 = vpack.c.b16 %v460, %v458
      %v483 = vpack.c.b16 %v461, %v459
      %v484 = vpack.c.b16 %v464, %v462
      %v485 = vpack.c.b16 %v465, %v463
      %v486 = vpack.c.b16 %v468, %v466
      %v487 = vpack.c.b16 %v469, %v467
      %v488 = vpack.c.b16 %v472, %v470
      %v489 = vpack.c.b16 %v473, %v471
      %506 = vmatprep.subr.bf16.mxu0 %v489
      %507 = vmatpush1.bf16.msra.mxu0 %v488
      %508 = vmatprep.subr.bf16.mxu0 %v487
      %509 = vmatpush1.bf16.msra.mxu0 %v486
      %510 = vmatprep.subr.bf16.mxu0 %v485
      %511 = vmatpush1.bf16.msra.mxu0 %v484
      %512 = vmatprep.subr.bf16.mxu0 %v483
      %513 = vmatpush1.bf16.msra.mxu0 %v482
      %514 = vmatprep.subr.bf16.mxu0 %v481
      %515 = vmatpush1.bf16.msra.mxu0 %v480
      %516 = vmatprep.subr.bf16.mxu0 %v479
      %517 = vmatpush1.bf16.msra.mxu0 %v478
      %518 = vmatprep.subr.bf16.mxu0 %v477
      %519 = vmatpush1.bf16.msra.mxu0 %v476
      %520 = vmatprep.subr.bf16.mxu0 %v475
      %521 = vmatpush1.bf16.msra.mxu0 %v474
      %522 = vmatprep.subr.bf16.mxu0 0
      %523 = vmatpush2.bf16.msra.mxu0 0
      %524 = vmatprep.subr.bf16.mxu0 0
      %525 = vmatpush2.bf16.msra.mxu0 0
      %526 = vmatprep.subr.bf16.mxu0 0
      %527 = vmatpush2.bf16.msra.mxu0 0
      %528 = vmatprep.subr.bf16.mxu0 0
      %529 = vmatpush2.bf16.msra.mxu0 0
      %530 = vmatprep.subr.bf16.mxu0 0
      %531 = vmatpush2.bf16.msra.mxu0 0
      %532 = vmatprep.subr.bf16.mxu0 0
      %533 = vmatpush2.bf16.msra.mxu0 0
      %534 = vmatprep.subr.bf16.mxu0 0
      %535 = vmatpush2.bf16.msra.mxu0 0
      %536 = vmatprep.subr.bf16.mxu0 0
      %537 = vmatpush2.bf16.msra.mxu0 0
      %538 = vmatprep.mubr.bf16.mxu0 0
      %539 = vmatmul.mubr.bf16.gmra.mxu0 %v424
      %v540 = vpop.f32.mrf.mxu0
      %v541 = vadd.f32 %v409, %v540
      %v542 = vpop.f32.mrf.mxu0
      %v543 = vadd.f32 %v411, %v542
      %v544 = vpop.f32.mrf.mxu0
      %v545 = vpop.f32.mrf.mxu0
      %546 = vdwg.mxu0
      %v547 = vld [vmem:[%s194] sm:$0x6]
      %v548 = vld [vmem:[%s194 + $0x4] sm:$0x6]
      %v552 = vunpack.c.l.s4 1983009808
      %v553 = vunpack.c.0.s8 %v552
      %v554 = vlaneseq
      %v555 = vshrl.u32 %v554, 7
      %v556 = vsub.s32 %v553, %v555
      %v557 = vrot.slane %v547, %v556
      %v558 = vcombine.high %v557, %v557
      %v560 = vunpack.c.l.s4 1983009808
      %v561 = vunpack.c.0.s8 %v560
      %v562 = vlaneseq
      %v563 = vshrl.u32 %v562, 7
      %v564 = vsub.s32 %v561, %v563
      %v565 = vrot.slane %v548, %v564
      %v566 = vcombine.high %v565, %v565
      %vm567 = vcmask 1040384
      %vm568 = vcmask 1042434
      %vm569 = vmor %vm567, %vm568
      %vm570 = vcmask 1044484
      %vm571 = vmor %vm569, %vm570
      %vm572 = vcmask 1046534
      %vm573 = vmor %vm571, %vm572
      %v574 = vrot.slane %v557, 7
      %v575 = vrot.slane %v574, 2
      %v576 = vrot.slane %v558, 7
      %v577 = vsel %vm573, %v575, %v576
      %v578 = vrot.slane %v565, 7
      %v579 = vrot.slane %v578, 2
      %v580 = vrot.slane %v566, 7
      %v581 = vsel %vm573, %v579, %v580
      %s582 = scalar_lea.vmem %s1, 256
      %v583 = vld [vmem:[%s582] sm:$0xff]
      %v584 = vld [vmem:[%s582 + $0x8] sm:$0xff]
      %v585 = vld [vmem:[%s582 + $0x10] sm:$0xff]
      %v586 = vld [vmem:[%s582 + $0x18] sm:$0xff]
      %v587 = vld [vmem:[%s582 + $0x20] sm:$0xff]
      %v588 = vld [vmem:[%s582 + $0x28] sm:$0xff]
      %v589 = vld [vmem:[%s582 + $0x30] sm:$0xff]
      %v590 = vld [vmem:[%s582 + $0x38] sm:$0xff]
      %v591 = vld [vmem:[%s582 + $0x40] sm:$0xff]
      %v592 = vld [vmem:[%s582 + $0x48] sm:$0xff]
      %v593 = vld [vmem:[%s582 + $0x50] sm:$0xff]
      %v594 = vld [vmem:[%s582 + $0x58] sm:$0xff]
      %v595 = vld [vmem:[%s582 + $0x60] sm:$0xff]
      %v596 = vld [vmem:[%s582 + $0x68] sm:$0xff]
      %v597 = vld [vmem:[%s582 + $0x70] sm:$0xff]
      %v598 = vld [vmem:[%s582 + $0x78] sm:$0xff]
      %v599 = vcombine.low %v577, %v581
      %v601 = vunpack.c.l.s4 1983009808
      %v602 = vunpack.c.0.s8 %v601
      %v603 = vlaneseq
      %v604 = vshrl.u32 %v603, 7
      %v605 = vsub.s32 %v602, %v604
      %v606 = vrot.slane %v599, %v605
      %v624 = vunpack.c.l.b16 %v583
      %v625 = vunpack.c.h.b16 %v583
      %v626 = vunpack.c.l.b16 %v584
      %v627 = vunpack.c.h.b16 %v584
      %v628 = vunpack.c.l.b16 %v585
      %v629 = vunpack.c.h.b16 %v585
      %v630 = vunpack.c.l.b16 %v586
      %v631 = vunpack.c.h.b16 %v586
      %v632 = vunpack.c.l.b16 %v587
      %v633 = vunpack.c.h.b16 %v587
      %v634 = vunpack.c.l.b16 %v588
      %v635 = vunpack.c.h.b16 %v588
      %v636 = vunpack.c.l.b16 %v589
      %v637 = vunpack.c.h.b16 %v589
      %v638 = vunpack.c.l.b16 %v590
      %v639 = vunpack.c.h.b16 %v590
      %v640 = vunpack.c.l.b16 %v591
      %v641 = vunpack.c.h.b16 %v591
      %v642 = vunpack.c.l.b16 %v592
      %v643 = vunpack.c.h.b16 %v592
      %v644 = vunpack.c.l.b16 %v593
      %v645 = vunpack.c.h.b16 %v593
      %v646 = vunpack.c.l.b16 %v594
      %v647 = vunpack.c.h.b16 %v594
      %v648 = vunpack.c.l.b16 %v595
      %v649 = vunpack.c.h.b16 %v595
      %v650 = vunpack.c.l.b16 %v596
      %v651 = vunpack.c.h.b16 %v596
      %v652 = vunpack.c.l.b16 %v597
      %v653 = vunpack.c.h.b16 %v597
      %v654 = vunpack.c.l.b16 %v598
      %v655 = vunpack.c.h.b16 %v598
      %v656 = vpack.c.b16 %v626, %v624
      %v657 = vpack.c.b16 %v627, %v625
      %v658 = vpack.c.b16 %v630, %v628
      %v659 = vpack.c.b16 %v631, %v629
      %v660 = vpack.c.b16 %v634, %v632
      %v661 = vpack.c.b16 %v635, %v633
      %v662 = vpack.c.b16 %v638, %v636
      %v663 = vpack.c.b16 %v639, %v637
      %v664 = vpack.c.b16 %v642, %v640
      %v665 = vpack.c.b16 %v643, %v641
      %v666 = vpack.c.b16 %v646, %v644
      %v667 = vpack.c.b16 %v647, %v645
      %v668 = vpack.c.b16 %v650, %v648
      %v669 = vpack.c.b16 %v651, %v649
      %v670 = vpack.c.b16 %v654, %v652
      %v671 = vpack.c.b16 %v655, %v653
      %688 = vmatprep.subr.bf16.mxu0 %v671
      %689 = vmatpush1.bf16.msra.mxu0 %v670
      %690 = vmatprep.subr.bf16.mxu0 %v669
      %691 = vmatpush1.bf16.msra.mxu0 %v668
      %692 = vmatprep.subr.bf16.mxu0 %v667
      %693 = vmatpush1.bf16.msra.mxu0 %v666
      %694 = vmatprep.subr.bf16.mxu0 %v665
      %695 = vmatpush1.bf16.msra.mxu0 %v664
      %696 = vmatprep.subr.bf16.mxu0 %v663
      %697 = vmatpush1.bf16.msra.mxu0 %v662
      %698 = vmatprep.subr.bf16.mxu0 %v661
      %699 = vmatpush1.bf16.msra.mxu0 %v660
      %700 = vmatprep.subr.bf16.mxu0 %v659
      %701 = vmatpush1.bf16.msra.mxu0 %v658
      %702 = vmatprep.subr.bf16.mxu0 %v657
      %703 = vmatpush1.bf16.msra.mxu0 %v656
      %704 = vmatprep.subr.bf16.mxu0 0
      %705 = vmatpush2.bf16.msra.mxu0 0
      %706 = vmatprep.subr.bf16.mxu0 0
      %707 = vmatpush2.bf16.msra.mxu0 0
      %708 = vmatprep.subr.bf16.mxu0 0
      %709 = vmatpush2.bf16.msra.mxu0 0
      %710 = vmatprep.subr.bf16.mxu0 0
      %711 = vmatpush2.bf16.msra.mxu0 0
      %712 = vmatprep.subr.bf16.mxu0 0
      %713 = vmatpush2.bf16.msra.mxu0 0
      %714 = vmatprep.subr.bf16.mxu0 0
      %715 = vmatpush2.bf16.msra.mxu0 0
      %716 = vmatprep.subr.bf16.mxu0 0
      %717 = vmatpush2.bf16.msra.mxu0 0
      %718 = vmatprep.subr.bf16.mxu0 0
      %719 = vmatpush2.bf16.msra.mxu0 0
      %720 = vmatprep.mubr.bf16.mxu0 0
      %721 = vmatmul.mubr.bf16.gmra.mxu0 %v606
      %v722 = vpop.f32.mrf.mxu0
      %v723 = vadd.f32 0.0, %v722
      %v724 = vpop.f32.mrf.mxu0
      %v725 = vadd.f32 0.0, %v724
      %v726 = vpop.f32.mrf.mxu0
      %v727 = vpop.f32.mrf.mxu0
      %728 = vdwg.mxu0
      %v729 = vadd.f32 %v541, %v723
      %v730 = vadd.f32 %v543, %v725
      %s731 = sadd.s32 %s192, 1
      %s732 = smul.addr %s731, 4
      %s733 = scalar_lea.vmem %s182, %s732
      %v734 = vld [vmem:[%s733] sm:$0x3]
      %v735 = vld [vmem:[%s733 + $0x4] sm:$0x3]
      %s736 = scalar_lea.vmem %s1, 384
      %v737 = vld [vmem:[%s736] sm:$0xff]
      %v738 = vld [vmem:[%s736 + $0x8] sm:$0xff]
      %v739 = vld [vmem:[%s736 + $0x10] sm:$0xff]
      %v740 = vld [vmem:[%s736 + $0x18] sm:$0xff]
      %v741 = vld [vmem:[%s736 + $0x20] sm:$0xff]
      %v742 = vld [vmem:[%s736 + $0x28] sm:$0xff]
      %v743 = vld [vmem:[%s736 + $0x30] sm:$0xff]
      %v744 = vld [vmem:[%s736 + $0x38] sm:$0xff]
      %v745 = vld [vmem:[%s736 + $0x40] sm:$0xff]
      %v746 = vld [vmem:[%s736 + $0x48] sm:$0xff]
      %v747 = vld [vmem:[%s736 + $0x50] sm:$0xff]
      %v748 = vld [vmem:[%s736 + $0x58] sm:$0xff]
      %v749 = vld [vmem:[%s736 + $0x60] sm:$0xff]
      %v750 = vld [vmem:[%s736 + $0x68] sm:$0xff]
      %v751 = vld [vmem:[%s736 + $0x70] sm:$0xff]
      %v752 = vld [vmem:[%s736 + $0x78] sm:$0xff]
      %v755 = vcombine.low %v734, %v735
      %v757 = vunpack.c.l.s4 1983009808
      %v758 = vunpack.c.0.s8 %v757
      %v759 = vlaneseq
      %v760 = vshrl.u32 %v759, 7
      %v761 = vsub.s32 %v758, %v760
      %v762 = vrot.slane %v755, %v761
      %v780 = vunpack.c.l.b16 %v737
      %v781 = vunpack.c.h.b16 %v737
      %v782 = vunpack.c.l.b16 %v738
      %v783 = vunpack.c.h.b16 %v738
      %v784 = vunpack.c.l.b16 %v739
      %v785 = vunpack.c.h.b16 %v739
      %v786 = vunpack.c.l.b16 %v740
      %v787 = vunpack.c.h.b16 %v740
      %v788 = vunpack.c.l.b16 %v741
      %v789 = vunpack.c.h.b16 %v741
      %v790 = vunpack.c.l.b16 %v742
      %v791 = vunpack.c.h.b16 %v742
      %v792 = vunpack.c.l.b16 %v743
      %v793 = vunpack.c.h.b16 %v743
      %v794 = vunpack.c.l.b16 %v744
      %v795 = vunpack.c.h.b16 %v744
      %v796 = vunpack.c.l.b16 %v745
      %v797 = vunpack.c.h.b16 %v745
      %v798 = vunpack.c.l.b16 %v746
      %v799 = vunpack.c.h.b16 %v746
      %v800 = vunpack.c.l.b16 %v747
      %v801 = vunpack.c.h.b16 %v747
      %v802 = vunpack.c.l.b16 %v748
      %v803 = vunpack.c.h.b16 %v748
      %v804 = vunpack.c.l.b16 %v749
      %v805 = vunpack.c.h.b16 %v749
      %v806 = vunpack.c.l.b16 %v750
      %v807 = vunpack.c.h.b16 %v750
      %v808 = vunpack.c.l.b16 %v751
      %v809 = vunpack.c.h.b16 %v751
      %v810 = vunpack.c.l.b16 %v752
      %v811 = vunpack.c.h.b16 %v752
      %v812 = vpack.c.b16 %v782, %v780
      %v813 = vpack.c.b16 %v783, %v781
      %v814 = vpack.c.b16 %v786, %v784
      %v815 = vpack.c.b16 %v787, %v785
      %v816 = vpack.c.b16 %v790, %v788
      %v817 = vpack.c.b16 %v791, %v789
      %v818 = vpack.c.b16 %v794, %v792
      %v819 = vpack.c.b16 %v795, %v793
      %v820 = vpack.c.b16 %v798, %v796
      %v821 = vpack.c.b16 %v799, %v797
      %v822 = vpack.c.b16 %v802, %v800
      %v823 = vpack.c.b16 %v803, %v801
      %v824 = vpack.c.b16 %v806, %v804
      %v825 = vpack.c.b16 %v807, %v805
      %v826 = vpack.c.b16 %v810, %v808
      %v827 = vpack.c.b16 %v811, %v809
      %844 = vmatprep.subr.bf16.mxu0 %v827
      %845 = vmatpush1.bf16.msra.mxu0 %v826
      %846 = vmatprep.subr.bf16.mxu0 %v825
      %847 = vmatpush1.bf16.msra.mxu0 %v824
      %848 = vmatprep.subr.bf16.mxu0 %v823
      %849 = vmatpush1.bf16.msra.mxu0 %v822
      %850 = vmatprep.subr.bf16.mxu0 %v821
      %851 = vmatpush1.bf16.msra.mxu0 %v820
      %852 = vmatprep.subr.bf16.mxu0 %v819
      %853 = vmatpush1.bf16.msra.mxu0 %v818
      %854 = vmatprep.subr.bf16.mxu0 %v817
      %855 = vmatpush1.bf16.msra.mxu0 %v816
      %856 = vmatprep.subr.bf16.mxu0 %v815
      %857 = vmatpush1.bf16.msra.mxu0 %v814
      %858 = vmatprep.subr.bf16.mxu0 %v813
      %859 = vmatpush1.bf16.msra.mxu0 %v812
      %860 = vmatprep.subr.bf16.mxu0 0
      %861 = vmatpush2.bf16.msra.mxu0 0
      %862 = vmatprep.subr.bf16.mxu0 0
      %863 = vmatpush2.bf16.msra.mxu0 0
      %864 = vmatprep.subr.bf16.mxu0 0
      %865 = vmatpush2.bf16.msra.mxu0 0
      %866 = vmatprep.subr.bf16.mxu0 0
      %867 = vmatpush2.bf16.msra.mxu0 0
      %868 = vmatprep.subr.bf16.mxu0 0
      %869 = vmatpush2.bf16.msra.mxu0 0
      %870 = vmatprep.subr.bf16.mxu0 0
      %871 = vmatpush2.bf16.msra.mxu0 0
      %872 = vmatprep.subr.bf16.mxu0 0
      %873 = vmatpush2.bf16.msra.mxu0 0
      %874 = vmatprep.subr.bf16.mxu0 0
      %875 = vmatpush2.bf16.msra.mxu0 0
      %876 = vmatprep.mubr.bf16.mxu0 0
      %877 = vmatmul.mubr.bf16.gmra.mxu0 %v762
      %v878 = vpop.f32.mrf.mxu0
      %v879 = vadd.f32 0.0, %v878
      %v880 = vpop.f32.mrf.mxu0
      %v881 = vadd.f32 0.0, %v880
      %v882 = vpop.f32.mrf.mxu0
      %v883 = vpop.f32.mrf.mxu0
      %884 = vdwg.mxu0
      %v885 = vadd.f32 %v729, %v879
      %v886 = vadd.f32 %v730, %v881
      %v887 = vld [vmem:[%s733] sm:$0x7]
      %v888 = vld [vmem:[%s733 + $0x4] sm:$0x7]
      %v892 = vunpack.c.l.s4 1983009808
      %v893 = vunpack.c.0.s8 %v892
      %v894 = vlaneseq
      %v895 = vshrl.u32 %v894, 7
      %v896 = vsub.s32 %v893, %v895
      %v897 = vrot.slane %v887, %v896
      %v898 = vcombine.high %v897, %v897
      %v900 = vunpack.c.l.s4 1983009808
      %v901 = vunpack.c.0.s8 %v900
      %v902 = vlaneseq
      %v903 = vshrl.u32 %v902, 7
      %v904 = vsub.s32 %v901, %v903
      %v905 = vrot.slane %v888, %v904
      %v906 = vcombine.high %v905, %v905
      %v908 = vshrl.u32 %v897, 16
      %v910 = vrot.slane %v908, 6
      %v911 = vshll.u32 %v897, 16
      %v913 = vrot.slane %v911, 7
      %v914 = vor.u32 %v910, %v913
      %v915 = vrot.slane %v914, 2
      %v917 = vshll.u32 %v898, 16
      %v919 = vrot.slane %v917, 7
      %v920 = vsel %vm239, %v915, %v919
      %v922 = vshrl.u32 %v905, 16
      %v924 = vrot.slane %v922, 6
      %v925 = vshll.u32 %v905, 16
      %v927 = vrot.slane %v925, 7
      %v928 = vor.u32 %v924, %v927
      %v929 = vrot.slane %v928, 2
      %v931 = vshll.u32 %v906, 16
      %v933 = vrot.slane %v931, 7
      %v934 = vsel %vm239, %v929, %v933
      %s935 = scalar_lea.vmem %s1, 512
      %v936 = vld [vmem:[%s935] sm:$0xff]
      %v937 = vld [vmem:[%s935 + $0x8] sm:$0xff]
      %v938 = vld [vmem:[%s935 + $0x10] sm:$0xff]
      %v939 = vld [vmem:[%s935 + $0x18] sm:$0xff]
      %v940 = vld [vmem:[%s935 + $0x20] sm:$0xff]
      %v941 = vld [vmem:[%s935 + $0x28] sm:$0xff]
      %v942 = vld [vmem:[%s935 + $0x30] sm:$0xff]
      %v943 = vld [vmem:[%s935 + $0x38] sm:$0xff]
      %v944 = vld [vmem:[%s935 + $0x40] sm:$0xff]
      %v945 = vld [vmem:[%s935 + $0x48] sm:$0xff]
      %v946 = vld [vmem:[%s935 + $0x50] sm:$0xff]
      %v947 = vld [vmem:[%s935 + $0x58] sm:$0xff]
      %v948 = vld [vmem:[%s935 + $0x60] sm:$0xff]
      %v949 = vld [vmem:[%s935 + $0x68] sm:$0xff]
      %v950 = vld [vmem:[%s935 + $0x70] sm:$0xff]
      %v951 = vld [vmem:[%s935 + $0x78] sm:$0xff]
      %v952 = vcombine.low %v920, %v934
      %v954 = vunpack.c.l.s4 1983009808
      %v955 = vunpack.c.0.s8 %v954
      %v956 = vlaneseq
      %v957 = vshrl.u32 %v956, 7
      %v958 = vsub.s32 %v955, %v957
      %v959 = vrot.slane %v952, %v958
      %v977 = vunpack.c.l.b16 %v936
      %v978 = vunpack.c.h.b16 %v936
      %v979 = vunpack.c.l.b16 %v937
      %v980 = vunpack.c.h.b16 %v937
      %v981 = vunpack.c.l.b16 %v938
      %v982 = vunpack.c.h.b16 %v938
      %v983 = vunpack.c.l.b16 %v939
      %v984 = vunpack.c.h.b16 %v939
      %v985 = vunpack.c.l.b16 %v940
      %v986 = vunpack.c.h.b16 %v940
      %v987 = vunpack.c.l.b16 %v941
      %v988 = vunpack.c.h.b16 %v941
      %v989 = vunpack.c.l.b16 %v942
      %v990 = vunpack.c.h.b16 %v942
      %v991 = vunpack.c.l.b16 %v943
      %v992 = vunpack.c.h.b16 %v943
      %v993 = vunpack.c.l.b16 %v944
      %v994 = vunpack.c.h.b16 %v944
      %v995 = vunpack.c.l.b16 %v945
      %v996 = vunpack.c.h.b16 %v945
      %v997 = vunpack.c.l.b16 %v946
      %v998 = vunpack.c.h.b16 %v946
      %v999 = vunpack.c.l.b16 %v947
      %v1000 = vunpack.c.h.b16 %v947
      %v1001 = vunpack.c.l.b16 %v948
      %v1002 = vunpack.c.h.b16 %v948
      %v1003 = vunpack.c.l.b16 %v949
      %v1004 = vunpack.c.h.b16 %v949
      %v1005 = vunpack.c.l.b16 %v950
      %v1006 = vunpack.c.h.b16 %v950
      %v1007 = vunpack.c.l.b16 %v951
      %v1008 = vunpack.c.h.b16 %v951
      %v1009 = vpack.c.b16 %v979, %v977
      %v1010 = vpack.c.b16 %v980, %v978
      %v1011 = vpack.c.b16 %v983, %v981
      %v1012 = vpack.c.b16 %v984, %v982
      %v1013 = vpack.c.b16 %v987, %v985
      %v1014 = vpack.c.b16 %v988, %v986
      %v1015 = vpack.c.b16 %v991, %v989
      %v1016 = vpack.c.b16 %v992, %v990
      %v1017 = vpack.c.b16 %v995, %v993
      %v1018 = vpack.c.b16 %v996, %v994
      %v1019 = vpack.c.b16 %v999, %v997
      %v1020 = vpack.c.b16 %v1000, %v998
      %v1021 = vpack.c.b16 %v1003, %v1001
      %v1022 = vpack.c.b16 %v1004, %v1002
      %v1023 = vpack.c.b16 %v1007, %v1005
      %v1024 = vpack.c.b16 %v1008, %v1006
      %1041 = vmatprep.subr.bf16.mxu0 %v1024
      %1042 = vmatpush1.bf16.msra.mxu0 %v1023
      %1043 = vmatprep.subr.bf16.mxu0 %v1022
      %1044 = vmatpush1.bf16.msra.mxu0 %v1021
      %1045 = vmatprep.subr.bf16.mxu0 %v1020
      %1046 = vmatpush1.bf16.msra.mxu0 %v1019
      %1047 = vmatprep.subr.bf16.mxu0 %v1018
      %1048 = vmatpush1.bf16.msra.mxu0 %v1017
      %1049 = vmatprep.subr.bf16.mxu0 %v1016
      %1050 = vmatpush1.bf16.msra.mxu0 %v1015
      %1051 = vmatprep.subr.bf16.mxu0 %v1014
      %1052 = vmatpush1.bf16.msra.mxu0 %v1013
      %1053 = vmatprep.subr.bf16.mxu0 %v1012
      %1054 = vmatpush1.bf16.msra.mxu0 %v1011
      %1055 = vmatprep.subr.bf16.mxu0 %v1010
      %1056 = vmatpush1.bf16.msra.mxu0 %v1009
      %1057 = vmatprep.subr.bf16.mxu0 0
      %1058 = vmatpush2.bf16.msra.mxu0 0
      %1059 = vmatprep.subr.bf16.mxu0 0
      %1060 = vmatpush2.bf16.msra.mxu0 0
      %1061 = vmatprep.subr.bf16.mxu0 0
      %1062 = vmatpush2.bf16.msra.mxu0 0
      %1063 = vmatprep.subr.bf16.mxu0 0
      %1064 = vmatpush2.bf16.msra.mxu0 0
      %1065 = vmatprep.subr.bf16.mxu0 0
      %1066 = vmatpush2.bf16.msra.mxu0 0
      %1067 = vmatprep.subr.bf16.mxu0 0
      %1068 = vmatpush2.bf16.msra.mxu0 0
      %1069 = vmatprep.subr.bf16.mxu0 0
      %1070 = vmatpush2.bf16.msra.mxu0 0
      %1071 = vmatprep.subr.bf16.mxu0 0
      %1072 = vmatpush2.bf16.msra.mxu0 0
      %1073 = vmatprep.mubr.bf16.mxu0 0
      %1074 = vmatmul.mubr.bf16.gmra.mxu0 %v959
      %v1075 = vpop.f32.mrf.mxu0
      %v1076 = vadd.f32 0.0, %v1075
      %v1077 = vpop.f32.mrf.mxu0
      %v1078 = vadd.f32 0.0, %v1077
      %v1079 = vpop.f32.mrf.mxu0
      %v1080 = vpop.f32.mrf.mxu0
      %1081 = vdwg.mxu0
      %v1082 = vadd.f32 %v885, %v1076
      %v1083 = vadd.f32 %v886, %v1078
      %v1084 = vld [vmem:[%s733] sm:$0x6]
      %v1085 = vld [vmem:[%s733 + $0x4] sm:$0x6]
      %v1089 = vunpack.c.l.s4 1983009808
      %v1090 = vunpack.c.0.s8 %v1089
      %v1091 = vlaneseq
      %v1092 = vshrl.u32 %v1091, 7
      %v1093 = vsub.s32 %v1090, %v1092
      %v1094 = vrot.slane %v1084, %v1093
      %v1095 = vcombine.high %v1094, %v1094
      %v1097 = vunpack.c.l.s4 1983009808
      %v1098 = vunpack.c.0.s8 %v1097
      %v1099 = vlaneseq
      %v1100 = vshrl.u32 %v1099, 7
      %v1101 = vsub.s32 %v1098, %v1100
      %v1102 = vrot.slane %v1085, %v1101
      %v1103 = vcombine.high %v1102, %v1102
      %v1104 = vrot.slane %v1094, 7
      %v1105 = vrot.slane %v1104, 2
      %v1106 = vrot.slane %v1095, 7
      %v1107 = vsel %vm573, %v1105, %v1106
      %v1108 = vrot.slane %v1102, 7
      %v1109 = vrot.slane %v1108, 2
      %v1110 = vrot.slane %v1103, 7
      %v1111 = vsel %vm573, %v1109, %v1110
      %s1112 = scalar_lea.vmem %s1, 640
      %v1113 = vld [vmem:[%s1112] sm:$0xff]
      %v1114 = vld [vmem:[%s1112 + $0x8] sm:$0xff]
      %v1115 = vld [vmem:[%s1112 + $0x10] sm:$0xff]
      %v1116 = vld [vmem:[%s1112 + $0x18] sm:$0xff]
      %v1117 = vld [vmem:[%s1112 + $0x20] sm:$0xff]
      %v1118 = vld [vmem:[%s1112 + $0x28] sm:$0xff]
      %v1119 = vld [vmem:[%s1112 + $0x30] sm:$0xff]
      %v1120 = vld [vmem:[%s1112 + $0x38] sm:$0xff]
      %v1121 = vld [vmem:[%s1112 + $0x40] sm:$0xff]
      %v1122 = vld [vmem:[%s1112 + $0x48] sm:$0xff]
      %v1123 = vld [vmem:[%s1112 + $0x50] sm:$0xff]
      %v1124 = vld [vmem:[%s1112 + $0x58] sm:$0xff]
      %v1125 = vld [vmem:[%s1112 + $0x60] sm:$0xff]
      %v1126 = vld [vmem:[%s1112 + $0x68] sm:$0xff]
      %v1127 = vld [vmem:[%s1112 + $0x70] sm:$0xff]
      %v1128 = vld [vmem:[%s1112 + $0x78] sm:$0xff]
      %v1129 = vcombine.low %v1107, %v1111
      %v1131 = vunpack.c.l.s4 1983009808
      %v1132 = vunpack.c.0.s8 %v1131
      %v1133 = vlaneseq
      %v1134 = vshrl.u32 %v1133, 7
      %v1135 = vsub.s32 %v1132, %v1134
      %v1136 = vrot.slane %v1129, %v1135
      %v1154 = vunpack.c.l.b16 %v1113
      %v1155 = vunpack.c.h.b16 %v1113
      %v1156 = vunpack.c.l.b16 %v1114
      %v1157 = vunpack.c.h.b16 %v1114
      %v1158 = vunpack.c.l.b16 %v1115
      %v1159 = vunpack.c.h.b16 %v1115
      %v1160 = vunpack.c.l.b16 %v1116
      %v1161 = vunpack.c.h.b16 %v1116
      %v1162 = vunpack.c.l.b16 %v1117
      %v1163 = vunpack.c.h.b16 %v1117
      %v1164 = vunpack.c.l.b16 %v1118
      %v1165 = vunpack.c.h.b16 %v1118
      %v1166 = vunpack.c.l.b16 %v1119
      %v1167 = vunpack.c.h.b16 %v1119
      %v1168 = vunpack.c.l.b16 %v1120
      %v1169 = vunpack.c.h.b16 %v1120
      %v1170 = vunpack.c.l.b16 %v1121
      %v1171 = vunpack.c.h.b16 %v1121
      %v1172 = vunpack.c.l.b16 %v1122
      %v1173 = vunpack.c.h.b16 %v1122
      %v1174 = vunpack.c.l.b16 %v1123
      %v1175 = vunpack.c.h.b16 %v1123
      %v1176 = vunpack.c.l.b16 %v1124
      %v1177 = vunpack.c.h.b16 %v1124
      %v1178 = vunpack.c.l.b16 %v1125
      %v1179 = vunpack.c.h.b16 %v1125
      %v1180 = vunpack.c.l.b16 %v1126
      %v1181 = vunpack.c.h.b16 %v1126
      %v1182 = vunpack.c.l.b16 %v1127
      %v1183 = vunpack.c.h.b16 %v1127
      %v1184 = vunpack.c.l.b16 %v1128
      %v1185 = vunpack.c.h.b16 %v1128
      %v1186 = vpack.c.b16 %v1156, %v1154
      %v1187 = vpack.c.b16 %v1157, %v1155
      %v1188 = vpack.c.b16 %v1160, %v1158
      %v1189 = vpack.c.b16 %v1161, %v1159
      %v1190 = vpack.c.b16 %v1164, %v1162
      %v1191 = vpack.c.b16 %v1165, %v1163
      %v1192 = vpack.c.b16 %v1168, %v1166
      %v1193 = vpack.c.b16 %v1169, %v1167
      %v1194 = vpack.c.b16 %v1172, %v1170
      %v1195 = vpack.c.b16 %v1173, %v1171
      %v1196 = vpack.c.b16 %v1176, %v1174
      %v1197 = vpack.c.b16 %v1177, %v1175
      %v1198 = vpack.c.b16 %v1180, %v1178
      %v1199 = vpack.c.b16 %v1181, %v1179
      %v1200 = vpack.c.b16 %v1184, %v1182
      %v1201 = vpack.c.b16 %v1185, %v1183
      %1218 = vmatprep.subr.bf16.mxu0 %v1201
      %1219 = vmatpush1.bf16.msra.mxu0 %v1200
      %1220 = vmatprep.subr.bf16.mxu0 %v1199
      %1221 = vmatpush1.bf16.msra.mxu0 %v1198
      %1222 = vmatprep.subr.bf16.mxu0 %v1197
      %1223 = vmatpush1.bf16.msra.mxu0 %v1196
      %1224 = vmatprep.subr.bf16.mxu0 %v1195
      %1225 = vmatpush1.bf16.msra.mxu0 %v1194
      %1226 = vmatprep.subr.bf16.mxu0 %v1193
      %1227 = vmatpush1.bf16.msra.mxu0 %v1192
      %1228 = vmatprep.subr.bf16.mxu0 %v1191
      %1229 = vmatpush1.bf16.msra.mxu0 %v1190
      %1230 = vmatprep.subr.bf16.mxu0 %v1189
      %1231 = vmatpush1.bf16.msra.mxu0 %v1188
      %1232 = vmatprep.subr.bf16.mxu0 %v1187
      %1233 = vmatpush1.bf16.msra.mxu0 %v1186
      %1234 = vmatprep.subr.bf16.mxu0 0
      %1235 = vmatpush2.bf16.msra.mxu0 0
      %1236 = vmatprep.subr.bf16.mxu0 0
      %1237 = vmatpush2.bf16.msra.mxu0 0
      %1238 = vmatprep.subr.bf16.mxu0 0
      %1239 = vmatpush2.bf16.msra.mxu0 0
      %1240 = vmatprep.subr.bf16.mxu0 0
      %1241 = vmatpush2.bf16.msra.mxu0 0
      %1242 = vmatprep.subr.bf16.mxu0 0
      %1243 = vmatpush2.bf16.msra.mxu0 0
      %1244 = vmatprep.subr.bf16.mxu0 0
      %1245 = vmatpush2.bf16.msra.mxu0 0
      %1246 = vmatprep.subr.bf16.mxu0 0
      %1247 = vmatpush2.bf16.msra.mxu0 0
      %1248 = vmatprep.subr.bf16.mxu0 0
      %1249 = vmatpush2.bf16.msra.mxu0 0
      %1250 = vmatprep.mubr.bf16.mxu0 0
      %1251 = vmatmul.mubr.bf16.gmra.mxu0 %v1136
      %v1252 = vpop.f32.mrf.mxu0
      %v1253 = vadd.f32 0.0, %v1252
      %v1254 = vpop.f32.mrf.mxu0
      %v1255 = vadd.f32 0.0, %v1254
      %v1256 = vpop.f32.mrf.mxu0
      %v1257 = vpop.f32.mrf.mxu0
      %1258 = vdwg.mxu0
      %v1259 = vadd.f32 %v1082, %v1253
      %v1260 = vadd.f32 %v1083, %v1255
      %s1261 = sadd.s32 %s192, 2
      %s1262 = smul.addr %s1261, 4
      %s1263 = scalar_lea.vmem %s182, %s1262
      %v1264 = vld [vmem:[%s1263] sm:$0x3]
      %v1265 = vld [vmem:[%s1263 + $0x4] sm:$0x3]
      %s1266 = scalar_lea.vmem %s1, 768
      %v1267 = vld [vmem:[%s1266] sm:$0xff]
      %v1268 = vld [vmem:[%s1266 + $0x8] sm:$0xff]
      %v1269 = vld [vmem:[%s1266 + $0x10] sm:$0xff]
      %v1270 = vld [vmem:[%s1266 + $0x18] sm:$0xff]
      %v1271 = vld [vmem:[%s1266 + $0x20] sm:$0xff]
      %v1272 = vld [vmem:[%s1266 + $0x28] sm:$0xff]
      %v1273 = vld [vmem:[%s1266 + $0x30] sm:$0xff]
      %v1274 = vld [vmem:[%s1266 + $0x38] sm:$0xff]
      %v1275 = vld [vmem:[%s1266 + $0x40] sm:$0xff]
      %v1276 = vld [vmem:[%s1266 + $0x48] sm:$0xff]
      %v1277 = vld [vmem:[%s1266 + $0x50] sm:$0xff]
      %v1278 = vld [vmem:[%s1266 + $0x58] sm:$0xff]
      %v1279 = vld [vmem:[%s1266 + $0x60] sm:$0xff]
      %v1280 = vld [vmem:[%s1266 + $0x68] sm:$0xff]
      %v1281 = vld [vmem:[%s1266 + $0x70] sm:$0xff]
      %v1282 = vld [vmem:[%s1266 + $0x78] sm:$0xff]
      %v1285 = vcombine.low %v1264, %v1265
      %v1287 = vunpack.c.l.s4 1983009808
      %v1288 = vunpack.c.0.s8 %v1287
      %v1289 = vlaneseq
      %v1290 = vshrl.u32 %v1289, 7
      %v1291 = vsub.s32 %v1288, %v1290
      %v1292 = vrot.slane %v1285, %v1291
      %v1310 = vunpack.c.l.b16 %v1267
      %v1311 = vunpack.c.h.b16 %v1267
      %v1312 = vunpack.c.l.b16 %v1268
      %v1313 = vunpack.c.h.b16 %v1268
      %v1314 = vunpack.c.l.b16 %v1269
      %v1315 = vunpack.c.h.b16 %v1269
      %v1316 = vunpack.c.l.b16 %v1270
      %v1317 = vunpack.c.h.b16 %v1270
      %v1318 = vunpack.c.l.b16 %v1271
      %v1319 = vunpack.c.h.b16 %v1271
      %v1320 = vunpack.c.l.b16 %v1272
      %v1321 = vunpack.c.h.b16 %v1272
      %v1322 = vunpack.c.l.b16 %v1273
      %v1323 = vunpack.c.h.b16 %v1273
      %v1324 = vunpack.c.l.b16 %v1274
      %v1325 = vunpack.c.h.b16 %v1274
      %v1326 = vunpack.c.l.b16 %v1275
      %v1327 = vunpack.c.h.b16 %v1275
      %v1328 = vunpack.c.l.b16 %v1276
      %v1329 = vunpack.c.h.b16 %v1276
      %v1330 = vunpack.c.l.b16 %v1277
      %v1331 = vunpack.c.h.b16 %v1277
      %v1332 = vunpack.c.l.b16 %v1278
      %v1333 = vunpack.c.h.b16 %v1278
      %v1334 = vunpack.c.l.b16 %v1279
      %v1335 = vunpack.c.h.b16 %v1279
      %v1336 = vunpack.c.l.b16 %v1280
      %v1337 = vunpack.c.h.b16 %v1280
      %v1338 = vunpack.c.l.b16 %v1281
      %v1339 = vunpack.c.h.b16 %v1281
      %v1340 = vunpack.c.l.b16 %v1282
      %v1341 = vunpack.c.h.b16 %v1282
      %v1342 = vpack.c.b16 %v1312, %v1310
      %v1343 = vpack.c.b16 %v1313, %v1311
      %v1344 = vpack.c.b16 %v1316, %v1314
      %v1345 = vpack.c.b16 %v1317, %v1315
      %v1346 = vpack.c.b16 %v1320, %v1318
      %v1347 = vpack.c.b16 %v1321, %v1319
      %v1348 = vpack.c.b16 %v1324, %v1322
      %v1349 = vpack.c.b16 %v1325, %v1323
      %v1350 = vpack.c.b16 %v1328, %v1326
      %v1351 = vpack.c.b16 %v1329, %v1327
      %v1352 = vpack.c.b16 %v1332, %v1330
      %v1353 = vpack.c.b16 %v1333, %v1331
      %v1354 = vpack.c.b16 %v1336, %v1334
      %v1355 = vpack.c.b16 %v1337, %v1335
      %v1356 = vpack.c.b16 %v1340, %v1338
      %v1357 = vpack.c.b16 %v1341, %v1339
      %1374 = vmatprep.subr.bf16.mxu0 %v1357
      %1375 = vmatpush1.bf16.msra.mxu0 %v1356
      %1376 = vmatprep.subr.bf16.mxu0 %v1355
      %1377 = vmatpush1.bf16.msra.mxu0 %v1354
      %1378 = vmatprep.subr.bf16.mxu0 %v1353
      %1379 = vmatpush1.bf16.msra.mxu0 %v1352
      %1380 = vmatprep.subr.bf16.mxu0 %v1351
      %1381 = vmatpush1.bf16.msra.mxu0 %v1350
      %1382 = vmatprep.subr.bf16.mxu0 %v1349
      %1383 = vmatpush1.bf16.msra.mxu0 %v1348
      %1384 = vmatprep.subr.bf16.mxu0 %v1347
      %1385 = vmatpush1.bf16.msra.mxu0 %v1346
      %1386 = vmatprep.subr.bf16.mxu0 %v1345
      %1387 = vmatpush1.bf16.msra.mxu0 %v1344
      %1388 = vmatprep.subr.bf16.mxu0 %v1343
      %1389 = vmatpush1.bf16.msra.mxu0 %v1342
      %1390 = vmatprep.subr.bf16.mxu0 0
      %1391 = vmatpush2.bf16.msra.mxu0 0
      %1392 = vmatprep.subr.bf16.mxu0 0
      %1393 = vmatpush2.bf16.msra.mxu0 0
      %1394 = vmatprep.subr.bf16.mxu0 0
      %1395 = vmatpush2.bf16.msra.mxu0 0
      %1396 = vmatprep.subr.bf16.mxu0 0
      %1397 = vmatpush2.bf16.msra.mxu0 0
      %1398 = vmatprep.subr.bf16.mxu0 0
      %1399 = vmatpush2.bf16.msra.mxu0 0
      %1400 = vmatprep.subr.bf16.mxu0 0
      %1401 = vmatpush2.bf16.msra.mxu0 0
      %1402 = vmatprep.subr.bf16.mxu0 0
      %1403 = vmatpush2.bf16.msra.mxu0 0
      %1404 = vmatprep.subr.bf16.mxu0 0
      %1405 = vmatpush2.bf16.msra.mxu0 0
      %1406 = vmatprep.mubr.bf16.mxu0 0
      %1407 = vmatmul.mubr.bf16.gmra.mxu0 %v1292
      %v1408 = vpop.f32.mrf.mxu0
      %v1409 = vadd.f32 0.0, %v1408
      %v1410 = vpop.f32.mrf.mxu0
      %v1411 = vadd.f32 0.0, %v1410
      %v1412 = vpop.f32.mrf.mxu0
      %v1413 = vpop.f32.mrf.mxu0
      %1414 = vdwg.mxu0
      %v1415 = vadd.f32 %v1259, %v1409
      %v1416 = vadd.f32 %v1260, %v1411
      %v1417 = vld [vmem:[%s1263] sm:$0x7]
      %v1418 = vld [vmem:[%s1263 + $0x4] sm:$0x7]
      %v1422 = vunpack.c.l.s4 1983009808
      %v1423 = vunpack.c.0.s8 %v1422
      %v1424 = vlaneseq
      %v1425 = vshrl.u32 %v1424, 7
      %v1426 = vsub.s32 %v1423, %v1425
      %v1427 = vrot.slane %v1417, %v1426
      %v1428 = vcombine.high %v1427, %v1427
      %v1430 = vunpack.c.l.s4 1983009808
      %v1431 = vunpack.c.0.s8 %v1430
      %v1432 = vlaneseq
      %v1433 = vshrl.u32 %v1432, 7
      %v1434 = vsub.s32 %v1431, %v1433
      %v1435 = vrot.slane %v1418, %v1434
      %v1436 = vcombine.high %v1435, %v1435
      %v1438 = vshrl.u32 %v1427, 16
      %v1440 = vrot.slane %v1438, 6
      %v1441 = vshll.u32 %v1427, 16
      %v1443 = vrot.slane %v1441, 7
      %v1444 = vor.u32 %v1440, %v1443
      %v1445 = vrot.slane %v1444, 2
      %v1447 = vshll.u32 %v1428, 16
      %v1449 = vrot.slane %v1447, 7
      %v1450 = vsel %vm239, %v1445, %v1449
      %v1452 = vshrl.u32 %v1435, 16
      %v1454 = vrot.slane %v1452, 6
      %v1455 = vshll.u32 %v1435, 16
      %v1457 = vrot.slane %v1455, 7
      %v1458 = vor.u32 %v1454, %v1457
      %v1459 = vrot.slane %v1458, 2
      %v1461 = vshll.u32 %v1436, 16
      %v1463 = vrot.slane %v1461, 7
      %v1464 = vsel %vm239, %v1459, %v1463
      %s1465 = scalar_lea.vmem %s1, 896
      %v1466 = vld [vmem:[%s1465] sm:$0xff]
      %v1467 = vld [vmem:[%s1465 + $0x8] sm:$0xff]
      %v1468 = vld [vmem:[%s1465 + $0x10] sm:$0xff]
      %v1469 = vld [vmem:[%s1465 + $0x18] sm:$0xff]
      %v1470 = vld [vmem:[%s1465 + $0x20] sm:$0xff]
      %v1471 = vld [vmem:[%s1465 + $0x28] sm:$0xff]
      %v1472 = vld [vmem:[%s1465 + $0x30] sm:$0xff]
      %v1473 = vld [vmem:[%s1465 + $0x38] sm:$0xff]
      %v1474 = vld [vmem:[%s1465 + $0x40] sm:$0xff]
      %v1475 = vld [vmem:[%s1465 + $0x48] sm:$0xff]
      %v1476 = vld [vmem:[%s1465 + $0x50] sm:$0xff]
      %v1477 = vld [vmem:[%s1465 + $0x58] sm:$0xff]
      %v1478 = vld [vmem:[%s1465 + $0x60] sm:$0xff]
      %v1479 = vld [vmem:[%s1465 + $0x68] sm:$0xff]
      %v1480 = vld [vmem:[%s1465 + $0x70] sm:$0xff]
      %v1481 = vld [vmem:[%s1465 + $0x78] sm:$0xff]
      %v1482 = vcombine.low %v1450, %v1464
      %v1484 = vunpack.c.l.s4 1983009808
      %v1485 = vunpack.c.0.s8 %v1484
      %v1486 = vlaneseq
      %v1487 = vshrl.u32 %v1486, 7
      %v1488 = vsub.s32 %v1485, %v1487
      %v1489 = vrot.slane %v1482, %v1488
      %v1507 = vunpack.c.l.b16 %v1466
      %v1508 = vunpack.c.h.b16 %v1466
      %v1509 = vunpack.c.l.b16 %v1467
      %v1510 = vunpack.c.h.b16 %v1467
      %v1511 = vunpack.c.l.b16 %v1468
      %v1512 = vunpack.c.h.b16 %v1468
      %v1513 = vunpack.c.l.b16 %v1469
      %v1514 = vunpack.c.h.b16 %v1469
      %v1515 = vunpack.c.l.b16 %v1470
      %v1516 = vunpack.c.h.b16 %v1470
      %v1517 = vunpack.c.l.b16 %v1471
      %v1518 = vunpack.c.h.b16 %v1471
      %v1519 = vunpack.c.l.b16 %v1472
      %v1520 = vunpack.c.h.b16 %v1472
      %v1521 = vunpack.c.l.b16 %v1473
      %v1522 = vunpack.c.h.b16 %v1473
      %v1523 = vunpack.c.l.b16 %v1474
      %v1524 = vunpack.c.h.b16 %v1474
      %v1525 = vunpack.c.l.b16 %v1475
      %v1526 = vunpack.c.h.b16 %v1475
      %v1527 = vunpack.c.l.b16 %v1476
      %v1528 = vunpack.c.h.b16 %v1476
      %v1529 = vunpack.c.l.b16 %v1477
      %v1530 = vunpack.c.h.b16 %v1477
      %v1531 = vunpack.c.l.b16 %v1478
      %v1532 = vunpack.c.h.b16 %v1478
      %v1533 = vunpack.c.l.b16 %v1479
      %v1534 = vunpack.c.h.b16 %v1479
      %v1535 = vunpack.c.l.b16 %v1480
      %v1536 = vunpack.c.h.b16 %v1480
      %v1537 = vunpack.c.l.b16 %v1481
      %v1538 = vunpack.c.h.b16 %v1481
      %v1539 = vpack.c.b16 %v1509, %v1507
      %v1540 = vpack.c.b16 %v1510, %v1508
      %v1541 = vpack.c.b16 %v1513, %v1511
      %v1542 = vpack.c.b16 %v1514, %v1512
      %v1543 = vpack.c.b16 %v1517, %v1515
      %v1544 = vpack.c.b16 %v1518, %v1516
      %v1545 = vpack.c.b16 %v1521, %v1519
      %v1546 = vpack.c.b16 %v1522, %v1520
      %v1547 = vpack.c.b16 %v1525, %v1523
      %v1548 = vpack.c.b16 %v1526, %v1524
      %v1549 = vpack.c.b16 %v1529, %v1527
      %v1550 = vpack.c.b16 %v1530, %v1528
      %v1551 = vpack.c.b16 %v1533, %v1531
      %v1552 = vpack.c.b16 %v1534, %v1532
      %v1553 = vpack.c.b16 %v1537, %v1535
      %v1554 = vpack.c.b16 %v1538, %v1536
      %1571 = vmatprep.subr.bf16.mxu0 %v1554
      %1572 = vmatpush1.bf16.msra.mxu0 %v1553
      %1573 = vmatprep.subr.bf16.mxu0 %v1552
      %1574 = vmatpush1.bf16.msra.mxu0 %v1551
      %1575 = vmatprep.subr.bf16.mxu0 %v1550
      %1576 = vmatpush1.bf16.msra.mxu0 %v1549
      %1577 = vmatprep.subr.bf16.mxu0 %v1548
      %1578 = vmatpush1.bf16.msra.mxu0 %v1547
      %1579 = vmatprep.subr.bf16.mxu0 %v1546
      %1580 = vmatpush1.bf16.msra.mxu0 %v1545
      %1581 = vmatprep.subr.bf16.mxu0 %v1544
      %1582 = vmatpush1.bf16.msra.mxu0 %v1543
      %1583 = vmatprep.subr.bf16.mxu0 %v1542
      %1584 = vmatpush1.bf16.msra.mxu0 %v1541
      %1585 = vmatprep.subr.bf16.mxu0 %v1540
      %1586 = vmatpush1.bf16.msra.mxu0 %v1539
      %1587 = vmatprep.subr.bf16.mxu0 0
      %1588 = vmatpush2.bf16.msra.mxu0 0
      %1589 = vmatprep.subr.bf16.mxu0 0
      %1590 = vmatpush2.bf16.msra.mxu0 0
      %1591 = vmatprep.subr.bf16.mxu0 0
      %1592 = vmatpush2.bf16.msra.mxu0 0
      %1593 = vmatprep.subr.bf16.mxu0 0
      %1594 = vmatpush2.bf16.msra.mxu0 0
      %1595 = vmatprep.subr.bf16.mxu0 0
      %1596 = vmatpush2.bf16.msra.mxu0 0
      %1597 = vmatprep.subr.bf16.mxu0 0
      %1598 = vmatpush2.bf16.msra.mxu0 0
      %1599 = vmatprep.subr.bf16.mxu0 0
      %1600 = vmatpush2.bf16.msra.mxu0 0
      %1601 = vmatprep.subr.bf16.mxu0 0
      %1602 = vmatpush2.bf16.msra.mxu0 0
      %1603 = vmatprep.mubr.bf16.mxu0 0
      %1604 = vmatmul.mubr.bf16.gmra.mxu0 %v1489
      %v1605 = vpop.f32.mrf.mxu0
      %v1606 = vadd.f32 0.0, %v1605
      %v1607 = vpop.f32.mrf.mxu0
      %v1608 = vadd.f32 0.0, %v1607
      %v1609 = vpop.f32.mrf.mxu0
      %v1610 = vpop.f32.mrf.mxu0
      %1611 = vdwg.mxu0
      %v1612 = vadd.f32 %v1415, %v1606
      %v1613 = vadd.f32 %v1416, %v1608
      %v1614 = vld [vmem:[%s1263] sm:$0x6]
      %v1615 = vld [vmem:[%s1263 + $0x4] sm:$0x6]
      %v1619 = vunpack.c.l.s4 1983009808
      %v1620 = vunpack.c.0.s8 %v1619
      %v1621 = vlaneseq
      %v1622 = vshrl.u32 %v1621, 7
      %v1623 = vsub.s32 %v1620, %v1622
      %v1624 = vrot.slane %v1614, %v1623
      %v1625 = vcombine.high %v1624, %v1624
      %v1627 = vunpack.c.l.s4 1983009808
      %v1628 = vunpack.c.0.s8 %v1627
      %v1629 = vlaneseq
      %v1630 = vshrl.u32 %v1629, 7
      %v1631 = vsub.s32 %v1628, %v1630
      %v1632 = vrot.slane %v1615, %v1631
      %v1633 = vcombine.high %v1632, %v1632
      %v1634 = vrot.slane %v1624, 7
      %v1635 = vrot.slane %v1634, 2
      %v1636 = vrot.slane %v1625, 7
      %v1637 = vsel %vm573, %v1635, %v1636
      %v1638 = vrot.slane %v1632, 7
      %v1639 = vrot.slane %v1638, 2
      %v1640 = vrot.slane %v1633, 7
      %v1641 = vsel %vm573, %v1639, %v1640
      %s1642 = scalar_lea.vmem %s1, 1024
      %v1643 = vld [vmem:[%s1642] sm:$0xff]
      %v1644 = vld [vmem:[%s1642 + $0x8] sm:$0xff]
      %v1645 = vld [vmem:[%s1642 + $0x10] sm:$0xff]
      %v1646 = vld [vmem:[%s1642 + $0x18] sm:$0xff]
      %v1647 = vld [vmem:[%s1642 + $0x20] sm:$0xff]
      %v1648 = vld [vmem:[%s1642 + $0x28] sm:$0xff]
      %v1649 = vld [vmem:[%s1642 + $0x30] sm:$0xff]
      %v1650 = vld [vmem:[%s1642 + $0x38] sm:$0xff]
      %v1651 = vld [vmem:[%s1642 + $0x40] sm:$0xff]
      %v1652 = vld [vmem:[%s1642 + $0x48] sm:$0xff]
      %v1653 = vld [vmem:[%s1642 + $0x50] sm:$0xff]
      %v1654 = vld [vmem:[%s1642 + $0x58] sm:$0xff]
      %v1655 = vld [vmem:[%s1642 + $0x60] sm:$0xff]
      %v1656 = vld [vmem:[%s1642 + $0x68] sm:$0xff]
      %v1657 = vld [vmem:[%s1642 + $0x70] sm:$0xff]
      %v1658 = vld [vmem:[%s1642 + $0x78] sm:$0xff]
      %v1659 = vcombine.low %v1637, %v1641
      %v1661 = vunpack.c.l.s4 1983009808
      %v1662 = vunpack.c.0.s8 %v1661
      %v1663 = vlaneseq
      %v1664 = vshrl.u32 %v1663, 7
      %v1665 = vsub.s32 %v1662, %v1664
      %v1666 = vrot.slane %v1659, %v1665
      %v1684 = vunpack.c.l.b16 %v1643
      %v1685 = vunpack.c.h.b16 %v1643
      %v1686 = vunpack.c.l.b16 %v1644
      %v1687 = vunpack.c.h.b16 %v1644
      %v1688 = vunpack.c.l.b16 %v1645
      %v1689 = vunpack.c.h.b16 %v1645
      %v1690 = vunpack.c.l.b16 %v1646
      %v1691 = vunpack.c.h.b16 %v1646
      %v1692 = vunpack.c.l.b16 %v1647
      %v1693 = vunpack.c.h.b16 %v1647
      %v1694 = vunpack.c.l.b16 %v1648
      %v1695 = vunpack.c.h.b16 %v1648
      %v1696 = vunpack.c.l.b16 %v1649
      %v1697 = vunpack.c.h.b16 %v1649
      %v1698 = vunpack.c.l.b16 %v1650
      %v1699 = vunpack.c.h.b16 %v1650
      %v1700 = vunpack.c.l.b16 %v1651
      %v1701 = vunpack.c.h.b16 %v1651
      %v1702 = vunpack.c.l.b16 %v1652
      %v1703 = vunpack.c.h.b16 %v1652
      %v1704 = vunpack.c.l.b16 %v1653
      %v1705 = vunpack.c.h.b16 %v1653
      %v1706 = vunpack.c.l.b16 %v1654
      %v1707 = vunpack.c.h.b16 %v1654
      %v1708 = vunpack.c.l.b16 %v1655
      %v1709 = vunpack.c.h.b16 %v1655
      %v1710 = vunpack.c.l.b16 %v1656
      %v1711 = vunpack.c.h.b16 %v1656
      %v1712 = vunpack.c.l.b16 %v1657
      %v1713 = vunpack.c.h.b16 %v1657
      %v1714 = vunpack.c.l.b16 %v1658
      %v1715 = vunpack.c.h.b16 %v1658
      %v1716 = vpack.c.b16 %v1686, %v1684
      %v1717 = vpack.c.b16 %v1687, %v1685
      %v1718 = vpack.c.b16 %v1690, %v1688
      %v1719 = vpack.c.b16 %v1691, %v1689
      %v1720 = vpack.c.b16 %v1694, %v1692
      %v1721 = vpack.c.b16 %v1695, %v1693
      %v1722 = vpack.c.b16 %v1698, %v1696
      %v1723 = vpack.c.b16 %v1699, %v1697
      %v1724 = vpack.c.b16 %v1702, %v1700
      %v1725 = vpack.c.b16 %v1703, %v1701
      %v1726 = vpack.c.b16 %v1706, %v1704
      %v1727 = vpack.c.b16 %v1707, %v1705
      %v1728 = vpack.c.b16 %v1710, %v1708
      %v1729 = vpack.c.b16 %v1711, %v1709
      %v1730 = vpack.c.b16 %v1714, %v1712
      %v1731 = vpack.c.b16 %v1715, %v1713
      %1748 = vmatprep.subr.bf16.mxu0 %v1731
      %1749 = vmatpush1.bf16.msra.mxu0 %v1730
      %1750 = vmatprep.subr.bf16.mxu0 %v1729
      %1751 = vmatpush1.bf16.msra.mxu0 %v1728
      %1752 = vmatprep.subr.bf16.mxu0 %v1727
      %1753 = vmatpush1.bf16.msra.mxu0 %v1726
      %1754 = vmatprep.subr.bf16.mxu0 %v1725
      %1755 = vmatpush1.bf16.msra.mxu0 %v1724
      %1756 = vmatprep.subr.bf16.mxu0 %v1723
      %1757 = vmatpush1.bf16.msra.mxu0 %v1722
      %1758 = vmatprep.subr.bf16.mxu0 %v1721
      %1759 = vmatpush1.bf16.msra.mxu0 %v1720
      %1760 = vmatprep.subr.bf16.mxu0 %v1719
      %1761 = vmatpush1.bf16.msra.mxu0 %v1718
      %1762 = vmatprep.subr.bf16.mxu0 %v1717
      %1763 = vmatpush1.bf16.msra.mxu0 %v1716
      %1764 = vmatprep.subr.bf16.mxu0 0
      %1765 = vmatpush2.bf16.msra.mxu0 0
      %1766 = vmatprep.subr.bf16.mxu0 0
      %1767 = vmatpush2.bf16.msra.mxu0 0
      %1768 = vmatprep.subr.bf16.mxu0 0
      %1769 = vmatpush2.bf16.msra.mxu0 0
      %1770 = vmatprep.subr.bf16.mxu0 0
      %1771 = vmatpush2.bf16.msra.mxu0 0
      %1772 = vmatprep.subr.bf16.mxu0 0
      %1773 = vmatpush2.bf16.msra.mxu0 0
      %1774 = vmatprep.subr.bf16.mxu0 0
      %1775 = vmatpush2.bf16.msra.mxu0 0
      %1776 = vmatprep.subr.bf16.mxu0 0
      %1777 = vmatpush2.bf16.msra.mxu0 0
      %1778 = vmatprep.subr.bf16.mxu0 0
      %1779 = vmatpush2.bf16.msra.mxu0 0
      %1780 = vmatprep.mubr.bf16.mxu0 0
      %1781 = vmatmul.mubr.bf16.gmra.mxu0 %v1666
      %v1782 = vpop.f32.mrf.mxu0
      %v1783 = vadd.f32 0.0, %v1782
      %v1784 = vpop.f32.mrf.mxu0
      %v1785 = vadd.f32 0.0, %v1784
      %v1786 = vpop.f32.mrf.mxu0
      %v1787 = vpop.f32.mrf.mxu0
      %1788 = vdwg.mxu0
      %v1789 = vadd.f32 %v1612, %v1783
      %v1790 = vadd.f32 %v1613, %v1785
      %v1791 = vld [vmem:[%s2] sm:$0x3]
      %v1793 = vlaneseq
      %v1794 = vshrl.u32 %v1793, 7
      %v1795 = vsub.s32 0, %v1794
      %v1796 = vrot.slane %v1791, %v1795
      %v1797 = vlaneseq
      %v1798 = vshrl.u32 %v1797, 7
      %v1799 = vsub.s32 1, %v1798
      %v1800 = vrot.slane %v1791, %v1799
      %v1803 = vadd.f32 %v1789, %v1796
      %v1804 = vadd.f32 %v1790, %v1800
      %v1805 = vmax.f32 %v1803, 0.0
      %v1806 = vmax.f32 %v1804, 0.0
      %v1809 = vrot.slane %v1805, 4
      %v1810 = vrot.slane %v1806, 4
      %v1813 = vmax.f32 %v1805, %v1809
      %v1814 = vmax.f32 %v1806, %v1810
      %v1815 = vlaneseq
      %v1816 = vshrl.u32 %v1815, 7
      %v1817 = vlaneseq
      %v1818 = vand.u32 %v1817, 127
      %v1819 = vmul.u32 %v1816, 2
      %vm1820 = vcmp.eq.s32.totalorder %v1818, %v1819
      %v1821 = vsel %vm1820, 1, 0
      %v1822 = vcvt.s32.f32 %v1821
      %v1823 = vadd.s32 %v1819, 1
      %vm1824 = vcmp.eq.s32.totalorder %v1818, %v1823
      %v1825 = vsel %vm1824, 1, 0
      %v1826 = vcvt.s32.f32 %v1825
      %vm1827 = vcmask 31744
      %v1829 = vsel %vm1827, %v1822, 0
      %vm1831 = vcmask 1043456
      %v1833 = vsel %vm1831, %v1813, 0
      %v1836 = vsel %vm1831, %v1814, 0
      %1838 = vmatprep.subr.mxu0 0.0
      %1839 = vmatpush1.msra.mxu0 0.0
      %1840 = vmatprep.subr.mxu0 0.0
      %1841 = vmatpush1.msra.mxu0 0.0
      %1842 = vmatprep.subr.mxu0 0.0
      %1843 = vmatpush1.msra.mxu0 0.0
      %1844 = vmatprep.subr.mxu0 0.0
      %1845 = vmatpush1.msra.mxu0 0.0
      %1846 = vmatprep.subr.mxu0 0.0
      %1847 = vmatpush1.msra.mxu0 0.0
      %1848 = vmatprep.subr.mxu0 0.0
      %1849 = vmatpush1.msra.mxu0 0.0
      %1850 = vmatprep.subr.mxu0 0.0
      %1851 = vmatpush1.msra.mxu0 0.0
      %1852 = vmatprep.subr.mxu0 0.0
      %1853 = vmatpush1.msra.mxu0 0.0
      %1854 = vmatprep.subr.mxu0 0.0
      %1855 = vmatpush1.msra.mxu0 0.0
      %1856 = vmatprep.subr.mxu0 0.0
      %1857 = vmatpush1.msra.mxu0 0.0
      %1858 = vmatprep.subr.mxu0 0.0
      %1859 = vmatpush1.msra.mxu0 0.0
      %1860 = vmatprep.subr.mxu0 0.0
      %1861 = vmatpush1.msra.mxu0 0.0
      %1862 = vmatprep.subr.mxu0 0.0
      %1863 = vmatpush1.msra.mxu0 0.0
      %1864 = vmatprep.subr.mxu0 0.0
      %1865 = vmatpush1.msra.mxu0 0.0
      %1866 = vmatprep.subr.mxu0 0.0
      %1867 = vmatpush1.msra.mxu0 0.0
      %1868 = vmatprep.subr.mxu0 %v1836
      %1869 = vmatpush1.msra.mxu0 %v1833
      %1870 = vmatprep.subr.mxu0 0.0
      %1871 = vmatpush2.msra.mxu0 0.0
      %1872 = vmatprep.subr.mxu0 0.0
      %1873 = vmatpush2.msra.mxu0 0.0
      %1874 = vmatprep.subr.mxu0 0.0
      %1875 = vmatpush2.msra.mxu0 0.0
      %1876 = vmatprep.subr.mxu0 0.0
      %1877 = vmatpush2.msra.mxu0 0.0
      %1878 = vmatprep.subr.mxu0 0.0
      %1879 = vmatpush2.msra.mxu0 0.0
      %1880 = vmatprep.subr.mxu0 0.0
      %1881 = vmatpush2.msra.mxu0 0.0
      %1882 = vmatprep.subr.mxu0 0.0
      %1883 = vmatpush2.msra.mxu0 0.0
      %1884 = vmatprep.subr.mxu0 0.0
      %1885 = vmatpush2.msra.mxu0 0.0
      %1886 = vmatprep.subr.mxu0 0.0
      %1887 = vmatpush2.msra.mxu0 0.0
      %1888 = vmatprep.subr.mxu0 0.0
      %1889 = vmatpush2.msra.mxu0 0.0
      %1890 = vmatprep.subr.mxu0 0.0
      %1891 = vmatpush2.msra.mxu0 0.0
      %1892 = vmatprep.subr.mxu0 0.0
      %1893 = vmatpush2.msra.mxu0 0.0
      %1894 = vmatprep.subr.mxu0 0.0
      %1895 = vmatpush2.msra.mxu0 0.0
      %1896 = vmatprep.subr.mxu0 0.0
      %1897 = vmatpush2.msra.mxu0 0.0
      %1898 = vmatprep.subr.mxu0 0.0
      %1899 = vmatpush2.msra.mxu0 0.0
      %1900 = vmatprep.subr.mxu0 0.0
      %1901 = vmatpush2.msra.mxu0 0.0
      %1902 = vmatprep.mubr.f32.mxu0 0.0
      %1903 = vmatmul.mubr.f32.gmra.mxu0 %v1829
      %v1904 = vpop.f32.mrf.mxu0
      %v1905 = vadd.f32 0.0, %v1904
      %v1906 = vpop.f32.mrf.mxu0
      %v1907 = vadd.f32 0.0, %v1906
      %1908 = vdwg.mxu0
      %v1910 = vsel %vm1827, %v1826, 0
      %1912 = vmatprep.subr.mxu0 0.0
      %1913 = vmatpush1.msra.mxu0 0.0
      %1914 = vmatprep.subr.mxu0 0.0
      %1915 = vmatpush1.msra.mxu0 0.0
      %1916 = vmatprep.subr.mxu0 0.0
      %1917 = vmatpush1.msra.mxu0 0.0
      %1918 = vmatprep.subr.mxu0 0.0
      %1919 = vmatpush1.msra.mxu0 0.0
      %1920 = vmatprep.subr.mxu0 0.0
      %1921 = vmatpush1.msra.mxu0 0.0
      %1922 = vmatprep.subr.mxu0 0.0
      %1923 = vmatpush1.msra.mxu0 0.0
      %1924 = vmatprep.subr.mxu0 0.0
      %1925 = vmatpush1.msra.mxu0 0.0
      %1926 = vmatprep.subr.mxu0 0.0
      %1927 = vmatpush1.msra.mxu0 0.0
      %1928 = vmatprep.subr.mxu0 0.0
      %1929 = vmatpush1.msra.mxu0 0.0
      %1930 = vmatprep.subr.mxu0 0.0
      %1931 = vmatpush1.msra.mxu0 0.0
      %1932 = vmatprep.subr.mxu0 0.0
      %1933 = vmatpush1.msra.mxu0 0.0
      %1934 = vmatprep.subr.mxu0 0.0
      %1935 = vmatpush1.msra.mxu0 0.0
      %1936 = vmatprep.subr.mxu0 0.0
      %1937 = vmatpush1.msra.mxu0 0.0
      %1938 = vmatprep.subr.mxu0 0.0
      %1939 = vmatpush1.msra.mxu0 0.0
      %1940 = vmatprep.subr.mxu0 0.0
      %1941 = vmatpush1.msra.mxu0 0.0
      %1942 = vmatprep.subr.mxu0 %v1836
      %1943 = vmatpush1.msra.mxu0 %v1833
      %1944 = vmatprep.subr.mxu0 0.0
      %1945 = vmatpush2.msra.mxu0 0.0
      %1946 = vmatprep.subr.mxu0 0.0
      %1947 = vmatpush2.msra.mxu0 0.0
      %1948 = vmatprep.subr.mxu0 0.0
      %1949 = vmatpush2.msra.mxu0 0.0
      %1950 = vmatprep.subr.mxu0 0.0
      %1951 = vmatpush2.msra.mxu0 0.0
      %1952 = vmatprep.subr.mxu0 0.0
      %1953 = vmatpush2.msra.mxu0 0.0
      %1954 = vmatprep.subr.mxu0 0.0
      %1955 = vmatpush2.msra.mxu0 0.0
      %1956 = vmatprep.subr.mxu0 0.0
      %1957 = vmatpush2.msra.mxu0 0.0
      %1958 = vmatprep.subr.mxu0 0.0
      %1959 = vmatpush2.msra.mxu0 0.0
      %1960 = vmatprep.subr.mxu0 0.0
      %1961 = vmatpush2.msra.mxu0 0.0
      %1962 = vmatprep.subr.mxu0 0.0
      %1963 = vmatpush2.msra.mxu0 0.0
      %1964 = vmatprep.subr.mxu0 0.0
      %1965 = vmatpush2.msra.mxu0 0.0
      %1966 = vmatprep.subr.mxu0 0.0
      %1967 = vmatpush2.msra.mxu0 0.0
      %1968 = vmatprep.subr.mxu0 0.0
      %1969 = vmatpush2.msra.mxu0 0.0
      %1970 = vmatprep.subr.mxu0 0.0
      %1971 = vmatpush2.msra.mxu0 0.0
      %1972 = vmatprep.subr.mxu0 0.0
      %1973 = vmatpush2.msra.mxu0 0.0
      %1974 = vmatprep.subr.mxu0 0.0
      %1975 = vmatpush2.msra.mxu0 0.0
      %1976 = vmatprep.mubr.f32.mxu0 0.0
      %1977 = vmatmul.mubr.f32.gmra.mxu0 %v1910
      %v1978 = vpop.f32.mrf.mxu0
      %v1979 = vadd.f32 0.0, %v1978
      %v1980 = vpop.f32.mrf.mxu0
      %v1981 = vadd.f32 0.0, %v1980
      %1982 = vdwg.mxu0
      %v1983 = vmax.f32 %v1905, %v1979
      %v1984 = vmax.f32 %v1907, %v1981
      %v1985 = vpack.c.bf16 %v1983, %v1983
      %v1986 = vpack.c.bf16 %v1984, %v1984
      %v1989 = vcombine.low %v1985, %v1986
      %v1991 = vunpack.c.l.s4 1966171168
      %v1992 = vunpack.c.0.s8 %v1991
      %v1993 = vlaneseq
      %v1994 = vshrl.u32 %v1993, 7
      %v1995 = vsub.s32 %v1992, %v1994
      %v1996 = vrot.slane %v1989, %v1995
      %v1998 = vunpack.c.l.s4 1966171168
      %v1999 = vunpack.c.0.s8 %v1998
      %v2000 = vlaneseq
      %v2001 = vshrl.u32 %v2000, 7
      %v2002 = vsub.s32 %v1999, %v2001
      %v2003 = vrot.slane %v1996, %v2002
      %2005 = vst [vmem:[%s190] sm:$0x3] %v2003
      %p2006 = scmp.lt.s32.totalorder %s18, 1
      %s2007 = scalar_select %p2006, %s18, 1
      %p2008 = scmp.lt.s32.totalorder %s19, 1
      %s2009 = scalar_select %p2008, %s19, 1
      %s2010 = smul.addr %s2009, 2
      %s2011 = smul.addr %s2007, 4
      %s2012 = sadd.s32 %s2010, %s2011
      %s2013 = scalar_lea.vmem %s3, %s2012
      // Predicated region
      $region33: #{modified_lenet_forward.8} parent=31 // pred_check
        %p2014 = pneg %p114
      $region34: #{modified_lenet_forward.8} parent=31 // pred_check_branch
        %2016 = sbr.rel (%p2014) target = $region36
      $region35: #{modified_lenet_forward.8} parent=31 // pred_region
        _
      $region36: #{modified_lenet_forward.8} parent=31 // pred_fallthru
        _
    $region32: #{modified_lenet_forward.8} parent=5 // pred_fallthru
      _
    %p2017 = scmp.le.s32.totalorder 2, %s9
    // Predicated region
    $region37: #{modified_lenet_forward.8} parent=5 // pred_check
      %p2018 = pneg %p2017
    $region38: #{modified_lenet_forward.8} parent=5 // pred_check_branch
      %2020 = sbr.rel (%p2018) target = $region40
    $region39: #{modified_lenet_forward.8} parent=5 // pred_region
      %s2021 = ssub.s32 %s9, 2
      // Predicated region
      $region41: #{modified_lenet_forward.8} parent=39 // pred_check
        %p2022 = pneg %p120
      $region42: #{modified_lenet_forward.8} parent=39 // pred_check_branch
        %2024 = sbr.rel (%p2022) target = $region44
      $region43: #{modified_lenet_forward.8} parent=39 // pred_region
        %p2025 = scmp.lt.s32.totalorder %s20, 1
        %s2026 = scalar_select %p2025, %s20, 1
        %p2027 = scmp.lt.s32.totalorder %s21, 1
        %s2028 = scalar_select %p2027, %s21, 1
        %s2029 = smul.addr %s2028, 2
        %s2030 = smul.addr %s2026, 4
        %s2031 = sadd.s32 %s2029, %s2030
        %s2032 = scalar_lea.vmem %s3, %s2031
      $region44: #{modified_lenet_forward.8} parent=39 // pred_fallthru
        _
    $region40: #{modified_lenet_forward.8} parent=5 // pred_fallthru
      _
  $region6: #{modified_lenet_forward.8} parent=0 // loop_footer
    %s13 = sadd.s32 1, %s9
  $region7: #{modified_lenet_forward.8} parent=0 // loop_footer_branch
    %8 = sbr.rel target = $region3
  $region8: #{modified_lenet_forward.8} parent=0 // loop_exit
    _

// kernel: modified_lenet_forward.9
$region0: #{modified_lenet_forward.9}
  #allocation0 [shape = 'u32[]', space=smem, size = 0x4, offset = 0x4, fixed_abs, tag = 'smem constant byte address 0x4 - core index']
  #allocation1 [shape = 'u32[144,128]{1,0:T(1,128)}', space=vmem, size = 0x12000, scoped, tag = 'internal scratch']
  %s0 = inlined_call_operand.vmem [shape: bf16[2,1024], index: 0, kind: input, shape index: {}]
  %s1 = inlined_call_operand.vmem [shape: bf16[1024,640], index: 1, kind: input, shape index: {}]
  %s2 = inlined_call_operand.vmem [shape: f32[1,640], index: 2, kind: input, shape index: {}]
  %s3 = inlined_call_operand.vmem [shape: bf16[640,192], index: 3, kind: input, shape index: {}]
  %s4 = inlined_call_operand.vmem [shape: f32[1,192], index: 4, kind: input, shape index: {}]
  %s5 = inlined_call_operand.vmem [shape: bf16[192,10], index: 5, kind: input, shape index: {}]
  %s6 = inlined_call_operand.vmem [shape: f32[1,10], index: 6, kind: input, shape index: {}]
  %s7 = inlined_call_operand.hbm [shape: f32[2,10], index: 7, kind: output, shape index: {}]
  %s8 = sld [smem:[#allocation0]]
  $region38: #{modified_lenet_forward.9} parent=0
    _
  %s10 = ssub.s32 1, %s8
  %s11 = scalar_select 0, %s10, %s8
  $region1: #{modified_lenet_forward.9} parent=0
    #allocation2 [shape = 'u8[1024]{0}', space=vmem, size = 0x400, scoped, tag = 'output window, operand 0, single buffered']
    #allocation3 [shape = 's32[1]{0}', space=sflag, size = 0x4, scoped, tag = 'scoped memory for modified_lenet_forward.9']
    %12 = vsyncpa [#allocation3], 0
    // Predicated region
    $region2: #{modified_lenet_forward.9} parent=1 // pred_check
      _
    $region3: #{modified_lenet_forward.9} parent=1 // pred_check_branch
      %14 = sbr.rel (0) target = $region5
    $region4: #{modified_lenet_forward.9} parent=1 // pred_region
      _
    $region5: #{modified_lenet_forward.9} parent=1 // pred_fallthru
      _
    // Predicated region
    $region6: #{modified_lenet_forward.9} parent=1 // pred_check
      _
    $region7: #{modified_lenet_forward.9} parent=1 // pred_check_branch
      %16 = sbr.rel (0) target = $region9
    $region8: #{modified_lenet_forward.9} parent=1 // pred_region
      _
    $region9: #{modified_lenet_forward.9} parent=1 // pred_fallthru
      _
    // Predicated region
    $region10: #{modified_lenet_forward.9} parent=1 // pred_check
      _
    $region11: #{modified_lenet_forward.9} parent=1 // pred_check_branch
      %18 = sbr.rel (0) target = $region13
    $region12: #{modified_lenet_forward.9} parent=1 // pred_region
      _
    $region13: #{modified_lenet_forward.9} parent=1 // pred_fallthru
      _
    // Predicated region
    $region14: #{modified_lenet_forward.9} parent=1 // pred_check
      _
    $region15: #{modified_lenet_forward.9} parent=1 // pred_check_branch
      %20 = sbr.rel (0) target = $region17
    $region16: #{modified_lenet_forward.9} parent=1 // pred_region
      _
    $region17: #{modified_lenet_forward.9} parent=1 // pred_fallthru
      _
    // Predicated region
    $region18: #{modified_lenet_forward.9} parent=1 // pred_check
      _
    $region19: #{modified_lenet_forward.9} parent=1 // pred_check_branch
      %22 = sbr.rel (0) target = $region21
    $region20: #{modified_lenet_forward.9} parent=1 // pred_region
      _
    $region21: #{modified_lenet_forward.9} parent=1 // pred_fallthru
      _
    // Predicated region
    $region22: #{modified_lenet_forward.9} parent=1 // pred_check
      _
    $region23: #{modified_lenet_forward.9} parent=1 // pred_check_branch
      %24 = sbr.rel (0) target = $region25
    $region24: #{modified_lenet_forward.9} parent=1 // pred_region
      _
    $region25: #{modified_lenet_forward.9} parent=1 // pred_fallthru
      _
    // Predicated region
    $region26: #{modified_lenet_forward.9} parent=1 // pred_check
      _
    $region27: #{modified_lenet_forward.9} parent=1 // pred_check_branch
      %26 = sbr.rel (0) target = $region29
    $region28: #{modified_lenet_forward.9} parent=1 // pred_region
      _
    $region29: #{modified_lenet_forward.9} parent=1 // pred_fallthru
      _
    %v28 = vld [vmem:[%s0] sm:$0xff]
    %v29 = vld [vmem:[%s1] sm:$0xff]
    %v30 = vld [vmem:[%s1 + $0x8] sm:$0xff]
    %v31 = vld [vmem:[%s1 + $0x10] sm:$0xf]
    %v32 = vld [vmem:[%s1 + $0x14] sm:$0xff]
    %v33 = vld [vmem:[%s1 + $0x1c] sm:$0xff]
    %v34 = vld [vmem:[%s1 + $0x24] sm:$0xf]
    %v35 = vld [vmem:[%s1 + $0x28] sm:$0xff]
    %v36 = vld [vmem:[%s1 + $0x30] sm:$0xff]
    %v37 = vld [vmem:[%s1 + $0x38] sm:$0xf]
    %v38 = vld [vmem:[%s1 + $0x3c] sm:$0xff]
    %v39 = vld [vmem:[%s1 + $0x44] sm:$0xff]
    %v40 = vld [vmem:[%s1 + $0x4c] sm:$0xf]
    %v41 = vld [vmem:[%s1 + $0x50] sm:$0xff]
    %v42 = vld [vmem:[%s1 + $0x58] sm:$0xff]
    %v43 = vld [vmem:[%s1 + $0x60] sm:$0xf]
    %v44 = vld [vmem:[%s1 + $0x64] sm:$0xff]
    %v45 = vld [vmem:[%s1 + $0x6c] sm:$0xff]
    %v46 = vld [vmem:[%s1 + $0x74] sm:$0xf]
    %v47 = vld [vmem:[%s1 + $0x78] sm:$0xff]
    %v48 = vld [vmem:[%s1 + $0x80] sm:$0xff]
    %v49 = vld [vmem:[%s1 + $0x88] sm:$0xf]
    %v50 = vld [vmem:[%s1 + $0x8c] sm:$0xff]
    %v51 = vld [vmem:[%s1 + $0x94] sm:$0xff]
    %v52 = vld [vmem:[%s1 + $0x9c] sm:$0xf]
    %v53 = vld [vmem:[%s1 + $0xa0] sm:$0xff]
    %v54 = vld [vmem:[%s1 + $0xa8] sm:$0xff]
    %v55 = vld [vmem:[%s1 + $0xb0] sm:$0xf]
    %v56 = vld [vmem:[%s1 + $0xb4] sm:$0xff]
    %v57 = vld [vmem:[%s1 + $0xbc] sm:$0xff]
    %v58 = vld [vmem:[%s1 + $0xc4] sm:$0xf]
    %v59 = vld [vmem:[%s1 + $0xc8] sm:$0xff]
    %v60 = vld [vmem:[%s1 + $0xd0] sm:$0xff]
    %v61 = vld [vmem:[%s1 + $0xd8] sm:$0xf]
    %v62 = vld [vmem:[%s1 + $0xdc] sm:$0xff]
    %v63 = vld [vmem:[%s1 + $0xe4] sm:$0xff]
    %v64 = vld [vmem:[%s1 + $0xec] sm:$0xf]
    %v65 = vld [vmem:[%s1 + $0xf0] sm:$0xff]
    %v66 = vld [vmem:[%s1 + $0xf8] sm:$0xff]
    %v67 = vld [vmem:[%s1 + $0x100] sm:$0xf]
    %v68 = vld [vmem:[%s1 + $0x104] sm:$0xff]
    %v69 = vld [vmem:[%s1 + $0x10c] sm:$0xff]
    %v70 = vld [vmem:[%s1 + $0x114] sm:$0xf]
    %v71 = vld [vmem:[%s1 + $0x118] sm:$0xff]
    %v72 = vld [vmem:[%s1 + $0x120] sm:$0xff]
    %v73 = vld [vmem:[%s1 + $0x128] sm:$0xf]
    %v74 = vld [vmem:[%s1 + $0x12c] sm:$0xff]
    %v75 = vld [vmem:[%s1 + $0x134] sm:$0xff]
    %v76 = vld [vmem:[%s1 + $0x13c] sm:$0xf]
    %v77 = vld [vmem:[%s1 + $0x140] sm:$0xff]
    %v78 = vld [vmem:[%s1 + $0x148] sm:$0xff]
    %v79 = vld [vmem:[%s1 + $0x150] sm:$0xf]
    %v80 = vld [vmem:[%s1 + $0x154] sm:$0xff]
    %v81 = vld [vmem:[%s1 + $0x15c] sm:$0xff]
    %v82 = vld [vmem:[%s1 + $0x164] sm:$0xf]
    %v83 = vld [vmem:[%s1 + $0x168] sm:$0xff]
    %v84 = vld [vmem:[%s1 + $0x170] sm:$0xff]
    %v85 = vld [vmem:[%s1 + $0x178] sm:$0xf]
    %v86 = vld [vmem:[%s1 + $0x17c] sm:$0xff]
    %v87 = vld [vmem:[%s1 + $0x184] sm:$0xff]
    %v88 = vld [vmem:[%s1 + $0x18c] sm:$0xf]
    %v89 = vld [vmem:[%s1 + $0x190] sm:$0xff]
    %v90 = vld [vmem:[%s1 + $0x198] sm:$0xff]
    %v91 = vld [vmem:[%s1 + $0x1a0] sm:$0xf]
    %v92 = vld [vmem:[%s1 + $0x1a4] sm:$0xff]
    %v93 = vld [vmem:[%s1 + $0x1ac] sm:$0xff]
    %v94 = vld [vmem:[%s1 + $0x1b4] sm:$0xf]
    %v95 = vld [vmem:[%s1 + $0x1b8] sm:$0xff]
    %v96 = vld [vmem:[%s1 + $0x1c0] sm:$0xff]
    %v97 = vld [vmem:[%s1 + $0x1c8] sm:$0xf]
    %v98 = vld [vmem:[%s1 + $0x1cc] sm:$0xff]
    %v99 = vld [vmem:[%s1 + $0x1d4] sm:$0xff]
    %v100 = vld [vmem:[%s1 + $0x1dc] sm:$0xf]
    %v101 = vld [vmem:[%s1 + $0x1e0] sm:$0xff]
    %v102 = vld [vmem:[%s1 + $0x1e8] sm:$0xff]
    %v103 = vld [vmem:[%s1 + $0x1f0] sm:$0xf]
    %v104 = vld [vmem:[%s1 + $0x1f4] sm:$0xff]
    %v105 = vld [vmem:[%s1 + $0x1fc] sm:$0xff]
    %v106 = vld [vmem:[%s1 + $0x204] sm:$0xf]
    %v107 = vld [vmem:[%s1 + $0x208] sm:$0xff]
    %v108 = vld [vmem:[%s1 + $0x210] sm:$0xff]
    %v109 = vld [vmem:[%s1 + $0x218] sm:$0xf]
    %v110 = vld [vmem:[%s1 + $0x21c] sm:$0xff]
    %v111 = vld [vmem:[%s1 + $0x224] sm:$0xff]
    %v112 = vld [vmem:[%s1 + $0x22c] sm:$0xf]
    %v113 = vld [vmem:[%s1 + $0x230] sm:$0xff]
    %v114 = vld [vmem:[%s1 + $0x238] sm:$0xff]
    %v115 = vld [vmem:[%s1 + $0x240] sm:$0xf]
    %v116 = vld [vmem:[%s1 + $0x244] sm:$0xff]
    %v117 = vld [vmem:[%s1 + $0x24c] sm:$0xff]
    %v118 = vld [vmem:[%s1 + $0x254] sm:$0xf]
    %v119 = vld [vmem:[%s1 + $0x258] sm:$0xff]
    %v120 = vld [vmem:[%s1 + $0x260] sm:$0xff]
    %v121 = vld [vmem:[%s1 + $0x268] sm:$0xf]
    %v122 = vld [vmem:[%s1 + $0x26c] sm:$0xff]
    %v123 = vld [vmem:[%s1 + $0x274] sm:$0xff]
    %v124 = vld [vmem:[%s1 + $0x27c] sm:$0xf]
    %v125 = vld [vmem:[%s1 + $0x280] sm:$0xff]
    %v126 = vld [vmem:[%s1 + $0x288] sm:$0xff]
    %v127 = vld [vmem:[%s1 + $0x290] sm:$0xf]
    %v128 = vld [vmem:[%s1 + $0x294] sm:$0xff]
    %v129 = vld [vmem:[%s1 + $0x29c] sm:$0xff]
    %v130 = vld [vmem:[%s1 + $0x2a4] sm:$0xf]
    %v131 = vld [vmem:[%s1 + $0x2a8] sm:$0xff]
    %v132 = vld [vmem:[%s1 + $0x2b0] sm:$0xff]
    %v133 = vld [vmem:[%s1 + $0x2b8] sm:$0xf]
    %v134 = vld [vmem:[%s1 + $0x2bc] sm:$0xff]
    %v135 = vld [vmem:[%s1 + $0x2c4] sm:$0xff]
    %v136 = vld [vmem:[%s1 + $0x2cc] sm:$0xf]
    %v137 = vld [vmem:[%s1 + $0x2d0] sm:$0xff]
    %v138 = vld [vmem:[%s1 + $0x2d8] sm:$0xff]
    %v139 = vld [vmem:[%s1 + $0x2e0] sm:$0xf]
    %v140 = vld [vmem:[%s1 + $0x2e4] sm:$0xff]
    %v141 = vld [vmem:[%s1 + $0x2ec] sm:$0xff]
    %v142 = vld [vmem:[%s1 + $0x2f4] sm:$0xf]
    %v143 = vld [vmem:[%s1 + $0x2f8] sm:$0xff]
    %v144 = vld [vmem:[%s1 + $0x300] sm:$0xff]
    %v145 = vld [vmem:[%s1 + $0x308] sm:$0xf]
    %v146 = vld [vmem:[%s1 + $0x30c] sm:$0xff]
    %v147 = vld [vmem:[%s1 + $0x314] sm:$0xff]
    %v148 = vld [vmem:[%s1 + $0x31c] sm:$0xf]
    %v149 = vld [vmem:[%s1 + $0x320] sm:$0xff]
    %v150 = vld [vmem:[%s1 + $0x328] sm:$0xff]
    %v151 = vld [vmem:[%s1 + $0x330] sm:$0xf]
    %v152 = vld [vmem:[%s1 + $0x334] sm:$0xff]
    %v153 = vld [vmem:[%s1 + $0x33c] sm:$0xff]
    %v154 = vld [vmem:[%s1 + $0x344] sm:$0xf]
    %v155 = vld [vmem:[%s1 + $0x348] sm:$0xff]
    %v156 = vld [vmem:[%s1 + $0x350] sm:$0xff]
    %v157 = vld [vmem:[%s1 + $0x358] sm:$0xf]
    %v158 = vld [vmem:[%s1 + $0x35c] sm:$0xff]
    %v159 = vld [vmem:[%s1 + $0x364] sm:$0xff]
    %v160 = vld [vmem:[%s1 + $0x36c] sm:$0xf]
    %v161 = vld [vmem:[%s1 + $0x370] sm:$0xff]
    %v162 = vld [vmem:[%s1 + $0x378] sm:$0xff]
    %v163 = vld [vmem:[%s1 + $0x380] sm:$0xf]
    %v164 = vld [vmem:[%s1 + $0x384] sm:$0xff]
    %v165 = vld [vmem:[%s1 + $0x38c] sm:$0xff]
    %v166 = vld [vmem:[%s1 + $0x394] sm:$0xf]
    %v167 = vld [vmem:[%s1 + $0x398] sm:$0xff]
    %v168 = vld [vmem:[%s1 + $0x3a0] sm:$0xff]
    %v169 = vld [vmem:[%s1 + $0x3a8] sm:$0xf]
    %v170 = vld [vmem:[%s1 + $0x3ac] sm:$0xff]
    %v171 = vld [vmem:[%s1 + $0x3b4] sm:$0xff]
    %v172 = vld [vmem:[%s1 + $0x3bc] sm:$0xf]
    %v173 = vld [vmem:[%s1 + $0x3c0] sm:$0xff]
    %v174 = vld [vmem:[%s1 + $0x3c8] sm:$0xff]
    %v175 = vld [vmem:[%s1 + $0x3d0] sm:$0xf]
    %v176 = vld [vmem:[%s1 + $0x3d4] sm:$0xff]
    %v177 = vld [vmem:[%s1 + $0x3dc] sm:$0xff]
    %v178 = vld [vmem:[%s1 + $0x3e4] sm:$0xf]
    %v179 = vld [vmem:[%s1 + $0x3e8] sm:$0xff]
    %v180 = vld [vmem:[%s1 + $0x3f0] sm:$0xff]
    %v181 = vld [vmem:[%s1 + $0x3f8] sm:$0xf]
    %v182 = vld [vmem:[%s1 + $0x3fc] sm:$0xff]
    %v183 = vld [vmem:[%s1 + $0x404] sm:$0xff]
    %v184 = vld [vmem:[%s1 + $0x40c] sm:$0xf]
    %v185 = vld [vmem:[%s1 + $0x410] sm:$0xff]
    %v186 = vld [vmem:[%s1 + $0x418] sm:$0xff]
    %v187 = vld [vmem:[%s1 + $0x420] sm:$0xf]
    %v188 = vld [vmem:[%s1 + $0x424] sm:$0xff]
    %v189 = vld [vmem:[%s1 + $0x42c] sm:$0xff]
    %v190 = vld [vmem:[%s1 + $0x434] sm:$0xf]
    %v191 = vld [vmem:[%s1 + $0x438] sm:$0xff]
    %v192 = vld [vmem:[%s1 + $0x440] sm:$0xff]
    %v193 = vld [vmem:[%s1 + $0x448] sm:$0xf]
    %v194 = vld [vmem:[%s1 + $0x44c] sm:$0xff]
    %v195 = vld [vmem:[%s1 + $0x454] sm:$0xff]
    %v196 = vld [vmem:[%s1 + $0x45c] sm:$0xf]
    %v197 = vld [vmem:[%s1 + $0x460] sm:$0xff]
    %v198 = vld [vmem:[%s1 + $0x468] sm:$0xff]
    %v199 = vld [vmem:[%s1 + $0x470] sm:$0xf]
    %v200 = vld [vmem:[%s1 + $0x474] sm:$0xff]
    %v201 = vld [vmem:[%s1 + $0x47c] sm:$0xff]
    %v202 = vld [vmem:[%s1 + $0x484] sm:$0xf]
    %v203 = vld [vmem:[%s1 + $0x488] sm:$0xff]
    %v204 = vld [vmem:[%s1 + $0x490] sm:$0xff]
    %v205 = vld [vmem:[%s1 + $0x498] sm:$0xf]
    %v206 = vld [vmem:[%s1 + $0x49c] sm:$0xff]
    %v207 = vld [vmem:[%s1 + $0x4a4] sm:$0xff]
    %v208 = vld [vmem:[%s1 + $0x4ac] sm:$0xf]
    %v209 = vld [vmem:[%s1 + $0x4b0] sm:$0xff]
    %v210 = vld [vmem:[%s1 + $0x4b8] sm:$0xff]
    %v211 = vld [vmem:[%s1 + $0x4c0] sm:$0xf]
    %v212 = vld [vmem:[%s1 + $0x4c4] sm:$0xff]
    %v213 = vld [vmem:[%s1 + $0x4cc] sm:$0xff]
    %v214 = vld [vmem:[%s1 + $0x4d4] sm:$0xf]
    %v215 = vld [vmem:[%s1 + $0x4d8] sm:$0xff]
    %v216 = vld [vmem:[%s1 + $0x4e0] sm:$0xff]
    %v217 = vld [vmem:[%s1 + $0x4e8] sm:$0xf]
    %v218 = vld [vmem:[%s1 + $0x4ec] sm:$0xff]
    %v219 = vld [vmem:[%s1 + $0x4f4] sm:$0xff]
    %v220 = vld [vmem:[%s1 + $0x4fc] sm:$0xf]
    %v221 = vld [vmem:[%s1 + $0x500] sm:$0xff]
    %v222 = vld [vmem:[%s1 + $0x508] sm:$0xff]
    %v223 = vld [vmem:[%s1 + $0x510] sm:$0xf]
    %v224 = vld [vmem:[%s1 + $0x514] sm:$0xff]
    %v225 = vld [vmem:[%s1 + $0x51c] sm:$0xff]
    %v226 = vld [vmem:[%s1 + $0x524] sm:$0xf]
    %v227 = vld [vmem:[%s1 + $0x528] sm:$0xff]
    %v228 = vld [vmem:[%s1 + $0x530] sm:$0xff]
    %v229 = vld [vmem:[%s1 + $0x538] sm:$0xf]
    %v230 = vld [vmem:[%s1 + $0x53c] sm:$0xff]
    %v231 = vld [vmem:[%s1 + $0x544] sm:$0xff]
    %v232 = vld [vmem:[%s1 + $0x54c] sm:$0xf]
    %v233 = vld [vmem:[%s1 + $0x550] sm:$0xff]
    %v234 = vld [vmem:[%s1 + $0x558] sm:$0xff]
    %v235 = vld [vmem:[%s1 + $0x560] sm:$0xf]
    %v236 = vld [vmem:[%s1 + $0x564] sm:$0xff]
    %v237 = vld [vmem:[%s1 + $0x56c] sm:$0xff]
    %v238 = vld [vmem:[%s1 + $0x574] sm:$0xf]
    %v239 = vld [vmem:[%s1 + $0x578] sm:$0xff]
    %v240 = vld [vmem:[%s1 + $0x580] sm:$0xff]
    %v241 = vld [vmem:[%s1 + $0x588] sm:$0xf]
    %v242 = vld [vmem:[%s1 + $0x58c] sm:$0xff]
    %v243 = vld [vmem:[%s1 + $0x594] sm:$0xff]
    %v244 = vld [vmem:[%s1 + $0x59c] sm:$0xf]
    %v245 = vld [vmem:[%s1 + $0x5a0] sm:$0xff]
    %v246 = vld [vmem:[%s1 + $0x5a8] sm:$0xff]
    %v247 = vld [vmem:[%s1 + $0x5b0] sm:$0xf]
    %v248 = vld [vmem:[%s1 + $0x5b4] sm:$0xff]
    %v249 = vld [vmem:[%s1 + $0x5bc] sm:$0xff]
    %v250 = vld [vmem:[%s1 + $0x5c4] sm:$0xf]
    %v251 = vld [vmem:[%s1 + $0x5c8] sm:$0xff]
    %v252 = vld [vmem:[%s1 + $0x5d0] sm:$0xff]
    %v253 = vld [vmem:[%s1 + $0x5d8] sm:$0xf]
    %v254 = vld [vmem:[%s1 + $0x5dc] sm:$0xff]
    %v255 = vld [vmem:[%s1 + $0x5e4] sm:$0xff]
    %v256 = vld [vmem:[%s1 + $0x5ec] sm:$0xf]
    %v257 = vld [vmem:[%s1 + $0x5f0] sm:$0xff]
    %v258 = vld [vmem:[%s1 + $0x5f8] sm:$0xff]
    %v259 = vld [vmem:[%s1 + $0x600] sm:$0xf]
    %v260 = vld [vmem:[%s1 + $0x604] sm:$0xff]
    %v261 = vld [vmem:[%s1 + $0x60c] sm:$0xff]
    %v262 = vld [vmem:[%s1 + $0x614] sm:$0xf]
    %v263 = vld [vmem:[%s1 + $0x618] sm:$0xff]
    %v264 = vld [vmem:[%s1 + $0x620] sm:$0xff]
    %v265 = vld [vmem:[%s1 + $0x628] sm:$0xf]
    %v266 = vld [vmem:[%s1 + $0x62c] sm:$0xff]
    %v267 = vld [vmem:[%s1 + $0x634] sm:$0xff]
    %v268 = vld [vmem:[%s1 + $0x63c] sm:$0xf]
    %v269 = vld [vmem:[%s1 + $0x640] sm:$0xff]
    %v270 = vld [vmem:[%s1 + $0x648] sm:$0xff]
    %v271 = vld [vmem:[%s1 + $0x650] sm:$0xf]
    %v272 = vld [vmem:[%s1 + $0x654] sm:$0xff]
    %v273 = vld [vmem:[%s1 + $0x65c] sm:$0xff]
    %v274 = vld [vmem:[%s1 + $0x664] sm:$0xf]
    %v275 = vld [vmem:[%s1 + $0x668] sm:$0xff]
    %v276 = vld [vmem:[%s1 + $0x670] sm:$0xff]
    %v277 = vld [vmem:[%s1 + $0x678] sm:$0xf]
    %v278 = vld [vmem:[%s1 + $0x67c] sm:$0xff]
    %v279 = vld [vmem:[%s1 + $0x684] sm:$0xff]
    %v280 = vld [vmem:[%s1 + $0x68c] sm:$0xf]
    %v281 = vld [vmem:[%s1 + $0x690] sm:$0xff]
    %v282 = vld [vmem:[%s1 + $0x698] sm:$0xff]
    %v283 = vld [vmem:[%s1 + $0x6a0] sm:$0xf]
    %v284 = vld [vmem:[%s1 + $0x6a4] sm:$0xff]
    %v285 = vld [vmem:[%s1 + $0x6ac] sm:$0xff]
    %v286 = vld [vmem:[%s1 + $0x6b4] sm:$0xf]
    %v287 = vld [vmem:[%s1 + $0x6b8] sm:$0xff]
    %v288 = vld [vmem:[%s1 + $0x6c0] sm:$0xff]
    %v289 = vld [vmem:[%s1 + $0x6c8] sm:$0xf]
    %v290 = vld [vmem:[%s1 + $0x6cc] sm:$0xff]
    %v291 = vld [vmem:[%s1 + $0x6d4] sm:$0xff]
    %v292 = vld [vmem:[%s1 + $0x6dc] sm:$0xf]
    %v293 = vld [vmem:[%s1 + $0x6e0] sm:$0xff]
    %v294 = vld [vmem:[%s1 + $0x6e8] sm:$0xff]
    %v295 = vld [vmem:[%s1 + $0x6f0] sm:$0xf]
    %v296 = vld [vmem:[%s1 + $0x6f4] sm:$0xff]
    %v297 = vld [vmem:[%s1 + $0x6fc] sm:$0xff]
    %v298 = vld [vmem:[%s1 + $0x704] sm:$0xf]
    %v299 = vld [vmem:[%s1 + $0x708] sm:$0xff]
    %v300 = vld [vmem:[%s1 + $0x710] sm:$0xff]
    %v301 = vld [vmem:[%s1 + $0x718] sm:$0xf]
    %v302 = vld [vmem:[%s1 + $0x71c] sm:$0xff]
    %v303 = vld [vmem:[%s1 + $0x724] sm:$0xff]
    %v304 = vld [vmem:[%s1 + $0x72c] sm:$0xf]
    %v305 = vld [vmem:[%s1 + $0x730] sm:$0xff]
    %v306 = vld [vmem:[%s1 + $0x738] sm:$0xff]
    %v307 = vld [vmem:[%s1 + $0x740] sm:$0xf]
    %v308 = vld [vmem:[%s1 + $0x744] sm:$0xff]
    %v309 = vld [vmem:[%s1 + $0x74c] sm:$0xff]
    %v310 = vld [vmem:[%s1 + $0x754] sm:$0xf]
    %v311 = vld [vmem:[%s1 + $0x758] sm:$0xff]
    %v312 = vld [vmem:[%s1 + $0x760] sm:$0xff]
    %v313 = vld [vmem:[%s1 + $0x768] sm:$0xf]
    %v314 = vld [vmem:[%s1 + $0x76c] sm:$0xff]
    %v315 = vld [vmem:[%s1 + $0x774] sm:$0xff]
    %v316 = vld [vmem:[%s1 + $0x77c] sm:$0xf]
    %v317 = vld [vmem:[%s1 + $0x780] sm:$0xff]
    %v318 = vld [vmem:[%s1 + $0x788] sm:$0xff]
    %v319 = vld [vmem:[%s1 + $0x790] sm:$0xf]
    %v320 = vld [vmem:[%s1 + $0x794] sm:$0xff]
    %v321 = vld [vmem:[%s1 + $0x79c] sm:$0xff]
    %v322 = vld [vmem:[%s1 + $0x7a4] sm:$0xf]
    %v323 = vld [vmem:[%s1 + $0x7a8] sm:$0xff]
    %v324 = vld [vmem:[%s1 + $0x7b0] sm:$0xff]
    %v325 = vld [vmem:[%s1 + $0x7b8] sm:$0xf]
    %v326 = vld [vmem:[%s1 + $0x7bc] sm:$0xff]
    %v327 = vld [vmem:[%s1 + $0x7c4] sm:$0xff]
    %v328 = vld [vmem:[%s1 + $0x7cc] sm:$0xf]
    %v329 = vld [vmem:[%s1 + $0x7d0] sm:$0xff]
    %v330 = vld [vmem:[%s1 + $0x7d8] sm:$0xff]
    %v331 = vld [vmem:[%s1 + $0x7e0] sm:$0xf]
    %v332 = vld [vmem:[%s1 + $0x7e4] sm:$0xff]
    %v333 = vld [vmem:[%s1 + $0x7ec] sm:$0xff]
    %v334 = vld [vmem:[%s1 + $0x7f4] sm:$0xf]
    %v335 = vld [vmem:[%s1 + $0x7f8] sm:$0xff]
    %v336 = vld [vmem:[%s1 + $0x800] sm:$0xff]
    %v337 = vld [vmem:[%s1 + $0x808] sm:$0xf]
    %v338 = vld [vmem:[%s1 + $0x80c] sm:$0xff]
    %v339 = vld [vmem:[%s1 + $0x814] sm:$0xff]
    %v340 = vld [vmem:[%s1 + $0x81c] sm:$0xf]
    %v341 = vld [vmem:[%s1 + $0x820] sm:$0xff]
    %v342 = vld [vmem:[%s1 + $0x828] sm:$0xff]
    %v343 = vld [vmem:[%s1 + $0x830] sm:$0xf]
    %v344 = vld [vmem:[%s1 + $0x834] sm:$0xff]
    %v345 = vld [vmem:[%s1 + $0x83c] sm:$0xff]
    %v346 = vld [vmem:[%s1 + $0x844] sm:$0xf]
    %v347 = vld [vmem:[%s1 + $0x848] sm:$0xff]
    %v348 = vld [vmem:[%s1 + $0x850] sm:$0xff]
    %v349 = vld [vmem:[%s1 + $0x858] sm:$0xf]
    %v350 = vld [vmem:[%s1 + $0x85c] sm:$0xff]
    %v351 = vld [vmem:[%s1 + $0x864] sm:$0xff]
    %v352 = vld [vmem:[%s1 + $0x86c] sm:$0xf]
    %v353 = vld [vmem:[%s1 + $0x870] sm:$0xff]
    %v354 = vld [vmem:[%s1 + $0x878] sm:$0xff]
    %v355 = vld [vmem:[%s1 + $0x880] sm:$0xf]
    %v356 = vld [vmem:[%s1 + $0x884] sm:$0xff]
    %v357 = vld [vmem:[%s1 + $0x88c] sm:$0xff]
    %v358 = vld [vmem:[%s1 + $0x894] sm:$0xf]
    %v359 = vld [vmem:[%s1 + $0x898] sm:$0xff]
    %v360 = vld [vmem:[%s1 + $0x8a0] sm:$0xff]
    %v361 = vld [vmem:[%s1 + $0x8a8] sm:$0xf]
    %v362 = vld [vmem:[%s1 + $0x8ac] sm:$0xff]
    %v363 = vld [vmem:[%s1 + $0x8b4] sm:$0xff]
    %v364 = vld [vmem:[%s1 + $0x8bc] sm:$0xf]
    %v365 = vld [vmem:[%s1 + $0x8c0] sm:$0xff]
    %v366 = vld [vmem:[%s1 + $0x8c8] sm:$0xff]
    %v367 = vld [vmem:[%s1 + $0x8d0] sm:$0xf]
    %v368 = vld [vmem:[%s1 + $0x8d4] sm:$0xff]
    %v369 = vld [vmem:[%s1 + $0x8dc] sm:$0xff]
    %v370 = vld [vmem:[%s1 + $0x8e4] sm:$0xf]
    %v371 = vld [vmem:[%s1 + $0x8e8] sm:$0xff]
    %v372 = vld [vmem:[%s1 + $0x8f0] sm:$0xff]
    %v373 = vld [vmem:[%s1 + $0x8f8] sm:$0xf]
    %v374 = vld [vmem:[%s1 + $0x8fc] sm:$0xff]
    %v375 = vld [vmem:[%s1 + $0x904] sm:$0xff]
    %v376 = vld [vmem:[%s1 + $0x90c] sm:$0xf]
    %v377 = vld [vmem:[%s1 + $0x910] sm:$0xff]
    %v378 = vld [vmem:[%s1 + $0x918] sm:$0xff]
    %v379 = vld [vmem:[%s1 + $0x920] sm:$0xf]
    %v380 = vld [vmem:[%s1 + $0x924] sm:$0xff]
    %v381 = vld [vmem:[%s1 + $0x92c] sm:$0xff]
    %v382 = vld [vmem:[%s1 + $0x934] sm:$0xf]
    %v383 = vld [vmem:[%s1 + $0x938] sm:$0xff]
    %v384 = vld [vmem:[%s1 + $0x940] sm:$0xff]
    %v385 = vld [vmem:[%s1 + $0x948] sm:$0xf]
    %v386 = vld [vmem:[%s1 + $0x94c] sm:$0xff]
    %v387 = vld [vmem:[%s1 + $0x954] sm:$0xff]
    %v388 = vld [vmem:[%s1 + $0x95c] sm:$0xf]
    %v389 = vld [vmem:[%s1 + $0x960] sm:$0xff]
    %v390 = vld [vmem:[%s1 + $0x968] sm:$0xff]
    %v391 = vld [vmem:[%s1 + $0x970] sm:$0xf]
    %v392 = vld [vmem:[%s1 + $0x974] sm:$0xff]
    %v393 = vld [vmem:[%s1 + $0x97c] sm:$0xff]
    %v394 = vld [vmem:[%s1 + $0x984] sm:$0xf]
    %v395 = vld [vmem:[%s1 + $0x988] sm:$0xff]
    %v396 = vld [vmem:[%s1 + $0x990] sm:$0xff]
    %v397 = vld [vmem:[%s1 + $0x998] sm:$0xf]
    %v398 = vld [vmem:[%s1 + $0x99c] sm:$0xff]
    %v399 = vld [vmem:[%s1 + $0x9a4] sm:$0xff]
    %v400 = vld [vmem:[%s1 + $0x9ac] sm:$0xf]
    %v401 = vld [vmem:[%s1 + $0x9b0] sm:$0xff]
    %v402 = vld [vmem:[%s1 + $0x9b8] sm:$0xff]
    %v403 = vld [vmem:[%s1 + $0x9c0] sm:$0xf]
    %v404 = vld [vmem:[%s1 + $0x9c4] sm:$0xff]
    %v405 = vld [vmem:[%s1 + $0x9cc] sm:$0xff]
    %v406 = vld [vmem:[%s1 + $0x9d4] sm:$0xf]
    %v407 = vld [vmem:[%s1 + $0x9d8] sm:$0xff]
    %v408 = vld [vmem:[%s1 + $0x9e0] sm:$0xff]
    %v409 = vld [vmem:[%s1 + $0x9e8] sm:$0xf]
    %v410 = vld [vmem:[%s1 + $0x9ec] sm:$0xff]
    %v411 = vld [vmem:[%s1 + $0x9f4] sm:$0xff]
    %v412 = vld [vmem:[%s1 + $0x9fc] sm:$0xf]
    %v413 = vld [vmem:[%s2] sm:$0x1f]
    %v415 = vlaneseq
    %v416 = vshrl.u32 %v415, 7
    %v417 = vsub.s32 0, %v416
    %v418 = vrot.slane %v413, %v417
    %v419 = vlaneseq
    %v420 = vshrl.u32 %v419, 7
    %v421 = vsub.s32 1, %v420
    %v422 = vrot.slane %v413, %v421
    %v423 = vlaneseq
    %v424 = vshrl.u32 %v423, 7
    %v425 = vsub.s32 2, %v424
    %v426 = vrot.slane %v413, %v425
    %v427 = vlaneseq
    %v428 = vshrl.u32 %v427, 7
    %v429 = vsub.s32 3, %v428
    %v430 = vrot.slane %v413, %v429
    %v431 = vlaneseq
    %v432 = vshrl.u32 %v431, 7
    %v433 = vsub.s32 4, %v432
    %v434 = vrot.slane %v413, %v433
    %v441 = vcombine.high %v28, %v28
    %v443 = vunpack.c.l.s4 1966171168
    %v444 = vunpack.c.0.s8 %v443
    %v445 = vlaneseq
    %v446 = vshrl.u32 %v445, 7
    %v447 = vsub.s32 %v444, %v446
    %v448 = vrot.slane %v28, %v447
    %v450 = vunpack.c.l.s4 1966171168
    %v451 = vunpack.c.0.s8 %v450
    %v452 = vlaneseq
    %v453 = vshrl.u32 %v452, 7
    %v454 = vsub.s32 %v451, %v453
    %v455 = vrot.slane %v441, %v454
    %v456 = vcombine.high %v448, %v448
    %v457 = vcombine.high %v455, %v455
    %v459 = vunpack.c.l.s4 1966171168
    %v460 = vunpack.c.0.s8 %v459
    %v461 = vlaneseq
    %v462 = vshrl.u32 %v461, 7
    %v463 = vsub.s32 %v460, %v462
    %v464 = vrot.slane %v448, %v463
    %v466 = vunpack.c.l.s4 1966171168
    %v467 = vunpack.c.0.s8 %v466
    %v468 = vlaneseq
    %v469 = vshrl.u32 %v468, 7
    %v470 = vsub.s32 %v467, %v469
    %v471 = vrot.slane %v455, %v470
    %v473 = vunpack.c.l.s4 1966171168
    %v474 = vunpack.c.0.s8 %v473
    %v475 = vlaneseq
    %v476 = vshrl.u32 %v475, 7
    %v477 = vsub.s32 %v474, %v476
    %v478 = vrot.slane %v456, %v477
    %v480 = vunpack.c.l.s4 1966171168
    %v481 = vunpack.c.0.s8 %v480
    %v482 = vlaneseq
    %v483 = vshrl.u32 %v482, 7
    %v484 = vsub.s32 %v481, %v483
    %v485 = vrot.slane %v457, %v484
    %v486 = vcombine.high %v464, %v464
    %v487 = vcombine.high %v471, %v471
    %v488 = vcombine.high %v478, %v478
    %v489 = vcombine.high %v485, %v485
    %v882 = vunpack.c.l.b16 %v29
    %v883 = vunpack.c.h.b16 %v29
    %v884 = vunpack.c.l.b16 %v30
    %v885 = vunpack.c.h.b16 %v30
    %v886 = vunpack.c.l.b16 %v31
    %v887 = vunpack.c.l.b16 %v32
    %v888 = vunpack.c.h.b16 %v32
    %v889 = vunpack.c.l.b16 %v33
    %v890 = vunpack.c.h.b16 %v33
    %v891 = vunpack.c.l.b16 %v34
    %v892 = vunpack.c.l.b16 %v35
    %v893 = vunpack.c.h.b16 %v35
    %v894 = vunpack.c.l.b16 %v36
    %v895 = vunpack.c.h.b16 %v36
    %v896 = vunpack.c.l.b16 %v37
    %v897 = vunpack.c.l.b16 %v38
    %v898 = vunpack.c.h.b16 %v38
    %v899 = vunpack.c.l.b16 %v39
    %v900 = vunpack.c.h.b16 %v39
    %v901 = vunpack.c.l.b16 %v40
    %v902 = vunpack.c.l.b16 %v41
    %v903 = vunpack.c.h.b16 %v41
    %v904 = vunpack.c.l.b16 %v42
    %v905 = vunpack.c.h.b16 %v42
    %v906 = vunpack.c.l.b16 %v43
    %v907 = vunpack.c.l.b16 %v44
    %v908 = vunpack.c.h.b16 %v44
    %v909 = vunpack.c.l.b16 %v45
    %v910 = vunpack.c.h.b16 %v45
    %v911 = vunpack.c.l.b16 %v46
    %v912 = vunpack.c.l.b16 %v47
    %v913 = vunpack.c.h.b16 %v47
    %v914 = vunpack.c.l.b16 %v48
    %v915 = vunpack.c.h.b16 %v48
    %v916 = vunpack.c.l.b16 %v49
    %v917 = vunpack.c.l.b16 %v50
    %v918 = vunpack.c.h.b16 %v50
    %v919 = vunpack.c.l.b16 %v51
    %v920 = vunpack.c.h.b16 %v51
    %v921 = vunpack.c.l.b16 %v52
    %v922 = vunpack.c.l.b16 %v53
    %v923 = vunpack.c.h.b16 %v53
    %v924 = vunpack.c.l.b16 %v54
    %v925 = vunpack.c.h.b16 %v54
    %v926 = vunpack.c.l.b16 %v55
    %v927 = vunpack.c.l.b16 %v56
    %v928 = vunpack.c.h.b16 %v56
    %v929 = vunpack.c.l.b16 %v57
    %v930 = vunpack.c.h.b16 %v57
    %v931 = vunpack.c.l.b16 %v58
    %v932 = vunpack.c.l.b16 %v59
    %v933 = vunpack.c.h.b16 %v59
    %v934 = vunpack.c.l.b16 %v60
    %v935 = vunpack.c.h.b16 %v60
    %v936 = vunpack.c.l.b16 %v61
    %v937 = vunpack.c.l.b16 %v62
    %v938 = vunpack.c.h.b16 %v62
    %v939 = vunpack.c.l.b16 %v63
    %v940 = vunpack.c.h.b16 %v63
    %v941 = vunpack.c.l.b16 %v64
    %v942 = vunpack.c.l.b16 %v65
    %v943 = vunpack.c.h.b16 %v65
    %v944 = vunpack.c.l.b16 %v66
    %v945 = vunpack.c.h.b16 %v66
    %v946 = vunpack.c.l.b16 %v67
    %v947 = vunpack.c.l.b16 %v68
    %v948 = vunpack.c.h.b16 %v68
    %v949 = vunpack.c.l.b16 %v69
    %v950 = vunpack.c.h.b16 %v69
    %v951 = vunpack.c.l.b16 %v70
    %v952 = vunpack.c.l.b16 %v71
    %v953 = vunpack.c.h.b16 %v71
    %v954 = vunpack.c.l.b16 %v72
    %v955 = vunpack.c.h.b16 %v72
    %v956 = vunpack.c.l.b16 %v73
    %v957 = vunpack.c.l.b16 %v74
    %v958 = vunpack.c.h.b16 %v74
    %v959 = vunpack.c.l.b16 %v75
    %v960 = vunpack.c.h.b16 %v75
    %v961 = vunpack.c.l.b16 %v76
    %v962 = vunpack.c.l.b16 %v77
    %v963 = vunpack.c.h.b16 %v77
    %v964 = vunpack.c.l.b16 %v78
    %v965 = vunpack.c.h.b16 %v78
    %v966 = vunpack.c.l.b16 %v79
    %v967 = vunpack.c.l.b16 %v80
    %v968 = vunpack.c.h.b16 %v80
    %v969 = vunpack.c.l.b16 %v81
    %v970 = vunpack.c.h.b16 %v81
    %v971 = vunpack.c.l.b16 %v82
    %v972 = vunpack.c.l.b16 %v83
    %v973 = vunpack.c.h.b16 %v83
    %v974 = vunpack.c.l.b16 %v84
    %v975 = vunpack.c.h.b16 %v84
    %v976 = vunpack.c.l.b16 %v85
    %v977 = vunpack.c.l.b16 %v86
    %v978 = vunpack.c.h.b16 %v86
    %v979 = vunpack.c.l.b16 %v87
    %v980 = vunpack.c.h.b16 %v87
    %v981 = vunpack.c.l.b16 %v88
    %v982 = vunpack.c.l.b16 %v89
    %v983 = vunpack.c.h.b16 %v89
    %v984 = vunpack.c.l.b16 %v90
    %v985 = vunpack.c.h.b16 %v90
    %v986 = vunpack.c.l.b16 %v91
    %v987 = vunpack.c.l.b16 %v92
    %v988 = vunpack.c.h.b16 %v92
    %v989 = vunpack.c.l.b16 %v93
    %v990 = vunpack.c.h.b16 %v93
    %v991 = vunpack.c.l.b16 %v94
    %v992 = vunpack.c.l.b16 %v95
    %v993 = vunpack.c.h.b16 %v95
    %v994 = vunpack.c.l.b16 %v96
    %v995 = vunpack.c.h.b16 %v96
    %v996 = vunpack.c.l.b16 %v97
    %v997 = vunpack.c.l.b16 %v98
    %v998 = vunpack.c.h.b16 %v98
    %v999 = vunpack.c.l.b16 %v99
    %v1000 = vunpack.c.h.b16 %v99
    %v1001 = vunpack.c.l.b16 %v100
    %v1002 = vunpack.c.l.b16 %v101
    %v1003 = vunpack.c.h.b16 %v101
    %v1004 = vunpack.c.l.b16 %v102
    %v1005 = vunpack.c.h.b16 %v102
    %v1006 = vunpack.c.l.b16 %v103
    %v1007 = vunpack.c.l.b16 %v104
    %v1008 = vunpack.c.h.b16 %v104
    %v1009 = vunpack.c.l.b16 %v105
    %v1010 = vunpack.c.h.b16 %v105
    %v1011 = vunpack.c.l.b16 %v106
    %v1012 = vunpack.c.l.b16 %v107
    %v1013 = vunpack.c.h.b16 %v107
    %v1014 = vunpack.c.l.b16 %v108
    %v1015 = vunpack.c.h.b16 %v108
    %v1016 = vunpack.c.l.b16 %v109
    %v1017 = vunpack.c.l.b16 %v110
    %v1018 = vunpack.c.h.b16 %v110
    %v1019 = vunpack.c.l.b16 %v111
    %v1020 = vunpack.c.h.b16 %v111
    %v1021 = vunpack.c.l.b16 %v112
    %v1022 = vunpack.c.l.b16 %v113
    %v1023 = vunpack.c.h.b16 %v113
    %v1024 = vunpack.c.l.b16 %v114
    %v1025 = vunpack.c.h.b16 %v114
    %v1026 = vunpack.c.l.b16 %v115
    %v1027 = vunpack.c.l.b16 %v116
    %v1028 = vunpack.c.h.b16 %v116
    %v1029 = vunpack.c.l.b16 %v117
    %v1030 = vunpack.c.h.b16 %v117
    %v1031 = vunpack.c.l.b16 %v118
    %v1032 = vunpack.c.l.b16 %v119
    %v1033 = vunpack.c.h.b16 %v119
    %v1034 = vunpack.c.l.b16 %v120
    %v1035 = vunpack.c.h.b16 %v120
    %v1036 = vunpack.c.l.b16 %v121
    %v1037 = vunpack.c.l.b16 %v122
    %v1038 = vunpack.c.h.b16 %v122
    %v1039 = vunpack.c.l.b16 %v123
    %v1040 = vunpack.c.h.b16 %v123
    %v1041 = vunpack.c.l.b16 %v124
    %v1042 = vunpack.c.l.b16 %v125
    %v1043 = vunpack.c.h.b16 %v125
    %v1044 = vunpack.c.l.b16 %v126
    %v1045 = vunpack.c.h.b16 %v126
    %v1046 = vunpack.c.l.b16 %v127
    %v1047 = vunpack.c.l.b16 %v128
    %v1048 = vunpack.c.h.b16 %v128
    %v1049 = vunpack.c.l.b16 %v129
    %v1050 = vunpack.c.h.b16 %v129
    %v1051 = vunpack.c.l.b16 %v130
    %v1052 = vunpack.c.l.b16 %v131
    %v1053 = vunpack.c.h.b16 %v131
    %v1054 = vunpack.c.l.b16 %v132
    %v1055 = vunpack.c.h.b16 %v132
    %v1056 = vunpack.c.l.b16 %v133
    %v1057 = vunpack.c.l.b16 %v134
    %v1058 = vunpack.c.h.b16 %v134
    %v1059 = vunpack.c.l.b16 %v135
    %v1060 = vunpack.c.h.b16 %v135
    %v1061 = vunpack.c.l.b16 %v136
    %v1062 = vunpack.c.l.b16 %v137
    %v1063 = vunpack.c.h.b16 %v137
    %v1064 = vunpack.c.l.b16 %v138
    %v1065 = vunpack.c.h.b16 %v138
    %v1066 = vunpack.c.l.b16 %v139
    %v1067 = vunpack.c.l.b16 %v140
    %v1068 = vunpack.c.h.b16 %v140
    %v1069 = vunpack.c.l.b16 %v141
    %v1070 = vunpack.c.h.b16 %v141
    %v1071 = vunpack.c.l.b16 %v142
    %v1072 = vunpack.c.l.b16 %v143
    %v1073 = vunpack.c.h.b16 %v143
    %v1074 = vunpack.c.l.b16 %v144
    %v1075 = vunpack.c.h.b16 %v144
    %v1076 = vunpack.c.l.b16 %v145
    %v1077 = vunpack.c.l.b16 %v146
    %v1078 = vunpack.c.h.b16 %v146
    %v1079 = vunpack.c.l.b16 %v147
    %v1080 = vunpack.c.h.b16 %v147
    %v1081 = vunpack.c.l.b16 %v148
    %v1082 = vunpack.c.l.b16 %v149
    %v1083 = vunpack.c.h.b16 %v149
    %v1084 = vunpack.c.l.b16 %v150
    %v1085 = vunpack.c.h.b16 %v150
    %v1086 = vunpack.c.l.b16 %v151
    %v1087 = vunpack.c.l.b16 %v152
    %v1088 = vunpack.c.h.b16 %v152
    %v1089 = vunpack.c.l.b16 %v153
    %v1090 = vunpack.c.h.b16 %v153
    %v1091 = vunpack.c.l.b16 %v154
    %v1092 = vunpack.c.l.b16 %v155
    %v1093 = vunpack.c.h.b16 %v155
    %v1094 = vunpack.c.l.b16 %v156
    %v1095 = vunpack.c.h.b16 %v156
    %v1096 = vunpack.c.l.b16 %v157
    %v1097 = vunpack.c.l.b16 %v158
    %v1098 = vunpack.c.h.b16 %v158
    %v1099 = vunpack.c.l.b16 %v159
    %v1100 = vunpack.c.h.b16 %v159
    %v1101 = vunpack.c.l.b16 %v160
    %v1102 = vunpack.c.l.b16 %v161
    %v1103 = vunpack.c.h.b16 %v161
    %v1104 = vunpack.c.l.b16 %v162
    %v1105 = vunpack.c.h.b16 %v162
    %v1106 = vunpack.c.l.b16 %v163
    %v1107 = vunpack.c.l.b16 %v164
    %v1108 = vunpack.c.h.b16 %v164
    %v1109 = vunpack.c.l.b16 %v165
    %v1110 = vunpack.c.h.b16 %v165
    %v1111 = vunpack.c.l.b16 %v166
    %v1112 = vunpack.c.l.b16 %v167
    %v1113 = vunpack.c.h.b16 %v167
    %v1114 = vunpack.c.l.b16 %v168
    %v1115 = vunpack.c.h.b16 %v168
    %v1116 = vunpack.c.l.b16 %v169
    %v1117 = vunpack.c.l.b16 %v170
    %v1118 = vunpack.c.h.b16 %v170
    %v1119 = vunpack.c.l.b16 %v171
    %v1120 = vunpack.c.h.b16 %v171
    %v1121 = vunpack.c.l.b16 %v172
    %v1122 = vunpack.c.l.b16 %v173
    %v1123 = vunpack.c.h.b16 %v173
    %v1124 = vunpack.c.l.b16 %v174
    %v1125 = vunpack.c.h.b16 %v174
    %v1126 = vunpack.c.l.b16 %v175
    %v1127 = vunpack.c.l.b16 %v176
    %v1128 = vunpack.c.h.b16 %v176
    %v1129 = vunpack.c.l.b16 %v177
    %v1130 = vunpack.c.h.b16 %v177
    %v1131 = vunpack.c.l.b16 %v178
    %v1132 = vunpack.c.l.b16 %v179
    %v1133 = vunpack.c.h.b16 %v179
    %v1134 = vunpack.c.l.b16 %v180
    %v1135 = vunpack.c.h.b16 %v180
    %v1136 = vunpack.c.l.b16 %v181
    %v1137 = vunpack.c.l.b16 %v182
    %v1138 = vunpack.c.h.b16 %v182
    %v1139 = vunpack.c.l.b16 %v183
    %v1140 = vunpack.c.h.b16 %v183
    %v1141 = vunpack.c.l.b16 %v184
    %v1142 = vunpack.c.l.b16 %v185
    %v1143 = vunpack.c.h.b16 %v185
    %v1144 = vunpack.c.l.b16 %v186
    %v1145 = vunpack.c.h.b16 %v186
    %v1146 = vunpack.c.l.b16 %v187
    %v1147 = vunpack.c.l.b16 %v188
    %v1148 = vunpack.c.h.b16 %v188
    %v1149 = vunpack.c.l.b16 %v189
    %v1150 = vunpack.c.h.b16 %v189
    %v1151 = vunpack.c.l.b16 %v190
    %v1152 = vunpack.c.l.b16 %v191
    %v1153 = vunpack.c.h.b16 %v191
    %v1154 = vunpack.c.l.b16 %v192
    %v1155 = vunpack.c.h.b16 %v192
    %v1156 = vunpack.c.l.b16 %v193
    %v1157 = vunpack.c.l.b16 %v194
    %v1158 = vunpack.c.h.b16 %v194
    %v1159 = vunpack.c.l.b16 %v195
    %v1160 = vunpack.c.h.b16 %v195
    %v1161 = vunpack.c.l.b16 %v196
    %v1162 = vunpack.c.l.b16 %v197
    %v1163 = vunpack.c.h.b16 %v197
    %v1164 = vunpack.c.l.b16 %v198
    %v1165 = vunpack.c.h.b16 %v198
    %v1166 = vunpack.c.l.b16 %v199
    %v1167 = vunpack.c.l.b16 %v200
    %v1168 = vunpack.c.h.b16 %v200
    %v1169 = vunpack.c.l.b16 %v201
    %v1170 = vunpack.c.h.b16 %v201
    %v1171 = vunpack.c.l.b16 %v202
    %v1172 = vunpack.c.l.b16 %v203
    %v1173 = vunpack.c.h.b16 %v203
    %v1174 = vunpack.c.l.b16 %v204
    %v1175 = vunpack.c.h.b16 %v204
    %v1176 = vunpack.c.l.b16 %v205
    %v1177 = vunpack.c.l.b16 %v206
    %v1178 = vunpack.c.h.b16 %v206
    %v1179 = vunpack.c.l.b16 %v207
    %v1180 = vunpack.c.h.b16 %v207
    %v1181 = vunpack.c.l.b16 %v208
    %v1182 = vunpack.c.l.b16 %v209
    %v1183 = vunpack.c.h.b16 %v209
    %v1184 = vunpack.c.l.b16 %v210
    %v1185 = vunpack.c.h.b16 %v210
    %v1186 = vunpack.c.l.b16 %v211
    %v1187 = vunpack.c.l.b16 %v212
    %v1188 = vunpack.c.h.b16 %v212
    %v1189 = vunpack.c.l.b16 %v213
    %v1190 = vunpack.c.h.b16 %v213
    %v1191 = vunpack.c.l.b16 %v214
    %v1192 = vunpack.c.l.b16 %v215
    %v1193 = vunpack.c.h.b16 %v215
    %v1194 = vunpack.c.l.b16 %v216
    %v1195 = vunpack.c.h.b16 %v216
    %v1196 = vunpack.c.l.b16 %v217
    %v1197 = vunpack.c.l.b16 %v218
    %v1198 = vunpack.c.h.b16 %v218
    %v1199 = vunpack.c.l.b16 %v219
    %v1200 = vunpack.c.h.b16 %v219
    %v1201 = vunpack.c.l.b16 %v220
    %v1202 = vunpack.c.l.b16 %v221
    %v1203 = vunpack.c.h.b16 %v221
    %v1204 = vunpack.c.l.b16 %v222
    %v1205 = vunpack.c.h.b16 %v222
    %v1206 = vunpack.c.l.b16 %v223
    %v1207 = vunpack.c.l.b16 %v224
    %v1208 = vunpack.c.h.b16 %v224
    %v1209 = vunpack.c.l.b16 %v225
    %v1210 = vunpack.c.h.b16 %v225
    %v1211 = vunpack.c.l.b16 %v226
    %v1212 = vunpack.c.l.b16 %v227
    %v1213 = vunpack.c.h.b16 %v227
    %v1214 = vunpack.c.l.b16 %v228
    %v1215 = vunpack.c.h.b16 %v228
    %v1216 = vunpack.c.l.b16 %v229
    %v1217 = vunpack.c.l.b16 %v230
    %v1218 = vunpack.c.h.b16 %v230
    %v1219 = vunpack.c.l.b16 %v231
    %v1220 = vunpack.c.h.b16 %v231
    %v1221 = vunpack.c.l.b16 %v232
    %v1222 = vunpack.c.l.b16 %v233
    %v1223 = vunpack.c.h.b16 %v233
    %v1224 = vunpack.c.l.b16 %v234
    %v1225 = vunpack.c.h.b16 %v234
    %v1226 = vunpack.c.l.b16 %v235
    %v1227 = vunpack.c.l.b16 %v236
    %v1228 = vunpack.c.h.b16 %v236
    %v1229 = vunpack.c.l.b16 %v237
    %v1230 = vunpack.c.h.b16 %v237
    %v1231 = vunpack.c.l.b16 %v238
    %v1232 = vunpack.c.l.b16 %v239
    %v1233 = vunpack.c.h.b16 %v239
    %v1234 = vunpack.c.l.b16 %v240
    %v1235 = vunpack.c.h.b16 %v240
    %v1236 = vunpack.c.l.b16 %v241
    %v1237 = vunpack.c.l.b16 %v242
    %v1238 = vunpack.c.h.b16 %v242
    %v1239 = vunpack.c.l.b16 %v243
    %v1240 = vunpack.c.h.b16 %v243
    %v1241 = vunpack.c.l.b16 %v244
    %v1242 = vunpack.c.l.b16 %v245
    %v1243 = vunpack.c.h.b16 %v245
    %v1244 = vunpack.c.l.b16 %v246
    %v1245 = vunpack.c.h.b16 %v246
    %v1246 = vunpack.c.l.b16 %v247
    %v1247 = vunpack.c.l.b16 %v248
    %v1248 = vunpack.c.h.b16 %v248
    %v1249 = vunpack.c.l.b16 %v249
    %v1250 = vunpack.c.h.b16 %v249
    %v1251 = vunpack.c.l.b16 %v250
    %v1252 = vunpack.c.l.b16 %v251
    %v1253 = vunpack.c.h.b16 %v251
    %v1254 = vunpack.c.l.b16 %v252
    %v1255 = vunpack.c.h.b16 %v252
    %v1256 = vunpack.c.l.b16 %v253
    %v1257 = vunpack.c.l.b16 %v254
    %v1258 = vunpack.c.h.b16 %v254
    %v1259 = vunpack.c.l.b16 %v255
    %v1260 = vunpack.c.h.b16 %v255
    %v1261 = vunpack.c.l.b16 %v256
    %v1262 = vunpack.c.l.b16 %v257
    %v1263 = vunpack.c.h.b16 %v257
    %v1264 = vunpack.c.l.b16 %v258
    %v1265 = vunpack.c.h.b16 %v258
    %v1266 = vunpack.c.l.b16 %v259
    %v1267 = vunpack.c.l.b16 %v260
    %v1268 = vunpack.c.h.b16 %v260
    %v1269 = vunpack.c.l.b16 %v261
    %v1270 = vunpack.c.h.b16 %v261
    %v1271 = vunpack.c.l.b16 %v262
    %v1272 = vunpack.c.l.b16 %v263
    %v1273 = vunpack.c.h.b16 %v263
    %v1274 = vunpack.c.l.b16 %v264
    %v1275 = vunpack.c.h.b16 %v264
    %v1276 = vunpack.c.l.b16 %v265
    %v1277 = vunpack.c.l.b16 %v266
    %v1278 = vunpack.c.h.b16 %v266
    %v1279 = vunpack.c.l.b16 %v267
    %v1280 = vunpack.c.h.b16 %v267
    %v1281 = vunpack.c.l.b16 %v268
    %v1282 = vunpack.c.l.b16 %v269
    %v1283 = vunpack.c.h.b16 %v269
    %v1284 = vunpack.c.l.b16 %v270
    %v1285 = vunpack.c.h.b16 %v270
    %v1286 = vunpack.c.l.b16 %v271
    %v1287 = vunpack.c.l.b16 %v272
    %v1288 = vunpack.c.h.b16 %v272
    %v1289 = vunpack.c.l.b16 %v273
    %v1290 = vunpack.c.h.b16 %v273
    %v1291 = vunpack.c.l.b16 %v274
    %v1292 = vunpack.c.l.b16 %v275
    %v1293 = vunpack.c.h.b16 %v275
    %v1294 = vunpack.c.l.b16 %v276
    %v1295 = vunpack.c.h.b16 %v276
    %v1296 = vunpack.c.l.b16 %v277
    %v1297 = vunpack.c.l.b16 %v278
    %v1298 = vunpack.c.h.b16 %v278
    %v1299 = vunpack.c.l.b16 %v279
    %v1300 = vunpack.c.h.b16 %v279
    %v1301 = vunpack.c.l.b16 %v280
    %v1302 = vunpack.c.l.b16 %v281
    %v1303 = vunpack.c.h.b16 %v281
    %v1304 = vunpack.c.l.b16 %v282
    %v1305 = vunpack.c.h.b16 %v282
    %v1306 = vunpack.c.l.b16 %v283
    %v1307 = vunpack.c.l.b16 %v284
    %v1308 = vunpack.c.h.b16 %v284
    %v1309 = vunpack.c.l.b16 %v285
    %v1310 = vunpack.c.h.b16 %v285
    %v1311 = vunpack.c.l.b16 %v286
    %v1312 = vunpack.c.l.b16 %v287
    %v1313 = vunpack.c.h.b16 %v287
    %v1314 = vunpack.c.l.b16 %v288
    %v1315 = vunpack.c.h.b16 %v288
    %v1316 = vunpack.c.l.b16 %v289
    %v1317 = vunpack.c.l.b16 %v290
    %v1318 = vunpack.c.h.b16 %v290
    %v1319 = vunpack.c.l.b16 %v291
    %v1320 = vunpack.c.h.b16 %v291
    %v1321 = vunpack.c.l.b16 %v292
    %v1322 = vunpack.c.l.b16 %v293
    %v1323 = vunpack.c.h.b16 %v293
    %v1324 = vunpack.c.l.b16 %v294
    %v1325 = vunpack.c.h.b16 %v294
    %v1326 = vunpack.c.l.b16 %v295
    %v1327 = vunpack.c.l.b16 %v296
    %v1328 = vunpack.c.h.b16 %v296
    %v1329 = vunpack.c.l.b16 %v297
    %v1330 = vunpack.c.h.b16 %v297
    %v1331 = vunpack.c.l.b16 %v298
    %v1332 = vunpack.c.l.b16 %v299
    %v1333 = vunpack.c.h.b16 %v299
    %v1334 = vunpack.c.l.b16 %v300
    %v1335 = vunpack.c.h.b16 %v300
    %v1336 = vunpack.c.l.b16 %v301
    %v1337 = vunpack.c.l.b16 %v302
    %v1338 = vunpack.c.h.b16 %v302
    %v1339 = vunpack.c.l.b16 %v303
    %v1340 = vunpack.c.h.b16 %v303
    %v1341 = vunpack.c.l.b16 %v304
    %v1342 = vunpack.c.l.b16 %v305
    %v1343 = vunpack.c.h.b16 %v305
    %v1344 = vunpack.c.l.b16 %v306
    %v1345 = vunpack.c.h.b16 %v306
    %v1346 = vunpack.c.l.b16 %v307
    %v1347 = vunpack.c.l.b16 %v308
    %v1348 = vunpack.c.h.b16 %v308
    %v1349 = vunpack.c.l.b16 %v309
    %v1350 = vunpack.c.h.b16 %v309
    %v1351 = vunpack.c.l.b16 %v310
    %v1352 = vunpack.c.l.b16 %v311
    %v1353 = vunpack.c.h.b16 %v311
    %v1354 = vunpack.c.l.b16 %v312
    %v1355 = vunpack.c.h.b16 %v312
    %v1356 = vunpack.c.l.b16 %v313
    %v1357 = vunpack.c.l.b16 %v314
    %v1358 = vunpack.c.h.b16 %v314
    %v1359 = vunpack.c.l.b16 %v315
    %v1360 = vunpack.c.h.b16 %v315
    %v1361 = vunpack.c.l.b16 %v316
    %v1362 = vunpack.c.l.b16 %v317
    %v1363 = vunpack.c.h.b16 %v317
    %v1364 = vunpack.c.l.b16 %v318
    %v1365 = vunpack.c.h.b16 %v318
    %v1366 = vunpack.c.l.b16 %v319
    %v1367 = vunpack.c.l.b16 %v320
    %v1368 = vunpack.c.h.b16 %v320
    %v1369 = vunpack.c.l.b16 %v321
    %v1370 = vunpack.c.h.b16 %v321
    %v1371 = vunpack.c.l.b16 %v322
    %v1372 = vunpack.c.l.b16 %v323
    %v1373 = vunpack.c.h.b16 %v323
    %v1374 = vunpack.c.l.b16 %v324
    %v1375 = vunpack.c.h.b16 %v324
    %v1376 = vunpack.c.l.b16 %v325
    %v1377 = vunpack.c.l.b16 %v326
    %v1378 = vunpack.c.h.b16 %v326
    %v1379 = vunpack.c.l.b16 %v327
    %v1380 = vunpack.c.h.b16 %v327
    %v1381 = vunpack.c.l.b16 %v328
    %v1382 = vunpack.c.l.b16 %v329
    %v1383 = vunpack.c.h.b16 %v329
    %v1384 = vunpack.c.l.b16 %v330
    %v1385 = vunpack.c.h.b16 %v330
    %v1386 = vunpack.c.l.b16 %v331
    %v1387 = vunpack.c.l.b16 %v332
    %v1388 = vunpack.c.h.b16 %v332
    %v1389 = vunpack.c.l.b16 %v333
    %v1390 = vunpack.c.h.b16 %v333
    %v1391 = vunpack.c.l.b16 %v334
    %v1392 = vunpack.c.l.b16 %v335
    %v1393 = vunpack.c.h.b16 %v335
    %v1394 = vunpack.c.l.b16 %v336
    %v1395 = vunpack.c.h.b16 %v336
    %v1396 = vunpack.c.l.b16 %v337
    %v1397 = vunpack.c.l.b16 %v338
    %v1398 = vunpack.c.h.b16 %v338
    %v1399 = vunpack.c.l.b16 %v339
    %v1400 = vunpack.c.h.b16 %v339
    %v1401 = vunpack.c.l.b16 %v340
    %v1402 = vunpack.c.l.b16 %v341
    %v1403 = vunpack.c.h.b16 %v341
    %v1404 = vunpack.c.l.b16 %v342
    %v1405 = vunpack.c.h.b16 %v342
    %v1406 = vunpack.c.l.b16 %v343
    %v1407 = vunpack.c.l.b16 %v344
    %v1408 = vunpack.c.h.b16 %v344
    %v1409 = vunpack.c.l.b16 %v345
    %v1410 = vunpack.c.h.b16 %v345
    %v1411 = vunpack.c.l.b16 %v346
    %v1412 = vunpack.c.l.b16 %v347
    %v1413 = vunpack.c.h.b16 %v347
    %v1414 = vunpack.c.l.b16 %v348
    %v1415 = vunpack.c.h.b16 %v348
    %v1416 = vunpack.c.l.b16 %v349
    %v1417 = vunpack.c.l.b16 %v350
    %v1418 = vunpack.c.h.b16 %v350
    %v1419 = vunpack.c.l.b16 %v351
    %v1420 = vunpack.c.h.b16 %v351
    %v1421 = vunpack.c.l.b16 %v352
    %v1422 = vunpack.c.l.b16 %v353
    %v1423 = vunpack.c.h.b16 %v353
    %v1424 = vunpack.c.l.b16 %v354
    %v1425 = vunpack.c.h.b16 %v354
    %v1426 = vunpack.c.l.b16 %v355
    %v1427 = vunpack.c.l.b16 %v356
    %v1428 = vunpack.c.h.b16 %v356
    %v1429 = vunpack.c.l.b16 %v357
    %v1430 = vunpack.c.h.b16 %v357
    %v1431 = vunpack.c.l.b16 %v358
    %v1432 = vunpack.c.l.b16 %v359
    %v1433 = vunpack.c.h.b16 %v359
    %v1434 = vunpack.c.l.b16 %v360
    %v1435 = vunpack.c.h.b16 %v360
    %v1436 = vunpack.c.l.b16 %v361
    %v1437 = vunpack.c.l.b16 %v362
    %v1438 = vunpack.c.h.b16 %v362
    %v1439 = vunpack.c.l.b16 %v363
    %v1440 = vunpack.c.h.b16 %v363
    %v1441 = vunpack.c.l.b16 %v364
    %v1442 = vunpack.c.l.b16 %v365
    %v1443 = vunpack.c.h.b16 %v365
    %v1444 = vunpack.c.l.b16 %v366
    %v1445 = vunpack.c.h.b16 %v366
    %v1446 = vunpack.c.l.b16 %v367
    %v1447 = vunpack.c.l.b16 %v368
    %v1448 = vunpack.c.h.b16 %v368
    %v1449 = vunpack.c.l.b16 %v369
    %v1450 = vunpack.c.h.b16 %v369
    %v1451 = vunpack.c.l.b16 %v370
    %v1452 = vunpack.c.l.b16 %v371
    %v1453 = vunpack.c.h.b16 %v371
    %v1454 = vunpack.c.l.b16 %v372
    %v1455 = vunpack.c.h.b16 %v372
    %v1456 = vunpack.c.l.b16 %v373
    %v1457 = vunpack.c.l.b16 %v374
    %v1458 = vunpack.c.h.b16 %v374
    %v1459 = vunpack.c.l.b16 %v375
    %v1460 = vunpack.c.h.b16 %v375
    %v1461 = vunpack.c.l.b16 %v376
    %v1462 = vunpack.c.l.b16 %v377
    %v1463 = vunpack.c.h.b16 %v377
    %v1464 = vunpack.c.l.b16 %v378
    %v1465 = vunpack.c.h.b16 %v378
    %v1466 = vunpack.c.l.b16 %v379
    %v1467 = vunpack.c.l.b16 %v380
    %v1468 = vunpack.c.h.b16 %v380
    %v1469 = vunpack.c.l.b16 %v381
    %v1470 = vunpack.c.h.b16 %v381
    %v1471 = vunpack.c.l.b16 %v382
    %v1472 = vunpack.c.l.b16 %v383
    %v1473 = vunpack.c.h.b16 %v383
    %v1474 = vunpack.c.l.b16 %v384
    %v1475 = vunpack.c.h.b16 %v384
    %v1476 = vunpack.c.l.b16 %v385
    %v1477 = vunpack.c.l.b16 %v386
    %v1478 = vunpack.c.h.b16 %v386
    %v1479 = vunpack.c.l.b16 %v387
    %v1480 = vunpack.c.h.b16 %v387
    %v1481 = vunpack.c.l.b16 %v388
    %v1482 = vunpack.c.l.b16 %v389
    %v1483 = vunpack.c.h.b16 %v389
    %v1484 = vunpack.c.l.b16 %v390
    %v1485 = vunpack.c.h.b16 %v390
    %v1486 = vunpack.c.l.b16 %v391
    %v1487 = vunpack.c.l.b16 %v392
    %v1488 = vunpack.c.h.b16 %v392
    %v1489 = vunpack.c.l.b16 %v393
    %v1490 = vunpack.c.h.b16 %v393
    %v1491 = vunpack.c.l.b16 %v394
    %v1492 = vunpack.c.l.b16 %v395
    %v1493 = vunpack.c.h.b16 %v395
    %v1494 = vunpack.c.l.b16 %v396
    %v1495 = vunpack.c.h.b16 %v396
    %v1496 = vunpack.c.l.b16 %v397
    %v1497 = vunpack.c.l.b16 %v398
    %v1498 = vunpack.c.h.b16 %v398
    %v1499 = vunpack.c.l.b16 %v399
    %v1500 = vunpack.c.h.b16 %v399
    %v1501 = vunpack.c.l.b16 %v400
    %v1502 = vunpack.c.l.b16 %v401
    %v1503 = vunpack.c.h.b16 %v401
    %v1504 = vunpack.c.l.b16 %v402
    %v1505 = vunpack.c.h.b16 %v402
    %v1506 = vunpack.c.l.b16 %v403
    %v1507 = vunpack.c.l.b16 %v404
    %v1508 = vunpack.c.h.b16 %v404
    %v1509 = vunpack.c.l.b16 %v405
    %v1510 = vunpack.c.h.b16 %v405
    %v1511 = vunpack.c.l.b16 %v406
    %v1512 = vunpack.c.l.b16 %v407
    %v1513 = vunpack.c.h.b16 %v407
    %v1514 = vunpack.c.l.b16 %v408
    %v1515 = vunpack.c.h.b16 %v408
    %v1516 = vunpack.c.l.b16 %v409
    %v1517 = vunpack.c.l.b16 %v410
    %v1518 = vunpack.c.h.b16 %v410
    %v1519 = vunpack.c.l.b16 %v411
    %v1520 = vunpack.c.h.b16 %v411
    %v1521 = vunpack.c.l.b16 %v412
    %v1522 = vpack.c.b16 %v887, %v882
    %v1523 = vpack.c.b16 %v888, %v883
    %v1524 = vpack.c.b16 %v889, %v884
    %v1525 = vpack.c.b16 %v890, %v885
    %v1526 = vpack.c.b16 %v891, %v886
    %v1527 = vpack.c.b16 %v897, %v892
    %v1528 = vpack.c.b16 %v898, %v893
    %v1529 = vpack.c.b16 %v899, %v894
    %v1530 = vpack.c.b16 %v900, %v895
    %v1531 = vpack.c.b16 %v901, %v896
    %v1532 = vpack.c.b16 %v907, %v902
    %v1533 = vpack.c.b16 %v908, %v903
    %v1534 = vpack.c.b16 %v909, %v904
    %v1535 = vpack.c.b16 %v910, %v905
    %v1536 = vpack.c.b16 %v911, %v906
    %v1537 = vpack.c.b16 %v917, %v912
    %v1538 = vpack.c.b16 %v918, %v913
    %v1539 = vpack.c.b16 %v919, %v914
    %v1540 = vpack.c.b16 %v920, %v915
    %v1541 = vpack.c.b16 %v921, %v916
    %v1542 = vpack.c.b16 %v927, %v922
    %v1543 = vpack.c.b16 %v928, %v923
    %v1544 = vpack.c.b16 %v929, %v924
    %v1545 = vpack.c.b16 %v930, %v925
    %v1546 = vpack.c.b16 %v931, %v926
    %v1547 = vpack.c.b16 %v937, %v932
    %v1548 = vpack.c.b16 %v938, %v933
    %v1549 = vpack.c.b16 %v939, %v934
    %v1550 = vpack.c.b16 %v940, %v935
    %v1551 = vpack.c.b16 %v941, %v936
    %v1552 = vpack.c.b16 %v947, %v942
    %v1553 = vpack.c.b16 %v948, %v943
    %v1554 = vpack.c.b16 %v949, %v944
    %v1555 = vpack.c.b16 %v950, %v945
    %v1556 = vpack.c.b16 %v951, %v946
    %v1557 = vpack.c.b16 %v957, %v952
    %v1558 = vpack.c.b16 %v958, %v953
    %v1559 = vpack.c.b16 %v959, %v954
    %v1560 = vpack.c.b16 %v960, %v955
    %v1561 = vpack.c.b16 %v961, %v956
    %v1562 = vpack.c.b16 %v967, %v962
    %v1563 = vpack.c.b16 %v968, %v963
    %v1564 = vpack.c.b16 %v969, %v964
    %v1565 = vpack.c.b16 %v970, %v965
    %v1566 = vpack.c.b16 %v971, %v966
    %v1567 = vpack.c.b16 %v977, %v972
    %v1568 = vpack.c.b16 %v978, %v973
    %v1569 = vpack.c.b16 %v979, %v974
    %v1570 = vpack.c.b16 %v980, %v975
    %v1571 = vpack.c.b16 %v981, %v976
    %v1572 = vpack.c.b16 %v987, %v982
    %v1573 = vpack.c.b16 %v988, %v983
    %v1574 = vpack.c.b16 %v989, %v984
    %v1575 = vpack.c.b16 %v990, %v985
    %v1576 = vpack.c.b16 %v991, %v986
    %v1577 = vpack.c.b16 %v997, %v992
    %v1578 = vpack.c.b16 %v998, %v993
    %v1579 = vpack.c.b16 %v999, %v994
    %v1580 = vpack.c.b16 %v1000, %v995
    %v1581 = vpack.c.b16 %v1001, %v996
    %v1582 = vpack.c.b16 %v1007, %v1002
    %v1583 = vpack.c.b16 %v1008, %v1003
    %v1584 = vpack.c.b16 %v1009, %v1004
    %v1585 = vpack.c.b16 %v1010, %v1005
    %v1586 = vpack.c.b16 %v1011, %v1006
    %v1587 = vpack.c.b16 %v1017, %v1012
    %v1588 = vpack.c.b16 %v1018, %v1013
    %v1589 = vpack.c.b16 %v1019, %v1014
    %v1590 = vpack.c.b16 %v1020, %v1015
    %v1591 = vpack.c.b16 %v1021, %v1016
    %v1592 = vpack.c.b16 %v1027, %v1022
    %v1593 = vpack.c.b16 %v1028, %v1023
    %v1594 = vpack.c.b16 %v1029, %v1024
    %v1595 = vpack.c.b16 %v1030, %v1025
    %v1596 = vpack.c.b16 %v1031, %v1026
    %v1597 = vpack.c.b16 %v1037, %v1032
    %v1598 = vpack.c.b16 %v1038, %v1033
    %v1599 = vpack.c.b16 %v1039, %v1034
    %v1600 = vpack.c.b16 %v1040, %v1035
    %v1601 = vpack.c.b16 %v1041, %v1036
    %v1602 = vpack.c.b16 %v1047, %v1042
    %v1603 = vpack.c.b16 %v1048, %v1043
    %v1604 = vpack.c.b16 %v1049, %v1044
    %v1605 = vpack.c.b16 %v1050, %v1045
    %v1606 = vpack.c.b16 %v1051, %v1046
    %v1607 = vpack.c.b16 %v1057, %v1052
    %v1608 = vpack.c.b16 %v1058, %v1053
    %v1609 = vpack.c.b16 %v1059, %v1054
    %v1610 = vpack.c.b16 %v1060, %v1055
    %v1611 = vpack.c.b16 %v1061, %v1056
    %v1612 = vpack.c.b16 %v1067, %v1062
    %v1613 = vpack.c.b16 %v1068, %v1063
    %v1614 = vpack.c.b16 %v1069, %v1064
    %v1615 = vpack.c.b16 %v1070, %v1065
    %v1616 = vpack.c.b16 %v1071, %v1066
    %v1617 = vpack.c.b16 %v1077, %v1072
    %v1618 = vpack.c.b16 %v1078, %v1073
    %v1619 = vpack.c.b16 %v1079, %v1074
    %v1620 = vpack.c.b16 %v1080, %v1075
    %v1621 = vpack.c.b16 %v1081, %v1076
    %v1622 = vpack.c.b16 %v1087, %v1082
    %v1623 = vpack.c.b16 %v1088, %v1083
    %v1624 = vpack.c.b16 %v1089, %v1084
    %v1625 = vpack.c.b16 %v1090, %v1085
    %v1626 = vpack.c.b16 %v1091, %v1086
    %v1627 = vpack.c.b16 %v1097, %v1092
    %v1628 = vpack.c.b16 %v1098, %v1093
    %v1629 = vpack.c.b16 %v1099, %v1094
    %v1630 = vpack.c.b16 %v1100, %v1095
    %v1631 = vpack.c.b16 %v1101, %v1096
    %v1632 = vpack.c.b16 %v1107, %v1102
    %v1633 = vpack.c.b16 %v1108, %v1103
    %v1634 = vpack.c.b16 %v1109, %v1104
    %v1635 = vpack.c.b16 %v1110, %v1105
    %v1636 = vpack.c.b16 %v1111, %v1106
    %v1637 = vpack.c.b16 %v1117, %v1112
    %v1638 = vpack.c.b16 %v1118, %v1113
    %v1639 = vpack.c.b16 %v1119, %v1114
    %v1640 = vpack.c.b16 %v1120, %v1115
    %v1641 = vpack.c.b16 %v1121, %v1116
    %v1642 = vpack.c.b16 %v1127, %v1122
    %v1643 = vpack.c.b16 %v1128, %v1123
    %v1644 = vpack.c.b16 %v1129, %v1124
    %v1645 = vpack.c.b16 %v1130, %v1125
    %v1646 = vpack.c.b16 %v1131, %v1126
    %v1647 = vpack.c.b16 %v1137, %v1132
    %v1648 = vpack.c.b16 %v1138, %v1133
    %v1649 = vpack.c.b16 %v1139, %v1134
    %v1650 = vpack.c.b16 %v1140, %v1135
    %v1651 = vpack.c.b16 %v1141, %v1136
    %v1652 = vpack.c.b16 %v1147, %v1142
    %v1653 = vpack.c.b16 %v1148, %v1143
    %v1654 = vpack.c.b16 %v1149, %v1144
    %v1655 = vpack.c.b16 %v1150, %v1145
    %v1656 = vpack.c.b16 %v1151, %v1146
    %v1657 = vpack.c.b16 %v1157, %v1152
    %v1658 = vpack.c.b16 %v1158, %v1153
    %v1659 = vpack.c.b16 %v1159, %v1154
    %v1660 = vpack.c.b16 %v1160, %v1155
    %v1661 = vpack.c.b16 %v1161, %v1156
    %v1662 = vpack.c.b16 %v1167, %v1162
    %v1663 = vpack.c.b16 %v1168, %v1163
    %v1664 = vpack.c.b16 %v1169, %v1164
    %v1665 = vpack.c.b16 %v1170, %v1165
    %v1666 = vpack.c.b16 %v1171, %v1166
    %v1667 = vpack.c.b16 %v1177, %v1172
    %v1668 = vpack.c.b16 %v1178, %v1173
    %v1669 = vpack.c.b16 %v1179, %v1174
    %v1670 = vpack.c.b16 %v1180, %v1175
    %v1671 = vpack.c.b16 %v1181, %v1176
    %v1672 = vpack.c.b16 %v1187, %v1182
    %v1673 = vpack.c.b16 %v1188, %v1183
    %v1674 = vpack.c.b16 %v1189, %v1184
    %v1675 = vpack.c.b16 %v1190, %v1185
    %v1676 = vpack.c.b16 %v1191, %v1186
    %v1677 = vpack.c.b16 %v1197, %v1192
    %v1678 = vpack.c.b16 %v1198, %v1193
    %v1679 = vpack.c.b16 %v1199, %v1194
    %v1680 = vpack.c.b16 %v1200, %v1195
    %v1681 = vpack.c.b16 %v1201, %v1196
    %v1682 = vpack.c.b16 %v1207, %v1202
    %v1683 = vpack.c.b16 %v1208, %v1203
    %v1684 = vpack.c.b16 %v1209, %v1204
    %v1685 = vpack.c.b16 %v1210, %v1205
    %v1686 = vpack.c.b16 %v1211, %v1206
    %v1687 = vpack.c.b16 %v1217, %v1212
    %v1688 = vpack.c.b16 %v1218, %v1213
    %v1689 = vpack.c.b16 %v1219, %v1214
    %v1690 = vpack.c.b16 %v1220, %v1215
    %v1691 = vpack.c.b16 %v1221, %v1216
    %v1692 = vpack.c.b16 %v1227, %v1222
    %v1693 = vpack.c.b16 %v1228, %v1223
    %v1694 = vpack.c.b16 %v1229, %v1224
    %v1695 = vpack.c.b16 %v1230, %v1225
    %v1696 = vpack.c.b16 %v1231, %v1226
    %v1697 = vpack.c.b16 %v1237, %v1232
    %v1698 = vpack.c.b16 %v1238, %v1233
    %v1699 = vpack.c.b16 %v1239, %v1234
    %v1700 = vpack.c.b16 %v1240, %v1235
    %v1701 = vpack.c.b16 %v1241, %v1236
    %v1702 = vpack.c.b16 %v1247, %v1242
    %v1703 = vpack.c.b16 %v1248, %v1243
    %v1704 = vpack.c.b16 %v1249, %v1244
    %v1705 = vpack.c.b16 %v1250, %v1245
    %v1706 = vpack.c.b16 %v1251, %v1246
    %v1707 = vpack.c.b16 %v1257, %v1252
    %v1708 = vpack.c.b16 %v1258, %v1253
    %v1709 = vpack.c.b16 %v1259, %v1254
    %v1710 = vpack.c.b16 %v1260, %v1255
    %v1711 = vpack.c.b16 %v1261, %v1256
    %v1712 = vpack.c.b16 %v1267, %v1262
    %v1713 = vpack.c.b16 %v1268, %v1263
    %v1714 = vpack.c.b16 %v1269, %v1264
    %v1715 = vpack.c.b16 %v1270, %v1265
    %v1716 = vpack.c.b16 %v1271, %v1266
    %v1717 = vpack.c.b16 %v1277, %v1272
    %v1718 = vpack.c.b16 %v1278, %v1273
    %v1719 = vpack.c.b16 %v1279, %v1274
    %v1720 = vpack.c.b16 %v1280, %v1275
    %v1721 = vpack.c.b16 %v1281, %v1276
    %v1722 = vpack.c.b16 %v1287, %v1282
    %v1723 = vpack.c.b16 %v1288, %v1283
    %v1724 = vpack.c.b16 %v1289, %v1284
    %v1725 = vpack.c.b16 %v1290, %v1285
    %v1726 = vpack.c.b16 %v1291, %v1286
    %v1727 = vpack.c.b16 %v1297, %v1292
    %v1728 = vpack.c.b16 %v1298, %v1293
    %v1729 = vpack.c.b16 %v1299, %v1294
    %v1730 = vpack.c.b16 %v1300, %v1295
    %v1731 = vpack.c.b16 %v1301, %v1296
    %v1732 = vpack.c.b16 %v1307, %v1302
    %v1733 = vpack.c.b16 %v1308, %v1303
    %v1734 = vpack.c.b16 %v1309, %v1304
    %v1735 = vpack.c.b16 %v1310, %v1305
    %v1736 = vpack.c.b16 %v1311, %v1306
    %v1737 = vpack.c.b16 %v1317, %v1312
    %v1738 = vpack.c.b16 %v1318, %v1313
    %v1739 = vpack.c.b16 %v1319, %v1314
    %v1740 = vpack.c.b16 %v1320, %v1315
    %v1741 = vpack.c.b16 %v1321, %v1316
    %v1742 = vpack.c.b16 %v1327, %v1322
    %v1743 = vpack.c.b16 %v1328, %v1323
    %v1744 = vpack.c.b16 %v1329, %v1324
    %v1745 = vpack.c.b16 %v1330, %v1325
    %v1746 = vpack.c.b16 %v1331, %v1326
    %v1747 = vpack.c.b16 %v1337, %v1332
    %v1748 = vpack.c.b16 %v1338, %v1333
    %v1749 = vpack.c.b16 %v1339, %v1334
    %v1750 = vpack.c.b16 %v1340, %v1335
    %v1751 = vpack.c.b16 %v1341, %v1336
    %v1752 = vpack.c.b16 %v1347, %v1342
    %v1753 = vpack.c.b16 %v1348, %v1343
    %v1754 = vpack.c.b16 %v1349, %v1344
    %v1755 = vpack.c.b16 %v1350, %v1345
    %v1756 = vpack.c.b16 %v1351, %v1346
    %v1757 = vpack.c.b16 %v1357, %v1352
    %v1758 = vpack.c.b16 %v1358, %v1353
    %v1759 = vpack.c.b16 %v1359, %v1354
    %v1760 = vpack.c.b16 %v1360, %v1355
    %v1761 = vpack.c.b16 %v1361, %v1356
    %v1762 = vpack.c.b16 %v1367, %v1362
    %v1763 = vpack.c.b16 %v1368, %v1363
    %v1764 = vpack.c.b16 %v1369, %v1364
    %v1765 = vpack.c.b16 %v1370, %v1365
    %v1766 = vpack.c.b16 %v1371, %v1366
    %v1767 = vpack.c.b16 %v1377, %v1372
    %v1768 = vpack.c.b16 %v1378, %v1373
    %v1769 = vpack.c.b16 %v1379, %v1374
    %v1770 = vpack.c.b16 %v1380, %v1375
    %v1771 = vpack.c.b16 %v1381, %v1376
    %v1772 = vpack.c.b16 %v1387, %v1382
    %v1773 = vpack.c.b16 %v1388, %v1383
    %v1774 = vpack.c.b16 %v1389, %v1384
    %v1775 = vpack.c.b16 %v1390, %v1385
    %v1776 = vpack.c.b16 %v1391, %v1386
    %v1777 = vpack.c.b16 %v1397, %v1392
    %v1778 = vpack.c.b16 %v1398, %v1393
    %v1779 = vpack.c.b16 %v1399, %v1394
    %v1780 = vpack.c.b16 %v1400, %v1395
    %v1781 = vpack.c.b16 %v1401, %v1396
    %v1782 = vpack.c.b16 %v1407, %v1402
    %v1783 = vpack.c.b16 %v1408, %v1403
    %v1784 = vpack.c.b16 %v1409, %v1404
    %v1785 = vpack.c.b16 %v1410, %v1405
    %v1786 = vpack.c.b16 %v1411, %v1406
    %v1787 = vpack.c.b16 %v1417, %v1412
    %v1788 = vpack.c.b16 %v1418, %v1413
    %v1789 = vpack.c.b16 %v1419, %v1414
    %v1790 = vpack.c.b16 %v1420, %v1415
    %v1791 = vpack.c.b16 %v1421, %v1416
    %v1792 = vpack.c.b16 %v1427, %v1422
    %v1793 = vpack.c.b16 %v1428, %v1423
    %v1794 = vpack.c.b16 %v1429, %v1424
    %v1795 = vpack.c.b16 %v1430, %v1425
    %v1796 = vpack.c.b16 %v1431, %v1426
    %v1797 = vpack.c.b16 %v1437, %v1432
    %v1798 = vpack.c.b16 %v1438, %v1433
    %v1799 = vpack.c.b16 %v1439, %v1434
    %v1800 = vpack.c.b16 %v1440, %v1435
    %v1801 = vpack.c.b16 %v1441, %v1436
    %v1802 = vpack.c.b16 %v1447, %v1442
    %v1803 = vpack.c.b16 %v1448, %v1443
    %v1804 = vpack.c.b16 %v1449, %v1444
    %v1805 = vpack.c.b16 %v1450, %v1445
    %v1806 = vpack.c.b16 %v1451, %v1446
    %v1807 = vpack.c.b16 %v1457, %v1452
    %v1808 = vpack.c.b16 %v1458, %v1453
    %v1809 = vpack.c.b16 %v1459, %v1454
    %v1810 = vpack.c.b16 %v1460, %v1455
    %v1811 = vpack.c.b16 %v1461, %v1456
    %v1812 = vpack.c.b16 %v1467, %v1462
    %v1813 = vpack.c.b16 %v1468, %v1463
    %v1814 = vpack.c.b16 %v1469, %v1464
    %v1815 = vpack.c.b16 %v1470, %v1465
    %v1816 = vpack.c.b16 %v1471, %v1466
    %v1817 = vpack.c.b16 %v1477, %v1472
    %v1818 = vpack.c.b16 %v1478, %v1473
    %v1819 = vpack.c.b16 %v1479, %v1474
    %v1820 = vpack.c.b16 %v1480, %v1475
    %v1821 = vpack.c.b16 %v1481, %v1476
    %v1822 = vpack.c.b16 %v1487, %v1482
    %v1823 = vpack.c.b16 %v1488, %v1483
    %v1824 = vpack.c.b16 %v1489, %v1484
    %v1825 = vpack.c.b16 %v1490, %v1485
    %v1826 = vpack.c.b16 %v1491, %v1486
    %v1827 = vpack.c.b16 %v1497, %v1492
    %v1828 = vpack.c.b16 %v1498, %v1493
    %v1829 = vpack.c.b16 %v1499, %v1494
    %v1830 = vpack.c.b16 %v1500, %v1495
    %v1831 = vpack.c.b16 %v1501, %v1496
    %v1832 = vpack.c.b16 %v1507, %v1502
    %v1833 = vpack.c.b16 %v1508, %v1503
    %v1834 = vpack.c.b16 %v1509, %v1504
    %v1835 = vpack.c.b16 %v1510, %v1505
    %v1836 = vpack.c.b16 %v1511, %v1506
    %v1837 = vpack.c.b16 %v1517, %v1512
    %v1838 = vpack.c.b16 %v1518, %v1513
    %v1839 = vpack.c.b16 %v1519, %v1514
    %v1840 = vpack.c.b16 %v1520, %v1515
    %v1841 = vpack.c.b16 %v1521, %v1516
    %2162 = vmatprep.subr.bf16.mxu0 %v1558
    %2163 = vmatpush1.bf16.msra.mxu0 %v1557
    %2164 = vmatprep.subr.bf16.mxu0 %v1553
    %2165 = vmatpush1.bf16.msra.mxu0 %v1552
    %2166 = vmatprep.subr.bf16.mxu0 %v1548
    %2167 = vmatpush1.bf16.msra.mxu0 %v1547
    %2168 = vmatprep.subr.bf16.mxu0 %v1543
    %2169 = vmatpush1.bf16.msra.mxu0 %v1542
    %2170 = vmatprep.subr.bf16.mxu0 %v1538
    %2171 = vmatpush1.bf16.msra.mxu0 %v1537
    %2172 = vmatprep.subr.bf16.mxu0 %v1533
    %2173 = vmatpush1.bf16.msra.mxu0 %v1532
    %2174 = vmatprep.subr.bf16.mxu0 %v1528
    %2175 = vmatpush1.bf16.msra.mxu0 %v1527
    %2176 = vmatprep.subr.bf16.mxu0 %v1523
    %2177 = vmatpush1.bf16.msra.mxu0 %v1522
    %2178 = vmatprep.subr.bf16.mxu0 %v1598
    %2179 = vmatpush2.bf16.msra.mxu0 %v1597
    %2180 = vmatprep.subr.bf16.mxu0 %v1593
    %2181 = vmatpush2.bf16.msra.mxu0 %v1592
    %2182 = vmatprep.subr.bf16.mxu0 %v1588
    %2183 = vmatpush2.bf16.msra.mxu0 %v1587
    %2184 = vmatprep.subr.bf16.mxu0 %v1583
    %2185 = vmatpush2.bf16.msra.mxu0 %v1582
    %2186 = vmatprep.subr.bf16.mxu0 %v1578
    %2187 = vmatpush2.bf16.msra.mxu0 %v1577
    %2188 = vmatprep.subr.bf16.mxu0 %v1573
    %2189 = vmatpush2.bf16.msra.mxu0 %v1572
    %2190 = vmatprep.subr.bf16.mxu0 %v1568
    %2191 = vmatpush2.bf16.msra.mxu0 %v1567
    %2192 = vmatprep.subr.bf16.mxu0 %v1563
    %2193 = vmatpush2.bf16.msra.mxu0 %v1562
    %2194 = vmatprep.mubr.bf16.mxu0 %v478
    %2195 = vmatmul.mubr.bf16.gmra.mxu0 %v464
    %v2196 = vpop.f32.mrf.mxu0
    %v2197 = vadd.f32 %v418, %v2196
    %v2198 = vpop.f32.mrf.mxu0
    %v2199 = vadd.f32 %v422, %v2198
    %v2200 = vpop.f32.mrf.mxu0
    %v2201 = vpop.f32.mrf.mxu0
    %2202 = vdwg.mxu0
    %2203 = vmatprep.subr.bf16.mxu0 %v1638
    %2204 = vmatpush1.bf16.msra.mxu0 %v1637
    %2205 = vmatprep.subr.bf16.mxu0 %v1633
    %2206 = vmatpush1.bf16.msra.mxu0 %v1632
    %2207 = vmatprep.subr.bf16.mxu0 %v1628
    %2208 = vmatpush1.bf16.msra.mxu0 %v1627
    %2209 = vmatprep.subr.bf16.mxu0 %v1623
    %2210 = vmatpush1.bf16.msra.mxu0 %v1622
    %2211 = vmatprep.subr.bf16.mxu0 %v1618
    %2212 = vmatpush1.bf16.msra.mxu0 %v1617
    %2213 = vmatprep.subr.bf16.mxu0 %v1613
    %2214 = vmatpush1.bf16.msra.mxu0 %v1612
    %2215 = vmatprep.subr.bf16.mxu0 %v1608
    %2216 = vmatpush1.bf16.msra.mxu0 %v1607
    %2217 = vmatprep.subr.bf16.mxu0 %v1603
    %2218 = vmatpush1.bf16.msra.mxu0 %v1602
    %2219 = vmatprep.subr.bf16.mxu0 %v1678
    %2220 = vmatpush2.bf16.msra.mxu0 %v1677
    %2221 = vmatprep.subr.bf16.mxu0 %v1673
    %2222 = vmatpush2.bf16.msra.mxu0 %v1672
    %2223 = vmatprep.subr.bf16.mxu0 %v1668
    %2224 = vmatpush2.bf16.msra.mxu0 %v1667
    %2225 = vmatprep.subr.bf16.mxu0 %v1663
    %2226 = vmatpush2.bf16.msra.mxu0 %v1662
    %2227 = vmatprep.subr.bf16.mxu0 %v1658
    %2228 = vmatpush2.bf16.msra.mxu0 %v1657
    %2229 = vmatprep.subr.bf16.mxu0 %v1653
    %2230 = vmatpush2.bf16.msra.mxu0 %v1652
    %2231 = vmatprep.subr.bf16.mxu0 %v1648
    %2232 = vmatpush2.bf16.msra.mxu0 %v1647
    %2233 = vmatprep.subr.bf16.mxu0 %v1643
    %2234 = vmatpush2.bf16.msra.mxu0 %v1642
    %2235 = vmatprep.mubr.bf16.mxu0 %v488
    %2236 = vmatmul.mubr.bf16.gmra.mxu0 %v486
    %v2237 = vpop.f32.mrf.mxu0
    %v2238 = vadd.f32 %v2197, %v2237
    %v2239 = vpop.f32.mrf.mxu0
    %v2240 = vadd.f32 %v2199, %v2239
    %v2241 = vpop.f32.mrf.mxu0
    %v2242 = vpop.f32.mrf.mxu0
    %2243 = vdwg.mxu0
    %2244 = vmatprep.subr.bf16.mxu0 %v1718
    %2245 = vmatpush1.bf16.msra.mxu0 %v1717
    %2246 = vmatprep.subr.bf16.mxu0 %v1713
    %2247 = vmatpush1.bf16.msra.mxu0 %v1712
    %2248 = vmatprep.subr.bf16.mxu0 %v1708
    %2249 = vmatpush1.bf16.msra.mxu0 %v1707
    %2250 = vmatprep.subr.bf16.mxu0 %v1703
    %2251 = vmatpush1.bf16.msra.mxu0 %v1702
    %2252 = vmatprep.subr.bf16.mxu0 %v1698
    %2253 = vmatpush1.bf16.msra.mxu0 %v1697
    %2254 = vmatprep.subr.bf16.mxu0 %v1693
    %2255 = vmatpush1.bf16.msra.mxu0 %v1692
    %2256 = vmatprep.subr.bf16.mxu0 %v1688
    %2257 = vmatpush1.bf16.msra.mxu0 %v1687
    %2258 = vmatprep.subr.bf16.mxu0 %v1683
    %2259 = vmatpush1.bf16.msra.mxu0 %v1682
    %2260 = vmatprep.subr.bf16.mxu0 %v1758
    %2261 = vmatpush2.bf16.msra.mxu0 %v1757
    %2262 = vmatprep.subr.bf16.mxu0 %v1753
    %2263 = vmatpush2.bf16.msra.mxu0 %v1752
    %2264 = vmatprep.subr.bf16.mxu0 %v1748
    %2265 = vmatpush2.bf16.msra.mxu0 %v1747
    %2266 = vmatprep.subr.bf16.mxu0 %v1743
    %2267 = vmatpush2.bf16.msra.mxu0 %v1742
    %2268 = vmatprep.subr.bf16.mxu0 %v1738
    %2269 = vmatpush2.bf16.msra.mxu0 %v1737
    %2270 = vmatprep.subr.bf16.mxu0 %v1733
    %2271 = vmatpush2.bf16.msra.mxu0 %v1732
    %2272 = vmatprep.subr.bf16.mxu0 %v1728
    %2273 = vmatpush2.bf16.msra.mxu0 %v1727
    %2274 = vmatprep.subr.bf16.mxu0 %v1723
    %2275 = vmatpush2.bf16.msra.mxu0 %v1722
    %2276 = vmatprep.mubr.bf16.mxu0 %v485
    %2277 = vmatmul.mubr.bf16.gmra.mxu0 %v471
    %v2278 = vpop.f32.mrf.mxu0
    %v2279 = vadd.f32 %v2238, %v2278
    %v2280 = vpop.f32.mrf.mxu0
    %v2281 = vadd.f32 %v2240, %v2280
    %v2282 = vpop.f32.mrf.mxu0
    %v2283 = vpop.f32.mrf.mxu0
    %2284 = vdwg.mxu0
    %2285 = vmatprep.subr.bf16.mxu0 %v1798
    %2286 = vmatpush1.bf16.msra.mxu0 %v1797
    %2287 = vmatprep.subr.bf16.mxu0 %v1793
    %2288 = vmatpush1.bf16.msra.mxu0 %v1792
    %2289 = vmatprep.subr.bf16.mxu0 %v1788
    %2290 = vmatpush1.bf16.msra.mxu0 %v1787
    %2291 = vmatprep.subr.bf16.mxu0 %v1783
    %2292 = vmatpush1.bf16.msra.mxu0 %v1782
    %2293 = vmatprep.subr.bf16.mxu0 %v1778
    %2294 = vmatpush1.bf16.msra.mxu0 %v1777
    %2295 = vmatprep.subr.bf16.mxu0 %v1773
    %2296 = vmatpush1.bf16.msra.mxu0 %v1772
    %2297 = vmatprep.subr.bf16.mxu0 %v1768
    %2298 = vmatpush1.bf16.msra.mxu0 %v1767
    %2299 = vmatprep.subr.bf16.mxu0 %v1763
    %2300 = vmatpush1.bf16.msra.mxu0 %v1762
    %2301 = vmatprep.subr.bf16.mxu0 %v1838
    %2302 = vmatpush2.bf16.msra.mxu0 %v1837
    %2303 = vmatprep.subr.bf16.mxu0 %v1833
    %2304 = vmatpush2.bf16.msra.mxu0 %v1832
    %2305 = vmatprep.subr.bf16.mxu0 %v1828
    %2306 = vmatpush2.bf16.msra.mxu0 %v1827
    %2307 = vmatprep.subr.bf16.mxu0 %v1823
    %2308 = vmatpush2.bf16.msra.mxu0 %v1822
    %2309 = vmatprep.subr.bf16.mxu0 %v1818
    %2310 = vmatpush2.bf16.msra.mxu0 %v1817
    %2311 = vmatprep.subr.bf16.mxu0 %v1813
    %2312 = vmatpush2.bf16.msra.mxu0 %v1812
    %2313 = vmatprep.subr.bf16.mxu0 %v1808
    %2314 = vmatpush2.bf16.msra.mxu0 %v1807
    %2315 = vmatprep.subr.bf16.mxu0 %v1803
    %2316 = vmatpush2.bf16.msra.mxu0 %v1802
    %2317 = vmatprep.mubr.bf16.mxu0 %v489
    %2318 = vmatmul.mubr.bf16.gmra.mxu0 %v487
    %v2319 = vpop.f32.mrf.mxu0
    %v2320 = vadd.f32 %v2279, %v2319
    %v2321 = vpop.f32.mrf.mxu0
    %v2322 = vadd.f32 %v2281, %v2321
    %v2323 = vpop.f32.mrf.mxu0
    %v2324 = vpop.f32.mrf.mxu0
    %2325 = vdwg.mxu0
    %2326 = vmatprep.subr.bf16.mxu0 %v1560
    %2327 = vmatpush1.bf16.msra.mxu0 %v1559
    %2328 = vmatprep.subr.bf16.mxu0 %v1555
    %2329 = vmatpush1.bf16.msra.mxu0 %v1554
    %2330 = vmatprep.subr.bf16.mxu0 %v1550
    %2331 = vmatpush1.bf16.msra.mxu0 %v1549
    %2332 = vmatprep.subr.bf16.mxu0 %v1545
    %2333 = vmatpush1.bf16.msra.mxu0 %v1544
    %2334 = vmatprep.subr.bf16.mxu0 %v1540
    %2335 = vmatpush1.bf16.msra.mxu0 %v1539
    %2336 = vmatprep.subr.bf16.mxu0 %v1535
    %2337 = vmatpush1.bf16.msra.mxu0 %v1534
    %2338 = vmatprep.subr.bf16.mxu0 %v1530
    %2339 = vmatpush1.bf16.msra.mxu0 %v1529
    %2340 = vmatprep.subr.bf16.mxu0 %v1525
    %2341 = vmatpush1.bf16.msra.mxu0 %v1524
    %2342 = vmatprep.subr.bf16.mxu0 %v1600
    %2343 = vmatpush2.bf16.msra.mxu0 %v1599
    %2344 = vmatprep.subr.bf16.mxu0 %v1595
    %2345 = vmatpush2.bf16.msra.mxu0 %v1594
    %2346 = vmatprep.subr.bf16.mxu0 %v1590
    %2347 = vmatpush2.bf16.msra.mxu0 %v1589
    %2348 = vmatprep.subr.bf16.mxu0 %v1585
    %2349 = vmatpush2.bf16.msra.mxu0 %v1584
    %2350 = vmatprep.subr.bf16.mxu0 %v1580
    %2351 = vmatpush2.bf16.msra.mxu0 %v1579
    %2352 = vmatprep.subr.bf16.mxu0 %v1575
    %2353 = vmatpush2.bf16.msra.mxu0 %v1574
    %2354 = vmatprep.subr.bf16.mxu0 %v1570
    %2355 = vmatpush2.bf16.msra.mxu0 %v1569
    %2356 = vmatprep.subr.bf16.mxu0 %v1565
    %2357 = vmatpush2.bf16.msra.mxu0 %v1564
    %2358 = vmatprep.mubr.bf16.mxu0 %v478
    %2359 = vmatmul.mubr.bf16.gmra.mxu0 %v464
    %v2360 = vpop.f32.mrf.mxu0
    %v2361 = vadd.f32 %v426, %v2360
    %v2362 = vpop.f32.mrf.mxu0
    %v2363 = vadd.f32 %v430, %v2362
    %v2364 = vpop.f32.mrf.mxu0
    %v2365 = vpop.f32.mrf.mxu0
    %2366 = vdwg.mxu0
    %2367 = vmatprep.subr.bf16.mxu0 %v1640
    %2368 = vmatpush1.bf16.msra.mxu0 %v1639
    %2369 = vmatprep.subr.bf16.mxu0 %v1635
    %2370 = vmatpush1.bf16.msra.mxu0 %v1634
    %2371 = vmatprep.subr.bf16.mxu0 %v1630
    %2372 = vmatpush1.bf16.msra.mxu0 %v1629
    %2373 = vmatprep.subr.bf16.mxu0 %v1625
    %2374 = vmatpush1.bf16.msra.mxu0 %v1624
    %2375 = vmatprep.subr.bf16.mxu0 %v1620
    %2376 = vmatpush1.bf16.msra.mxu0 %v1619
    %2377 = vmatprep.subr.bf16.mxu0 %v1615
    %2378 = vmatpush1.bf16.msra.mxu0 %v1614
    %2379 = vmatprep.subr.bf16.mxu0 %v1610
    %2380 = vmatpush1.bf16.msra.mxu0 %v1609
    %2381 = vmatprep.subr.bf16.mxu0 %v1605
    %2382 = vmatpush1.bf16.msra.mxu0 %v1604
    %2383 = vmatprep.subr.bf16.mxu0 %v1680
    %2384 = vmatpush2.bf16.msra.mxu0 %v1679
    %2385 = vmatprep.subr.bf16.mxu0 %v1675
    %2386 = vmatpush2.bf16.msra.mxu0 %v1674
    %2387 = vmatprep.subr.bf16.mxu0 %v1670
    %2388 = vmatpush2.bf16.msra.mxu0 %v1669
    %2389 = vmatprep.subr.bf16.mxu0 %v1665
    %2390 = vmatpush2.bf16.msra.mxu0 %v1664
    %2391 = vmatprep.subr.bf16.mxu0 %v1660
    %2392 = vmatpush2.bf16.msra.mxu0 %v1659
    %2393 = vmatprep.subr.bf16.mxu0 %v1655
    %2394 = vmatpush2.bf16.msra.mxu0 %v1654
    %2395 = vmatprep.subr.bf16.mxu0 %v1650
    %2396 = vmatpush2.bf16.msra.mxu0 %v1649
    %2397 = vmatprep.subr.bf16.mxu0 %v1645
    %2398 = vmatpush2.bf16.msra.mxu0 %v1644
    %2399 = vmatprep.mubr.bf16.mxu0 %v488
    %2400 = vmatmul.mubr.bf16.gmra.mxu0 %v486
    %v2401 = vpop.f32.mrf.mxu0
    %v2402 = vadd.f32 %v2361, %v2401
    %v2403 = vpop.f32.mrf.mxu0
    %v2404 = vadd.f32 %v2363, %v2403
    %v2405 = vpop.f32.mrf.mxu0
    %v2406 = vpop.f32.mrf.mxu0
    %2407 = vdwg.mxu0
    %2408 = vmatprep.subr.bf16.mxu0 %v1720
    %2409 = vmatpush1.bf16.msra.mxu0 %v1719
    %2410 = vmatprep.subr.bf16.mxu0 %v1715
    %2411 = vmatpush1.bf16.msra.mxu0 %v1714
    %2412 = vmatprep.subr.bf16.mxu0 %v1710
    %2413 = vmatpush1.bf16.msra.mxu0 %v1709
    %2414 = vmatprep.subr.bf16.mxu0 %v1705
    %2415 = vmatpush1.bf16.msra.mxu0 %v1704
    %2416 = vmatprep.subr.bf16.mxu0 %v1700
    %2417 = vmatpush1.bf16.msra.mxu0 %v1699
    %2418 = vmatprep.subr.bf16.mxu0 %v1695
    %2419 = vmatpush1.bf16.msra.mxu0 %v1694
    %2420 = vmatprep.subr.bf16.mxu0 %v1690
    %2421 = vmatpush1.bf16.msra.mxu0 %v1689
    %2422 = vmatprep.subr.bf16.mxu0 %v1685
    %2423 = vmatpush1.bf16.msra.mxu0 %v1684
    %2424 = vmatprep.subr.bf16.mxu0 %v1760
    %2425 = vmatpush2.bf16.msra.mxu0 %v1759
    %2426 = vmatprep.subr.bf16.mxu0 %v1755
    %2427 = vmatpush2.bf16.msra.mxu0 %v1754
    %2428 = vmatprep.subr.bf16.mxu0 %v1750
    %2429 = vmatpush2.bf16.msra.mxu0 %v1749
    %2430 = vmatprep.subr.bf16.mxu0 %v1745
    %2431 = vmatpush2.bf16.msra.mxu0 %v1744
    %2432 = vmatprep.subr.bf16.mxu0 %v1740
    %2433 = vmatpush2.bf16.msra.mxu0 %v1739
    %2434 = vmatprep.subr.bf16.mxu0 %v1735
    %2435 = vmatpush2.bf16.msra.mxu0 %v1734
    %2436 = vmatprep.subr.bf16.mxu0 %v1730
    %2437 = vmatpush2.bf16.msra.mxu0 %v1729
    %2438 = vmatprep.subr.bf16.mxu0 %v1725
    %2439 = vmatpush2.bf16.msra.mxu0 %v1724
    %2440 = vmatprep.mubr.bf16.mxu0 %v485
    %2441 = vmatmul.mubr.bf16.gmra.mxu0 %v471
    %v2442 = vpop.f32.mrf.mxu0
    %v2443 = vadd.f32 %v2402, %v2442
    %v2444 = vpop.f32.mrf.mxu0
    %v2445 = vadd.f32 %v2404, %v2444
    %v2446 = vpop.f32.mrf.mxu0
    %v2447 = vpop.f32.mrf.mxu0
    %2448 = vdwg.mxu0
    %2449 = vmatprep.subr.bf16.mxu0 %v1800
    %2450 = vmatpush1.bf16.msra.mxu0 %v1799
    %2451 = vmatprep.subr.bf16.mxu0 %v1795
    %2452 = vmatpush1.bf16.msra.mxu0 %v1794
    %2453 = vmatprep.subr.bf16.mxu0 %v1790
    %2454 = vmatpush1.bf16.msra.mxu0 %v1789
    %2455 = vmatprep.subr.bf16.mxu0 %v1785
    %2456 = vmatpush1.bf16.msra.mxu0 %v1784
    %2457 = vmatprep.subr.bf16.mxu0 %v1780
    %2458 = vmatpush1.bf16.msra.mxu0 %v1779
    %2459 = vmatprep.subr.bf16.mxu0 %v1775
    %2460 = vmatpush1.bf16.msra.mxu0 %v1774
    %2461 = vmatprep.subr.bf16.mxu0 %v1770
    %2462 = vmatpush1.bf16.msra.mxu0 %v1769
    %2463 = vmatprep.subr.bf16.mxu0 %v1765
    %2464 = vmatpush1.bf16.msra.mxu0 %v1764
    %2465 = vmatprep.subr.bf16.mxu0 %v1840
    %2466 = vmatpush2.bf16.msra.mxu0 %v1839
    %2467 = vmatprep.subr.bf16.mxu0 %v1835
    %2468 = vmatpush2.bf16.msra.mxu0 %v1834
    %2469 = vmatprep.subr.bf16.mxu0 %v1830
    %2470 = vmatpush2.bf16.msra.mxu0 %v1829
    %2471 = vmatprep.subr.bf16.mxu0 %v1825
    %2472 = vmatpush2.bf16.msra.mxu0 %v1824
    %2473 = vmatprep.subr.bf16.mxu0 %v1820
    %2474 = vmatpush2.bf16.msra.mxu0 %v1819
    %2475 = vmatprep.subr.bf16.mxu0 %v1815
    %2476 = vmatpush2.bf16.msra.mxu0 %v1814
    %2477 = vmatprep.subr.bf16.mxu0 %v1810
    %2478 = vmatpush2.bf16.msra.mxu0 %v1809
    %2479 = vmatprep.subr.bf16.mxu0 %v1805
    %2480 = vmatpush2.bf16.msra.mxu0 %v1804
    %2481 = vmatprep.mubr.bf16.mxu0 %v489
    %2482 = vmatmul.mubr.bf16.gmra.mxu0 %v487
    %v2483 = vpop.f32.mrf.mxu0
    %v2484 = vadd.f32 %v2443, %v2483
    %v2485 = vpop.f32.mrf.mxu0
    %v2486 = vadd.f32 %v2445, %v2485
    %v2487 = vpop.f32.mrf.mxu0
    %v2488 = vpop.f32.mrf.mxu0
    %2489 = vdwg.mxu0
    %2490 = vmatprep.subr.bf16.mxu0 0
    %2491 = vmatpush1.bf16.msra.mxu0 %v1561
    %2492 = vmatprep.subr.bf16.mxu0 0
    %2493 = vmatpush1.bf16.msra.mxu0 %v1556
    %2494 = vmatprep.subr.bf16.mxu0 0
    %2495 = vmatpush1.bf16.msra.mxu0 %v1551
    %2496 = vmatprep.subr.bf16.mxu0 0
    %2497 = vmatpush1.bf16.msra.mxu0 %v1546
    %2498 = vmatprep.subr.bf16.mxu0 0
    %2499 = vmatpush1.bf16.msra.mxu0 %v1541
    %2500 = vmatprep.subr.bf16.mxu0 0
    %2501 = vmatpush1.bf16.msra.mxu0 %v1536
    %2502 = vmatprep.subr.bf16.mxu0 0
    %2503 = vmatpush1.bf16.msra.mxu0 %v1531
    %2504 = vmatprep.subr.bf16.mxu0 0
    %2505 = vmatpush1.bf16.msra.mxu0 %v1526
    %2506 = vmatprep.subr.bf16.mxu0 0
    %2507 = vmatpush2.bf16.msra.mxu0 %v1601
    %2508 = vmatprep.subr.bf16.mxu0 0
    %2509 = vmatpush2.bf16.msra.mxu0 %v1596
    %2510 = vmatprep.subr.bf16.mxu0 0
    %2511 = vmatpush2.bf16.msra.mxu0 %v1591
    %2512 = vmatprep.subr.bf16.mxu0 0
    %2513 = vmatpush2.bf16.msra.mxu0 %v1586
    %2514 = vmatprep.subr.bf16.mxu0 0
    %2515 = vmatpush2.bf16.msra.mxu0 %v1581
    %2516 = vmatprep.subr.bf16.mxu0 0
    %2517 = vmatpush2.bf16.msra.mxu0 %v1576
    %2518 = vmatprep.subr.bf16.mxu0 0
    %2519 = vmatpush2.bf16.msra.mxu0 %v1571
    %2520 = vmatprep.subr.bf16.mxu0 0
    %2521 = vmatpush2.bf16.msra.mxu0 %v1566
    %2522 = vmatprep.mubr.bf16.mxu0 %v478
    %2523 = vmatmul.mubr.bf16.gmra.mxu0 %v464
    %v2524 = vpop.f32.mrf.mxu0
    %v2525 = vadd.f32 %v434, %v2524
    %v2526 = vpop.f32.mrf.mxu0
    %v2527 = vpop.f32.mrf.mxu0
    %v2528 = vpop.f32.mrf.mxu0
    %2529 = vdwg.mxu0
    %2530 = vmatprep.subr.bf16.mxu0 0
    %2531 = vmatpush1.bf16.msra.mxu0 %v1641
    %2532 = vmatprep.subr.bf16.mxu0 0
    %2533 = vmatpush1.bf16.msra.mxu0 %v1636
    %2534 = vmatprep.subr.bf16.mxu0 0
    %2535 = vmatpush1.bf16.msra.mxu0 %v1631
    %2536 = vmatprep.subr.bf16.mxu0 0
    %2537 = vmatpush1.bf16.msra.mxu0 %v1626
    %2538 = vmatprep.subr.bf16.mxu0 0
    %2539 = vmatpush1.bf16.msra.mxu0 %v1621
    %2540 = vmatprep.subr.bf16.mxu0 0
    %2541 = vmatpush1.bf16.msra.mxu0 %v1616
    %2542 = vmatprep.subr.bf16.mxu0 0
    %2543 = vmatpush1.bf16.msra.mxu0 %v1611
    %2544 = vmatprep.subr.bf16.mxu0 0
    %2545 = vmatpush1.bf16.msra.mxu0 %v1606
    %2546 = vmatprep.subr.bf16.mxu0 0
    %2547 = vmatpush2.bf16.msra.mxu0 %v1681
    %2548 = vmatprep.subr.bf16.mxu0 0
    %2549 = vmatpush2.bf16.msra.mxu0 %v1676
    %2550 = vmatprep.subr.bf16.mxu0 0
    %2551 = vmatpush2.bf16.msra.mxu0 %v1671
    %2552 = vmatprep.subr.bf16.mxu0 0
    %2553 = vmatpush2.bf16.msra.mxu0 %v1666
    %2554 = vmatprep.subr.bf16.mxu0 0
    %2555 = vmatpush2.bf16.msra.mxu0 %v1661
    %2556 = vmatprep.subr.bf16.mxu0 0
    %2557 = vmatpush2.bf16.msra.mxu0 %v1656
    %2558 = vmatprep.subr.bf16.mxu0 0
    %2559 = vmatpush2.bf16.msra.mxu0 %v1651
    %2560 = vmatprep.subr.bf16.mxu0 0
    %2561 = vmatpush2.bf16.msra.mxu0 %v1646
    %2562 = vmatprep.mubr.bf16.mxu0 %v488
    %2563 = vmatmul.mubr.bf16.gmra.mxu0 %v486
    %v2564 = vpop.f32.mrf.mxu0
    %v2565 = vadd.f32 %v2525, %v2564
    %v2566 = vpop.f32.mrf.mxu0
    %v2567 = vpop.f32.mrf.mxu0
    %v2568 = vpop.f32.mrf.mxu0
    %2569 = vdwg.mxu0
    %2570 = vmatprep.subr.bf16.mxu0 0
    %2571 = vmatpush1.bf16.msra.mxu0 %v1721
    %2572 = vmatprep.subr.bf16.mxu0 0
    %2573 = vmatpush1.bf16.msra.mxu0 %v1716
    %2574 = vmatprep.subr.bf16.mxu0 0
    %2575 = vmatpush1.bf16.msra.mxu0 %v1711
    %2576 = vmatprep.subr.bf16.mxu0 0
    %2577 = vmatpush1.bf16.msra.mxu0 %v1706
    %2578 = vmatprep.subr.bf16.mxu0 0
    %2579 = vmatpush1.bf16.msra.mxu0 %v1701
    %2580 = vmatprep.subr.bf16.mxu0 0
    %2581 = vmatpush1.bf16.msra.mxu0 %v1696
    %2582 = vmatprep.subr.bf16.mxu0 0
    %2583 = vmatpush1.bf16.msra.mxu0 %v1691
    %2584 = vmatprep.subr.bf16.mxu0 0
    %2585 = vmatpush1.bf16.msra.mxu0 %v1686
    %2586 = vmatprep.subr.bf16.mxu0 0
    %2587 = vmatpush2.bf16.msra.mxu0 %v1761
    %2588 = vmatprep.subr.bf16.mxu0 0
    %2589 = vmatpush2.bf16.msra.mxu0 %v1756
    %2590 = vmatprep.subr.bf16.mxu0 0
    %2591 = vmatpush2.bf16.msra.mxu0 %v1751
    %2592 = vmatprep.subr.bf16.mxu0 0
    %2593 = vmatpush2.bf16.msra.mxu0 %v1746
    %2594 = vmatprep.subr.bf16.mxu0 0
    %2595 = vmatpush2.bf16.msra.mxu0 %v1741
    %2596 = vmatprep.subr.bf16.mxu0 0
    %2597 = vmatpush2.bf16.msra.mxu0 %v1736
    %2598 = vmatprep.subr.bf16.mxu0 0
    %2599 = vmatpush2.bf16.msra.mxu0 %v1731
    %2600 = vmatprep.subr.bf16.mxu0 0
    %2601 = vmatpush2.bf16.msra.mxu0 %v1726
    %2602 = vmatprep.mubr.bf16.mxu0 %v485
    %2603 = vmatmul.mubr.bf16.gmra.mxu0 %v471
    %v2604 = vpop.f32.mrf.mxu0
    %v2605 = vadd.f32 %v2565, %v2604
    %v2606 = vpop.f32.mrf.mxu0
    %v2607 = vpop.f32.mrf.mxu0
    %v2608 = vpop.f32.mrf.mxu0
    %2609 = vdwg.mxu0
    %2610 = vmatprep.subr.bf16.mxu0 0
    %2611 = vmatpush1.bf16.msra.mxu0 %v1801
    %2612 = vmatprep.subr.bf16.mxu0 0
    %2613 = vmatpush1.bf16.msra.mxu0 %v1796
    %2614 = vmatprep.subr.bf16.mxu0 0
    %2615 = vmatpush1.bf16.msra.mxu0 %v1791
    %2616 = vmatprep.subr.bf16.mxu0 0
    %2617 = vmatpush1.bf16.msra.mxu0 %v1786
    %2618 = vmatprep.subr.bf16.mxu0 0
    %2619 = vmatpush1.bf16.msra.mxu0 %v1781
    %2620 = vmatprep.subr.bf16.mxu0 0
    %2621 = vmatpush1.bf16.msra.mxu0 %v1776
    %2622 = vmatprep.subr.bf16.mxu0 0
    %2623 = vmatpush1.bf16.msra.mxu0 %v1771
    %2624 = vmatprep.subr.bf16.mxu0 0
    %2625 = vmatpush1.bf16.msra.mxu0 %v1766
    %2626 = vmatprep.subr.bf16.mxu0 0
    %2627 = vmatpush2.bf16.msra.mxu0 %v1841
    %2628 = vmatprep.subr.bf16.mxu0 0
    %2629 = vmatpush2.bf16.msra.mxu0 %v1836
    %2630 = vmatprep.subr.bf16.mxu0 0
    %2631 = vmatpush2.bf16.msra.mxu0 %v1831
    %2632 = vmatprep.subr.bf16.mxu0 0
    %2633 = vmatpush2.bf16.msra.mxu0 %v1826
    %2634 = vmatprep.subr.bf16.mxu0 0
    %2635 = vmatpush2.bf16.msra.mxu0 %v1821
    %2636 = vmatprep.subr.bf16.mxu0 0
    %2637 = vmatpush2.bf16.msra.mxu0 %v1816
    %2638 = vmatprep.subr.bf16.mxu0 0
    %2639 = vmatpush2.bf16.msra.mxu0 %v1811
    %2640 = vmatprep.subr.bf16.mxu0 0
    %2641 = vmatpush2.bf16.msra.mxu0 %v1806
    %2642 = vmatprep.mubr.bf16.mxu0 %v489
    %2643 = vmatmul.mubr.bf16.gmra.mxu0 %v487
    %v2644 = vpop.f32.mrf.mxu0
    %v2645 = vadd.f32 %v2605, %v2644
    %v2646 = vpop.f32.mrf.mxu0
    %v2647 = vpop.f32.mrf.mxu0
    %v2648 = vpop.f32.mrf.mxu0
    %2649 = vdwg.mxu0
    %v2650 = vmax.f32 %v2320, 0.0
    %v2651 = vmax.f32 %v2322, 0.0
    %v2652 = vmax.f32 %v2484, 0.0
    %v2653 = vmax.f32 %v2486, 0.0
    %v2654 = vmax.f32 %v2645, 0.0
    %v2655 = vpack.c.bf16 %v2650, %v2650
    %v2656 = vpack.c.bf16 %v2651, %v2651
    %v2657 = vpack.c.bf16 %v2652, %v2652
    %v2658 = vpack.c.bf16 %v2653, %v2653
    %v2659 = vpack.c.bf16 %v2654, %v2654
    %v2660 = vld [vmem:[%s3] sm:$0xff]
    %v2661 = vld [vmem:[%s3 + $0x8] sm:$0xff]
    %v2662 = vld [vmem:[%s3 + $0x10] sm:$0xff]
    %v2663 = vld [vmem:[%s3 + $0x18] sm:$0xff]
    %v2664 = vld [vmem:[%s3 + $0x20] sm:$0xff]
    %v2665 = vld [vmem:[%s3 + $0x28] sm:$0xff]
    %v2666 = vld [vmem:[%s3 + $0x30] sm:$0xff]
    %v2667 = vld [vmem:[%s3 + $0x38] sm:$0xff]
    %v2668 = vld [vmem:[%s3 + $0x40] sm:$0xff]
    %v2669 = vld [vmem:[%s3 + $0x48] sm:$0xff]
    %v2670 = vld [vmem:[%s3 + $0x50] sm:$0xff]
    %v2671 = vld [vmem:[%s3 + $0x58] sm:$0xff]
    %v2672 = vld [vmem:[%s3 + $0x60] sm:$0xff]
    %v2673 = vld [vmem:[%s3 + $0x68] sm:$0xff]
    %v2674 = vld [vmem:[%s3 + $0x70] sm:$0xff]
    %v2675 = vld [vmem:[%s3 + $0x78] sm:$0xff]
    %v2676 = vld [vmem:[%s3 + $0x80] sm:$0xff]
    %v2677 = vld [vmem:[%s3 + $0x88] sm:$0xff]
    %v2678 = vld [vmem:[%s3 + $0x90] sm:$0xff]
    %v2679 = vld [vmem:[%s3 + $0x98] sm:$0xff]
    %v2680 = vld [vmem:[%s3 + $0xa0] sm:$0xff]
    %v2681 = vld [vmem:[%s3 + $0xa8] sm:$0xff]
    %v2682 = vld [vmem:[%s3 + $0xb0] sm:$0xff]
    %v2683 = vld [vmem:[%s3 + $0xb8] sm:$0xff]
    %v2684 = vld [vmem:[%s3 + $0xc0] sm:$0xff]
    %v2685 = vld [vmem:[%s3 + $0xc8] sm:$0xff]
    %v2686 = vld [vmem:[%s3 + $0xd0] sm:$0xff]
    %v2687 = vld [vmem:[%s3 + $0xd8] sm:$0xff]
    %v2688 = vld [vmem:[%s3 + $0xe0] sm:$0xff]
    %v2689 = vld [vmem:[%s3 + $0xe8] sm:$0xff]
    %v2690 = vld [vmem:[%s3 + $0xf0] sm:$0xff]
    %v2691 = vld [vmem:[%s3 + $0xf8] sm:$0xff]
    %v2692 = vld [vmem:[%s3 + $0x100] sm:$0xff]
    %v2693 = vld [vmem:[%s3 + $0x108] sm:$0xff]
    %v2694 = vld [vmem:[%s3 + $0x110] sm:$0xff]
    %v2695 = vld [vmem:[%s3 + $0x118] sm:$0xff]
    %v2696 = vld [vmem:[%s3 + $0x120] sm:$0xff]
    %v2697 = vld [vmem:[%s3 + $0x128] sm:$0xff]
    %v2698 = vld [vmem:[%s3 + $0x130] sm:$0xff]
    %v2699 = vld [vmem:[%s3 + $0x138] sm:$0xff]
    %v2700 = vld [vmem:[%s3 + $0x140] sm:$0xff]
    %v2701 = vld [vmem:[%s3 + $0x148] sm:$0xff]
    %v2702 = vld [vmem:[%s3 + $0x150] sm:$0xff]
    %v2703 = vld [vmem:[%s3 + $0x158] sm:$0xff]
    %v2704 = vld [vmem:[%s3 + $0x160] sm:$0xff]
    %v2705 = vld [vmem:[%s3 + $0x168] sm:$0xff]
    %v2706 = vld [vmem:[%s3 + $0x170] sm:$0xff]
    %v2707 = vld [vmem:[%s3 + $0x178] sm:$0xff]
    %v2708 = vld [vmem:[%s3 + $0x180] sm:$0xff]
    %v2709 = vld [vmem:[%s3 + $0x188] sm:$0xff]
    %v2710 = vld [vmem:[%s3 + $0x190] sm:$0xff]
    %v2711 = vld [vmem:[%s3 + $0x198] sm:$0xff]
    %v2712 = vld [vmem:[%s3 + $0x1a0] sm:$0xff]
    %v2713 = vld [vmem:[%s3 + $0x1a8] sm:$0xff]
    %v2714 = vld [vmem:[%s3 + $0x1b0] sm:$0xff]
    %v2715 = vld [vmem:[%s3 + $0x1b8] sm:$0xff]
    %v2716 = vld [vmem:[%s3 + $0x1c0] sm:$0xff]
    %v2717 = vld [vmem:[%s3 + $0x1c8] sm:$0xff]
    %v2718 = vld [vmem:[%s3 + $0x1d0] sm:$0xff]
    %v2719 = vld [vmem:[%s3 + $0x1d8] sm:$0xff]
    %v2720 = vld [vmem:[%s3 + $0x1e0] sm:$0xff]
    %v2721 = vld [vmem:[%s3 + $0x1e8] sm:$0xff]
    %v2722 = vld [vmem:[%s3 + $0x1f0] sm:$0xff]
    %v2723 = vld [vmem:[%s3 + $0x1f8] sm:$0xff]
    %v2724 = vld [vmem:[%s3 + $0x200] sm:$0xff]
    %v2725 = vld [vmem:[%s3 + $0x208] sm:$0xff]
    %v2726 = vld [vmem:[%s3 + $0x210] sm:$0xff]
    %v2727 = vld [vmem:[%s3 + $0x218] sm:$0xff]
    %v2728 = vld [vmem:[%s3 + $0x220] sm:$0xff]
    %v2729 = vld [vmem:[%s3 + $0x228] sm:$0xff]
    %v2730 = vld [vmem:[%s3 + $0x230] sm:$0xff]
    %v2731 = vld [vmem:[%s3 + $0x238] sm:$0xff]
    %v2732 = vld [vmem:[%s3 + $0x240] sm:$0xff]
    %v2733 = vld [vmem:[%s3 + $0x248] sm:$0xff]
    %v2734 = vld [vmem:[%s3 + $0x250] sm:$0xff]
    %v2735 = vld [vmem:[%s3 + $0x258] sm:$0xff]
    %v2736 = vld [vmem:[%s3 + $0x260] sm:$0xff]
    %v2737 = vld [vmem:[%s3 + $0x268] sm:$0xff]
    %v2738 = vld [vmem:[%s3 + $0x270] sm:$0xff]
    %v2739 = vld [vmem:[%s3 + $0x278] sm:$0xff]
    %v2740 = vld [vmem:[%s4] sm:$0x3]
    %v2742 = vlaneseq
    %v2743 = vshrl.u32 %v2742, 7
    %v2744 = vsub.s32 0, %v2743
    %v2745 = vrot.slane %v2740, %v2744
    %v2746 = vlaneseq
    %v2747 = vshrl.u32 %v2746, 7
    %v2748 = vsub.s32 1, %v2747
    %v2749 = vrot.slane %v2740, %v2748
    %v2832 = vunpack.c.l.b16 %v2660
    %v2833 = vunpack.c.h.b16 %v2660
    %v2834 = vunpack.c.l.b16 %v2661
    %v2835 = vunpack.c.h.b16 %v2661
    %v2836 = vunpack.c.l.b16 %v2662
    %v2837 = vunpack.c.h.b16 %v2662
    %v2838 = vunpack.c.l.b16 %v2663
    %v2839 = vunpack.c.h.b16 %v2663
    %v2840 = vunpack.c.l.b16 %v2664
    %v2841 = vunpack.c.h.b16 %v2664
    %v2842 = vunpack.c.l.b16 %v2665
    %v2843 = vunpack.c.h.b16 %v2665
    %v2844 = vunpack.c.l.b16 %v2666
    %v2845 = vunpack.c.h.b16 %v2666
    %v2846 = vunpack.c.l.b16 %v2667
    %v2847 = vunpack.c.h.b16 %v2667
    %v2848 = vunpack.c.l.b16 %v2668
    %v2849 = vunpack.c.h.b16 %v2668
    %v2850 = vunpack.c.l.b16 %v2669
    %v2851 = vunpack.c.h.b16 %v2669
    %v2852 = vunpack.c.l.b16 %v2670
    %v2853 = vunpack.c.h.b16 %v2670
    %v2854 = vunpack.c.l.b16 %v2671
    %v2855 = vunpack.c.h.b16 %v2671
    %v2856 = vunpack.c.l.b16 %v2672
    %v2857 = vunpack.c.h.b16 %v2672
    %v2858 = vunpack.c.l.b16 %v2673
    %v2859 = vunpack.c.h.b16 %v2673
    %v2860 = vunpack.c.l.b16 %v2674
    %v2861 = vunpack.c.h.b16 %v2674
    %v2862 = vunpack.c.l.b16 %v2675
    %v2863 = vunpack.c.h.b16 %v2675
    %v2864 = vunpack.c.l.b16 %v2676
    %v2865 = vunpack.c.h.b16 %v2676
    %v2866 = vunpack.c.l.b16 %v2677
    %v2867 = vunpack.c.h.b16 %v2677
    %v2868 = vunpack.c.l.b16 %v2678
    %v2869 = vunpack.c.h.b16 %v2678
    %v2870 = vunpack.c.l.b16 %v2679
    %v2871 = vunpack.c.h.b16 %v2679
    %v2872 = vunpack.c.l.b16 %v2680
    %v2873 = vunpack.c.h.b16 %v2680
    %v2874 = vunpack.c.l.b16 %v2681
    %v2875 = vunpack.c.h.b16 %v2681
    %v2876 = vunpack.c.l.b16 %v2682
    %v2877 = vunpack.c.h.b16 %v2682
    %v2878 = vunpack.c.l.b16 %v2683
    %v2879 = vunpack.c.h.b16 %v2683
    %v2880 = vunpack.c.l.b16 %v2684
    %v2881 = vunpack.c.h.b16 %v2684
    %v2882 = vunpack.c.l.b16 %v2685
    %v2883 = vunpack.c.h.b16 %v2685
    %v2884 = vunpack.c.l.b16 %v2686
    %v2885 = vunpack.c.h.b16 %v2686
    %v2886 = vunpack.c.l.b16 %v2687
    %v2887 = vunpack.c.h.b16 %v2687
    %v2888 = vunpack.c.l.b16 %v2688
    %v2889 = vunpack.c.h.b16 %v2688
    %v2890 = vunpack.c.l.b16 %v2689
    %v2891 = vunpack.c.h.b16 %v2689
    %v2892 = vunpack.c.l.b16 %v2690
    %v2893 = vunpack.c.h.b16 %v2690
    %v2894 = vunpack.c.l.b16 %v2691
    %v2895 = vunpack.c.h.b16 %v2691
    %v2896 = vunpack.c.l.b16 %v2692
    %v2897 = vunpack.c.h.b16 %v2692
    %v2898 = vunpack.c.l.b16 %v2693
    %v2899 = vunpack.c.h.b16 %v2693
    %v2900 = vunpack.c.l.b16 %v2694
    %v2901 = vunpack.c.h.b16 %v2694
    %v2902 = vunpack.c.l.b16 %v2695
    %v2903 = vunpack.c.h.b16 %v2695
    %v2904 = vunpack.c.l.b16 %v2696
    %v2905 = vunpack.c.h.b16 %v2696
    %v2906 = vunpack.c.l.b16 %v2697
    %v2907 = vunpack.c.h.b16 %v2697
    %v2908 = vunpack.c.l.b16 %v2698
    %v2909 = vunpack.c.h.b16 %v2698
    %v2910 = vunpack.c.l.b16 %v2699
    %v2911 = vunpack.c.h.b16 %v2699
    %v2912 = vunpack.c.l.b16 %v2700
    %v2913 = vunpack.c.h.b16 %v2700
    %v2914 = vunpack.c.l.b16 %v2701
    %v2915 = vunpack.c.h.b16 %v2701
    %v2916 = vunpack.c.l.b16 %v2702
    %v2917 = vunpack.c.h.b16 %v2702
    %v2918 = vunpack.c.l.b16 %v2703
    %v2919 = vunpack.c.h.b16 %v2703
    %v2920 = vunpack.c.l.b16 %v2704
    %v2921 = vunpack.c.h.b16 %v2704
    %v2922 = vunpack.c.l.b16 %v2705
    %v2923 = vunpack.c.h.b16 %v2705
    %v2924 = vunpack.c.l.b16 %v2706
    %v2925 = vunpack.c.h.b16 %v2706
    %v2926 = vunpack.c.l.b16 %v2707
    %v2927 = vunpack.c.h.b16 %v2707
    %v2928 = vunpack.c.l.b16 %v2708
    %v2929 = vunpack.c.h.b16 %v2708
    %v2930 = vunpack.c.l.b16 %v2709
    %v2931 = vunpack.c.h.b16 %v2709
    %v2932 = vunpack.c.l.b16 %v2710
    %v2933 = vunpack.c.h.b16 %v2710
    %v2934 = vunpack.c.l.b16 %v2711
    %v2935 = vunpack.c.h.b16 %v2711
    %v2936 = vunpack.c.l.b16 %v2712
    %v2937 = vunpack.c.h.b16 %v2712
    %v2938 = vunpack.c.l.b16 %v2713
    %v2939 = vunpack.c.h.b16 %v2713
    %v2940 = vunpack.c.l.b16 %v2714
    %v2941 = vunpack.c.h.b16 %v2714
    %v2942 = vunpack.c.l.b16 %v2715
    %v2943 = vunpack.c.h.b16 %v2715
    %v2944 = vunpack.c.l.b16 %v2716
    %v2945 = vunpack.c.h.b16 %v2716
    %v2946 = vunpack.c.l.b16 %v2717
    %v2947 = vunpack.c.h.b16 %v2717
    %v2948 = vunpack.c.l.b16 %v2718
    %v2949 = vunpack.c.h.b16 %v2718
    %v2950 = vunpack.c.l.b16 %v2719
    %v2951 = vunpack.c.h.b16 %v2719
    %v2952 = vunpack.c.l.b16 %v2720
    %v2953 = vunpack.c.h.b16 %v2720
    %v2954 = vunpack.c.l.b16 %v2721
    %v2955 = vunpack.c.h.b16 %v2721
    %v2956 = vunpack.c.l.b16 %v2722
    %v2957 = vunpack.c.h.b16 %v2722
    %v2958 = vunpack.c.l.b16 %v2723
    %v2959 = vunpack.c.h.b16 %v2723
    %v2960 = vunpack.c.l.b16 %v2724
    %v2961 = vunpack.c.h.b16 %v2724
    %v2962 = vunpack.c.l.b16 %v2725
    %v2963 = vunpack.c.h.b16 %v2725
    %v2964 = vunpack.c.l.b16 %v2726
    %v2965 = vunpack.c.h.b16 %v2726
    %v2966 = vunpack.c.l.b16 %v2727
    %v2967 = vunpack.c.h.b16 %v2727
    %v2968 = vunpack.c.l.b16 %v2728
    %v2969 = vunpack.c.h.b16 %v2728
    %v2970 = vunpack.c.l.b16 %v2729
    %v2971 = vunpack.c.h.b16 %v2729
    %v2972 = vunpack.c.l.b16 %v2730
    %v2973 = vunpack.c.h.b16 %v2730
    %v2974 = vunpack.c.l.b16 %v2731
    %v2975 = vunpack.c.h.b16 %v2731
    %v2976 = vunpack.c.l.b16 %v2732
    %v2977 = vunpack.c.h.b16 %v2732
    %v2978 = vunpack.c.l.b16 %v2733
    %v2979 = vunpack.c.h.b16 %v2733
    %v2980 = vunpack.c.l.b16 %v2734
    %v2981 = vunpack.c.h.b16 %v2734
    %v2982 = vunpack.c.l.b16 %v2735
    %v2983 = vunpack.c.h.b16 %v2735
    %v2984 = vunpack.c.l.b16 %v2736
    %v2985 = vunpack.c.h.b16 %v2736
    %v2986 = vunpack.c.l.b16 %v2737
    %v2987 = vunpack.c.h.b16 %v2737
    %v2988 = vunpack.c.l.b16 %v2738
    %v2989 = vunpack.c.h.b16 %v2738
    %v2990 = vunpack.c.l.b16 %v2739
    %v2991 = vunpack.c.h.b16 %v2739
    %v2992 = vpack.c.b16 %v2834, %v2832
    %v2993 = vpack.c.b16 %v2835, %v2833
    %v2994 = vpack.c.b16 %v2838, %v2836
    %v2995 = vpack.c.b16 %v2839, %v2837
    %v2996 = vpack.c.b16 %v2842, %v2840
    %v2997 = vpack.c.b16 %v2843, %v2841
    %v2998 = vpack.c.b16 %v2846, %v2844
    %v2999 = vpack.c.b16 %v2847, %v2845
    %v3000 = vpack.c.b16 %v2850, %v2848
    %v3001 = vpack.c.b16 %v2851, %v2849
    %v3002 = vpack.c.b16 %v2854, %v2852
    %v3003 = vpack.c.b16 %v2855, %v2853
    %v3004 = vpack.c.b16 %v2858, %v2856
    %v3005 = vpack.c.b16 %v2859, %v2857
    %v3006 = vpack.c.b16 %v2862, %v2860
    %v3007 = vpack.c.b16 %v2863, %v2861
    %v3008 = vpack.c.b16 %v2866, %v2864
    %v3009 = vpack.c.b16 %v2867, %v2865
    %v3010 = vpack.c.b16 %v2870, %v2868
    %v3011 = vpack.c.b16 %v2871, %v2869
    %v3012 = vpack.c.b16 %v2874, %v2872
    %v3013 = vpack.c.b16 %v2875, %v2873
    %v3014 = vpack.c.b16 %v2878, %v2876
    %v3015 = vpack.c.b16 %v2879, %v2877
    %v3016 = vpack.c.b16 %v2882, %v2880
    %v3017 = vpack.c.b16 %v2883, %v2881
    %v3018 = vpack.c.b16 %v2886, %v2884
    %v3019 = vpack.c.b16 %v2887, %v2885
    %v3020 = vpack.c.b16 %v2890, %v2888
    %v3021 = vpack.c.b16 %v2891, %v2889
    %v3022 = vpack.c.b16 %v2894, %v2892
    %v3023 = vpack.c.b16 %v2895, %v2893
    %v3024 = vpack.c.b16 %v2898, %v2896
    %v3025 = vpack.c.b16 %v2899, %v2897
    %v3026 = vpack.c.b16 %v2902, %v2900
    %v3027 = vpack.c.b16 %v2903, %v2901
    %v3028 = vpack.c.b16 %v2906, %v2904
    %v3029 = vpack.c.b16 %v2907, %v2905
    %v3030 = vpack.c.b16 %v2910, %v2908
    %v3031 = vpack.c.b16 %v2911, %v2909
    %v3032 = vpack.c.b16 %v2914, %v2912
    %v3033 = vpack.c.b16 %v2915, %v2913
    %v3034 = vpack.c.b16 %v2918, %v2916
    %v3035 = vpack.c.b16 %v2919, %v2917
    %v3036 = vpack.c.b16 %v2922, %v2920
    %v3037 = vpack.c.b16 %v2923, %v2921
    %v3038 = vpack.c.b16 %v2926, %v2924
    %v3039 = vpack.c.b16 %v2927, %v2925
    %v3040 = vpack.c.b16 %v2930, %v2928
    %v3041 = vpack.c.b16 %v2931, %v2929
    %v3042 = vpack.c.b16 %v2934, %v2932
    %v3043 = vpack.c.b16 %v2935, %v2933
    %v3044 = vpack.c.b16 %v2938, %v2936
    %v3045 = vpack.c.b16 %v2939, %v2937
    %v3046 = vpack.c.b16 %v2942, %v2940
    %v3047 = vpack.c.b16 %v2943, %v2941
    %v3048 = vpack.c.b16 %v2946, %v2944
    %v3049 = vpack.c.b16 %v2947, %v2945
    %v3050 = vpack.c.b16 %v2950, %v2948
    %v3051 = vpack.c.b16 %v2951, %v2949
    %v3052 = vpack.c.b16 %v2954, %v2952
    %v3053 = vpack.c.b16 %v2955, %v2953
    %v3054 = vpack.c.b16 %v2958, %v2956
    %v3055 = vpack.c.b16 %v2959, %v2957
    %v3056 = vpack.c.b16 %v2962, %v2960
    %v3057 = vpack.c.b16 %v2963, %v2961
    %v3058 = vpack.c.b16 %v2966, %v2964
    %v3059 = vpack.c.b16 %v2967, %v2965
    %v3060 = vpack.c.b16 %v2970, %v2968
    %v3061 = vpack.c.b16 %v2971, %v2969
    %v3062 = vpack.c.b16 %v2974, %v2972
    %v3063 = vpack.c.b16 %v2975, %v2973
    %v3064 = vpack.c.b16 %v2978, %v2976
    %v3065 = vpack.c.b16 %v2979, %v2977
    %v3066 = vpack.c.b16 %v2982, %v2980
    %v3067 = vpack.c.b16 %v2983, %v2981
    %v3068 = vpack.c.b16 %v2986, %v2984
    %v3069 = vpack.c.b16 %v2987, %v2985
    %v3070 = vpack.c.b16 %v2990, %v2988
    %v3071 = vpack.c.b16 %v2991, %v2989
    %3152 = vmatprep.subr.bf16.mxu0 %v3007
    %3153 = vmatpush1.bf16.msra.mxu0 %v3006
    %3154 = vmatprep.subr.bf16.mxu0 %v3005
    %3155 = vmatpush1.bf16.msra.mxu0 %v3004
    %3156 = vmatprep.subr.bf16.mxu0 %v3003
    %3157 = vmatpush1.bf16.msra.mxu0 %v3002
    %3158 = vmatprep.subr.bf16.mxu0 %v3001
    %3159 = vmatpush1.bf16.msra.mxu0 %v3000
    %3160 = vmatprep.subr.bf16.mxu0 %v2999
    %3161 = vmatpush1.bf16.msra.mxu0 %v2998
    %3162 = vmatprep.subr.bf16.mxu0 %v2997
    %3163 = vmatpush1.bf16.msra.mxu0 %v2996
    %3164 = vmatprep.subr.bf16.mxu0 %v2995
    %3165 = vmatpush1.bf16.msra.mxu0 %v2994
    %3166 = vmatprep.subr.bf16.mxu0 %v2993
    %3167 = vmatpush1.bf16.msra.mxu0 %v2992
    %3168 = vmatprep.subr.bf16.mxu0 %v3023
    %3169 = vmatpush2.bf16.msra.mxu0 %v3022
    %3170 = vmatprep.subr.bf16.mxu0 %v3021
    %3171 = vmatpush2.bf16.msra.mxu0 %v3020
    %3172 = vmatprep.subr.bf16.mxu0 %v3019
    %3173 = vmatpush2.bf16.msra.mxu0 %v3018
    %3174 = vmatprep.subr.bf16.mxu0 %v3017
    %3175 = vmatpush2.bf16.msra.mxu0 %v3016
    %3176 = vmatprep.subr.bf16.mxu0 %v3015
    %3177 = vmatpush2.bf16.msra.mxu0 %v3014
    %3178 = vmatprep.subr.bf16.mxu0 %v3013
    %3179 = vmatpush2.bf16.msra.mxu0 %v3012
    %3180 = vmatprep.subr.bf16.mxu0 %v3011
    %3181 = vmatpush2.bf16.msra.mxu0 %v3010
    %3182 = vmatprep.subr.bf16.mxu0 %v3009
    %3183 = vmatpush2.bf16.msra.mxu0 %v3008
    %3184 = vmatprep.mubr.bf16.mxu0 %v2656
    %3185 = vmatmul.mubr.bf16.gmra.mxu0 %v2655
    %v3186 = vpop.f32.mrf.mxu0
    %v3187 = vadd.f32 %v2745, %v3186
    %v3188 = vpop.f32.mrf.mxu0
    %v3189 = vadd.f32 %v2749, %v3188
    %v3190 = vpop.f32.mrf.mxu0
    %v3191 = vpop.f32.mrf.mxu0
    %3192 = vdwg.mxu0
    %3193 = vmatprep.subr.bf16.mxu0 %v3039
    %3194 = vmatpush1.bf16.msra.mxu0 %v3038
    %3195 = vmatprep.subr.bf16.mxu0 %v3037
    %3196 = vmatpush1.bf16.msra.mxu0 %v3036
    %3197 = vmatprep.subr.bf16.mxu0 %v3035
    %3198 = vmatpush1.bf16.msra.mxu0 %v3034
    %3199 = vmatprep.subr.bf16.mxu0 %v3033
    %3200 = vmatpush1.bf16.msra.mxu0 %v3032
    %3201 = vmatprep.subr.bf16.mxu0 %v3031
    %3202 = vmatpush1.bf16.msra.mxu0 %v3030
    %3203 = vmatprep.subr.bf16.mxu0 %v3029
    %3204 = vmatpush1.bf16.msra.mxu0 %v3028
    %3205 = vmatprep.subr.bf16.mxu0 %v3027
    %3206 = vmatpush1.bf16.msra.mxu0 %v3026
    %3207 = vmatprep.subr.bf16.mxu0 %v3025
    %3208 = vmatpush1.bf16.msra.mxu0 %v3024
    %3209 = vmatprep.subr.bf16.mxu0 %v3055
    %3210 = vmatpush2.bf16.msra.mxu0 %v3054
    %3211 = vmatprep.subr.bf16.mxu0 %v3053
    %3212 = vmatpush2.bf16.msra.mxu0 %v3052
    %3213 = vmatprep.subr.bf16.mxu0 %v3051
    %3214 = vmatpush2.bf16.msra.mxu0 %v3050
    %3215 = vmatprep.subr.bf16.mxu0 %v3049
    %3216 = vmatpush2.bf16.msra.mxu0 %v3048
    %3217 = vmatprep.subr.bf16.mxu0 %v3047
    %3218 = vmatpush2.bf16.msra.mxu0 %v3046
    %3219 = vmatprep.subr.bf16.mxu0 %v3045
    %3220 = vmatpush2.bf16.msra.mxu0 %v3044
    %3221 = vmatprep.subr.bf16.mxu0 %v3043
    %3222 = vmatpush2.bf16.msra.mxu0 %v3042
    %3223 = vmatprep.subr.bf16.mxu0 %v3041
    %3224 = vmatpush2.bf16.msra.mxu0 %v3040
    %3225 = vmatprep.mubr.bf16.mxu0 %v2658
    %3226 = vmatmul.mubr.bf16.gmra.mxu0 %v2657
    %v3227 = vpop.f32.mrf.mxu0
    %v3228 = vadd.f32 %v3187, %v3227
    %v3229 = vpop.f32.mrf.mxu0
    %v3230 = vadd.f32 %v3189, %v3229
    %v3231 = vpop.f32.mrf.mxu0
    %v3232 = vpop.f32.mrf.mxu0
    %3233 = vdwg.mxu0
    %3234 = vmatprep.subr.bf16.mxu0 %v3071
    %3235 = vmatpush1.bf16.msra.mxu0 %v3070
    %3236 = vmatprep.subr.bf16.mxu0 %v3069
    %3237 = vmatpush1.bf16.msra.mxu0 %v3068
    %3238 = vmatprep.subr.bf16.mxu0 %v3067
    %3239 = vmatpush1.bf16.msra.mxu0 %v3066
    %3240 = vmatprep.subr.bf16.mxu0 %v3065
    %3241 = vmatpush1.bf16.msra.mxu0 %v3064
    %3242 = vmatprep.subr.bf16.mxu0 %v3063
    %3243 = vmatpush1.bf16.msra.mxu0 %v3062
    %3244 = vmatprep.subr.bf16.mxu0 %v3061
    %3245 = vmatpush1.bf16.msra.mxu0 %v3060
    %3246 = vmatprep.subr.bf16.mxu0 %v3059
    %3247 = vmatpush1.bf16.msra.mxu0 %v3058
    %3248 = vmatprep.subr.bf16.mxu0 %v3057
    %3249 = vmatpush1.bf16.msra.mxu0 %v3056
    %3250 = vmatprep.subr.bf16.mxu0 0
    %3251 = vmatpush2.bf16.msra.mxu0 0
    %3252 = vmatprep.subr.bf16.mxu0 0
    %3253 = vmatpush2.bf16.msra.mxu0 0
    %3254 = vmatprep.subr.bf16.mxu0 0
    %3255 = vmatpush2.bf16.msra.mxu0 0
    %3256 = vmatprep.subr.bf16.mxu0 0
    %3257 = vmatpush2.bf16.msra.mxu0 0
    %3258 = vmatprep.subr.bf16.mxu0 0
    %3259 = vmatpush2.bf16.msra.mxu0 0
    %3260 = vmatprep.subr.bf16.mxu0 0
    %3261 = vmatpush2.bf16.msra.mxu0 0
    %3262 = vmatprep.subr.bf16.mxu0 0
    %3263 = vmatpush2.bf16.msra.mxu0 0
    %3264 = vmatprep.subr.bf16.mxu0 0
    %3265 = vmatpush2.bf16.msra.mxu0 0
    %3266 = vmatprep.mubr.bf16.mxu0 0
    %3267 = vmatmul.mubr.bf16.gmra.mxu0 %v2659
    %v3268 = vpop.f32.mrf.mxu0
    %v3269 = vadd.f32 %v3228, %v3268
    %v3270 = vpop.f32.mrf.mxu0
    %v3271 = vadd.f32 %v3230, %v3270
    %v3272 = vpop.f32.mrf.mxu0
    %v3273 = vpop.f32.mrf.mxu0
    %3274 = vdwg.mxu0
    %v3275 = vmax.f32 %v3269, 0.0
    %v3276 = vmax.f32 %v3271, 0.0
    %v3277 = vpack.c.bf16 %v3275, %v3275
    %v3278 = vpack.c.bf16 %v3276, %v3276
    %v3279 = vld [vmem:[%s5] sm:$0xf]
    %v3280 = vld [vmem:[%s5 + $0x4] sm:$0xf]
    %v3281 = vld [vmem:[%s5 + $0x8] sm:$0xf]
    %v3282 = vld [vmem:[%s5 + $0xc] sm:$0xf]
    %v3283 = vld [vmem:[%s5 + $0x10] sm:$0xf]
    %v3284 = vld [vmem:[%s5 + $0x14] sm:$0xf]
    %v3285 = vld [vmem:[%s5 + $0x18] sm:$0xf]
    %v3286 = vld [vmem:[%s5 + $0x1c] sm:$0xf]
    %v3287 = vld [vmem:[%s5 + $0x20] sm:$0xf]
    %v3288 = vld [vmem:[%s5 + $0x24] sm:$0xf]
    %v3289 = vld [vmem:[%s5 + $0x28] sm:$0xf]
    %v3290 = vld [vmem:[%s5 + $0x2c] sm:$0xf]
    %v3291 = vld [vmem:[%s5 + $0x30] sm:$0xf]
    %v3292 = vld [vmem:[%s5 + $0x34] sm:$0xf]
    %v3293 = vld [vmem:[%s5 + $0x38] sm:$0xf]
    %v3294 = vld [vmem:[%s5 + $0x3c] sm:$0xf]
    %v3295 = vld [vmem:[%s5 + $0x40] sm:$0xf]
    %v3296 = vld [vmem:[%s5 + $0x44] sm:$0xf]
    %v3297 = vld [vmem:[%s5 + $0x48] sm:$0xf]
    %v3298 = vld [vmem:[%s5 + $0x4c] sm:$0xf]
    %v3299 = vld [vmem:[%s5 + $0x50] sm:$0xf]
    %v3300 = vld [vmem:[%s5 + $0x54] sm:$0xf]
    %v3301 = vld [vmem:[%s5 + $0x58] sm:$0xf]
    %v3302 = vld [vmem:[%s5 + $0x5c] sm:$0xf]
    %v3303 = vld [vmem:[%s6] sm:$0x1]
    %v3305 = vlaneseq
    %v3306 = vshrl.u32 %v3305, 7
    %v3307 = vsub.s32 0, %v3306
    %v3308 = vrot.slane %v3303, %v3307
    %v3334 = vunpack.c.l.b16 %v3279
    %v3335 = vunpack.c.l.b16 %v3280
    %v3336 = vunpack.c.l.b16 %v3281
    %v3337 = vunpack.c.l.b16 %v3282
    %v3338 = vunpack.c.l.b16 %v3283
    %v3339 = vunpack.c.l.b16 %v3284
    %v3340 = vunpack.c.l.b16 %v3285
    %v3341 = vunpack.c.l.b16 %v3286
    %v3342 = vunpack.c.l.b16 %v3287
    %v3343 = vunpack.c.l.b16 %v3288
    %v3344 = vunpack.c.l.b16 %v3289
    %v3345 = vunpack.c.l.b16 %v3290
    %v3346 = vunpack.c.l.b16 %v3291
    %v3347 = vunpack.c.l.b16 %v3292
    %v3348 = vunpack.c.l.b16 %v3293
    %v3349 = vunpack.c.l.b16 %v3294
    %v3350 = vunpack.c.l.b16 %v3295
    %v3351 = vunpack.c.l.b16 %v3296
    %v3352 = vunpack.c.l.b16 %v3297
    %v3353 = vunpack.c.l.b16 %v3298
    %v3354 = vunpack.c.l.b16 %v3299
    %v3355 = vunpack.c.l.b16 %v3300
    %v3356 = vunpack.c.l.b16 %v3301
    %v3357 = vunpack.c.l.b16 %v3302
    %v3358 = vpack.c.b16 %v3335, %v3334
    %v3359 = vpack.c.b16 %v3337, %v3336
    %v3360 = vpack.c.b16 %v3339, %v3338
    %v3361 = vpack.c.b16 %v3341, %v3340
    %v3362 = vpack.c.b16 %v3343, %v3342
    %v3363 = vpack.c.b16 %v3345, %v3344
    %v3364 = vpack.c.b16 %v3347, %v3346
    %v3365 = vpack.c.b16 %v3349, %v3348
    %v3366 = vpack.c.b16 %v3351, %v3350
    %v3367 = vpack.c.b16 %v3353, %v3352
    %v3368 = vpack.c.b16 %v3355, %v3354
    %v3369 = vpack.c.b16 %v3357, %v3356
    %vm3382 = vcmask 523264
    %v3384 = vsel %vm3382, %v3278, 0
    %3386 = vmatprep.subr.bf16.mxu0 0
    %3387 = vmatpush1.bf16.msra.mxu0 %v3365
    %3388 = vmatprep.subr.bf16.mxu0 0
    %3389 = vmatpush1.bf16.msra.mxu0 %v3364
    %3390 = vmatprep.subr.bf16.mxu0 0
    %3391 = vmatpush1.bf16.msra.mxu0 %v3363
    %3392 = vmatprep.subr.bf16.mxu0 0
    %3393 = vmatpush1.bf16.msra.mxu0 %v3362
    %3394 = vmatprep.subr.bf16.mxu0 0
    %3395 = vmatpush1.bf16.msra.mxu0 %v3361
    %3396 = vmatprep.subr.bf16.mxu0 0
    %3397 = vmatpush1.bf16.msra.mxu0 %v3360
    %3398 = vmatprep.subr.bf16.mxu0 0
    %3399 = vmatpush1.bf16.msra.mxu0 %v3359
    %3400 = vmatprep.subr.bf16.mxu0 0
    %3401 = vmatpush1.bf16.msra.mxu0 %v3358
    %3402 = vmatprep.subr.bf16.mxu0 0
    %3403 = vmatpush2.bf16.msra.mxu0 0
    %3404 = vmatprep.subr.bf16.mxu0 0
    %3405 = vmatpush2.bf16.msra.mxu0 0
    %3406 = vmatprep.subr.bf16.mxu0 0
    %3407 = vmatpush2.bf16.msra.mxu0 0
    %3408 = vmatprep.subr.bf16.mxu0 0
    %3409 = vmatpush2.bf16.msra.mxu0 0
    %3410 = vmatprep.subr.bf16.mxu0 0
    %3411 = vmatpush2.bf16.msra.mxu0 %v3369
    %3412 = vmatprep.subr.bf16.mxu0 0
    %3413 = vmatpush2.bf16.msra.mxu0 %v3368
    %3414 = vmatprep.subr.bf16.mxu0 0
    %3415 = vmatpush2.bf16.msra.mxu0 %v3367
    %3416 = vmatprep.subr.bf16.mxu0 0
    %3417 = vmatpush2.bf16.msra.mxu0 %v3366
    %3418 = vmatprep.mubr.bf16.mxu0 %v3384
    %3419 = vmatmul.mubr.bf16.gmra.mxu0 %v3277
    %v3420 = vpop.f32.mrf.mxu0
    %v3421 = vadd.f32 %v3308, %v3420
    %v3422 = vpop.f32.mrf.mxu0
    %v3423 = vpop.f32.mrf.mxu0
    %v3424 = vpop.f32.mrf.mxu0
    %3425 = vdwg.mxu0
    %vm3426 = vcmask 74752
    %3427 = vst.msk [vmem:[#allocation2] sm:$0x3] %vm3426, %v3421
    // Predicated region
    $region30: #{modified_lenet_forward.9} parent=1 // pred_check
      _
    $region31: #{modified_lenet_forward.9} parent=1 // pred_check_branch
      %3429 = sbr.rel (0) target = $region33
    $region32: #{modified_lenet_forward.9} parent=1 // pred_region
      %s3431 = ssub.s32 32, 32
      %3432 = vsyncadd [#allocation3], %s3431
      %s3434 = sshll.u32 [#allocation2], 4
      %s3435 = int_to_ptr.vmem [resolvable:$true] %s3434
      %3437 = dma.vmem_to_hbm [thread:$0]  %s3435, 32, %s7, [#allocation3]
    $region33: #{modified_lenet_forward.9} parent=1 // pred_fallthru
      _
    // Predicated region
    $region34: #{modified_lenet_forward.9} parent=1 // pred_check
      _
    $region35: #{modified_lenet_forward.9} parent=1 // pred_check_branch
      %3439 = sbr.rel (0) target = $region37
    $region36: #{modified_lenet_forward.9} parent=1 // pred_region
      %3440 = dma.done [#allocation3], 32
    $region37: #{modified_lenet_forward.9} parent=1 // pred_fallthru
      _
    %3441 = vsyncpa [#allocation3], 1

</llo_original>
